<compile_context>
chip_gen: v7x
topology: tpu7x:2x2x1
jax: 0.10.0
libtpu: 0.0.40
codegen_flags: <defaults>
</compile_context>

<pallas_src>
import functools

import jax
import jax.numpy as jnp
from jax.experimental import pallas as pl
from jax.experimental.pallas import tpu as pltpu

OUTPUT_SIZE = 129
LANE = 128


# ----------------------------------------------------------------------------
# Fused kernel: LSTM stack + Linear + softmax(dim=0)
# ----------------------------------------------------------------------------
def _fused_forward_kernel(num_layers, *refs):
    """refs = (x, [wih_l, whh_l, bias_l] * num_layers, fc_w, fc_b, out, seq_scr)

      x      : (B, S, D_in)  f32
      wih_l  : (D_l, 4P)     f32   gate g occupies lanes [g*P, g*P + H)
      whh_l  : (P, 4P)       f32   rows >= H are zero
      bias_l : (1, 4P)       f32   (b_ih + b_hh), gate-padded
      fc_w   : (P, O)        f32   rows >= H are zero
      fc_b   : (1, O)        f32
      out    : (B, S, O)     f32
      seq_scr: (S, P)        f32   VMEM scratch holding one layer-output sequence
    """
    x_ref = refs[0]
    layer_refs = refs[1:1 + 3 * num_layers]
    fcw_ref = refs[1 + 3 * num_layers]
    fcb_ref = refs[2 + 3 * num_layers]
    out_ref = refs[3 + 3 * num_layers]
    seq_scr = refs[4 + 3 * num_layers]

    B, S, _ = x_ref.shape
    P = fcw_ref.shape[0]

    fc_w = fcw_ref[...]
    fc_b = fcb_ref[...]

    logits = []
    for b in range(B):                        # B is tiny & static -> unrolled
        seq_in = x_ref[b]                     # (S, D_in) value
        for l in range(num_layers):
            w_ih = layer_refs[3 * l][...]         # (D_l, 4P)
            w_hh = layer_refs[3 * l + 1][...]     # (P, 4P)
            bias = layer_refs[3 * l + 2][...]     # (1, 4P)

            # Hoisted input projection: all S timesteps in one MXU matmul.
            xproj = jnp.dot(seq_in, w_ih,
                            preferred_element_type=jnp.float32) + bias   # (S, 4P)

            h = jnp.zeros((1, P), jnp.float32)
            c = jnp.zeros((1, P), jnp.float32)
            for t in range(S):                # static, fully unrolled recurrence
                gates = xproj[t:t + 1, :] + jnp.dot(
                    h, w_hh, preferred_element_type=jnp.float32)          # (1, 4P)
                # PyTorch gate order: input, forget, cell(g), output.
                i_g = jax.nn.sigmoid(gates[:, 0 * P:1 * P])
                f_g = jax.nn.sigmoid(gates[:, 1 * P:2 * P])
                g_g = jnp.tanh(gates[:, 2 * P:3 * P])
                o_g = jax.nn.sigmoid(gates[:, 3 * P:4 * P])
                c = f_g * c + i_g * g_g
                h = o_g * jnp.tanh(c)
                seq_scr[t:t + 1, :] = h       # stays in VMEM
            seq_in = seq_scr[...]             # (S, P) -> next layer / FC input

        # TODO(synk): training-mode dropout (PRNG mask) not implemented; nn.Dropout
        # is the identity in eval/inference mode.
        logits.append(jnp.dot(seq_in, fc_w,
                              preferred_element_type=jnp.float32) + fc_b)  # (S, O)

    # nn.Softmax(dim=None) on a 3-D tensor -> softmax over dim 0 (the batch axis).
    m = logits[0]
    for b in range(1, B):
        m = jnp.maximum(m, logits[b])
    exps = [jnp.exp(l - m) for l in logits]
    denom = exps[0]
    for b in range(1, B):
        denom = denom + exps[b]
    inv = 1.0 / denom
    for b in range(B):
        out_ref[b] = (exps[b] * inv).astype(out_ref.dtype)


# ----------------------------------------------------------------------------
# Wrapper: single fused pallas_call (no grid, everything resident in VMEM)
# ----------------------------------------------------------------------------
@functools.partial(jax.jit, static_argnames=("num_layers",))
def model_forward(x, kparams, num_layers):
    """x: (B, S, OUTPUT_SIZE) batch-first, like the PyTorch module."""
    B, S, _ = x.shape
    P = kparams["fc_w"].shape[0]

    inputs = [x.astype(jnp.float32)]
    for l in range(num_layers):
        p = kparams[f"lstm_l{l}"]
        inputs += [p["wih"], p["whh"], p["bias"]]
    inputs += [kparams["fc_w"], kparams["fc_b"]]

    kernel = functools.partial(_fused_forward_kernel, num_layers)
    return pl.pallas_call(
        kernel,
        out_shape=jax.ShapeDtypeStruct((B, S, OUTPUT_SIZE), jnp.float32),
        in_specs=[pl.BlockSpec(memory_space=pltpu.MemorySpace.VMEM)] * len(inputs),
        out_specs=pl.BlockSpec(memory_space=pltpu.MemorySpace.VMEM),
        scratch_shapes=[pltpu.VMEM((S, P), jnp.float32)],
    )(*inputs)


# ----------------------------------------------------------------------------
# Parameters: PyTorch layout + one-time conversion to kernel layout
# ----------------------------------------------------------------------------
def init_params(key, rnn_size, num_layers):
    """PyTorch-layout params: U(-1/sqrt(H), 1/sqrt(H)), shapes as nn.LSTM / nn.Linear."""
    params = {}
    H = rnn_size
    bound = 1.0 / (H ** 0.5)
    for l in range(num_layers):
        d_in = OUTPUT_SIZE if l == 0 else H
        key, k1, k2, k3, k4 = jax.random.split(key, 5)
        params[f"lstm_l{l}"] = {
            "w_ih": jax.random.uniform(k1, (4 * H, d_in), jnp.float32, -bound, bound),
            "w_hh": jax.random.uniform(k2, (4 * H, H), jnp.float32, -bound, bound),
            "b_ih": jax.random.uniform(k3, (4 * H,), jnp.float32, -bound, bound),
            "b_hh": jax.random.uniform(k4, (4 * H,), jnp.float32, -bound, bound),
        }
    key, k1, k2 = jax.random.split(key, 3)
    params["fc_w"] = jax.random.uniform(k1, (OUTPUT_SIZE, H), jnp.float32, -bound, bound)
    params["fc_b"] = jax.random.uniform(k2, (OUTPUT_SIZE,), jnp.float32, -bound, bound)
    return params


def prepare_kernel_params(params, rnn_size, num_layers):
    """One-time layout prep: transpose weights, lane-pad each gate block to P lanes."""
    H = rnn_size
    P = ((H + LANE - 1) // LANE) * LANE

    def pack_gates(w, rows_pad):
        # w: (4H, D) torch layout -> (rows_pad, 4P) with gate g at lanes [g*P, g*P+H).
        d = w.shape[1]
        out = jnp.zeros((rows_pad, 4 * P), jnp.float32)
        for g in range(4):
            out = out.at[:d, g * P:g * P + H].set(jnp.transpose(w[g * H:(g + 1) * H, :]))
        return out

    def pack_bias(bvec):
        out = jnp.zeros((1, 4 * P), jnp.float32)
        for g in range(4):
            out = out.at[0, g * P:g * P + H].set(bvec[g * H:(g + 1) * H])
        return out

    kp = {}
    for l in range(num_layers):
        p = params[f"lstm_l{l}"]
        d_in = p["w_ih"].shape[1]
        rows = d_in if l == 0 else P     # layer-0 input is the raw 129-wide x
        kp[f"lstm_l{l}"] = {
            "wih": pack_gates(p["w_ih"], rows),
            "whh": pack_gates(p["w_hh"], P),
            "bias": pack_bias(p["b_ih"] + p["b_hh"]),
        }
    O = params["fc_w"].shape[0]
    kp["fc_w"] = jnp.zeros((P, O), jnp.float32).at[:H, :].set(jnp.transpose(params["fc_w"]))
    kp["fc_b"] = params["fc_b"].reshape(1, O).astype(jnp.float32)
    return kp


# ----------------------------------------------------------------------------
# Pure-JAX reference (mirrors the PyTorch module in eval mode), for validation
# ----------------------------------------------------------------------------
def reference_forward(x, params, num_layers):
    B, S, _ = x.shape
    seq = jnp.transpose(x, (1, 0, 2))       # time-major (S, B, D)
    for l in range(num_layers):
        p = params[f"lstm_l{l}"]
        H = p["w_hh"].shape[1]

        def step(carry, x_t, p=p, H=H):
            h, c = carry
            g = x_t @ p["w_ih"].T + h @ p["w_hh"].T + p["b_ih"] + p["b_hh"]
            i = jax.nn.sigmoid(g[:, 0 * H:1 * H])
            f = jax.nn.sigmoid(g[:, 1 * H:2 * H])
            gg = jnp.tanh(g[:, 2 * H:3 * H])
            o = jax.nn.sigmoid(g[:, 3 * H:4 * H])
            c = f * c + i * gg
            h = o * jnp.tanh(c)
            return (h, c), h

        init = (jnp.zeros((B, H), jnp.float32), jnp.zeros((B, H), jnp.float32))
        _, seq = jax.lax.scan(step, init, seq)
    h_bsf = jnp.transpose(seq, (1, 0, 2))                     # (B, S, H)
    logits = h_bsf @ params["fc_w"].T + params["fc_b"]        # (B, S, O)
    return jax.nn.softmax(logits, axis=0)                     # dim=0, as nn.Softmax(dim=None) on 3-D


if __name__ == "__main__":
    # Small shapes: batch=2, seq=8, rnn_size=32, num_layers=2, feature=129.
    B, S, RNN_SIZE, NUM_LAYERS = 2, 8, 32, 2

    key = jax.random.PRNGKey(0)
    key, kx = jax.random.split(key)
    x = jax.random.normal(kx, (B, S, OUTPUT_SIZE), jnp.float32)

    params = init_params(key, RNN_SIZE, NUM_LAYERS)
    kparams = prepare_kernel_params(params, RNN_SIZE, NUM_LAYERS)   # one-time, outside hot path

    out = model_forward(x, kparams, NUM_LAYERS)
    jax.block_until_ready(out)

    assert out.shape == (B, S, OUTPUT_SIZE)
    assert bool(jnp.all(jnp.isfinite(out)))
    # softmax over dim=0 => values across the batch axis sum to 1
    assert jnp.allclose(jnp.sum(out, axis=0), 1.0, atol=1e-4)

    ref = reference_forward(x, params, NUM_LAYERS)
    max_err = float(jnp.max(jnp.abs(out - ref)))
    assert max_err < 2e-2, f"mismatch vs pure-JAX reference: {max_err}"

    print("KERNEL_OK")
</pallas_src>

<mosaic_0001>
module attributes {stable_mosaic.version = 11 : i64} {
  func.func @_fused_forward_kernel(%arg0: memref<2x8x129xf32, #tpu.memory_space<vmem>>, %arg1: memref<129x512xf32, #tpu.memory_space<vmem>>, %arg2: memref<128x512xf32, #tpu.memory_space<vmem>>, %arg3: memref<1x512xf32, #tpu.memory_space<vmem>>, %arg4: memref<128x512xf32, #tpu.memory_space<vmem>>, %arg5: memref<128x512xf32, #tpu.memory_space<vmem>>, %arg6: memref<1x512xf32, #tpu.memory_space<vmem>>, %arg7: memref<128x129xf32, #tpu.memory_space<vmem>>, %arg8: memref<1x129xf32, #tpu.memory_space<vmem>>, %arg9: memref<2x8x129xf32, #tpu.memory_space<vmem>>, %arg10: memref<8x128xf32, #tpu.memory_space<vmem>>) attributes {dimension_semantics = [], scalar_prefetch = 0 : i64, scratch_operands = 1 : i64, tpu.core_type = #tpu.core_type<tc>} {
    %c0 = arith.constant 0 : index
    %c0_0 = arith.constant 0 : index
    %0 = vector.load %arg7[%c0, %c0_0] : memref<128x129xf32, #tpu.memory_space<vmem>>, vector<128x129xf32>
    %c0_1 = arith.constant 0 : index
    %c0_2 = arith.constant 0 : index
    %1 = vector.load %arg8[%c0_1, %c0_2] : memref<1x129xf32, #tpu.memory_space<vmem>>, vector<1x129xf32>
    %c0_3 = arith.constant 0 : index
    %c0_4 = arith.constant 0 : index
    %c0_5 = arith.constant 0 : index
    %2 = vector.load %arg0[%c0_3, %c0_4, %c0_5] : memref<2x8x129xf32, #tpu.memory_space<vmem>>, vector<1x8x129xf32>
    %3 = vector.shape_cast %2 : vector<1x8x129xf32> to vector<8x129xf32>
    %c0_6 = arith.constant 0 : index
    %c0_7 = arith.constant 0 : index
    %4 = vector.load %arg1[%c0_6, %c0_7] : memref<129x512xf32, #tpu.memory_space<vmem>>, vector<129x512xf32>
    %c0_8 = arith.constant 0 : index
    %c0_9 = arith.constant 0 : index
    %5 = vector.load %arg2[%c0_8, %c0_9] : memref<128x512xf32, #tpu.memory_space<vmem>>, vector<128x512xf32>
    %c0_10 = arith.constant 0 : index
    %c0_11 = arith.constant 0 : index
    %6 = vector.load %arg3[%c0_10, %c0_11] : memref<1x512xf32, #tpu.memory_space<vmem>>, vector<1x512xf32>
    %cst = arith.constant dense<0.000000e+00> : vector<8x512xf32>
    %7 = tpu.matmul %3, %4, %cst {dimension_numbers = #tpu.dot_dimension_numbers<[1], [0], [0], [1], [0, 0, 1, 1], [], []>} : vector<8x129xf32>, vector<129x512xf32>, vector<8x512xf32> -> vector<8x512xf32>
    %8 = vector.broadcast %6 : vector<1x512xf32> to vector<8x512xf32>
    %9 = arith.addf %7, %8 : vector<8x512xf32>
    %cst_12 = arith.constant 0.000000e+00 : f32
    %10 = vector.broadcast %cst_12 : f32 to vector<1x128xf32>
    %cst_13 = arith.constant 0.000000e+00 : f32
    %11 = vector.broadcast %cst_13 : f32 to vector<1x128xf32>
    %12 = vector.extract_strided_slice %9 {offsets = [0, 0], sizes = [1, 512], strides = [1, 1]} : vector<8x512xf32> to vector<1x512xf32>
    %cst_14 = arith.constant dense<0.000000e+00> : vector<1x512xf32>
    %13 = tpu.matmul %10, %5, %cst_14 {dimension_numbers = #tpu.dot_dimension_numbers<[1], [0], [0], [1], [0, 0, 1, 1], [], []>} : vector<1x128xf32>, vector<128x512xf32>, vector<1x512xf32> -> vector<1x512xf32>
    %14 = arith.addf %12, %13 : vector<1x512xf32>
    %15 = vector.extract_strided_slice %14 {offsets = [0, 0], sizes = [1, 128], strides = [1, 1]} : vector<1x512xf32> to vector<1x128xf32>
    %16 = arith.negf %15 : vector<1x128xf32>
    %17 = math.exp %16 : vector<1x128xf32>
    %cst_15 = arith.constant 1.000000e+00 : f32
    %18 = vector.broadcast %cst_15 : f32 to vector<1x128xf32>
    %19 = arith.addf %18, %17 : vector<1x128xf32>
    %20 = arith.divf %18, %19 : vector<1x128xf32>
    %21 = vector.extract_strided_slice %14 {offsets = [0, 128], sizes = [1, 128], strides = [1, 1]} : vector<1x512xf32> to vector<1x128xf32>
    %22 = arith.negf %21 : vector<1x128xf32>
    %23 = math.exp %22 : vector<1x128xf32>
    %cst_16 = arith.constant 1.000000e+00 : f32
    %24 = vector.broadcast %cst_16 : f32 to vector<1x128xf32>
    %25 = arith.addf %24, %23 : vector<1x128xf32>
    %26 = arith.divf %24, %25 : vector<1x128xf32>
    %27 = vector.extract_strided_slice %14 {offsets = [0, 256], sizes = [1, 128], strides = [1, 1]} : vector<1x512xf32> to vector<1x128xf32>
    %28 = math.tanh %27 : vector<1x128xf32>
    %29 = vector.extract_strided_slice %14 {offsets = [0, 384], sizes = [1, 128], strides = [1, 1]} : vector<1x512xf32> to vector<1x128xf32>
    %30 = arith.negf %29 : vector<1x128xf32>
    %31 = math.exp %30 : vector<1x128xf32>
    %cst_17 = arith.constant 1.000000e+00 : f32
    %32 = vector.broadcast %cst_17 : f32 to vector<1x128xf32>
    %33 = arith.addf %32, %31 : vector<1x128xf32>
    %34 = arith.divf %32, %33 : vector<1x128xf32>
    %35 = arith.mulf %26, %11 : vector<1x128xf32>
    %36 = arith.mulf %20, %28 : vector<1x128xf32>
    %37 = arith.addf %35, %36 : vector<1x128xf32>
    %38 = math.tanh %37 : vector<1x128xf32>
    %39 = arith.mulf %34, %38 : vector<1x128xf32>
    %c0_18 = arith.constant 0 : index
    %c0_19 = arith.constant 0 : index
    %40 = vector.load %arg10[%c0_18, %c0_19] : memref<8x128xf32, #tpu.memory_space<vmem>>, vector<1x128xf32>
    tpu.vector_store %arg10[%c0_18, %c0_19], %39 {strides = array<i32>} : memref<8x128xf32, #tpu.memory_space<vmem>>, vector<1x128xf32>,
    %41 = vector.extract_strided_slice %9 {offsets = [1, 0], sizes = [1, 512], strides = [1, 1]} : vector<8x512xf32> to vector<1x512xf32>
    %cst_20 = arith.constant dense<0.000000e+00> : vector<1x512xf32>
    %42 = tpu.matmul %39, %5, %cst_20 {dimension_numbers = #tpu.dot_dimension_numbers<[1], [0], [0], [1], [0, 0, 1, 1], [], []>} : vector<1x128xf32>, vector<128x512xf32>, vector<1x512xf32> -> vector<1x512xf32>
    %43 = arith.addf %41, %42 : vector<1x512xf32>
    %44 = vector.extract_strided_slice %43 {offsets = [0, 0], sizes = [1, 128], strides = [1, 1]} : vector<1x512xf32> to vector<1x128xf32>
    %45 = arith.negf %44 : vector<1x128xf32>
    %46 = math.exp %45 : vector<1x128xf32>
    %cst_21 = arith.constant 1.000000e+00 : f32
    %47 = vector.broadcast %cst_21 : f32 to vector<1x128xf32>
    %48 = arith.addf %47, %46 : vector<1x128xf32>
    %49 = arith.divf %47, %48 : vector<1x128xf32>
    %50 = vector.extract_strided_slice %43 {offsets = [0, 128], sizes = [1, 128], strides = [1, 1]} : vector<1x512xf32> to vector<1x128xf32>
    %51 = arith.negf %50 : vector<1x128xf32>
    %52 = math.exp %51 : vector<1x128xf32>
    %cst_22 = arith.constant 1.000000e+00 : f32
    %53 = vector.broadcast %cst_22 : f32 to vector<1x128xf32>
    %54 = arith.addf %53, %52 : vector<1x128xf32>
    %55 = arith.divf %53, %54 : vector<1x128xf32>
    %56 = vector.extract_strided_slice %43 {offsets = [0, 256], sizes = [1, 128], strides = [1, 1]} : vector<1x512xf32> to vector<1x128xf32>
    %57 = math.tanh %56 : vector<1x128xf32>
    %58 = vector.extract_strided_slice %43 {offsets = [0, 384], sizes = [1, 128], strides = [1, 1]} : vector<1x512xf32> to vector<1x128xf32>
    %59 = arith.negf %58 : vector<1x128xf32>
    %60 = math.exp %59 : vector<1x128xf32>
    %cst_23 = arith.constant 1.000000e+00 : f32
    %61 = vector.broadcast %cst_23 : f32 to vector<1x128xf32>
    %62 = arith.addf %61, %60 : vector<1x128xf32>
    %63 = arith.divf %61, %62 : vector<1x128xf32>
    %64 = arith.mulf %55, %37 : vector<1x128xf32>
    %65 = arith.mulf %49, %57 : vector<1x128xf32>
    %66 = arith.addf %64, %65 : vector<1x128xf32>
    %67 = math.tanh %66 : vector<1x128xf32>
    %68 = arith.mulf %63, %67 : vector<1x128xf32>
    %c1 = arith.constant 1 : index
    %c0_24 = arith.constant 0 : index
    %69 = vector.load %arg10[%c1, %c0_24] : memref<8x128xf32, #tpu.memory_space<vmem>>, vector<1x128xf32>
    tpu.vector_store %arg10[%c1, %c0_24], %68 {strides = array<i32>} : memref<8x128xf32, #tpu.memory_space<vmem>>, vector<1x128xf32>,
    %70 = vector.extract_strided_slice %9 {offsets = [2, 0], sizes = [1, 512], strides = [1, 1]} : vector<8x512xf32> to vector<1x512xf32>
    %cst_25 = arith.constant dense<0.000000e+00> : vector<1x512xf32>
    %71 = tpu.matmul %68, %5, %cst_25 {dimension_numbers = #tpu.dot_dimension_numbers<[1], [0], [0], [1], [0, 0, 1, 1], [], []>} : vector<1x128xf32>, vector<128x512xf32>, vector<1x512xf32> -> vector<1x512xf32>
    %72 = arith.addf %70, %71 : vector<1x512xf32>
    %73 = vector.extract_strided_slice %72 {offsets = [0, 0], sizes = [1, 128], strides = [1, 1]} : vector<1x512xf32> to vector<1x128xf32>
    %74 = arith.negf %73 : vector<1x128xf32>
    %75 = math.exp %74 : vector<1x128xf32>
    %cst_26 = arith.constant 1.000000e+00 : f32
    %76 = vector.broadcast %cst_26 : f32 to vector<1x128xf32>
    %77 = arith.addf %76, %75 : vector<1x128xf32>
    %78 = arith.divf %76, %77 : vector<1x128xf32>
    %79 = vector.extract_strided_slice %72 {offsets = [0, 128], sizes = [1, 128], strides = [1, 1]} : vector<1x512xf32> to vector<1x128xf32>
    %80 = arith.negf %79 : vector<1x128xf32>
    %81 = math.exp %80 : vector<1x128xf32>
    %cst_27 = arith.constant 1.000000e+00 : f32
    %82 = vector.broadcast %cst_27 : f32 to vector<1x128xf32>
    %83 = arith.addf %82, %81 : vector<1x128xf32>
    %84 = arith.divf %82, %83 : vector<1x128xf32>
    %85 = vector.extract_strided_slice %72 {offsets = [0, 256], sizes = [1, 128], strides = [1, 1]} : vector<1x512xf32> to vector<1x128xf32>
    %86 = math.tanh %85 : vector<1x128xf32>
    %87 = vector.extract_strided_slice %72 {offsets = [0, 384], sizes = [1, 128], strides = [1, 1]} : vector<1x512xf32> to vector<1x128xf32>
    %88 = arith.negf %87 : vector<1x128xf32>
    %89 = math.exp %88 : vector<1x128xf32>
    %cst_28 = arith.constant 1.000000e+00 : f32
    %90 = vector.broadcast %cst_28 : f32 to vector<1x128xf32>
    %91 = arith.addf %90, %89 : vector<1x128xf32>
    %92 = arith.divf %90, %91 : vector<1x128xf32>
    %93 = arith.mulf %84, %66 : vector<1x128xf32>
    %94 = arith.mulf %78, %86 : vector<1x128xf32>
    %95 = arith.addf %93, %94 : vector<1x128xf32>
    %96 = math.tanh %95 : vector<1x128xf32>
    %97 = arith.mulf %92, %96 : vector<1x128xf32>
    %c2 = arith.constant 2 : index
    %c0_29 = arith.constant 0 : index
    %98 = vector.load %arg10[%c2, %c0_29] : memref<8x128xf32, #tpu.memory_space<vmem>>, vector<1x128xf32>
    tpu.vector_store %arg10[%c2, %c0_29], %97 {strides = array<i32>} : memref<8x128xf32, #tpu.memory_space<vmem>>, vector<1x128xf32>,
    %99 = vector.extract_strided_slice %9 {offsets = [3, 0], sizes = [1, 512], strides = [1, 1]} : vector<8x512xf32> to vector<1x512xf32>
    %cst_30 = arith.constant dense<0.000000e+00> : vector<1x512xf32>
    %100 = tpu.matmul %97, %5, %cst_30 {dimension_numbers = #tpu.dot_dimension_numbers<[1], [0], [0], [1], [0, 0, 1, 1], [], []>} : vector<1x128xf32>, vector<128x512xf32>, vector<1x512xf32> -> vector<1x512xf32>
    %101 = arith.addf %99, %100 : vector<1x512xf32>
    %102 = vector.extract_strided_slice %101 {offsets = [0, 0], sizes = [1, 128], strides = [1, 1]} : vector<1x512xf32> to vector<1x128xf32>
    %103 = arith.negf %102 : vector<1x128xf32>
    %104 = math.exp %103 : vector<1x128xf32>
    %cst_31 = arith.constant 1.000000e+00 : f32
    %105 = vector.broadcast %cst_31 : f32 to vector<1x128xf32>
    %106 = arith.addf %105, %104 : vector<1x128xf32>
    %107 = arith.divf %105, %106 : vector<1x128xf32>
    %108 = vector.extract_strided_slice %101 {offsets = [0, 128], sizes = [1, 128], strides = [1, 1]} : vector<1x512xf32> to vector<1x128xf32>
    %109 = arith.negf %108 : vector<1x128xf32>
    %110 = math.exp %109 : vector<1x128xf32>
    %cst_32 = arith.constant 1.000000e+00 : f32
    %111 = vector.broadcast %cst_32 : f32 to vector<1x128xf32>
    %112 = arith.addf %111, %110 : vector<1x128xf32>
    %113 = arith.divf %111, %112 : vector<1x128xf32>
    %114 = vector.extract_strided_slice %101 {offsets = [0, 256], sizes = [1, 128], strides = [1, 1]} : vector<1x512xf32> to vector<1x128xf32>
    %115 = math.tanh %114 : vector<1x128xf32>
    %116 = vector.extract_strided_slice %101 {offsets = [0, 384], sizes = [1, 128], strides = [1, 1]} : vector<1x512xf32> to vector<1x128xf32>
    %117 = arith.negf %116 : vector<1x128xf32>
    %118 = math.exp %117 : vector<1x128xf32>
    %cst_33 = arith.constant 1.000000e+00 : f32
    %119 = vector.broadcast %cst_33 : f32 to vector<1x128xf32>
    %120 = arith.addf %119, %118 : vector<1x128xf32>
    %121 = arith.divf %119, %120 : vector<1x128xf32>
    %122 = arith.mulf %113, %95 : vector<1x128xf32>
    %123 = arith.mulf %107, %115 : vector<1x128xf32>
    %124 = arith.addf %122, %123 : vector<1x128xf32>
    %125 = math.tanh %124 : vector<1x128xf32>
    %126 = arith.mulf %121, %125 : vector<1x128xf32>
    %c3 = arith.constant 3 : index
    %c0_34 = arith.constant 0 : index
    %127 = vector.load %arg10[%c3, %c0_34] : memref<8x128xf32, #tpu.memory_space<vmem>>, vector<1x128xf32>
    tpu.vector_store %arg10[%c3, %c0_34], %126 {strides = array<i32>} : memref<8x128xf32, #tpu.memory_space<vmem>>, vector<1x128xf32>,
    %128 = vector.extract_strided_slice %9 {offsets = [4, 0], sizes = [1, 512], strides = [1, 1]} : vector<8x512xf32> to vector<1x512xf32>
    %cst_35 = arith.constant dense<0.000000e+00> : vector<1x512xf32>
    %129 = tpu.matmul %126, %5, %cst_35 {dimension_numbers = #tpu.dot_dimension_numbers<[1], [0], [0], [1], [0, 0, 1, 1], [], []>} : vector<1x128xf32>, vector<128x512xf32>, vector<1x512xf32> -> vector<1x512xf32>
    %130 = arith.addf %128, %129 : vector<1x512xf32>
    %131 = vector.extract_strided_slice %130 {offsets = [0, 0], sizes = [1, 128], strides = [1, 1]} : vector<1x512xf32> to vector<1x128xf32>
    %132 = arith.negf %131 : vector<1x128xf32>
    %133 = math.exp %132 : vector<1x128xf32>
    %cst_36 = arith.constant 1.000000e+00 : f32
    %134 = vector.broadcast %cst_36 : f32 to vector<1x128xf32>
    %135 = arith.addf %134, %133 : vector<1x128xf32>
    %136 = arith.divf %134, %135 : vector<1x128xf32>
    %137 = vector.extract_strided_slice %130 {offsets = [0, 128], sizes = [1, 128], strides = [1, 1]} : vector<1x512xf32> to vector<1x128xf32>
    %138 = arith.negf %137 : vector<1x128xf32>
    %139 = math.exp %138 : vector<1x128xf32>
    %cst_37 = arith.constant 1.000000e+00 : f32
    %140 = vector.broadcast %cst_37 : f32 to vector<1x128xf32>
    %141 = arith.addf %140, %139 : vector<1x128xf32>
    %142 = arith.divf %140, %141 : vector<1x128xf32>
    %143 = vector.extract_strided_slice %130 {offsets = [0, 256], sizes = [1, 128], strides = [1, 1]} : vector<1x512xf32> to vector<1x128xf32>
    %144 = math.tanh %143 : vector<1x128xf32>
    %145 = vector.extract_strided_slice %130 {offsets = [0, 384], sizes = [1, 128], strides = [1, 1]} : vector<1x512xf32> to vector<1x128xf32>
    %146 = arith.negf %145 : vector<1x128xf32>
    %147 = math.exp %146 : vector<1x128xf32>
    %cst_38 = arith.constant 1.000000e+00 : f32
    %148 = vector.broadcast %cst_38 : f32 to vector<1x128xf32>
    %149 = arith.addf %148, %147 : vector<1x128xf32>
    %150 = arith.divf %148, %149 : vector<1x128xf32>
    %151 = arith.mulf %142, %124 : vector<1x128xf32>
    %152 = arith.mulf %136, %144 : vector<1x128xf32>
    %153 = arith.addf %151, %152 : vector<1x128xf32>
    %154 = math.tanh %153 : vector<1x128xf32>
    %155 = arith.mulf %150, %154 : vector<1x128xf32>
    %c4 = arith.constant 4 : index
    %c0_39 = arith.constant 0 : index
    %156 = vector.load %arg10[%c4, %c0_39] : memref<8x128xf32, #tpu.memory_space<vmem>>, vector<1x128xf32>
    tpu.vector_store %arg10[%c4, %c0_39], %155 {strides = array<i32>} : memref<8x128xf32, #tpu.memory_space<vmem>>, vector<1x128xf32>,
    %157 = vector.extract_strided_slice %9 {offsets = [5, 0], sizes = [1, 512], strides = [1, 1]} : vector<8x512xf32> to vector<1x512xf32>
    %cst_40 = arith.constant dense<0.000000e+00> : vector<1x512xf32>
    %158 = tpu.matmul %155, %5, %cst_40 {dimension_numbers = #tpu.dot_dimension_numbers<[1], [0], [0], [1], [0, 0, 1, 1], [], []>} : vector<1x128xf32>, vector<128x512xf32>, vector<1x512xf32> -> vector<1x512xf32>
    %159 = arith.addf %157, %158 : vector<1x512xf32>
    %160 = vector.extract_strided_slice %159 {offsets = [0, 0], sizes = [1, 128], strides = [1, 1]} : vector<1x512xf32> to vector<1x128xf32>
    %161 = arith.negf %160 : vector<1x128xf32>
    %162 = math.exp %161 : vector<1x128xf32>
    %cst_41 = arith.constant 1.000000e+00 : f32
    %163 = vector.broadcast %cst_41 : f32 to vector<1x128xf32>
    %164 = arith.addf %163, %162 : vector<1x128xf32>
    %165 = arith.divf %163, %164 : vector<1x128xf32>
    %166 = vector.extract_strided_slice %159 {offsets = [0, 128], sizes = [1, 128], strides = [1, 1]} : vector<1x512xf32> to vector<1x128xf32>
    %167 = arith.negf %166 : vector<1x128xf32>
    %168 = math.exp %167 : vector<1x128xf32>
    %cst_42 = arith.constant 1.000000e+00 : f32
    %169 = vector.broadcast %cst_42 : f32 to vector<1x128xf32>
    %170 = arith.addf %169, %168 : vector<1x128xf32>
    %171 = arith.divf %169, %170 : vector<1x128xf32>
    %172 = vector.extract_strided_slice %159 {offsets = [0, 256], sizes = [1, 128], strides = [1, 1]} : vector<1x512xf32> to vector<1x128xf32>
    %173 = math.tanh %172 : vector<1x128xf32>
    %174 = vector.extract_strided_slice %159 {offsets = [0, 384], sizes = [1, 128], strides = [1, 1]} : vector<1x512xf32> to vector<1x128xf32>
    %175 = arith.negf %174 : vector<1x128xf32>
    %176 = math.exp %175 : vector<1x128xf32>
    %cst_43 = arith.constant 1.000000e+00 : f32
    %177 = vector.broadcast %cst_43 : f32 to vector<1x128xf32>
    %178 = arith.addf %177, %176 : vector<1x128xf32>
    %179 = arith.divf %177, %178 : vector<1x128xf32>
    %180 = arith.mulf %171, %153 : vector<1x128xf32>
    %181 = arith.mulf %165, %173 : vector<1x128xf32>
    %182 = arith.addf %180, %181 : vector<1x128xf32>
    %183 = math.tanh %182 : vector<1x128xf32>
    %184 = arith.mulf %179, %183 : vector<1x128xf32>
    %c5 = arith.constant 5 : index
    %c0_44 = arith.constant 0 : index
    %185 = vector.load %arg10[%c5, %c0_44] : memref<8x128xf32, #tpu.memory_space<vmem>>, vector<1x128xf32>
    tpu.vector_store %arg10[%c5, %c0_44], %184 {strides = array<i32>} : memref<8x128xf32, #tpu.memory_space<vmem>>, vector<1x128xf32>,
    %186 = vector.extract_strided_slice %9 {offsets = [6, 0], sizes = [1, 512], strides = [1, 1]} : vector<8x512xf32> to vector<1x512xf32>
    %cst_45 = arith.constant dense<0.000000e+00> : vector<1x512xf32>
    %187 = tpu.matmul %184, %5, %cst_45 {dimension_numbers = #tpu.dot_dimension_numbers<[1], [0], [0], [1], [0, 0, 1, 1], [], []>} : vector<1x128xf32>, vector<128x512xf32>, vector<1x512xf32> -> vector<1x512xf32>
    %188 = arith.addf %186, %187 : vector<1x512xf32>
    %189 = vector.extract_strided_slice %188 {offsets = [0, 0], sizes = [1, 128], strides = [1, 1]} : vector<1x512xf32> to vector<1x128xf32>
    %190 = arith.negf %189 : vector<1x128xf32>
    %191 = math.exp %190 : vector<1x128xf32>
    %cst_46 = arith.constant 1.000000e+00 : f32
    %192 = vector.broadcast %cst_46 : f32 to vector<1x128xf32>
    %193 = arith.addf %192, %191 : vector<1x128xf32>
    %194 = arith.divf %192, %193 : vector<1x128xf32>
    %195 = vector.extract_strided_slice %188 {offsets = [0, 128], sizes = [1, 128], strides = [1, 1]} : vector<1x512xf32> to vector<1x128xf32>
    %196 = arith.negf %195 : vector<1x128xf32>
    %197 = math.exp %196 : vector<1x128xf32>
    %cst_47 = arith.constant 1.000000e+00 : f32
    %198 = vector.broadcast %cst_47 : f32 to vector<1x128xf32>
    %199 = arith.addf %198, %197 : vector<1x128xf32>
    %200 = arith.divf %198, %199 : vector<1x128xf32>
    %201 = vector.extract_strided_slice %188 {offsets = [0, 256], sizes = [1, 128], strides = [1, 1]} : vector<1x512xf32> to vector<1x128xf32>
    %202 = math.tanh %201 : vector<1x128xf32>
    %203 = vector.extract_strided_slice %188 {offsets = [0, 384], sizes = [1, 128], strides = [1, 1]} : vector<1x512xf32> to vector<1x128xf32>
    %204 = arith.negf %203 : vector<1x128xf32>
    %205 = math.exp %204 : vector<1x128xf32>
    %cst_48 = arith.constant 1.000000e+00 : f32
    %206 = vector.broadcast %cst_48 : f32 to vector<1x128xf32>
    %207 = arith.addf %206, %205 : vector<1x128xf32>
    %208 = arith.divf %206, %207 : vector<1x128xf32>
    %209 = arith.mulf %200, %182 : vector<1x128xf32>
    %210 = arith.mulf %194, %202 : vector<1x128xf32>
    %211 = arith.addf %209, %210 : vector<1x128xf32>
    %212 = math.tanh %211 : vector<1x128xf32>
    %213 = arith.mulf %208, %212 : vector<1x128xf32>
    %c6 = arith.constant 6 : index
    %c0_49 = arith.constant 0 : index
    %214 = vector.load %arg10[%c6, %c0_49] : memref<8x128xf32, #tpu.memory_space<vmem>>, vector<1x128xf32>
    tpu.vector_store %arg10[%c6, %c0_49], %213 {strides = array<i32>} : memref<8x128xf32, #tpu.memory_space<vmem>>, vector<1x128xf32>,
    %215 = vector.extract_strided_slice %9 {offsets = [7, 0], sizes = [1, 512], strides = [1, 1]} : vector<8x512xf32> to vector<1x512xf32>
    %cst_50 = arith.constant dense<0.000000e+00> : vector<1x512xf32>
    %216 = tpu.matmul %213, %5, %cst_50 {dimension_numbers = #tpu.dot_dimension_numbers<[1], [0], [0], [1], [0, 0, 1, 1], [], []>} : vector<1x128xf32>, vector<128x512xf32>, vector<1x512xf32> -> vector<1x512xf32>
    %217 = arith.addf %215, %216 : vector<1x512xf32>
    %218 = vector.extract_strided_slice %217 {offsets = [0, 0], sizes = [1, 128], strides = [1, 1]} : vector<1x512xf32> to vector<1x128xf32>
    %219 = arith.negf %218 : vector<1x128xf32>
    %220 = math.exp %219 : vector<1x128xf32>
    %cst_51 = arith.constant 1.000000e+00 : f32
    %221 = vector.broadcast %cst_51 : f32 to vector<1x128xf32>
    %222 = arith.addf %221, %220 : vector<1x128xf32>
    %223 = arith.divf %221, %222 : vector<1x128xf32>
    %224 = vector.extract_strided_slice %217 {offsets = [0, 128], sizes = [1, 128], strides = [1, 1]} : vector<1x512xf32> to vector<1x128xf32>
    %225 = arith.negf %224 : vector<1x128xf32>
    %226 = math.exp %225 : vector<1x128xf32>
    %cst_52 = arith.constant 1.000000e+00 : f32
    %227 = vector.broadcast %cst_52 : f32 to vector<1x128xf32>
    %228 = arith.addf %227, %226 : vector<1x128xf32>
    %229 = arith.divf %227, %228 : vector<1x128xf32>
    %230 = vector.extract_strided_slice %217 {offsets = [0, 256], sizes = [1, 128], strides = [1, 1]} : vector<1x512xf32> to vector<1x128xf32>
    %231 = math.tanh %230 : vector<1x128xf32>
    %232 = vector.extract_strided_slice %217 {offsets = [0, 384], sizes = [1, 128], strides = [1, 1]} : vector<1x512xf32> to vector<1x128xf32>
    %233 = arith.negf %232 : vector<1x128xf32>
    %234 = math.exp %233 : vector<1x128xf32>
    %cst_53 = arith.constant 1.000000e+00 : f32
    %235 = vector.broadcast %cst_53 : f32 to vector<1x128xf32>
    %236 = arith.addf %235, %234 : vector<1x128xf32>
    %237 = arith.divf %235, %236 : vector<1x128xf32>
    %238 = arith.mulf %229, %211 : vector<1x128xf32>
    %239 = arith.mulf %223, %231 : vector<1x128xf32>
    %240 = arith.addf %238, %239 : vector<1x128xf32>
    %241 = math.tanh %240 : vector<1x128xf32>
    %242 = arith.mulf %237, %241 : vector<1x128xf32>
    %c7 = arith.constant 7 : index
    %c0_54 = arith.constant 0 : index
    %243 = vector.load %arg10[%c7, %c0_54] : memref<8x128xf32, #tpu.memory_space<vmem>>, vector<1x128xf32>
    tpu.vector_store %arg10[%c7, %c0_54], %242 {strides = array<i32>} : memref<8x128xf32, #tpu.memory_space<vmem>>, vector<1x128xf32>,
    %c0_55 = arith.constant 0 : index
    %c0_56 = arith.constant 0 : index
    %244 = vector.load %arg10[%c0_55, %c0_56] : memref<8x128xf32, #tpu.memory_space<vmem>>, vector<8x128xf32>
    %c0_57 = arith.constant 0 : index
    %c0_58 = arith.constant 0 : index
    %245 = vector.load %arg4[%c0_57, %c0_58] : memref<128x512xf32, #tpu.memory_space<vmem>>, vector<128x512xf32>
    %c0_59 = arith.constant 0 : index
    %c0_60 = arith.constant 0 : index
    %246 = vector.load %arg5[%c0_59, %c0_60] : memref<128x512xf32, #tpu.memory_space<vmem>>, vector<128x512xf32>
    %c0_61 = arith.constant 0 : index
    %c0_62 = arith.constant 0 : index
    %247 = vector.load %arg6[%c0_61, %c0_62] : memref<1x512xf32, #tpu.memory_space<vmem>>, vector<1x512xf32>
    %cst_63 = arith.constant dense<0.000000e+00> : vector<8x512xf32>
    %248 = tpu.matmul %244, %245, %cst_63 {dimension_numbers = #tpu.dot_dimension_numbers<[1], [0], [0], [1], [0, 0, 1, 1], [], []>} : vector<8x128xf32>, vector<128x512xf32>, vector<8x512xf32> -> vector<8x512xf32>
    %249 = vector.broadcast %247 : vector<1x512xf32> to vector<8x512xf32>
    %250 = arith.addf %248, %249 : vector<8x512xf32>
    %cst_64 = arith.constant 0.000000e+00 : f32
    %251 = vector.broadcast %cst_64 : f32 to vector<1x128xf32>
    %cst_65 = arith.constant 0.000000e+00 : f32
    %252 = vector.broadcast %cst_65 : f32 to vector<1x128xf32>
    %253 = vector.extract_strided_slice %250 {offsets = [0, 0], sizes = [1, 512], strides = [1, 1]} : vector<8x512xf32> to vector<1x512xf32>
    %cst_66 = arith.constant dense<0.000000e+00> : vector<1x512xf32>
    %254 = tpu.matmul %251, %246, %cst_66 {dimension_numbers = #tpu.dot_dimension_numbers<[1], [0], [0], [1], [0, 0, 1, 1], [], []>} : vector<1x128xf32>, vector<128x512xf32>, vector<1x512xf32> -> vector<1x512xf32>
    %255 = arith.addf %253, %254 : vector<1x512xf32>
    %256 = vector.extract_strided_slice %255 {offsets = [0, 0], sizes = [1, 128], strides = [1, 1]} : vector<1x512xf32> to vector<1x128xf32>
    %257 = arith.negf %256 : vector<1x128xf32>
    %258 = math.exp %257 : vector<1x128xf32>
    %cst_67 = arith.constant 1.000000e+00 : f32
    %259 = vector.broadcast %cst_67 : f32 to vector<1x128xf32>
    %260 = arith.addf %259, %258 : vector<1x128xf32>
    %261 = arith.divf %259, %260 : vector<1x128xf32>
    %262 = vector.extract_strided_slice %255 {offsets = [0, 128], sizes = [1, 128], strides = [1, 1]} : vector<1x512xf32> to vector<1x128xf32>
    %263 = arith.negf %262 : vector<1x128xf32>
    %264 = math.exp %263 : vector<1x128xf32>
    %cst_68 = arith.constant 1.000000e+00 : f32
    %265 = vector.broadcast %cst_68 : f32 to vector<1x128xf32>
    %266 = arith.addf %265, %264 : vector<1x128xf32>
    %267 = arith.divf %265, %266 : vector<1x128xf32>
    %268 = vector.extract_strided_slice %255 {offsets = [0, 256], sizes = [1, 128], strides = [1, 1]} : vector<1x512xf32> to vector<1x128xf32>
    %269 = math.tanh %268 : vector<1x128xf32>
    %270 = vector.extract_strided_slice %255 {offsets = [0, 384], sizes = [1, 128], strides = [1, 1]} : vector<1x512xf32> to vector<1x128xf32>
    %271 = arith.negf %270 : vector<1x128xf32>
    %272 = math.exp %271 : vector<1x128xf32>
    %cst_69 = arith.constant 1.000000e+00 : f32
    %273 = vector.broadcast %cst_69 : f32 to vector<1x128xf32>
    %274 = arith.addf %273, %272 : vector<1x128xf32>
    %275 = arith.divf %273, %274 : vector<1x128xf32>
    %276 = arith.mulf %267, %252 : vector<1x128xf32>
    %277 = arith.mulf %261, %269 : vector<1x128xf32>
    %278 = arith.addf %276, %277 : vector<1x128xf32>
    %279 = math.tanh %278 : vector<1x128xf32>
    %280 = arith.mulf %275, %279 : vector<1x128xf32>
    %c0_70 = arith.constant 0 : index
    %c0_71 = arith.constant 0 : index
    %281 = vector.load %arg10[%c0_70, %c0_71] : memref<8x128xf32, #tpu.memory_space<vmem>>, vector<1x128xf32>
    tpu.vector_store %arg10[%c0_70, %c0_71], %280 {strides = array<i32>} : memref<8x128xf32, #tpu.memory_space<vmem>>, vector<1x128xf32>,
    %282 = vector.extract_strided_slice %250 {offsets = [1, 0], sizes = [1, 512], strides = [1, 1]} : vector<8x512xf32> to vector<1x512xf32>
    %cst_72 = arith.constant dense<0.000000e+00> : vector<1x512xf32>
    %283 = tpu.matmul %280, %246, %cst_72 {dimension_numbers = #tpu.dot_dimension_numbers<[1], [0], [0], [1], [0, 0, 1, 1], [], []>} : vector<1x128xf32>, vector<128x512xf32>, vector<1x512xf32> -> vector<1x512xf32>
    %284 = arith.addf %282, %283 : vector<1x512xf32>
    %285 = vector.extract_strided_slice %284 {offsets = [0, 0], sizes = [1, 128], strides = [1, 1]} : vector<1x512xf32> to vector<1x128xf32>
    %286 = arith.negf %285 : vector<1x128xf32>
    %287 = math.exp %286 : vector<1x128xf32>
    %cst_73 = arith.constant 1.000000e+00 : f32
    %288 = vector.broadcast %cst_73 : f32 to vector<1x128xf32>
    %289 = arith.addf %288, %287 : vector<1x128xf32>
    %290 = arith.divf %288, %289 : vector<1x128xf32>
    %291 = vector.extract_strided_slice %284 {offsets = [0, 128], sizes = [1, 128], strides = [1, 1]} : vector<1x512xf32> to vector<1x128xf32>
    %292 = arith.negf %291 : vector<1x128xf32>
    %293 = math.exp %292 : vector<1x128xf32>
    %cst_74 = arith.constant 1.000000e+00 : f32
    %294 = vector.broadcast %cst_74 : f32 to vector<1x128xf32>
    %295 = arith.addf %294, %293 : vector<1x128xf32>
    %296 = arith.divf %294, %295 : vector<1x128xf32>
    %297 = vector.extract_strided_slice %284 {offsets = [0, 256], sizes = [1, 128], strides = [1, 1]} : vector<1x512xf32> to vector<1x128xf32>
    %298 = math.tanh %297 : vector<1x128xf32>
    %299 = vector.extract_strided_slice %284 {offsets = [0, 384], sizes = [1, 128], strides = [1, 1]} : vector<1x512xf32> to vector<1x128xf32>
    %300 = arith.negf %299 : vector<1x128xf32>
    %301 = math.exp %300 : vector<1x128xf32>
    %cst_75 = arith.constant 1.000000e+00 : f32
    %302 = vector.broadcast %cst_75 : f32 to vector<1x128xf32>
    %303 = arith.addf %302, %301 : vector<1x128xf32>
    %304 = arith.divf %302, %303 : vector<1x128xf32>
    %305 = arith.mulf %296, %278 : vector<1x128xf32>
    %306 = arith.mulf %290, %298 : vector<1x128xf32>
    %307 = arith.addf %305, %306 : vector<1x128xf32>
    %308 = math.tanh %307 : vector<1x128xf32>
    %309 = arith.mulf %304, %308 : vector<1x128xf32>
    %c1_76 = arith.constant 1 : index
    %c0_77 = arith.constant 0 : index
    %310 = vector.load %arg10[%c1_76, %c0_77] : memref<8x128xf32, #tpu.memory_space<vmem>>, vector<1x128xf32>
    tpu.vector_store %arg10[%c1_76, %c0_77], %309 {strides = array<i32>} : memref<8x128xf32, #tpu.memory_space<vmem>>, vector<1x128xf32>,
    %311 = vector.extract_strided_slice %250 {offsets = [2, 0], sizes = [1, 512], strides = [1, 1]} : vector<8x512xf32> to vector<1x512xf32>
    %cst_78 = arith.constant dense<0.000000e+00> : vector<1x512xf32>
    %312 = tpu.matmul %309, %246, %cst_78 {dimension_numbers = #tpu.dot_dimension_numbers<[1], [0], [0], [1], [0, 0, 1, 1], [], []>} : vector<1x128xf32>, vector<128x512xf32>, vector<1x512xf32> -> vector<1x512xf32>
    %313 = arith.addf %311, %312 : vector<1x512xf32>
    %314 = vector.extract_strided_slice %313 {offsets = [0, 0], sizes = [1, 128], strides = [1, 1]} : vector<1x512xf32> to vector<1x128xf32>
    %315 = arith.negf %314 : vector<1x128xf32>
    %316 = math.exp %315 : vector<1x128xf32>
    %cst_79 = arith.constant 1.000000e+00 : f32
    %317 = vector.broadcast %cst_79 : f32 to vector<1x128xf32>
    %318 = arith.addf %317, %316 : vector<1x128xf32>
    %319 = arith.divf %317, %318 : vector<1x128xf32>
    %320 = vector.extract_strided_slice %313 {offsets = [0, 128], sizes = [1, 128], strides = [1, 1]} : vector<1x512xf32> to vector<1x128xf32>
    %321 = arith.negf %320 : vector<1x128xf32>
    %322 = math.exp %321 : vector<1x128xf32>
    %cst_80 = arith.constant 1.000000e+00 : f32
    %323 = vector.broadcast %cst_80 : f32 to vector<1x128xf32>
    %324 = arith.addf %323, %322 : vector<1x128xf32>
    %325 = arith.divf %323, %324 : vector<1x128xf32>
    %326 = vector.extract_strided_slice %313 {offsets = [0, 256], sizes = [1, 128], strides = [1, 1]} : vector<1x512xf32> to vector<1x128xf32>
    %327 = math.tanh %326 : vector<1x128xf32>
    %328 = vector.extract_strided_slice %313 {offsets = [0, 384], sizes = [1, 128], strides = [1, 1]} : vector<1x512xf32> to vector<1x128xf32>
    %329 = arith.negf %328 : vector<1x128xf32>
    %330 = math.exp %329 : vector<1x128xf32>
    %cst_81 = arith.constant 1.000000e+00 : f32
    %331 = vector.broadcast %cst_81 : f32 to vector<1x128xf32>
    %332 = arith.addf %331, %330 : vector<1x128xf32>
    %333 = arith.divf %331, %332 : vector<1x128xf32>
    %334 = arith.mulf %325, %307 : vector<1x128xf32>
    %335 = arith.mulf %319, %327 : vector<1x128xf32>
    %336 = arith.addf %334, %335 : vector<1x128xf32>
    %337 = math.tanh %336 : vector<1x128xf32>
    %338 = arith.mulf %333, %337 : vector<1x128xf32>
    %c2_82 = arith.constant 2 : index
    %c0_83 = arith.constant 0 : index
    %339 = vector.load %arg10[%c2_82, %c0_83] : memref<8x128xf32, #tpu.memory_space<vmem>>, vector<1x128xf32>
    tpu.vector_store %arg10[%c2_82, %c0_83], %338 {strides = array<i32>} : memref<8x128xf32, #tpu.memory_space<vmem>>, vector<1x128xf32>,
    %340 = vector.extract_strided_slice %250 {offsets = [3, 0], sizes = [1, 512], strides = [1, 1]} : vector<8x512xf32> to vector<1x512xf32>
    %cst_84 = arith.constant dense<0.000000e+00> : vector<1x512xf32>
    %341 = tpu.matmul %338, %246, %cst_84 {dimension_numbers = #tpu.dot_dimension_numbers<[1], [0], [0], [1], [0, 0, 1, 1], [], []>} : vector<1x128xf32>, vector<128x512xf32>, vector<1x512xf32> -> vector<1x512xf32>
    %342 = arith.addf %340, %341 : vector<1x512xf32>
    %343 = vector.extract_strided_slice %342 {offsets = [0, 0], sizes = [1, 128], strides = [1, 1]} : vector<1x512xf32> to vector<1x128xf32>
    %344 = arith.negf %343 : vector<1x128xf32>
    %345 = math.exp %344 : vector<1x128xf32>
    %cst_85 = arith.constant 1.000000e+00 : f32
    %346 = vector.broadcast %cst_85 : f32 to vector<1x128xf32>
    %347 = arith.addf %346, %345 : vector<1x128xf32>
    %348 = arith.divf %346, %347 : vector<1x128xf32>
    %349 = vector.extract_strided_slice %342 {offsets = [0, 128], sizes = [1, 128], strides = [1, 1]} : vector<1x512xf32> to vector<1x128xf32>
    %350 = arith.negf %349 : vector<1x128xf32>
    %351 = math.exp %350 : vector<1x128xf32>
    %cst_86 = arith.constant 1.000000e+00 : f32
    %352 = vector.broadcast %cst_86 : f32 to vector<1x128xf32>
    %353 = arith.addf %352, %351 : vector<1x128xf32>
    %354 = arith.divf %352, %353 : vector<1x128xf32>
    %355 = vector.extract_strided_slice %342 {offsets = [0, 256], sizes = [1, 128], strides = [1, 1]} : vector<1x512xf32> to vector<1x128xf32>
    %356 = math.tanh %355 : vector<1x128xf32>
    %357 = vector.extract_strided_slice %342 {offsets = [0, 384], sizes = [1, 128], strides = [1, 1]} : vector<1x512xf32> to vector<1x128xf32>
    %358 = arith.negf %357 : vector<1x128xf32>
    %359 = math.exp %358 : vector<1x128xf32>
    %cst_87 = arith.constant 1.000000e+00 : f32
    %360 = vector.broadcast %cst_87 : f32 to vector<1x128xf32>
    %361 = arith.addf %360, %359 : vector<1x128xf32>
    %362 = arith.divf %360, %361 : vector<1x128xf32>
    %363 = arith.mulf %354, %336 : vector<1x128xf32>
    %364 = arith.mulf %348, %356 : vector<1x128xf32>
    %365 = arith.addf %363, %364 : vector<1x128xf32>
    %366 = math.tanh %365 : vector<1x128xf32>
    %367 = arith.mulf %362, %366 : vector<1x128xf32>
    %c3_88 = arith.constant 3 : index
    %c0_89 = arith.constant 0 : index
    %368 = vector.load %arg10[%c3_88, %c0_89] : memref<8x128xf32, #tpu.memory_space<vmem>>, vector<1x128xf32>
    tpu.vector_store %arg10[%c3_88, %c0_89], %367 {strides = array<i32>} : memref<8x128xf32, #tpu.memory_space<vmem>>, vector<1x128xf32>,
    %369 = vector.extract_strided_slice %250 {offsets = [4, 0], sizes = [1, 512], strides = [1, 1]} : vector<8x512xf32> to vector<1x512xf32>
    %cst_90 = arith.constant dense<0.000000e+00> : vector<1x512xf32>
    %370 = tpu.matmul %367, %246, %cst_90 {dimension_numbers = #tpu.dot_dimension_numbers<[1], [0], [0], [1], [0, 0, 1, 1], [], []>} : vector<1x128xf32>, vector<128x512xf32>, vector<1x512xf32> -> vector<1x512xf32>
    %371 = arith.addf %369, %370 : vector<1x512xf32>
    %372 = vector.extract_strided_slice %371 {offsets = [0, 0], sizes = [1, 128], strides = [1, 1]} : vector<1x512xf32> to vector<1x128xf32>
    %373 = arith.negf %372 : vector<1x128xf32>
    %374 = math.exp %373 : vector<1x128xf32>
    %cst_91 = arith.constant 1.000000e+00 : f32
    %375 = vector.broadcast %cst_91 : f32 to vector<1x128xf32>
    %376 = arith.addf %375, %374 : vector<1x128xf32>
    %377 = arith.divf %375, %376 : vector<1x128xf32>
    %378 = vector.extract_strided_slice %371 {offsets = [0, 128], sizes = [1, 128], strides = [1, 1]} : vector<1x512xf32> to vector<1x128xf32>
    %379 = arith.negf %378 : vector<1x128xf32>
    %380 = math.exp %379 : vector<1x128xf32>
    %cst_92 = arith.constant 1.000000e+00 : f32
    %381 = vector.broadcast %cst_92 : f32 to vector<1x128xf32>
    %382 = arith.addf %381, %380 : vector<1x128xf32>
    %383 = arith.divf %381, %382 : vector<1x128xf32>
    %384 = vector.extract_strided_slice %371 {offsets = [0, 256], sizes = [1, 128], strides = [1, 1]} : vector<1x512xf32> to vector<1x128xf32>
    %385 = math.tanh %384 : vector<1x128xf32>
    %386 = vector.extract_strided_slice %371 {offsets = [0, 384], sizes = [1, 128], strides = [1, 1]} : vector<1x512xf32> to vector<1x128xf32>
    %387 = arith.negf %386 : vector<1x128xf32>
    %388 = math.exp %387 : vector<1x128xf32>
    %cst_93 = arith.constant 1.000000e+00 : f32
    %389 = vector.broadcast %cst_93 : f32 to vector<1x128xf32>
    %390 = arith.addf %389, %388 : vector<1x128xf32>
    %391 = arith.divf %389, %390 : vector<1x128xf32>
    %392 = arith.mulf %383, %365 : vector<1x128xf32>
    %393 = arith.mulf %377, %385 : vector<1x128xf32>
    %394 = arith.addf %392, %393 : vector<1x128xf32>
    %395 = math.tanh %394 : vector<1x128xf32>
    %396 = arith.mulf %391, %395 : vector<1x128xf32>
    %c4_94 = arith.constant 4 : index
    %c0_95 = arith.constant 0 : index
    %397 = vector.load %arg10[%c4_94, %c0_95] : memref<8x128xf32, #tpu.memory_space<vmem>>, vector<1x128xf32>
    tpu.vector_store %arg10[%c4_94, %c0_95], %396 {strides = array<i32>} : memref<8x128xf32, #tpu.memory_space<vmem>>, vector<1x128xf32>,
    %398 = vector.extract_strided_slice %250 {offsets = [5, 0], sizes = [1, 512], strides = [1, 1]} : vector<8x512xf32> to vector<1x512xf32>
    %cst_96 = arith.constant dense<0.000000e+00> : vector<1x512xf32>
    %399 = tpu.matmul %396, %246, %cst_96 {dimension_numbers = #tpu.dot_dimension_numbers<[1], [0], [0], [1], [0, 0, 1, 1], [], []>} : vector<1x128xf32>, vector<128x512xf32>, vector<1x512xf32> -> vector<1x512xf32>
    %400 = arith.addf %398, %399 : vector<1x512xf32>
    %401 = vector.extract_strided_slice %400 {offsets = [0, 0], sizes = [1, 128], strides = [1, 1]} : vector<1x512xf32> to vector<1x128xf32>
    %402 = arith.negf %401 : vector<1x128xf32>
    %403 = math.exp %402 : vector<1x128xf32>
    %cst_97 = arith.constant 1.000000e+00 : f32
    %404 = vector.broadcast %cst_97 : f32 to vector<1x128xf32>
    %405 = arith.addf %404, %403 : vector<1x128xf32>
    %406 = arith.divf %404, %405 : vector<1x128xf32>
    %407 = vector.extract_strided_slice %400 {offsets = [0, 128], sizes = [1, 128], strides = [1, 1]} : vector<1x512xf32> to vector<1x128xf32>
    %408 = arith.negf %407 : vector<1x128xf32>
    %409 = math.exp %408 : vector<1x128xf32>
    %cst_98 = arith.constant 1.000000e+00 : f32
    %410 = vector.broadcast %cst_98 : f32 to vector<1x128xf32>
    %411 = arith.addf %410, %409 : vector<1x128xf32>
    %412 = arith.divf %410, %411 : vector<1x128xf32>
    %413 = vector.extract_strided_slice %400 {offsets = [0, 256], sizes = [1, 128], strides = [1, 1]} : vector<1x512xf32> to vector<1x128xf32>
    %414 = math.tanh %413 : vector<1x128xf32>
    %415 = vector.extract_strided_slice %400 {offsets = [0, 384], sizes = [1, 128], strides = [1, 1]} : vector<1x512xf32> to vector<1x128xf32>
    %416 = arith.negf %415 : vector<1x128xf32>
    %417 = math.exp %416 : vector<1x128xf32>
    %cst_99 = arith.constant 1.000000e+00 : f32
    %418 = vector.broadcast %cst_99 : f32 to vector<1x128xf32>
    %419 = arith.addf %418, %417 : vector<1x128xf32>
    %420 = arith.divf %418, %419 : vector<1x128xf32>
    %421 = arith.mulf %412, %394 : vector<1x128xf32>
    %422 = arith.mulf %406, %414 : vector<1x128xf32>
    %423 = arith.addf %421, %422 : vector<1x128xf32>
    %424 = math.tanh %423 : vector<1x128xf32>
    %425 = arith.mulf %420, %424 : vector<1x128xf32>
    %c5_100 = arith.constant 5 : index
    %c0_101 = arith.constant 0 : index
    %426 = vector.load %arg10[%c5_100, %c0_101] : memref<8x128xf32, #tpu.memory_space<vmem>>, vector<1x128xf32>
    tpu.vector_store %arg10[%c5_100, %c0_101], %425 {strides = array<i32>} : memref<8x128xf32, #tpu.memory_space<vmem>>, vector<1x128xf32>,
    %427 = vector.extract_strided_slice %250 {offsets = [6, 0], sizes = [1, 512], strides = [1, 1]} : vector<8x512xf32> to vector<1x512xf32>
    %cst_102 = arith.constant dense<0.000000e+00> : vector<1x512xf32>
    %428 = tpu.matmul %425, %246, %cst_102 {dimension_numbers = #tpu.dot_dimension_numbers<[1], [0], [0], [1], [0, 0, 1, 1], [], []>} : vector<1x128xf32>, vector<128x512xf32>, vector<1x512xf32> -> vector<1x512xf32>
    %429 = arith.addf %427, %428 : vector<1x512xf32>
    %430 = vector.extract_strided_slice %429 {offsets = [0, 0], sizes = [1, 128], strides = [1, 1]} : vector<1x512xf32> to vector<1x128xf32>
    %431 = arith.negf %430 : vector<1x128xf32>
    %432 = math.exp %431 : vector<1x128xf32>
    %cst_103 = arith.constant 1.000000e+00 : f32
    %433 = vector.broadcast %cst_103 : f32 to vector<1x128xf32>
    %434 = arith.addf %433, %432 : vector<1x128xf32>
    %435 = arith.divf %433, %434 : vector<1x128xf32>
    %436 = vector.extract_strided_slice %429 {offsets = [0, 128], sizes = [1, 128], strides = [1, 1]} : vector<1x512xf32> to vector<1x128xf32>
    %437 = arith.negf %436 : vector<1x128xf32>
    %438 = math.exp %437 : vector<1x128xf32>
    %cst_104 = arith.constant 1.000000e+00 : f32
    %439 = vector.broadcast %cst_104 : f32 to vector<1x128xf32>
    %440 = arith.addf %439, %438 : vector<1x128xf32>
    %441 = arith.divf %439, %440 : vector<1x128xf32>
    %442 = vector.extract_strided_slice %429 {offsets = [0, 256], sizes = [1, 128], strides = [1, 1]} : vector<1x512xf32> to vector<1x128xf32>
    %443 = math.tanh %442 : vector<1x128xf32>
    %444 = vector.extract_strided_slice %429 {offsets = [0, 384], sizes = [1, 128], strides = [1, 1]} : vector<1x512xf32> to vector<1x128xf32>
    %445 = arith.negf %444 : vector<1x128xf32>
    %446 = math.exp %445 : vector<1x128xf32>
    %cst_105 = arith.constant 1.000000e+00 : f32
    %447 = vector.broadcast %cst_105 : f32 to vector<1x128xf32>
    %448 = arith.addf %447, %446 : vector<1x128xf32>
    %449 = arith.divf %447, %448 : vector<1x128xf32>
    %450 = arith.mulf %441, %423 : vector<1x128xf32>
    %451 = arith.mulf %435, %443 : vector<1x128xf32>
    %452 = arith.addf %450, %451 : vector<1x128xf32>
    %453 = math.tanh %452 : vector<1x128xf32>
    %454 = arith.mulf %449, %453 : vector<1x128xf32>
    %c6_106 = arith.constant 6 : index
    %c0_107 = arith.constant 0 : index
    %455 = vector.load %arg10[%c6_106, %c0_107] : memref<8x128xf32, #tpu.memory_space<vmem>>, vector<1x128xf32>
    tpu.vector_store %arg10[%c6_106, %c0_107], %454 {strides = array<i32>} : memref<8x128xf32, #tpu.memory_space<vmem>>, vector<1x128xf32>,
    %456 = vector.extract_strided_slice %250 {offsets = [7, 0], sizes = [1, 512], strides = [1, 1]} : vector<8x512xf32> to vector<1x512xf32>
    %cst_108 = arith.constant dense<0.000000e+00> : vector<1x512xf32>
    %457 = tpu.matmul %454, %246, %cst_108 {dimension_numbers = #tpu.dot_dimension_numbers<[1], [0], [0], [1], [0, 0, 1, 1], [], []>} : vector<1x128xf32>, vector<128x512xf32>, vector<1x512xf32> -> vector<1x512xf32>
    %458 = arith.addf %456, %457 : vector<1x512xf32>
    %459 = vector.extract_strided_slice %458 {offsets = [0, 0], sizes = [1, 128], strides = [1, 1]} : vector<1x512xf32> to vector<1x128xf32>
    %460 = arith.negf %459 : vector<1x128xf32>
    %461 = math.exp %460 : vector<1x128xf32>
    %cst_109 = arith.constant 1.000000e+00 : f32
    %462 = vector.broadcast %cst_109 : f32 to vector<1x128xf32>
    %463 = arith.addf %462, %461 : vector<1x128xf32>
    %464 = arith.divf %462, %463 : vector<1x128xf32>
    %465 = vector.extract_strided_slice %458 {offsets = [0, 128], sizes = [1, 128], strides = [1, 1]} : vector<1x512xf32> to vector<1x128xf32>
    %466 = arith.negf %465 : vector<1x128xf32>
    %467 = math.exp %466 : vector<1x128xf32>
    %cst_110 = arith.constant 1.000000e+00 : f32
    %468 = vector.broadcast %cst_110 : f32 to vector<1x128xf32>
    %469 = arith.addf %468, %467 : vector<1x128xf32>
    %470 = arith.divf %468, %469 : vector<1x128xf32>
    %471 = vector.extract_strided_slice %458 {offsets = [0, 256], sizes = [1, 128], strides = [1, 1]} : vector<1x512xf32> to vector<1x128xf32>
    %472 = math.tanh %471 : vector<1x128xf32>
    %473 = vector.extract_strided_slice %458 {offsets = [0, 384], sizes = [1, 128], strides = [1, 1]} : vector<1x512xf32> to vector<1x128xf32>
    %474 = arith.negf %473 : vector<1x128xf32>
    %475 = math.exp %474 : vector<1x128xf32>
    %cst_111 = arith.constant 1.000000e+00 : f32
    %476 = vector.broadcast %cst_111 : f32 to vector<1x128xf32>
    %477 = arith.addf %476, %475 : vector<1x128xf32>
    %478 = arith.divf %476, %477 : vector<1x128xf32>
    %479 = arith.mulf %470, %452 : vector<1x128xf32>
    %480 = arith.mulf %464, %472 : vector<1x128xf32>
    %481 = arith.addf %479, %480 : vector<1x128xf32>
    %482 = math.tanh %481 : vector<1x128xf32>
    %483 = arith.mulf %478, %482 : vector<1x128xf32>
    %c7_112 = arith.constant 7 : index
    %c0_113 = arith.constant 0 : index
    %484 = vector.load %arg10[%c7_112, %c0_113] : memref<8x128xf32, #tpu.memory_space<vmem>>, vector<1x128xf32>
    tpu.vector_store %arg10[%c7_112, %c0_113], %483 {strides = array<i32>} : memref<8x128xf32, #tpu.memory_space<vmem>>, vector<1x128xf32>,
    %c0_114 = arith.constant 0 : index
    %c0_115 = arith.constant 0 : index
    %485 = vector.load %arg10[%c0_114, %c0_115] : memref<8x128xf32, #tpu.memory_space<vmem>>, vector<8x128xf32>
    %cst_116 = arith.constant dense<0.000000e+00> : vector<8x129xf32>
    %486 = tpu.matmul %485, %0, %cst_116 {dimension_numbers = #tpu.dot_dimension_numbers<[1], [0], [0], [1], [0, 0, 1, 1], [], []>} : vector<8x128xf32>, vector<128x129xf32>, vector<8x129xf32> -> vector<8x129xf32>
    %487 = vector.broadcast %1 : vector<1x129xf32> to vector<8x129xf32>
    %488 = arith.addf %486, %487 : vector<8x129xf32>
    %c1_117 = arith.constant 1 : index
    %c0_118 = arith.constant 0 : index
    %c0_119 = arith.constant 0 : index
    %489 = vector.load %arg0[%c1_117, %c0_118, %c0_119] : memref<2x8x129xf32, #tpu.memory_space<vmem>>, vector<1x8x129xf32>
    %490 = vector.shape_cast %489 : vector<1x8x129xf32> to vector<8x129xf32>
    %c0_120 = arith.constant 0 : index
    %c0_121 = arith.constant 0 : index
    %491 = vector.load %arg1[%c0_120, %c0_121] : memref<129x512xf32, #tpu.memory_space<vmem>>, vector<129x512xf32>
    %c0_122 = arith.constant 0 : index
    %c0_123 = arith.constant 0 : index
    %492 = vector.load %arg2[%c0_122, %c0_123] : memref<128x512xf32, #tpu.memory_space<vmem>>, vector<128x512xf32>
    %c0_124 = arith.constant 0 : index
    %c0_125 = arith.constant 0 : index
    %493 = vector.load %arg3[%c0_124, %c0_125] : memref<1x512xf32, #tpu.memory_space<vmem>>, vector<1x512xf32>
    %cst_126 = arith.constant dense<0.000000e+00> : vector<8x512xf32>
    %494 = tpu.matmul %490, %491, %cst_126 {dimension_numbers = #tpu.dot_dimension_numbers<[1], [0], [0], [1], [0, 0, 1, 1], [], []>} : vector<8x129xf32>, vector<129x512xf32>, vector<8x512xf32> -> vector<8x512xf32>
    %495 = vector.broadcast %493 : vector<1x512xf32> to vector<8x512xf32>
    %496 = arith.addf %494, %495 : vector<8x512xf32>
    %cst_127 = arith.constant 0.000000e+00 : f32
    %497 = vector.broadcast %cst_127 : f32 to vector<1x128xf32>
    %cst_128 = arith.constant 0.000000e+00 : f32
    %498 = vector.broadcast %cst_128 : f32 to vector<1x128xf32>
    %499 = vector.extract_strided_slice %496 {offsets = [0, 0], sizes = [1, 512], strides = [1, 1]} : vector<8x512xf32> to vector<1x512xf32>
    %cst_129 = arith.constant dense<0.000000e+00> : vector<1x512xf32>
    %500 = tpu.matmul %497, %492, %cst_129 {dimension_numbers = #tpu.dot_dimension_numbers<[1], [0], [0], [1], [0, 0, 1, 1], [], []>} : vector<1x128xf32>, vector<128x512xf32>, vector<1x512xf32> -> vector<1x512xf32>
    %501 = arith.addf %499, %500 : vector<1x512xf32>
    %502 = vector.extract_strided_slice %501 {offsets = [0, 0], sizes = [1, 128], strides = [1, 1]} : vector<1x512xf32> to vector<1x128xf32>
    %503 = arith.negf %502 : vector<1x128xf32>
    %504 = math.exp %503 : vector<1x128xf32>
    %cst_130 = arith.constant 1.000000e+00 : f32
    %505 = vector.broadcast %cst_130 : f32 to vector<1x128xf32>
    %506 = arith.addf %505, %504 : vector<1x128xf32>
    %507 = arith.divf %505, %506 : vector<1x128xf32>
    %508 = vector.extract_strided_slice %501 {offsets = [0, 128], sizes = [1, 128], strides = [1, 1]} : vector<1x512xf32> to vector<1x128xf32>
    %509 = arith.negf %508 : vector<1x128xf32>
    %510 = math.exp %509 : vector<1x128xf32>
    %cst_131 = arith.constant 1.000000e+00 : f32
    %511 = vector.broadcast %cst_131 : f32 to vector<1x128xf32>
    %512 = arith.addf %511, %510 : vector<1x128xf32>
    %513 = arith.divf %511, %512 : vector<1x128xf32>
    %514 = vector.extract_strided_slice %501 {offsets = [0, 256], sizes = [1, 128], strides = [1, 1]} : vector<1x512xf32> to vector<1x128xf32>
    %515 = math.tanh %514 : vector<1x128xf32>
    %516 = vector.extract_strided_slice %501 {offsets = [0, 384], sizes = [1, 128], strides = [1, 1]} : vector<1x512xf32> to vector<1x128xf32>
    %517 = arith.negf %516 : vector<1x128xf32>
    %518 = math.exp %517 : vector<1x128xf32>
    %cst_132 = arith.constant 1.000000e+00 : f32
    %519 = vector.broadcast %cst_132 : f32 to vector<1x128xf32>
    %520 = arith.addf %519, %518 : vector<1x128xf32>
    %521 = arith.divf %519, %520 : vector<1x128xf32>
    %522 = arith.mulf %513, %498 : vector<1x128xf32>
    %523 = arith.mulf %507, %515 : vector<1x128xf32>
    %524 = arith.addf %522, %523 : vector<1x128xf32>
    %525 = math.tanh %524 : vector<1x128xf32>
    %526 = arith.mulf %521, %525 : vector<1x128xf32>
    %c0_133 = arith.constant 0 : index
    %c0_134 = arith.constant 0 : index
    %527 = vector.load %arg10[%c0_133, %c0_134] : memref<8x128xf32, #tpu.memory_space<vmem>>, vector<1x128xf32>
    tpu.vector_store %arg10[%c0_133, %c0_134], %526 {strides = array<i32>} : memref<8x128xf32, #tpu.memory_space<vmem>>, vector<1x128xf32>,
    %528 = vector.extract_strided_slice %496 {offsets = [1, 0], sizes = [1, 512], strides = [1, 1]} : vector<8x512xf32> to vector<1x512xf32>
    %cst_135 = arith.constant dense<0.000000e+00> : vector<1x512xf32>
    %529 = tpu.matmul %526, %492, %cst_135 {dimension_numbers = #tpu.dot_dimension_numbers<[1], [0], [0], [1], [0, 0, 1, 1], [], []>} : vector<1x128xf32>, vector<128x512xf32>, vector<1x512xf32> -> vector<1x512xf32>
    %530 = arith.addf %528, %529 : vector<1x512xf32>
    %531 = vector.extract_strided_slice %530 {offsets = [0, 0], sizes = [1, 128], strides = [1, 1]} : vector<1x512xf32> to vector<1x128xf32>
    %532 = arith.negf %531 : vector<1x128xf32>
    %533 = math.exp %532 : vector<1x128xf32>
    %cst_136 = arith.constant 1.000000e+00 : f32
    %534 = vector.broadcast %cst_136 : f32 to vector<1x128xf32>
    %535 = arith.addf %534, %533 : vector<1x128xf32>
    %536 = arith.divf %534, %535 : vector<1x128xf32>
    %537 = vector.extract_strided_slice %530 {offsets = [0, 128], sizes = [1, 128], strides = [1, 1]} : vector<1x512xf32> to vector<1x128xf32>
    %538 = arith.negf %537 : vector<1x128xf32>
    %539 = math.exp %538 : vector<1x128xf32>
    %cst_137 = arith.constant 1.000000e+00 : f32
    %540 = vector.broadcast %cst_137 : f32 to vector<1x128xf32>
    %541 = arith.addf %540, %539 : vector<1x128xf32>
    %542 = arith.divf %540, %541 : vector<1x128xf32>
    %543 = vector.extract_strided_slice %530 {offsets = [0, 256], sizes = [1, 128], strides = [1, 1]} : vector<1x512xf32> to vector<1x128xf32>
    %544 = math.tanh %543 : vector<1x128xf32>
    %545 = vector.extract_strided_slice %530 {offsets = [0, 384], sizes = [1, 128], strides = [1, 1]} : vector<1x512xf32> to vector<1x128xf32>
    %546 = arith.negf %545 : vector<1x128xf32>
    %547 = math.exp %546 : vector<1x128xf32>
    %cst_138 = arith.constant 1.000000e+00 : f32
    %548 = vector.broadcast %cst_138 : f32 to vector<1x128xf32>
    %549 = arith.addf %548, %547 : vector<1x128xf32>
    %550 = arith.divf %548, %549 : vector<1x128xf32>
    %551 = arith.mulf %542, %524 : vector<1x128xf32>
    %552 = arith.mulf %536, %544 : vector<1x128xf32>
    %553 = arith.addf %551, %552 : vector<1x128xf32>
    %554 = math.tanh %553 : vector<1x128xf32>
    %555 = arith.mulf %550, %554 : vector<1x128xf32>
    %c1_139 = arith.constant 1 : index
    %c0_140 = arith.constant 0 : index
    %556 = vector.load %arg10[%c1_139, %c0_140] : memref<8x128xf32, #tpu.memory_space<vmem>>, vector<1x128xf32>
    tpu.vector_store %arg10[%c1_139, %c0_140], %555 {strides = array<i32>} : memref<8x128xf32, #tpu.memory_space<vmem>>, vector<1x128xf32>,
    %557 = vector.extract_strided_slice %496 {offsets = [2, 0], sizes = [1, 512], strides = [1, 1]} : vector<8x512xf32> to vector<1x512xf32>
    %cst_141 = arith.constant dense<0.000000e+00> : vector<1x512xf32>
    %558 = tpu.matmul %555, %492, %cst_141 {dimension_numbers = #tpu.dot_dimension_numbers<[1], [0], [0], [1], [0, 0, 1, 1], [], []>} : vector<1x128xf32>, vector<128x512xf32>, vector<1x512xf32> -> vector<1x512xf32>
    %559 = arith.addf %557, %558 : vector<1x512xf32>
    %560 = vector.extract_strided_slice %559 {offsets = [0, 0], sizes = [1, 128], strides = [1, 1]} : vector<1x512xf32> to vector<1x128xf32>
    %561 = arith.negf %560 : vector<1x128xf32>
    %562 = math.exp %561 : vector<1x128xf32>
    %cst_142 = arith.constant 1.000000e+00 : f32
    %563 = vector.broadcast %cst_142 : f32 to vector<1x128xf32>
    %564 = arith.addf %563, %562 : vector<1x128xf32>
    %565 = arith.divf %563, %564 : vector<1x128xf32>
    %566 = vector.extract_strided_slice %559 {offsets = [0, 128], sizes = [1, 128], strides = [1, 1]} : vector<1x512xf32> to vector<1x128xf32>
    %567 = arith.negf %566 : vector<1x128xf32>
    %568 = math.exp %567 : vector<1x128xf32>
    %cst_143 = arith.constant 1.000000e+00 : f32
    %569 = vector.broadcast %cst_143 : f32 to vector<1x128xf32>
    %570 = arith.addf %569, %568 : vector<1x128xf32>
    %571 = arith.divf %569, %570 : vector<1x128xf32>
    %572 = vector.extract_strided_slice %559 {offsets = [0, 256], sizes = [1, 128], strides = [1, 1]} : vector<1x512xf32> to vector<1x128xf32>
    %573 = math.tanh %572 : vector<1x128xf32>
    %574 = vector.extract_strided_slice %559 {offsets = [0, 384], sizes = [1, 128], strides = [1, 1]} : vector<1x512xf32> to vector<1x128xf32>
    %575 = arith.negf %574 : vector<1x128xf32>
    %576 = math.exp %575 : vector<1x128xf32>
    %cst_144 = arith.constant 1.000000e+00 : f32
    %577 = vector.broadcast %cst_144 : f32 to vector<1x128xf32>
    %578 = arith.addf %577, %576 : vector<1x128xf32>
    %579 = arith.divf %577, %578 : vector<1x128xf32>
    %580 = arith.mulf %571, %553 : vector<1x128xf32>
    %581 = arith.mulf %565, %573 : vector<1x128xf32>
    %582 = arith.addf %580, %581 : vector<1x128xf32>
    %583 = math.tanh %582 : vector<1x128xf32>
    %584 = arith.mulf %579, %583 : vector<1x128xf32>
    %c2_145 = arith.constant 2 : index
    %c0_146 = arith.constant 0 : index
    %585 = vector.load %arg10[%c2_145, %c0_146] : memref<8x128xf32, #tpu.memory_space<vmem>>, vector<1x128xf32>
    tpu.vector_store %arg10[%c2_145, %c0_146], %584 {strides = array<i32>} : memref<8x128xf32, #tpu.memory_space<vmem>>, vector<1x128xf32>,
    %586 = vector.extract_strided_slice %496 {offsets = [3, 0], sizes = [1, 512], strides = [1, 1]} : vector<8x512xf32> to vector<1x512xf32>
    %cst_147 = arith.constant dense<0.000000e+00> : vector<1x512xf32>
    %587 = tpu.matmul %584, %492, %cst_147 {dimension_numbers = #tpu.dot_dimension_numbers<[1], [0], [0], [1], [0, 0, 1, 1], [], []>} : vector<1x128xf32>, vector<128x512xf32>, vector<1x512xf32> -> vector<1x512xf32>
    %588 = arith.addf %586, %587 : vector<1x512xf32>
    %589 = vector.extract_strided_slice %588 {offsets = [0, 0], sizes = [1, 128], strides = [1, 1]} : vector<1x512xf32> to vector<1x128xf32>
    %590 = arith.negf %589 : vector<1x128xf32>
    %591 = math.exp %590 : vector<1x128xf32>
    %cst_148 = arith.constant 1.000000e+00 : f32
    %592 = vector.broadcast %cst_148 : f32 to vector<1x128xf32>
    %593 = arith.addf %592, %591 : vector<1x128xf32>
    %594 = arith.divf %592, %593 : vector<1x128xf32>
    %595 = vector.extract_strided_slice %588 {offsets = [0, 128], sizes = [1, 128], strides = [1, 1]} : vector<1x512xf32> to vector<1x128xf32>
    %596 = arith.negf %595 : vector<1x128xf32>
    %597 = math.exp %596 : vector<1x128xf32>
    %cst_149 = arith.constant 1.000000e+00 : f32
    %598 = vector.broadcast %cst_149 : f32 to vector<1x128xf32>
    %599 = arith.addf %598, %597 : vector<1x128xf32>
    %600 = arith.divf %598, %599 : vector<1x128xf32>
    %601 = vector.extract_strided_slice %588 {offsets = [0, 256], sizes = [1, 128], strides = [1, 1]} : vector<1x512xf32> to vector<1x128xf32>
    %602 = math.tanh %601 : vector<1x128xf32>
    %603 = vector.extract_strided_slice %588 {offsets = [0, 384], sizes = [1, 128], strides = [1, 1]} : vector<1x512xf32> to vector<1x128xf32>
    %604 = arith.negf %603 : vector<1x128xf32>
    %605 = math.exp %604 : vector<1x128xf32>
    %cst_150 = arith.constant 1.000000e+00 : f32
    %606 = vector.broadcast %cst_150 : f32 to vector<1x128xf32>
    %607 = arith.addf %606, %605 : vector<1x128xf32>
    %608 = arith.divf %606, %607 : vector<1x128xf32>
    %609 = arith.mulf %600, %582 : vector<1x128xf32>
    %610 = arith.mulf %594, %602 : vector<1x128xf32>
    %611 = arith.addf %609, %610 : vector<1x128xf32>
    %612 = math.tanh %611 : vector<1x128xf32>
    %613 = arith.mulf %608, %612 : vector<1x128xf32>
    %c3_151 = arith.constant 3 : index
    %c0_152 = arith.constant 0 : index
    %614 = vector.load %arg10[%c3_151, %c0_152] : memref<8x128xf32, #tpu.memory_space<vmem>>, vector<1x128xf32>
    tpu.vector_store %arg10[%c3_151, %c0_152], %613 {strides = array<i32>} : memref<8x128xf32, #tpu.memory_space<vmem>>, vector<1x128xf32>,
    %615 = vector.extract_strided_slice %496 {offsets = [4, 0], sizes = [1, 512], strides = [1, 1]} : vector<8x512xf32> to vector<1x512xf32>
    %cst_153 = arith.constant dense<0.000000e+00> : vector<1x512xf32>
    %616 = tpu.matmul %613, %492, %cst_153 {dimension_numbers = #tpu.dot_dimension_numbers<[1], [0], [0], [1], [0, 0, 1, 1], [], []>} : vector<1x128xf32>, vector<128x512xf32>, vector<1x512xf32> -> vector<1x512xf32>
    %617 = arith.addf %615, %616 : vector<1x512xf32>
    %618 = vector.extract_strided_slice %617 {offsets = [0, 0], sizes = [1, 128], strides = [1, 1]} : vector<1x512xf32> to vector<1x128xf32>
    %619 = arith.negf %618 : vector<1x128xf32>
    %620 = math.exp %619 : vector<1x128xf32>
    %cst_154 = arith.constant 1.000000e+00 : f32
    %621 = vector.broadcast %cst_154 : f32 to vector<1x128xf32>
    %622 = arith.addf %621, %620 : vector<1x128xf32>
    %623 = arith.divf %621, %622 : vector<1x128xf32>
    %624 = vector.extract_strided_slice %617 {offsets = [0, 128], sizes = [1, 128], strides = [1, 1]} : vector<1x512xf32> to vector<1x128xf32>
    %625 = arith.negf %624 : vector<1x128xf32>
    %626 = math.exp %625 : vector<1x128xf32>
    %cst_155 = arith.constant 1.000000e+00 : f32
    %627 = vector.broadcast %cst_155 : f32 to vector<1x128xf32>
    %628 = arith.addf %627, %626 : vector<1x128xf32>
    %629 = arith.divf %627, %628 : vector<1x128xf32>
    %630 = vector.extract_strided_slice %617 {offsets = [0, 256], sizes = [1, 128], strides = [1, 1]} : vector<1x512xf32> to vector<1x128xf32>
    %631 = math.tanh %630 : vector<1x128xf32>
    %632 = vector.extract_strided_slice %617 {offsets = [0, 384], sizes = [1, 128], strides = [1, 1]} : vector<1x512xf32> to vector<1x128xf32>
    %633 = arith.negf %632 : vector<1x128xf32>
    %634 = math.exp %633 : vector<1x128xf32>
    %cst_156 = arith.constant 1.000000e+00 : f32
    %635 = vector.broadcast %cst_156 : f32 to vector<1x128xf32>
    %636 = arith.addf %635, %634 : vector<1x128xf32>
    %637 = arith.divf %635, %636 : vector<1x128xf32>
    %638 = arith.mulf %629, %611 : vector<1x128xf32>
    %639 = arith.mulf %623, %631 : vector<1x128xf32>
    %640 = arith.addf %638, %639 : vector<1x128xf32>
    %641 = math.tanh %640 : vector<1x128xf32>
    %642 = arith.mulf %637, %641 : vector<1x128xf32>
    %c4_157 = arith.constant 4 : index
    %c0_158 = arith.constant 0 : index
    %643 = vector.load %arg10[%c4_157, %c0_158] : memref<8x128xf32, #tpu.memory_space<vmem>>, vector<1x128xf32>
    tpu.vector_store %arg10[%c4_157, %c0_158], %642 {strides = array<i32>} : memref<8x128xf32, #tpu.memory_space<vmem>>, vector<1x128xf32>,
    %644 = vector.extract_strided_slice %496 {offsets = [5, 0], sizes = [1, 512], strides = [1, 1]} : vector<8x512xf32> to vector<1x512xf32>
    %cst_159 = arith.constant dense<0.000000e+00> : vector<1x512xf32>
    %645 = tpu.matmul %642, %492, %cst_159 {dimension_numbers = #tpu.dot_dimension_numbers<[1], [0], [0], [1], [0, 0, 1, 1], [], []>} : vector<1x128xf32>, vector<128x512xf32>, vector<1x512xf32> -> vector<1x512xf32>
    %646 = arith.addf %644, %645 : vector<1x512xf32>
    %647 = vector.extract_strided_slice %646 {offsets = [0, 0], sizes = [1, 128], strides = [1, 1]} : vector<1x512xf32> to vector<1x128xf32>
    %648 = arith.negf %647 : vector<1x128xf32>
    %649 = math.exp %648 : vector<1x128xf32>
    %cst_160 = arith.constant 1.000000e+00 : f32
    %650 = vector.broadcast %cst_160 : f32 to vector<1x128xf32>
    %651 = arith.addf %650, %649 : vector<1x128xf32>
    %652 = arith.divf %650, %651 : vector<1x128xf32>
    %653 = vector.extract_strided_slice %646 {offsets = [0, 128], sizes = [1, 128], strides = [1, 1]} : vector<1x512xf32> to vector<1x128xf32>
    %654 = arith.negf %653 : vector<1x128xf32>
    %655 = math.exp %654 : vector<1x128xf32>
    %cst_161 = arith.constant 1.000000e+00 : f32
    %656 = vector.broadcast %cst_161 : f32 to vector<1x128xf32>
    %657 = arith.addf %656, %655 : vector<1x128xf32>
    %658 = arith.divf %656, %657 : vector<1x128xf32>
    %659 = vector.extract_strided_slice %646 {offsets = [0, 256], sizes = [1, 128], strides = [1, 1]} : vector<1x512xf32> to vector<1x128xf32>
    %660 = math.tanh %659 : vector<1x128xf32>
    %661 = vector.extract_strided_slice %646 {offsets = [0, 384], sizes = [1, 128], strides = [1, 1]} : vector<1x512xf32> to vector<1x128xf32>
    %662 = arith.negf %661 : vector<1x128xf32>
    %663 = math.exp %662 : vector<1x128xf32>
    %cst_162 = arith.constant 1.000000e+00 : f32
    %664 = vector.broadcast %cst_162 : f32 to vector<1x128xf32>
    %665 = arith.addf %664, %663 : vector<1x128xf32>
    %666 = arith.divf %664, %665 : vector<1x128xf32>
    %667 = arith.mulf %658, %640 : vector<1x128xf32>
    %668 = arith.mulf %652, %660 : vector<1x128xf32>
    %669 = arith.addf %667, %668 : vector<1x128xf32>
    %670 = math.tanh %669 : vector<1x128xf32>
    %671 = arith.mulf %666, %670 : vector<1x128xf32>
    %c5_163 = arith.constant 5 : index
    %c0_164 = arith.constant 0 : index
    %672 = vector.load %arg10[%c5_163, %c0_164] : memref<8x128xf32, #tpu.memory_space<vmem>>, vector<1x128xf32>
    tpu.vector_store %arg10[%c5_163, %c0_164], %671 {strides = array<i32>} : memref<8x128xf32, #tpu.memory_space<vmem>>, vector<1x128xf32>,
    %673 = vector.extract_strided_slice %496 {offsets = [6, 0], sizes = [1, 512], strides = [1, 1]} : vector<8x512xf32> to vector<1x512xf32>
    %cst_165 = arith.constant dense<0.000000e+00> : vector<1x512xf32>
    %674 = tpu.matmul %671, %492, %cst_165 {dimension_numbers = #tpu.dot_dimension_numbers<[1], [0], [0], [1], [0, 0, 1, 1], [], []>} : vector<1x128xf32>, vector<128x512xf32>, vector<1x512xf32> -> vector<1x512xf32>
    %675 = arith.addf %673, %674 : vector<1x512xf32>
    %676 = vector.extract_strided_slice %675 {offsets = [0, 0], sizes = [1, 128], strides = [1, 1]} : vector<1x512xf32> to vector<1x128xf32>
    %677 = arith.negf %676 : vector<1x128xf32>
    %678 = math.exp %677 : vector<1x128xf32>
    %cst_166 = arith.constant 1.000000e+00 : f32
    %679 = vector.broadcast %cst_166 : f32 to vector<1x128xf32>
    %680 = arith.addf %679, %678 : vector<1x128xf32>
    %681 = arith.divf %679, %680 : vector<1x128xf32>
    %682 = vector.extract_strided_slice %675 {offsets = [0, 128], sizes = [1, 128], strides = [1, 1]} : vector<1x512xf32> to vector<1x128xf32>
    %683 = arith.negf %682 : vector<1x128xf32>
    %684 = math.exp %683 : vector<1x128xf32>
    %cst_167 = arith.constant 1.000000e+00 : f32
    %685 = vector.broadcast %cst_167 : f32 to vector<1x128xf32>
    %686 = arith.addf %685, %684 : vector<1x128xf32>
    %687 = arith.divf %685, %686 : vector<1x128xf32>
    %688 = vector.extract_strided_slice %675 {offsets = [0, 256], sizes = [1, 128], strides = [1, 1]} : vector<1x512xf32> to vector<1x128xf32>
    %689 = math.tanh %688 : vector<1x128xf32>
    %690 = vector.extract_strided_slice %675 {offsets = [0, 384], sizes = [1, 128], strides = [1, 1]} : vector<1x512xf32> to vector<1x128xf32>
    %691 = arith.negf %690 : vector<1x128xf32>
    %692 = math.exp %691 : vector<1x128xf32>
    %cst_168 = arith.constant 1.000000e+00 : f32
    %693 = vector.broadcast %cst_168 : f32 to vector<1x128xf32>
    %694 = arith.addf %693, %692 : vector<1x128xf32>
    %695 = arith.divf %693, %694 : vector<1x128xf32>
    %696 = arith.mulf %687, %669 : vector<1x128xf32>
    %697 = arith.mulf %681, %689 : vector<1x128xf32>
    %698 = arith.addf %696, %697 : vector<1x128xf32>
    %699 = math.tanh %698 : vector<1x128xf32>
    %700 = arith.mulf %695, %699 : vector<1x128xf32>
    %c6_169 = arith.constant 6 : index
    %c0_170 = arith.constant 0 : index
    %701 = vector.load %arg10[%c6_169, %c0_170] : memref<8x128xf32, #tpu.memory_space<vmem>>, vector<1x128xf32>
    tpu.vector_store %arg10[%c6_169, %c0_170], %700 {strides = array<i32>} : memref<8x128xf32, #tpu.memory_space<vmem>>, vector<1x128xf32>,
    %702 = vector.extract_strided_slice %496 {offsets = [7, 0], sizes = [1, 512], strides = [1, 1]} : vector<8x512xf32> to vector<1x512xf32>
    %cst_171 = arith.constant dense<0.000000e+00> : vector<1x512xf32>
    %703 = tpu.matmul %700, %492, %cst_171 {dimension_numbers = #tpu.dot_dimension_numbers<[1], [0], [0], [1], [0, 0, 1, 1], [], []>} : vector<1x128xf32>, vector<128x512xf32>, vector<1x512xf32> -> vector<1x512xf32>
    %704 = arith.addf %702, %703 : vector<1x512xf32>
    %705 = vector.extract_strided_slice %704 {offsets = [0, 0], sizes = [1, 128], strides = [1, 1]} : vector<1x512xf32> to vector<1x128xf32>
    %706 = arith.negf %705 : vector<1x128xf32>
    %707 = math.exp %706 : vector<1x128xf32>
    %cst_172 = arith.constant 1.000000e+00 : f32
    %708 = vector.broadcast %cst_172 : f32 to vector<1x128xf32>
    %709 = arith.addf %708, %707 : vector<1x128xf32>
    %710 = arith.divf %708, %709 : vector<1x128xf32>
    %711 = vector.extract_strided_slice %704 {offsets = [0, 128], sizes = [1, 128], strides = [1, 1]} : vector<1x512xf32> to vector<1x128xf32>
    %712 = arith.negf %711 : vector<1x128xf32>
    %713 = math.exp %712 : vector<1x128xf32>
    %cst_173 = arith.constant 1.000000e+00 : f32
    %714 = vector.broadcast %cst_173 : f32 to vector<1x128xf32>
    %715 = arith.addf %714, %713 : vector<1x128xf32>
    %716 = arith.divf %714, %715 : vector<1x128xf32>
    %717 = vector.extract_strided_slice %704 {offsets = [0, 256], sizes = [1, 128], strides = [1, 1]} : vector<1x512xf32> to vector<1x128xf32>
    %718 = math.tanh %717 : vector<1x128xf32>
    %719 = vector.extract_strided_slice %704 {offsets = [0, 384], sizes = [1, 128], strides = [1, 1]} : vector<1x512xf32> to vector<1x128xf32>
    %720 = arith.negf %719 : vector<1x128xf32>
    %721 = math.exp %720 : vector<1x128xf32>
    %cst_174 = arith.constant 1.000000e+00 : f32
    %722 = vector.broadcast %cst_174 : f32 to vector<1x128xf32>
    %723 = arith.addf %722, %721 : vector<1x128xf32>
    %724 = arith.divf %722, %723 : vector<1x128xf32>
    %725 = arith.mulf %716, %698 : vector<1x128xf32>
    %726 = arith.mulf %710, %718 : vector<1x128xf32>
    %727 = arith.addf %725, %726 : vector<1x128xf32>
    %728 = math.tanh %727 : vector<1x128xf32>
    %729 = arith.mulf %724, %728 : vector<1x128xf32>
    %c7_175 = arith.constant 7 : index
    %c0_176 = arith.constant 0 : index
    %730 = vector.load %arg10[%c7_175, %c0_176] : memref<8x128xf32, #tpu.memory_space<vmem>>, vector<1x128xf32>
    tpu.vector_store %arg10[%c7_175, %c0_176], %729 {strides = array<i32>} : memref<8x128xf32, #tpu.memory_space<vmem>>, vector<1x128xf32>,
    %c0_177 = arith.constant 0 : index
    %c0_178 = arith.constant 0 : index
    %731 = vector.load %arg10[%c0_177, %c0_178] : memref<8x128xf32, #tpu.memory_space<vmem>>, vector<8x128xf32>
    %c0_179 = arith.constant 0 : index
    %c0_180 = arith.constant 0 : index
    %732 = vector.load %arg4[%c0_179, %c0_180] : memref<128x512xf32, #tpu.memory_space<vmem>>, vector<128x512xf32>
    %c0_181 = arith.constant 0 : index
    %c0_182 = arith.constant 0 : index
    %733 = vector.load %arg5[%c0_181, %c0_182] : memref<128x512xf32, #tpu.memory_space<vmem>>, vector<128x512xf32>
    %c0_183 = arith.constant 0 : index
    %c0_184 = arith.constant 0 : index
    %734 = vector.load %arg6[%c0_183, %c0_184] : memref<1x512xf32, #tpu.memory_space<vmem>>, vector<1x512xf32>
    %cst_185 = arith.constant dense<0.000000e+00> : vector<8x512xf32>
    %735 = tpu.matmul %731, %732, %cst_185 {dimension_numbers = #tpu.dot_dimension_numbers<[1], [0], [0], [1], [0, 0, 1, 1], [], []>} : vector<8x128xf32>, vector<128x512xf32>, vector<8x512xf32> -> vector<8x512xf32>
    %736 = vector.broadcast %734 : vector<1x512xf32> to vector<8x512xf32>
    %737 = arith.addf %735, %736 : vector<8x512xf32>
    %cst_186 = arith.constant 0.000000e+00 : f32
    %738 = vector.broadcast %cst_186 : f32 to vector<1x128xf32>
    %cst_187 = arith.constant 0.000000e+00 : f32
    %739 = vector.broadcast %cst_187 : f32 to vector<1x128xf32>
    %740 = vector.extract_strided_slice %737 {offsets = [0, 0], sizes = [1, 512], strides = [1, 1]} : vector<8x512xf32> to vector<1x512xf32>
    %cst_188 = arith.constant dense<0.000000e+00> : vector<1x512xf32>
    %741 = tpu.matmul %738, %733, %cst_188 {dimension_numbers = #tpu.dot_dimension_numbers<[1], [0], [0], [1], [0, 0, 1, 1], [], []>} : vector<1x128xf32>, vector<128x512xf32>, vector<1x512xf32> -> vector<1x512xf32>
    %742 = arith.addf %740, %741 : vector<1x512xf32>
    %743 = vector.extract_strided_slice %742 {offsets = [0, 0], sizes = [1, 128], strides = [1, 1]} : vector<1x512xf32> to vector<1x128xf32>
    %744 = arith.negf %743 : vector<1x128xf32>
    %745 = math.exp %744 : vector<1x128xf32>
    %cst_189 = arith.constant 1.000000e+00 : f32
    %746 = vector.broadcast %cst_189 : f32 to vector<1x128xf32>
    %747 = arith.addf %746, %745 : vector<1x128xf32>
    %748 = arith.divf %746, %747 : vector<1x128xf32>
    %749 = vector.extract_strided_slice %742 {offsets = [0, 128], sizes = [1, 128], strides = [1, 1]} : vector<1x512xf32> to vector<1x128xf32>
    %750 = arith.negf %749 : vector<1x128xf32>
    %751 = math.exp %750 : vector<1x128xf32>
    %cst_190 = arith.constant 1.000000e+00 : f32
    %752 = vector.broadcast %cst_190 : f32 to vector<1x128xf32>
    %753 = arith.addf %752, %751 : vector<1x128xf32>
    %754 = arith.divf %752, %753 : vector<1x128xf32>
    %755 = vector.extract_strided_slice %742 {offsets = [0, 256], sizes = [1, 128], strides = [1, 1]} : vector<1x512xf32> to vector<1x128xf32>
    %756 = math.tanh %755 : vector<1x128xf32>
    %757 = vector.extract_strided_slice %742 {offsets = [0, 384], sizes = [1, 128], strides = [1, 1]} : vector<1x512xf32> to vector<1x128xf32>
    %758 = arith.negf %757 : vector<1x128xf32>
    %759 = math.exp %758 : vector<1x128xf32>
    %cst_191 = arith.constant 1.000000e+00 : f32
    %760 = vector.broadcast %cst_191 : f32 to vector<1x128xf32>
    %761 = arith.addf %760, %759 : vector<1x128xf32>
    %762 = arith.divf %760, %761 : vector<1x128xf32>
    %763 = arith.mulf %754, %739 : vector<1x128xf32>
    %764 = arith.mulf %748, %756 : vector<1x128xf32>
    %765 = arith.addf %763, %764 : vector<1x128xf32>
    %766 = math.tanh %765 : vector<1x128xf32>
    %767 = arith.mulf %762, %766 : vector<1x128xf32>
    %c0_192 = arith.constant 0 : index
    %c0_193 = arith.constant 0 : index
    %768 = vector.load %arg10[%c0_192, %c0_193] : memref<8x128xf32, #tpu.memory_space<vmem>>, vector<1x128xf32>
    tpu.vector_store %arg10[%c0_192, %c0_193], %767 {strides = array<i32>} : memref<8x128xf32, #tpu.memory_space<vmem>>, vector<1x128xf32>,
    %769 = vector.extract_strided_slice %737 {offsets = [1, 0], sizes = [1, 512], strides = [1, 1]} : vector<8x512xf32> to vector<1x512xf32>
    %cst_194 = arith.constant dense<0.000000e+00> : vector<1x512xf32>
    %770 = tpu.matmul %767, %733, %cst_194 {dimension_numbers = #tpu.dot_dimension_numbers<[1], [0], [0], [1], [0, 0, 1, 1], [], []>} : vector<1x128xf32>, vector<128x512xf32>, vector<1x512xf32> -> vector<1x512xf32>
    %771 = arith.addf %769, %770 : vector<1x512xf32>
    %772 = vector.extract_strided_slice %771 {offsets = [0, 0], sizes = [1, 128], strides = [1, 1]} : vector<1x512xf32> to vector<1x128xf32>
    %773 = arith.negf %772 : vector<1x128xf32>
    %774 = math.exp %773 : vector<1x128xf32>
    %cst_195 = arith.constant 1.000000e+00 : f32
    %775 = vector.broadcast %cst_195 : f32 to vector<1x128xf32>
    %776 = arith.addf %775, %774 : vector<1x128xf32>
    %777 = arith.divf %775, %776 : vector<1x128xf32>
    %778 = vector.extract_strided_slice %771 {offsets = [0, 128], sizes = [1, 128], strides = [1, 1]} : vector<1x512xf32> to vector<1x128xf32>
    %779 = arith.negf %778 : vector<1x128xf32>
    %780 = math.exp %779 : vector<1x128xf32>
    %cst_196 = arith.constant 1.000000e+00 : f32
    %781 = vector.broadcast %cst_196 : f32 to vector<1x128xf32>
    %782 = arith.addf %781, %780 : vector<1x128xf32>
    %783 = arith.divf %781, %782 : vector<1x128xf32>
    %784 = vector.extract_strided_slice %771 {offsets = [0, 256], sizes = [1, 128], strides = [1, 1]} : vector<1x512xf32> to vector<1x128xf32>
    %785 = math.tanh %784 : vector<1x128xf32>
    %786 = vector.extract_strided_slice %771 {offsets = [0, 384], sizes = [1, 128], strides = [1, 1]} : vector<1x512xf32> to vector<1x128xf32>
    %787 = arith.negf %786 : vector<1x128xf32>
    %788 = math.exp %787 : vector<1x128xf32>
    %cst_197 = arith.constant 1.000000e+00 : f32
    %789 = vector.broadcast %cst_197 : f32 to vector<1x128xf32>
    %790 = arith.addf %789, %788 : vector<1x128xf32>
    %791 = arith.divf %789, %790 : vector<1x128xf32>
    %792 = arith.mulf %783, %765 : vector<1x128xf32>
    %793 = arith.mulf %777, %785 : vector<1x128xf32>
    %794 = arith.addf %792, %793 : vector<1x128xf32>
    %795 = math.tanh %794 : vector<1x128xf32>
    %796 = arith.mulf %791, %795 : vector<1x128xf32>
    %c1_198 = arith.constant 1 : index
    %c0_199 = arith.constant 0 : index
    %797 = vector.load %arg10[%c1_198, %c0_199] : memref<8x128xf32, #tpu.memory_space<vmem>>, vector<1x128xf32>
    tpu.vector_store %arg10[%c1_198, %c0_199], %796 {strides = array<i32>} : memref<8x128xf32, #tpu.memory_space<vmem>>, vector<1x128xf32>,
    %798 = vector.extract_strided_slice %737 {offsets = [2, 0], sizes = [1, 512], strides = [1, 1]} : vector<8x512xf32> to vector<1x512xf32>
    %cst_200 = arith.constant dense<0.000000e+00> : vector<1x512xf32>
    %799 = tpu.matmul %796, %733, %cst_200 {dimension_numbers = #tpu.dot_dimension_numbers<[1], [0], [0], [1], [0, 0, 1, 1], [], []>} : vector<1x128xf32>, vector<128x512xf32>, vector<1x512xf32> -> vector<1x512xf32>
    %800 = arith.addf %798, %799 : vector<1x512xf32>
    %801 = vector.extract_strided_slice %800 {offsets = [0, 0], sizes = [1, 128], strides = [1, 1]} : vector<1x512xf32> to vector<1x128xf32>
    %802 = arith.negf %801 : vector<1x128xf32>
    %803 = math.exp %802 : vector<1x128xf32>
    %cst_201 = arith.constant 1.000000e+00 : f32
    %804 = vector.broadcast %cst_201 : f32 to vector<1x128xf32>
    %805 = arith.addf %804, %803 : vector<1x128xf32>
    %806 = arith.divf %804, %805 : vector<1x128xf32>
    %807 = vector.extract_strided_slice %800 {offsets = [0, 128], sizes = [1, 128], strides = [1, 1]} : vector<1x512xf32> to vector<1x128xf32>
    %808 = arith.negf %807 : vector<1x128xf32>
    %809 = math.exp %808 : vector<1x128xf32>
    %cst_202 = arith.constant 1.000000e+00 : f32
    %810 = vector.broadcast %cst_202 : f32 to vector<1x128xf32>
    %811 = arith.addf %810, %809 : vector<1x128xf32>
    %812 = arith.divf %810, %811 : vector<1x128xf32>
    %813 = vector.extract_strided_slice %800 {offsets = [0, 256], sizes = [1, 128], strides = [1, 1]} : vector<1x512xf32> to vector<1x128xf32>
    %814 = math.tanh %813 : vector<1x128xf32>
    %815 = vector.extract_strided_slice %800 {offsets = [0, 384], sizes = [1, 128], strides = [1, 1]} : vector<1x512xf32> to vector<1x128xf32>
    %816 = arith.negf %815 : vector<1x128xf32>
    %817 = math.exp %816 : vector<1x128xf32>
    %cst_203 = arith.constant 1.000000e+00 : f32
    %818 = vector.broadcast %cst_203 : f32 to vector<1x128xf32>
    %819 = arith.addf %818, %817 : vector<1x128xf32>
    %820 = arith.divf %818, %819 : vector<1x128xf32>
    %821 = arith.mulf %812, %794 : vector<1x128xf32>
    %822 = arith.mulf %806, %814 : vector<1x128xf32>
    %823 = arith.addf %821, %822 : vector<1x128xf32>
    %824 = math.tanh %823 : vector<1x128xf32>
    %825 = arith.mulf %820, %824 : vector<1x128xf32>
    %c2_204 = arith.constant 2 : index
    %c0_205 = arith.constant 0 : index
    %826 = vector.load %arg10[%c2_204, %c0_205] : memref<8x128xf32, #tpu.memory_space<vmem>>, vector<1x128xf32>
    tpu.vector_store %arg10[%c2_204, %c0_205], %825 {strides = array<i32>} : memref<8x128xf32, #tpu.memory_space<vmem>>, vector<1x128xf32>,
    %827 = vector.extract_strided_slice %737 {offsets = [3, 0], sizes = [1, 512], strides = [1, 1]} : vector<8x512xf32> to vector<1x512xf32>
    %cst_206 = arith.constant dense<0.000000e+00> : vector<1x512xf32>
    %828 = tpu.matmul %825, %733, %cst_206 {dimension_numbers = #tpu.dot_dimension_numbers<[1], [0], [0], [1], [0, 0, 1, 1], [], []>} : vector<1x128xf32>, vector<128x512xf32>, vector<1x512xf32> -> vector<1x512xf32>
    %829 = arith.addf %827, %828 : vector<1x512xf32>
    %830 = vector.extract_strided_slice %829 {offsets = [0, 0], sizes = [1, 128], strides = [1, 1]} : vector<1x512xf32> to vector<1x128xf32>
    %831 = arith.negf %830 : vector<1x128xf32>
    %832 = math.exp %831 : vector<1x128xf32>
    %cst_207 = arith.constant 1.000000e+00 : f32
    %833 = vector.broadcast %cst_207 : f32 to vector<1x128xf32>
    %834 = arith.addf %833, %832 : vector<1x128xf32>
    %835 = arith.divf %833, %834 : vector<1x128xf32>
    %836 = vector.extract_strided_slice %829 {offsets = [0, 128], sizes = [1, 128], strides = [1, 1]} : vector<1x512xf32> to vector<1x128xf32>
    %837 = arith.negf %836 : vector<1x128xf32>
    %838 = math.exp %837 : vector<1x128xf32>
    %cst_208 = arith.constant 1.000000e+00 : f32
    %839 = vector.broadcast %cst_208 : f32 to vector<1x128xf32>
    %840 = arith.addf %839, %838 : vector<1x128xf32>
    %841 = arith.divf %839, %840 : vector<1x128xf32>
    %842 = vector.extract_strided_slice %829 {offsets = [0, 256], sizes = [1, 128], strides = [1, 1]} : vector<1x512xf32> to vector<1x128xf32>
    %843 = math.tanh %842 : vector<1x128xf32>
    %844 = vector.extract_strided_slice %829 {offsets = [0, 384], sizes = [1, 128], strides = [1, 1]} : vector<1x512xf32> to vector<1x128xf32>
    %845 = arith.negf %844 : vector<1x128xf32>
    %846 = math.exp %845 : vector<1x128xf32>
    %cst_209 = arith.constant 1.000000e+00 : f32
    %847 = vector.broadcast %cst_209 : f32 to vector<1x128xf32>
    %848 = arith.addf %847, %846 : vector<1x128xf32>
    %849 = arith.divf %847, %848 : vector<1x128xf32>
    %850 = arith.mulf %841, %823 : vector<1x128xf32>
    %851 = arith.mulf %835, %843 : vector<1x128xf32>
    %852 = arith.addf %850, %851 : vector<1x128xf32>
    %853 = math.tanh %852 : vector<1x128xf32>
    %854 = arith.mulf %849, %853 : vector<1x128xf32>
    %c3_210 = arith.constant 3 : index
    %c0_211 = arith.constant 0 : index
    %855 = vector.load %arg10[%c3_210, %c0_211] : memref<8x128xf32, #tpu.memory_space<vmem>>, vector<1x128xf32>
    tpu.vector_store %arg10[%c3_210, %c0_211], %854 {strides = array<i32>} : memref<8x128xf32, #tpu.memory_space<vmem>>, vector<1x128xf32>,
    %856 = vector.extract_strided_slice %737 {offsets = [4, 0], sizes = [1, 512], strides = [1, 1]} : vector<8x512xf32> to vector<1x512xf32>
    %cst_212 = arith.constant dense<0.000000e+00> : vector<1x512xf32>
    %857 = tpu.matmul %854, %733, %cst_212 {dimension_numbers = #tpu.dot_dimension_numbers<[1], [0], [0], [1], [0, 0, 1, 1], [], []>} : vector<1x128xf32>, vector<128x512xf32>, vector<1x512xf32> -> vector<1x512xf32>
    %858 = arith.addf %856, %857 : vector<1x512xf32>
    %859 = vector.extract_strided_slice %858 {offsets = [0, 0], sizes = [1, 128], strides = [1, 1]} : vector<1x512xf32> to vector<1x128xf32>
    %860 = arith.negf %859 : vector<1x128xf32>
    %861 = math.exp %860 : vector<1x128xf32>
    %cst_213 = arith.constant 1.000000e+00 : f32
    %862 = vector.broadcast %cst_213 : f32 to vector<1x128xf32>
    %863 = arith.addf %862, %861 : vector<1x128xf32>
    %864 = arith.divf %862, %863 : vector<1x128xf32>
    %865 = vector.extract_strided_slice %858 {offsets = [0, 128], sizes = [1, 128], strides = [1, 1]} : vector<1x512xf32> to vector<1x128xf32>
    %866 = arith.negf %865 : vector<1x128xf32>
    %867 = math.exp %866 : vector<1x128xf32>
    %cst_214 = arith.constant 1.000000e+00 : f32
    %868 = vector.broadcast %cst_214 : f32 to vector<1x128xf32>
    %869 = arith.addf %868, %867 : vector<1x128xf32>
    %870 = arith.divf %868, %869 : vector<1x128xf32>
    %871 = vector.extract_strided_slice %858 {offsets = [0, 256], sizes = [1, 128], strides = [1, 1]} : vector<1x512xf32> to vector<1x128xf32>
    %872 = math.tanh %871 : vector<1x128xf32>
    %873 = vector.extract_strided_slice %858 {offsets = [0, 384], sizes = [1, 128], strides = [1, 1]} : vector<1x512xf32> to vector<1x128xf32>
    %874 = arith.negf %873 : vector<1x128xf32>
    %875 = math.exp %874 : vector<1x128xf32>
    %cst_215 = arith.constant 1.000000e+00 : f32
    %876 = vector.broadcast %cst_215 : f32 to vector<1x128xf32>
    %877 = arith.addf %876, %875 : vector<1x128xf32>
    %878 = arith.divf %876, %877 : vector<1x128xf32>
    %879 = arith.mulf %870, %852 : vector<1x128xf32>
    %880 = arith.mulf %864, %872 : vector<1x128xf32>
    %881 = arith.addf %879, %880 : vector<1x128xf32>
    %882 = math.tanh %881 : vector<1x128xf32>
    %883 = arith.mulf %878, %882 : vector<1x128xf32>
    %c4_216 = arith.constant 4 : index
    %c0_217 = arith.constant 0 : index
    %884 = vector.load %arg10[%c4_216, %c0_217] : memref<8x128xf32, #tpu.memory_space<vmem>>, vector<1x128xf32>
    tpu.vector_store %arg10[%c4_216, %c0_217], %883 {strides = array<i32>} : memref<8x128xf32, #tpu.memory_space<vmem>>, vector<1x128xf32>,
    %885 = vector.extract_strided_slice %737 {offsets = [5, 0], sizes = [1, 512], strides = [1, 1]} : vector<8x512xf32> to vector<1x512xf32>
    %cst_218 = arith.constant dense<0.000000e+00> : vector<1x512xf32>
    %886 = tpu.matmul %883, %733, %cst_218 {dimension_numbers = #tpu.dot_dimension_numbers<[1], [0], [0], [1], [0, 0, 1, 1], [], []>} : vector<1x128xf32>, vector<128x512xf32>, vector<1x512xf32> -> vector<1x512xf32>
    %887 = arith.addf %885, %886 : vector<1x512xf32>
    %888 = vector.extract_strided_slice %887 {offsets = [0, 0], sizes = [1, 128], strides = [1, 1]} : vector<1x512xf32> to vector<1x128xf32>
    %889 = arith.negf %888 : vector<1x128xf32>
    %890 = math.exp %889 : vector<1x128xf32>
    %cst_219 = arith.constant 1.000000e+00 : f32
    %891 = vector.broadcast %cst_219 : f32 to vector<1x128xf32>
    %892 = arith.addf %891, %890 : vector<1x128xf32>
    %893 = arith.divf %891, %892 : vector<1x128xf32>
    %894 = vector.extract_strided_slice %887 {offsets = [0, 128], sizes = [1, 128], strides = [1, 1]} : vector<1x512xf32> to vector<1x128xf32>
    %895 = arith.negf %894 : vector<1x128xf32>
    %896 = math.exp %895 : vector<1x128xf32>
    %cst_220 = arith.constant 1.000000e+00 : f32
    %897 = vector.broadcast %cst_220 : f32 to vector<1x128xf32>
    %898 = arith.addf %897, %896 : vector<1x128xf32>
    %899 = arith.divf %897, %898 : vector<1x128xf32>
    %900 = vector.extract_strided_slice %887 {offsets = [0, 256], sizes = [1, 128], strides = [1, 1]} : vector<1x512xf32> to vector<1x128xf32>
    %901 = math.tanh %900 : vector<1x128xf32>
    %902 = vector.extract_strided_slice %887 {offsets = [0, 384], sizes = [1, 128], strides = [1, 1]} : vector<1x512xf32> to vector<1x128xf32>
    %903 = arith.negf %902 : vector<1x128xf32>
    %904 = math.exp %903 : vector<1x128xf32>
    %cst_221 = arith.constant 1.000000e+00 : f32
    %905 = vector.broadcast %cst_221 : f32 to vector<1x128xf32>
    %906 = arith.addf %905, %904 : vector<1x128xf32>
    %907 = arith.divf %905, %906 : vector<1x128xf32>
    %908 = arith.mulf %899, %881 : vector<1x128xf32>
    %909 = arith.mulf %893, %901 : vector<1x128xf32>
    %910 = arith.addf %908, %909 : vector<1x128xf32>
    %911 = math.tanh %910 : vector<1x128xf32>
    %912 = arith.mulf %907, %911 : vector<1x128xf32>
    %c5_222 = arith.constant 5 : index
    %c0_223 = arith.constant 0 : index
    %913 = vector.load %arg10[%c5_222, %c0_223] : memref<8x128xf32, #tpu.memory_space<vmem>>, vector<1x128xf32>
    tpu.vector_store %arg10[%c5_222, %c0_223], %912 {strides = array<i32>} : memref<8x128xf32, #tpu.memory_space<vmem>>, vector<1x128xf32>,
    %914 = vector.extract_strided_slice %737 {offsets = [6, 0], sizes = [1, 512], strides = [1, 1]} : vector<8x512xf32> to vector<1x512xf32>
    %cst_224 = arith.constant dense<0.000000e+00> : vector<1x512xf32>
    %915 = tpu.matmul %912, %733, %cst_224 {dimension_numbers = #tpu.dot_dimension_numbers<[1], [0], [0], [1], [0, 0, 1, 1], [], []>} : vector<1x128xf32>, vector<128x512xf32>, vector<1x512xf32> -> vector<1x512xf32>
    %916 = arith.addf %914, %915 : vector<1x512xf32>
    %917 = vector.extract_strided_slice %916 {offsets = [0, 0], sizes = [1, 128], strides = [1, 1]} : vector<1x512xf32> to vector<1x128xf32>
    %918 = arith.negf %917 : vector<1x128xf32>
    %919 = math.exp %918 : vector<1x128xf32>
    %cst_225 = arith.constant 1.000000e+00 : f32
    %920 = vector.broadcast %cst_225 : f32 to vector<1x128xf32>
    %921 = arith.addf %920, %919 : vector<1x128xf32>
    %922 = arith.divf %920, %921 : vector<1x128xf32>
    %923 = vector.extract_strided_slice %916 {offsets = [0, 128], sizes = [1, 128], strides = [1, 1]} : vector<1x512xf32> to vector<1x128xf32>
    %924 = arith.negf %923 : vector<1x128xf32>
    %925 = math.exp %924 : vector<1x128xf32>
    %cst_226 = arith.constant 1.000000e+00 : f32
    %926 = vector.broadcast %cst_226 : f32 to vector<1x128xf32>
    %927 = arith.addf %926, %925 : vector<1x128xf32>
    %928 = arith.divf %926, %927 : vector<1x128xf32>
    %929 = vector.extract_strided_slice %916 {offsets = [0, 256], sizes = [1, 128], strides = [1, 1]} : vector<1x512xf32> to vector<1x128xf32>
    %930 = math.tanh %929 : vector<1x128xf32>
    %931 = vector.extract_strided_slice %916 {offsets = [0, 384], sizes = [1, 128], strides = [1, 1]} : vector<1x512xf32> to vector<1x128xf32>
    %932 = arith.negf %931 : vector<1x128xf32>
    %933 = math.exp %932 : vector<1x128xf32>
    %cst_227 = arith.constant 1.000000e+00 : f32
    %934 = vector.broadcast %cst_227 : f32 to vector<1x128xf32>
    %935 = arith.addf %934, %933 : vector<1x128xf32>
    %936 = arith.divf %934, %935 : vector<1x128xf32>
    %937 = arith.mulf %928, %910 : vector<1x128xf32>
    %938 = arith.mulf %922, %930 : vector<1x128xf32>
    %939 = arith.addf %937, %938 : vector<1x128xf32>
    %940 = math.tanh %939 : vector<1x128xf32>
    %941 = arith.mulf %936, %940 : vector<1x128xf32>
    %c6_228 = arith.constant 6 : index
    %c0_229 = arith.constant 0 : index
    %942 = vector.load %arg10[%c6_228, %c0_229] : memref<8x128xf32, #tpu.memory_space<vmem>>, vector<1x128xf32>
    tpu.vector_store %arg10[%c6_228, %c0_229], %941 {strides = array<i32>} : memref<8x128xf32, #tpu.memory_space<vmem>>, vector<1x128xf32>,
    %943 = vector.extract_strided_slice %737 {offsets = [7, 0], sizes = [1, 512], strides = [1, 1]} : vector<8x512xf32> to vector<1x512xf32>
    %cst_230 = arith.constant dense<0.000000e+00> : vector<1x512xf32>
    %944 = tpu.matmul %941, %733, %cst_230 {dimension_numbers = #tpu.dot_dimension_numbers<[1], [0], [0], [1], [0, 0, 1, 1], [], []>} : vector<1x128xf32>, vector<128x512xf32>, vector<1x512xf32> -> vector<1x512xf32>
    %945 = arith.addf %943, %944 : vector<1x512xf32>
    %946 = vector.extract_strided_slice %945 {offsets = [0, 0], sizes = [1, 128], strides = [1, 1]} : vector<1x512xf32> to vector<1x128xf32>
    %947 = arith.negf %946 : vector<1x128xf32>
    %948 = math.exp %947 : vector<1x128xf32>
    %cst_231 = arith.constant 1.000000e+00 : f32
    %949 = vector.broadcast %cst_231 : f32 to vector<1x128xf32>
    %950 = arith.addf %949, %948 : vector<1x128xf32>
    %951 = arith.divf %949, %950 : vector<1x128xf32>
    %952 = vector.extract_strided_slice %945 {offsets = [0, 128], sizes = [1, 128], strides = [1, 1]} : vector<1x512xf32> to vector<1x128xf32>
    %953 = arith.negf %952 : vector<1x128xf32>
    %954 = math.exp %953 : vector<1x128xf32>
    %cst_232 = arith.constant 1.000000e+00 : f32
    %955 = vector.broadcast %cst_232 : f32 to vector<1x128xf32>
    %956 = arith.addf %955, %954 : vector<1x128xf32>
    %957 = arith.divf %955, %956 : vector<1x128xf32>
    %958 = vector.extract_strided_slice %945 {offsets = [0, 256], sizes = [1, 128], strides = [1, 1]} : vector<1x512xf32> to vector<1x128xf32>
    %959 = math.tanh %958 : vector<1x128xf32>
    %960 = vector.extract_strided_slice %945 {offsets = [0, 384], sizes = [1, 128], strides = [1, 1]} : vector<1x512xf32> to vector<1x128xf32>
    %961 = arith.negf %960 : vector<1x128xf32>
    %962 = math.exp %961 : vector<1x128xf32>
    %cst_233 = arith.constant 1.000000e+00 : f32
    %963 = vector.broadcast %cst_233 : f32 to vector<1x128xf32>
    %964 = arith.addf %963, %962 : vector<1x128xf32>
    %965 = arith.divf %963, %964 : vector<1x128xf32>
    %966 = arith.mulf %957, %939 : vector<1x128xf32>
    %967 = arith.mulf %951, %959 : vector<1x128xf32>
    %968 = arith.addf %966, %967 : vector<1x128xf32>
    %969 = math.tanh %968 : vector<1x128xf32>
    %970 = arith.mulf %965, %969 : vector<1x128xf32>
    %c7_234 = arith.constant 7 : index
    %c0_235 = arith.constant 0 : index
    %971 = vector.load %arg10[%c7_234, %c0_235] : memref<8x128xf32, #tpu.memory_space<vmem>>, vector<1x128xf32>
    tpu.vector_store %arg10[%c7_234, %c0_235], %970 {strides = array<i32>} : memref<8x128xf32, #tpu.memory_space<vmem>>, vector<1x128xf32>,
    %c0_236 = arith.constant 0 : index
    %c0_237 = arith.constant 0 : index
    %972 = vector.load %arg10[%c0_236, %c0_237] : memref<8x128xf32, #tpu.memory_space<vmem>>, vector<8x128xf32>
    %cst_238 = arith.constant dense<0.000000e+00> : vector<8x129xf32>
    %973 = tpu.matmul %972, %0, %cst_238 {dimension_numbers = #tpu.dot_dimension_numbers<[1], [0], [0], [1], [0, 0, 1, 1], [], []>} : vector<8x128xf32>, vector<128x129xf32>, vector<8x129xf32> -> vector<8x129xf32>
    %974 = vector.broadcast %1 : vector<1x129xf32> to vector<8x129xf32>
    %975 = arith.addf %973, %974 : vector<8x129xf32>
    %976 = arith.maximumf %488, %975 : vector<8x129xf32>
    %977 = arith.subf %488, %976 : vector<8x129xf32>
    %978 = math.exp %977 : vector<8x129xf32>
    %979 = arith.subf %975, %976 : vector<8x129xf32>
    %980 = math.exp %979 : vector<8x129xf32>
    %981 = arith.addf %978, %980 : vector<8x129xf32>
    %cst_239 = arith.constant 1.000000e+00 : f32
    %982 = vector.broadcast %cst_239 : f32 to vector<8x129xf32>
    %983 = arith.divf %982, %981 : vector<8x129xf32>
    %984 = arith.mulf %978, %983 : vector<8x129xf32>
    %c0_240 = arith.constant 0 : index
    %c0_241 = arith.constant 0 : index
    %c0_242 = arith.constant 0 : index
    %985 = vector.load %arg9[%c0_240, %c0_241, %c0_242] : memref<2x8x129xf32, #tpu.memory_space<vmem>>, vector<1x8x129xf32>
    %986 = vector.shape_cast %985 : vector<1x8x129xf32> to vector<8x129xf32>
    %987 = vector.shape_cast %984 : vector<8x129xf32> to vector<1x8x129xf32>
    tpu.vector_store %arg9[%c0_240, %c0_241, %c0_242], %987 {strides = array<i32>} : memref<2x8x129xf32, #tpu.memory_space<vmem>>, vector<1x8x129xf32>,
    %988 = arith.mulf %980, %983 : vector<8x129xf32>
    %c1_243 = arith.constant 1 : index
    %c0_244 = arith.constant 0 : index
    %c0_245 = arith.constant 0 : index
    %989 = vector.load %arg9[%c1_243, %c0_244, %c0_245] : memref<2x8x129xf32, #tpu.memory_space<vmem>>, vector<1x8x129xf32>
    %990 = vector.shape_cast %989 : vector<1x8x129xf32> to vector<8x129xf32>
    %991 = vector.shape_cast %988 : vector<8x129xf32> to vector<1x8x129xf32>
    tpu.vector_store %arg9[%c1_243, %c0_244, %c0_245], %991 {strides = array<i32>} : memref<2x8x129xf32, #tpu.memory_space<vmem>>, vector<1x8x129xf32>,
    return
  }
}

</mosaic_0001>

<llo_original>
// kernel: model_forward.1
$region0: #{model_forward.1}
  #allocation0 [shape = 'u32[]', space=smem, size = 0x4, offset = 0x4, fixed_abs, tag = 'smem constant byte address 0x4 - core index']
  #allocation1 [shape = 'u32[144,128]{1,0:T(1,128)}', space=vmem, size = 0x12000, scoped, tag = 'internal scratch']
  #allocation2 [shape = 'f32[8,128]{1,0:T(8,128)}', space=vmem, size = 0x1000, scoped, tag = 'scratch operand']
  %s0 = inlined_call_operand.vmem [shape: f32[2,8,129], index: 0, kind: input, shape index: {}]
  %s1 = inlined_call_operand.hbm [shape: f32[129,512], index: 1, kind: input, shape index: {}]
  %s2 = inlined_call_operand.hbm [shape: f32[128,512], index: 2, kind: input, shape index: {}]
  %s3 = inlined_call_operand.vmem [shape: f32[1,512], index: 3, kind: input, shape index: {}]
  %s4 = inlined_call_operand.hbm [shape: f32[128,512], index: 4, kind: input, shape index: {}]
  %s5 = inlined_call_operand.hbm [shape: f32[128,512], index: 5, kind: input, shape index: {}]
  %s6 = inlined_call_operand.vmem [shape: f32[1,512], index: 6, kind: input, shape index: {}]
  %s7 = inlined_call_operand.vmem [shape: f32[128,129], index: 7, kind: input, shape index: {}]
  %s8 = inlined_call_operand.vmem [shape: f32[1,129], index: 8, kind: input, shape index: {}]
  %s9 = inlined_call_operand.hbm [shape: f32[2,8,129], index: 9, kind: output, shape index: {}]
  %s10 = sld [smem:[#allocation0]]
  $region62: #{model_forward.1} parent=0
    _
  %s12 = ssub.s32 1, %s10
  %s13 = scalar_select 0, %s12, %s10
  $region1: #{model_forward.1} parent=0
    #allocation3 [shape = 'u8[278528]{0}', space=vmem, size = 0x44000, scoped, tag = 'input window, operand 1, single buffered']
    #allocation4 [shape = 's32[1]{0}', space=sflag, size = 0x4, scoped, tag = 'scoped memory for model_forward.1']
    #allocation5 [shape = 's32[1]{0}', space=sflag, size = 0x4, scoped, tag = 'scoped memory for model_forward.1']
    #allocation6 [shape = 'u8[262144]{0}', space=vmem, size = 0x40000, scoped, tag = 'input window, operand 2, single buffered']
    #allocation7 [shape = 's32[1]{0}', space=sflag, size = 0x4, scoped, tag = 'scoped memory for model_forward.1']
    #allocation8 [shape = 'u8[262144]{0}', space=vmem, size = 0x40000, scoped, tag = 'input window, operand 4, single buffered']
    #allocation9 [shape = 'u8[262144]{0}', space=vmem, size = 0x40000, scoped, tag = 'input window, operand 5, single buffered']
    #allocation10 [shape = 's32[1]{0}', space=sflag, size = 0x4, scoped, tag = 'scoped memory for model_forward.1']
    #allocation11 [shape = 'u8[16384]{0}', space=vmem, size = 0x4000, scoped, tag = 'output window, operand 0, single buffered']
    %14 = vsyncpa [#allocation4], 0
    %15 = vsyncpa [#allocation7], 0
    %16 = vsyncpa [#allocation10], 0
    %17 = vsyncpa [#allocation5], 0
    // Predicated region
    $region2: #{model_forward.1} parent=1 // pred_check
      _
    $region3: #{model_forward.1} parent=1 // pred_check_branch
      %19 = sbr.rel (0) target = $region5
    $region4: #{model_forward.1} parent=1 // pred_region
      _
    $region5: #{model_forward.1} parent=1 // pred_fallthru
      _
    // Predicated region
    $region6: #{model_forward.1} parent=1 // pred_check
      _
    $region7: #{model_forward.1} parent=1 // pred_check_branch
      %21 = sbr.rel (0) target = $region9
    $region8: #{model_forward.1} parent=1 // pred_region
      %s23 = ssub.s32 8704, 8704
      %24 = vsyncadd [#allocation4], %s23
      %s25 = sshll.u32 [#allocation3], 4
      %s26 = int_to_ptr.vmem [resolvable:$true] %s25
      %31 = dma.hbm_to_vmem [thread:$0]  %s1, 8704, %s26, [#allocation4], 512, 512, 32
    $region9: #{model_forward.1} parent=1 // pred_fallthru
      _
    // Predicated region
    $region10: #{model_forward.1} parent=1 // pred_check
      _
    $region11: #{model_forward.1} parent=1 // pred_check_branch
      %33 = sbr.rel (0) target = $region13
    $region12: #{model_forward.1} parent=1 // pred_region
      %s35 = ssub.s32 8192, 8192
      %36 = vsyncadd [#allocation7], %s35
      %s37 = sshll.u32 [#allocation6], 4
      %s38 = int_to_ptr.vmem [resolvable:$true] %s37
      %43 = dma.hbm_to_vmem [thread:$0]  %s2, 8192, %s38, [#allocation7], 512, 512, 32
    $region13: #{model_forward.1} parent=1 // pred_fallthru
      _
    // Predicated region
    $region14: #{model_forward.1} parent=1 // pred_check
      _
    $region15: #{model_forward.1} parent=1 // pred_check_branch
      %45 = sbr.rel (0) target = $region17
    $region16: #{model_forward.1} parent=1 // pred_region
      _
    $region17: #{model_forward.1} parent=1 // pred_fallthru
      _
    // Predicated region
    $region18: #{model_forward.1} parent=1 // pred_check
      _
    $region19: #{model_forward.1} parent=1 // pred_check_branch
      %47 = sbr.rel (0) target = $region21
    $region20: #{model_forward.1} parent=1 // pred_region
      %s49 = ssub.s32 8192, 8192
      %50 = vsyncadd [#allocation7], %s49
      %s51 = sshll.u32 [#allocation8], 4
      %s52 = int_to_ptr.vmem [resolvable:$true] %s51
      %57 = dma.hbm_to_vmem [thread:$0]  %s4, 8192, %s52, [#allocation7], 512, 512, 32
    $region21: #{model_forward.1} parent=1 // pred_fallthru
      _
    // Predicated region
    $region22: #{model_forward.1} parent=1 // pred_check
      _
    $region23: #{model_forward.1} parent=1 // pred_check_branch
      %59 = sbr.rel (0) target = $region25
    $region24: #{model_forward.1} parent=1 // pred_region
      %s61 = ssub.s32 8192, 8192
      %62 = vsyncadd [#allocation10], %s61
      %s63 = sshll.u32 [#allocation9], 4
      %s64 = int_to_ptr.vmem [resolvable:$true] %s63
      %69 = dma.hbm_to_vmem [thread:$0]  %s5, 8192, %s64, [#allocation10], 512, 512, 32
    $region25: #{model_forward.1} parent=1 // pred_fallthru
      _
    // Predicated region
    $region26: #{model_forward.1} parent=1 // pred_check
      _
    $region27: #{model_forward.1} parent=1 // pred_check_branch
      %71 = sbr.rel (0) target = $region29
    $region28: #{model_forward.1} parent=1 // pred_region
      _
    $region29: #{model_forward.1} parent=1 // pred_fallthru
      _
    // Predicated region
    $region30: #{model_forward.1} parent=1 // pred_check
      _
    $region31: #{model_forward.1} parent=1 // pred_check_branch
      %73 = sbr.rel (0) target = $region33
    $region32: #{model_forward.1} parent=1 // pred_region
      _
    $region33: #{model_forward.1} parent=1 // pred_fallthru
      _
    // Predicated region
    $region34: #{model_forward.1} parent=1 // pred_check
      _
    $region35: #{model_forward.1} parent=1 // pred_check_branch
      %75 = sbr.rel (0) target = $region37
    $region36: #{model_forward.1} parent=1 // pred_region
      _
    $region37: #{model_forward.1} parent=1 // pred_fallthru
      _
    // Predicated region
    $region38: #{model_forward.1} parent=1 // pred_check
      _
    $region39: #{model_forward.1} parent=1 // pred_check_branch
      %77 = sbr.rel (0) target = $region41
    $region40: #{model_forward.1} parent=1 // pred_region
      %78 = dma.done [#allocation4], 8704
    $region41: #{model_forward.1} parent=1 // pred_fallthru
      _
    // Predicated region
    $region42: #{model_forward.1} parent=1 // pred_check
      _
    $region43: #{model_forward.1} parent=1 // pred_check_branch
      %80 = sbr.rel (0) target = $region45
    $region44: #{model_forward.1} parent=1 // pred_region
      %81 = dma.done [#allocation7], 8192
    $region45: #{model_forward.1} parent=1 // pred_fallthru
      _
    // Predicated region
    $region46: #{model_forward.1} parent=1 // pred_check
      _
    $region47: #{model_forward.1} parent=1 // pred_check_branch
      %83 = sbr.rel (0) target = $region49
    $region48: #{model_forward.1} parent=1 // pred_region
      %84 = dma.done [#allocation7], 8192
    $region49: #{model_forward.1} parent=1 // pred_fallthru
      _
    // Predicated region
    $region50: #{model_forward.1} parent=1 // pred_check
      _
    $region51: #{model_forward.1} parent=1 // pred_check_branch
      %86 = sbr.rel (0) target = $region53
    $region52: #{model_forward.1} parent=1 // pred_region
      %87 = dma.done [#allocation10], 8192
    $region53: #{model_forward.1} parent=1 // pred_fallthru
      _
    %v88 = vld [vmem:[%s7] sm:$0xff]
    %v89 = vld [vmem:[%s7 + $0x8] sm:$0xff]
    %v90 = vld [vmem:[%s7 + $0x10] sm:$0xff]
    %v91 = vld [vmem:[%s7 + $0x18] sm:$0xff]
    %v92 = vld [vmem:[%s7 + $0x20] sm:$0xff]
    %v93 = vld [vmem:[%s7 + $0x28] sm:$0xff]
    %v94 = vld [vmem:[%s7 + $0x30] sm:$0xff]
    %v95 = vld [vmem:[%s7 + $0x38] sm:$0xff]
    %v96 = vld [vmem:[%s7 + $0x40] sm:$0xff]
    %v97 = vld [vmem:[%s7 + $0x48] sm:$0xff]
    %v98 = vld [vmem:[%s7 + $0x50] sm:$0xff]
    %v99 = vld [vmem:[%s7 + $0x58] sm:$0xff]
    %v100 = vld [vmem:[%s7 + $0x60] sm:$0xff]
    %v101 = vld [vmem:[%s7 + $0x68] sm:$0xff]
    %v102 = vld [vmem:[%s7 + $0x70] sm:$0xff]
    %v103 = vld [vmem:[%s7 + $0x78] sm:$0xff]
    %v104 = vld [vmem:[%s7 + $0x80] sm:$0xff]
    %v105 = vld [vmem:[%s7 + $0x88] sm:$0xff]
    %v106 = vld [vmem:[%s7 + $0x90] sm:$0xff]
    %v107 = vld [vmem:[%s7 + $0x98] sm:$0xff]
    %v108 = vld [vmem:[%s7 + $0xa0] sm:$0xff]
    %v109 = vld [vmem:[%s7 + $0xa8] sm:$0xff]
    %v110 = vld [vmem:[%s7 + $0xb0] sm:$0xff]
    %v111 = vld [vmem:[%s7 + $0xb8] sm:$0xff]
    %v112 = vld [vmem:[%s7 + $0xc0] sm:$0xff]
    %v113 = vld [vmem:[%s7 + $0xc8] sm:$0xff]
    %v114 = vld [vmem:[%s7 + $0xd0] sm:$0xff]
    %v115 = vld [vmem:[%s7 + $0xd8] sm:$0xff]
    %v116 = vld [vmem:[%s7 + $0xe0] sm:$0xff]
    %v117 = vld [vmem:[%s7 + $0xe8] sm:$0xff]
    %v118 = vld [vmem:[%s7 + $0xf0] sm:$0xff]
    %v119 = vld [vmem:[%s7 + $0xf8] sm:$0xff]
    %v120 = vld [vmem:[%s8] sm:$0x3]
    %v121 = vld [vmem:[%s0] sm:$0xff]
    %v122 = vld [vmem:[%s0 + $0x8] sm:$0xff]
    %v123 = vld [vmem:[#allocation3] sm:$0xff]
    %v124 = vld [vmem:[#allocation3 + $0x8] sm:$0xff]
    %v125 = vld [vmem:[#allocation3 + $0x10] sm:$0xff]
    %v126 = vld [vmem:[#allocation3 + $0x18] sm:$0xff]
    %v127 = vld [vmem:[#allocation3 + $0x20] sm:$0xff]
    %v128 = vld [vmem:[#allocation3 + $0x28] sm:$0xff]
    %v129 = vld [vmem:[#allocation3 + $0x30] sm:$0xff]
    %v130 = vld [vmem:[#allocation3 + $0x38] sm:$0xff]
    %v131 = vld [vmem:[#allocation3 + $0x40] sm:$0xff]
    %v132 = vld [vmem:[#allocation3 + $0x48] sm:$0xff]
    %v133 = vld [vmem:[#allocation3 + $0x50] sm:$0xff]
    %v134 = vld [vmem:[#allocation3 + $0x58] sm:$0xff]
    %v135 = vld [vmem:[#allocation3 + $0x60] sm:$0xff]
    %v136 = vld [vmem:[#allocation3 + $0x68] sm:$0xff]
    %v137 = vld [vmem:[#allocation3 + $0x70] sm:$0xff]
    %v138 = vld [vmem:[#allocation3 + $0x78] sm:$0xff]
    %v139 = vld [vmem:[#allocation3 + $0x80] sm:$0xff]
    %v140 = vld [vmem:[#allocation3 + $0x88] sm:$0xff]
    %v141 = vld [vmem:[#allocation3 + $0x90] sm:$0xff]
    %v142 = vld [vmem:[#allocation3 + $0x98] sm:$0xff]
    %v143 = vld [vmem:[#allocation3 + $0xa0] sm:$0xff]
    %v144 = vld [vmem:[#allocation3 + $0xa8] sm:$0xff]
    %v145 = vld [vmem:[#allocation3 + $0xb0] sm:$0xff]
    %v146 = vld [vmem:[#allocation3 + $0xb8] sm:$0xff]
    %v147 = vld [vmem:[#allocation3 + $0xc0] sm:$0xff]
    %v148 = vld [vmem:[#allocation3 + $0xc8] sm:$0xff]
    %v149 = vld [vmem:[#allocation3 + $0xd0] sm:$0xff]
    %v150 = vld [vmem:[#allocation3 + $0xd8] sm:$0xff]
    %v151 = vld [vmem:[#allocation3 + $0xe0] sm:$0xff]
    %v152 = vld [vmem:[#allocation3 + $0xe8] sm:$0xff]
    %v153 = vld [vmem:[#allocation3 + $0xf0] sm:$0xff]
    %v154 = vld [vmem:[#allocation3 + $0xf8] sm:$0xff]
    %v155 = vld [vmem:[#allocation3 + $0x100] sm:$0xff]
    %v156 = vld [vmem:[#allocation3 + $0x108] sm:$0xff]
    %v157 = vld [vmem:[#allocation3 + $0x110] sm:$0xff]
    %v158 = vld [vmem:[#allocation3 + $0x118] sm:$0xff]
    %v159 = vld [vmem:[#allocation3 + $0x120] sm:$0xff]
    %v160 = vld [vmem:[#allocation3 + $0x128] sm:$0xff]
    %v161 = vld [vmem:[#allocation3 + $0x130] sm:$0xff]
    %v162 = vld [vmem:[#allocation3 + $0x138] sm:$0xff]
    %v163 = vld [vmem:[#allocation3 + $0x140] sm:$0xff]
    %v164 = vld [vmem:[#allocation3 + $0x148] sm:$0xff]
    %v165 = vld [vmem:[#allocation3 + $0x150] sm:$0xff]
    %v166 = vld [vmem:[#allocation3 + $0x158] sm:$0xff]
    %v167 = vld [vmem:[#allocation3 + $0x160] sm:$0xff]
    %v168 = vld [vmem:[#allocation3 + $0x168] sm:$0xff]
    %v169 = vld [vmem:[#allocation3 + $0x170] sm:$0xff]
    %v170 = vld [vmem:[#allocation3 + $0x178] sm:$0xff]
    %v171 = vld [vmem:[#allocation3 + $0x180] sm:$0xff]
    %v172 = vld [vmem:[#allocation3 + $0x188] sm:$0xff]
    %v173 = vld [vmem:[#allocation3 + $0x190] sm:$0xff]
    %v174 = vld [vmem:[#allocation3 + $0x198] sm:$0xff]
    %v175 = vld [vmem:[#allocation3 + $0x1a0] sm:$0xff]
    %v176 = vld [vmem:[#allocation3 + $0x1a8] sm:$0xff]
    %v177 = vld [vmem:[#allocation3 + $0x1b0] sm:$0xff]
    %v178 = vld [vmem:[#allocation3 + $0x1b8] sm:$0xff]
    %v179 = vld [vmem:[#allocation3 + $0x1c0] sm:$0xff]
    %v180 = vld [vmem:[#allocation3 + $0x1c8] sm:$0xff]
    %v181 = vld [vmem:[#allocation3 + $0x1d0] sm:$0xff]
    %v182 = vld [vmem:[#allocation3 + $0x1d8] sm:$0xff]
    %v183 = vld [vmem:[#allocation3 + $0x1e0] sm:$0xff]
    %v184 = vld [vmem:[#allocation3 + $0x1e8] sm:$0xff]
    %v185 = vld [vmem:[#allocation3 + $0x1f0] sm:$0xff]
    %v186 = vld [vmem:[#allocation3 + $0x1f8] sm:$0xff]
    %v187 = vld [vmem:[#allocation3 + $0x200] sm:$0x1]
    %v188 = vld [vmem:[#allocation3 + $0x208] sm:$0x1]
    %v189 = vld [vmem:[#allocation3 + $0x210] sm:$0x1]
    %v190 = vld [vmem:[#allocation3 + $0x218] sm:$0x1]
    %v191 = vld [vmem:[#allocation6] sm:$0xff]
    %v192 = vld [vmem:[#allocation6 + $0x8] sm:$0xff]
    %v193 = vld [vmem:[#allocation6 + $0x10] sm:$0xff]
    %v194 = vld [vmem:[#allocation6 + $0x18] sm:$0xff]
    %v195 = vld [vmem:[#allocation6 + $0x20] sm:$0xff]
    %v196 = vld [vmem:[#allocation6 + $0x28] sm:$0xff]
    %v197 = vld [vmem:[#allocation6 + $0x30] sm:$0xff]
    %v198 = vld [vmem:[#allocation6 + $0x38] sm:$0xff]
    %v199 = vld [vmem:[#allocation6 + $0x40] sm:$0xff]
    %v200 = vld [vmem:[#allocation6 + $0x48] sm:$0xff]
    %v201 = vld [vmem:[#allocation6 + $0x50] sm:$0xff]
    %v202 = vld [vmem:[#allocation6 + $0x58] sm:$0xff]
    %v203 = vld [vmem:[#allocation6 + $0x60] sm:$0xff]
    %v204 = vld [vmem:[#allocation6 + $0x68] sm:$0xff]
    %v205 = vld [vmem:[#allocation6 + $0x70] sm:$0xff]
    %v206 = vld [vmem:[#allocation6 + $0x78] sm:$0xff]
    %v207 = vld [vmem:[#allocation6 + $0x80] sm:$0xff]
    %v208 = vld [vmem:[#allocation6 + $0x88] sm:$0xff]
    %v209 = vld [vmem:[#allocation6 + $0x90] sm:$0xff]
    %v210 = vld [vmem:[#allocation6 + $0x98] sm:$0xff]
    %v211 = vld [vmem:[#allocation6 + $0xa0] sm:$0xff]
    %v212 = vld [vmem:[#allocation6 + $0xa8] sm:$0xff]
    %v213 = vld [vmem:[#allocation6 + $0xb0] sm:$0xff]
    %v214 = vld [vmem:[#allocation6 + $0xb8] sm:$0xff]
    %v215 = vld [vmem:[#allocation6 + $0xc0] sm:$0xff]
    %v216 = vld [vmem:[#allocation6 + $0xc8] sm:$0xff]
    %v217 = vld [vmem:[#allocation6 + $0xd0] sm:$0xff]
    %v218 = vld [vmem:[#allocation6 + $0xd8] sm:$0xff]
    %v219 = vld [vmem:[#allocation6 + $0xe0] sm:$0xff]
    %v220 = vld [vmem:[#allocation6 + $0xe8] sm:$0xff]
    %v221 = vld [vmem:[#allocation6 + $0xf0] sm:$0xff]
    %v222 = vld [vmem:[#allocation6 + $0xf8] sm:$0xff]
    %v223 = vld [vmem:[#allocation6 + $0x100] sm:$0xff]
    %v224 = vld [vmem:[#allocation6 + $0x108] sm:$0xff]
    %v225 = vld [vmem:[#allocation6 + $0x110] sm:$0xff]
    %v226 = vld [vmem:[#allocation6 + $0x118] sm:$0xff]
    %v227 = vld [vmem:[#allocation6 + $0x120] sm:$0xff]
    %v228 = vld [vmem:[#allocation6 + $0x128] sm:$0xff]
    %v229 = vld [vmem:[#allocation6 + $0x130] sm:$0xff]
    %v230 = vld [vmem:[#allocation6 + $0x138] sm:$0xff]
    %v231 = vld [vmem:[#allocation6 + $0x140] sm:$0xff]
    %v232 = vld [vmem:[#allocation6 + $0x148] sm:$0xff]
    %v233 = vld [vmem:[#allocation6 + $0x150] sm:$0xff]
    %v234 = vld [vmem:[#allocation6 + $0x158] sm:$0xff]
    %v235 = vld [vmem:[#allocation6 + $0x160] sm:$0xff]
    %v236 = vld [vmem:[#allocation6 + $0x168] sm:$0xff]
    %v237 = vld [vmem:[#allocation6 + $0x170] sm:$0xff]
    %v238 = vld [vmem:[#allocation6 + $0x178] sm:$0xff]
    %v239 = vld [vmem:[#allocation6 + $0x180] sm:$0xff]
    %v240 = vld [vmem:[#allocation6 + $0x188] sm:$0xff]
    %v241 = vld [vmem:[#allocation6 + $0x190] sm:$0xff]
    %v242 = vld [vmem:[#allocation6 + $0x198] sm:$0xff]
    %v243 = vld [vmem:[#allocation6 + $0x1a0] sm:$0xff]
    %v244 = vld [vmem:[#allocation6 + $0x1a8] sm:$0xff]
    %v245 = vld [vmem:[#allocation6 + $0x1b0] sm:$0xff]
    %v246 = vld [vmem:[#allocation6 + $0x1b8] sm:$0xff]
    %v247 = vld [vmem:[#allocation6 + $0x1c0] sm:$0xff]
    %v248 = vld [vmem:[#allocation6 + $0x1c8] sm:$0xff]
    %v249 = vld [vmem:[#allocation6 + $0x1d0] sm:$0xff]
    %v250 = vld [vmem:[#allocation6 + $0x1d8] sm:$0xff]
    %v251 = vld [vmem:[#allocation6 + $0x1e0] sm:$0xff]
    %v252 = vld [vmem:[#allocation6 + $0x1e8] sm:$0xff]
    %v253 = vld [vmem:[#allocation6 + $0x1f0] sm:$0xff]
    %v254 = vld [vmem:[#allocation6 + $0x1f8] sm:$0xff]
    %v255 = vld [vmem:[%s3] sm:$0xf]
    %v257 = vlaneseq
    %v258 = vshrl.u32 %v257, 7
    %v259 = vsub.s32 0, %v258
    %v260 = vrot.slane %v255, %v259
    %v261 = vlaneseq
    %v262 = vshrl.u32 %v261, 7
    %v263 = vsub.s32 1, %v262
    %v264 = vrot.slane %v255, %v263
    %v265 = vlaneseq
    %v266 = vshrl.u32 %v265, 7
    %v267 = vsub.s32 2, %v266
    %v268 = vrot.slane %v255, %v267
    %v269 = vlaneseq
    %v270 = vshrl.u32 %v269, 7
    %v271 = vsub.s32 3, %v270
    %v272 = vrot.slane %v255, %v271
    %vm277 = vcmask 7168
    %v279 = vsel %vm277, %v122, 0
    %vm281 = vcmask 1040384
    %v283 = vsel %vm281, %v187, 0
    %v286 = vsel %vm281, %v188, 0
    %v289 = vsel %vm281, %v189, 0
    %v292 = vsel %vm281, %v190, 0
    %294 = vmatprep.subr.mxu0 %v124
    %295 = vmatpush1.msra.mxu0 %v123
    %296 = vmatprep.subr.mxu0 %v128
    %297 = vmatpush1.msra.mxu0 %v127
    %298 = vmatprep.subr.mxu0 %v132
    %299 = vmatpush1.msra.mxu0 %v131
    %300 = vmatprep.subr.mxu0 %v136
    %301 = vmatpush1.msra.mxu0 %v135
    %302 = vmatprep.subr.mxu0 %v140
    %303 = vmatpush1.msra.mxu0 %v139
    %304 = vmatprep.subr.mxu0 %v144
    %305 = vmatpush1.msra.mxu0 %v143
    %306 = vmatprep.subr.mxu0 %v148
    %307 = vmatpush1.msra.mxu0 %v147
    %308 = vmatprep.subr.mxu0 %v152
    %309 = vmatpush1.msra.mxu0 %v151
    %310 = vmatprep.subr.mxu0 %v156
    %311 = vmatpush1.msra.mxu0 %v155
    %312 = vmatprep.subr.mxu0 %v160
    %313 = vmatpush1.msra.mxu0 %v159
    %314 = vmatprep.subr.mxu0 %v164
    %315 = vmatpush1.msra.mxu0 %v163
    %316 = vmatprep.subr.mxu0 %v168
    %317 = vmatpush1.msra.mxu0 %v167
    %318 = vmatprep.subr.mxu0 %v172
    %319 = vmatpush1.msra.mxu0 %v171
    %320 = vmatprep.subr.mxu0 %v176
    %321 = vmatpush1.msra.mxu0 %v175
    %322 = vmatprep.subr.mxu0 %v180
    %323 = vmatpush1.msra.mxu0 %v179
    %324 = vmatprep.subr.mxu0 %v184
    %325 = vmatpush1.msra.mxu0 %v183
    %326 = vmatprep.subr.mxu0 %v286
    %327 = vmatpush1.msra.mxu0 %v283
    %328 = vmatprep.subr.mxu0 0.0
    %329 = vmatpush1.msra.mxu0 0.0
    %330 = vmatprep.subr.mxu0 0.0
    %331 = vmatpush1.msra.mxu0 0.0
    %332 = vmatprep.subr.mxu0 0.0
    %333 = vmatpush1.msra.mxu0 0.0
    %334 = vmatprep.subr.mxu0 0.0
    %335 = vmatpush1.msra.mxu0 0.0
    %336 = vmatprep.subr.mxu0 0.0
    %337 = vmatpush1.msra.mxu0 0.0
    %338 = vmatprep.subr.mxu0 0.0
    %339 = vmatpush1.msra.mxu0 0.0
    %340 = vmatprep.subr.mxu0 0.0
    %341 = vmatpush1.msra.mxu0 0.0
    %342 = vmatprep.subr.mxu0 0.0
    %343 = vmatpush1.msra.mxu0 0.0
    %344 = vmatprep.subr.mxu0 0.0
    %345 = vmatpush1.msra.mxu0 0.0
    %346 = vmatprep.subr.mxu0 0.0
    %347 = vmatpush1.msra.mxu0 0.0
    %348 = vmatprep.subr.mxu0 0.0
    %349 = vmatpush1.msra.mxu0 0.0
    %350 = vmatprep.subr.mxu0 0.0
    %351 = vmatpush1.msra.mxu0 0.0
    %352 = vmatprep.subr.mxu0 0.0
    %353 = vmatpush1.msra.mxu0 0.0
    %354 = vmatprep.subr.mxu0 0.0
    %355 = vmatpush1.msra.mxu0 0.0
    %356 = vmatprep.subr.mxu0 0.0
    %357 = vmatpush1.msra.mxu0 0.0
    %358 = vmatprep.mubr.f32.mxu0 %v279
    %359 = vmatmul.mubr.f32.gmra.mrb[0].mxu0 %v121
    %v360 = vpop.f32.mrb[0].mxu0
    %v361 = vadd.f32 %v260, %v360
    %v362 = vpop.f32.mrb[0].mxu0
    %v363 = vadd.f32 %v264, %v362
    %364 = vdwg.mxu0
    %365 = vmatprep.subr.mxu0 %v126
    %366 = vmatpush1.msra.mxu0 %v125
    %367 = vmatprep.subr.mxu0 %v130
    %368 = vmatpush1.msra.mxu0 %v129
    %369 = vmatprep.subr.mxu0 %v134
    %370 = vmatpush1.msra.mxu0 %v133
    %371 = vmatprep.subr.mxu0 %v138
    %372 = vmatpush1.msra.mxu0 %v137
    %373 = vmatprep.subr.mxu0 %v142
    %374 = vmatpush1.msra.mxu0 %v141
    %375 = vmatprep.subr.mxu0 %v146
    %376 = vmatpush1.msra.mxu0 %v145
    %377 = vmatprep.subr.mxu0 %v150
    %378 = vmatpush1.msra.mxu0 %v149
    %379 = vmatprep.subr.mxu0 %v154
    %380 = vmatpush1.msra.mxu0 %v153
    %381 = vmatprep.subr.mxu0 %v158
    %382 = vmatpush1.msra.mxu0 %v157
    %383 = vmatprep.subr.mxu0 %v162
    %384 = vmatpush1.msra.mxu0 %v161
    %385 = vmatprep.subr.mxu0 %v166
    %386 = vmatpush1.msra.mxu0 %v165
    %387 = vmatprep.subr.mxu0 %v170
    %388 = vmatpush1.msra.mxu0 %v169
    %389 = vmatprep.subr.mxu0 %v174
    %390 = vmatpush1.msra.mxu0 %v173
    %391 = vmatprep.subr.mxu0 %v178
    %392 = vmatpush1.msra.mxu0 %v177
    %393 = vmatprep.subr.mxu0 %v182
    %394 = vmatpush1.msra.mxu0 %v181
    %395 = vmatprep.subr.mxu0 %v186
    %396 = vmatpush1.msra.mxu0 %v185
    %397 = vmatprep.subr.mxu0 %v292
    %398 = vmatpush1.msra.mxu0 %v289
    %399 = vmatprep.subr.mxu0 0.0
    %400 = vmatpush1.msra.mxu0 0.0
    %401 = vmatprep.subr.mxu0 0.0
    %402 = vmatpush1.msra.mxu0 0.0
    %403 = vmatprep.subr.mxu0 0.0
    %404 = vmatpush1.msra.mxu0 0.0
    %405 = vmatprep.subr.mxu0 0.0
    %406 = vmatpush1.msra.mxu0 0.0
    %407 = vmatprep.subr.mxu0 0.0
    %408 = vmatpush1.msra.mxu0 0.0
    %409 = vmatprep.subr.mxu0 0.0
    %410 = vmatpush1.msra.mxu0 0.0
    %411 = vmatprep.subr.mxu0 0.0
    %412 = vmatpush1.msra.mxu0 0.0
    %413 = vmatprep.subr.mxu0 0.0
    %414 = vmatpush1.msra.mxu0 0.0
    %415 = vmatprep.subr.mxu0 0.0
    %416 = vmatpush1.msra.mxu0 0.0
    %417 = vmatprep.subr.mxu0 0.0
    %418 = vmatpush1.msra.mxu0 0.0
    %419 = vmatprep.subr.mxu0 0.0
    %420 = vmatpush1.msra.mxu0 0.0
    %421 = vmatprep.subr.mxu0 0.0
    %422 = vmatpush1.msra.mxu0 0.0
    %423 = vmatprep.subr.mxu0 0.0
    %424 = vmatpush1.msra.mxu0 0.0
    %425 = vmatprep.subr.mxu0 0.0
    %426 = vmatpush1.msra.mxu0 0.0
    %427 = vmatprep.subr.mxu0 0.0
    %428 = vmatpush1.msra.mxu0 0.0
    %429 = vmatprep.mubr.f32.mxu0 %v279
    %430 = vmatmul.mubr.f32.gmra.mrb[0].mxu0 %v121
    %v431 = vpop.f32.mrb[0].mxu0
    %v432 = vadd.f32 %v268, %v431
    %v433 = vpop.f32.mrb[0].mxu0
    %v434 = vadd.f32 %v272, %v433
    %435 = vdwg.mxu0
    %436 = vmatprep.subr.mxu0 %v192
    %437 = vmatpush1.msra.mxu0 %v191
    %438 = vmatprep.subr.mxu0 %v196
    %439 = vmatpush1.msra.mxu0 %v195
    %440 = vmatprep.subr.mxu0 %v200
    %441 = vmatpush1.msra.mxu0 %v199
    %442 = vmatprep.subr.mxu0 %v204
    %443 = vmatpush1.msra.mxu0 %v203
    %444 = vmatprep.subr.mxu0 %v208
    %445 = vmatpush1.msra.mxu0 %v207
    %446 = vmatprep.subr.mxu0 %v212
    %447 = vmatpush1.msra.mxu0 %v211
    %448 = vmatprep.subr.mxu0 %v216
    %449 = vmatpush1.msra.mxu0 %v215
    %450 = vmatprep.subr.mxu0 %v220
    %451 = vmatpush1.msra.mxu0 %v219
    %452 = vmatprep.subr.mxu0 %v224
    %453 = vmatpush1.msra.mxu0 %v223
    %454 = vmatprep.subr.mxu0 %v228
    %455 = vmatpush1.msra.mxu0 %v227
    %456 = vmatprep.subr.mxu0 %v232
    %457 = vmatpush1.msra.mxu0 %v231
    %458 = vmatprep.subr.mxu0 %v236
    %459 = vmatpush1.msra.mxu0 %v235
    %460 = vmatprep.subr.mxu0 %v240
    %461 = vmatpush1.msra.mxu0 %v239
    %462 = vmatprep.subr.mxu0 %v244
    %463 = vmatpush1.msra.mxu0 %v243
    %464 = vmatprep.subr.mxu0 %v248
    %465 = vmatpush1.msra.mxu0 %v247
    %466 = vmatprep.subr.mxu0 %v252
    %467 = vmatpush1.msra.mxu0 %v251
    %468 = vmatprep.subr.mxu0 0.0
    %469 = vmatpush1.msra.mxu0 0.0
    %470 = vmatprep.subr.mxu0 0.0
    %471 = vmatpush1.msra.mxu0 0.0
    %472 = vmatprep.subr.mxu0 0.0
    %473 = vmatpush1.msra.mxu0 0.0
    %474 = vmatprep.subr.mxu0 0.0
    %475 = vmatpush1.msra.mxu0 0.0
    %476 = vmatprep.subr.mxu0 0.0
    %477 = vmatpush1.msra.mxu0 0.0
    %478 = vmatprep.subr.mxu0 0.0
    %479 = vmatpush1.msra.mxu0 0.0
    %480 = vmatprep.subr.mxu0 0.0
    %481 = vmatpush1.msra.mxu0 0.0
    %482 = vmatprep.subr.mxu0 0.0
    %483 = vmatpush1.msra.mxu0 0.0
    %484 = vmatprep.subr.mxu0 0.0
    %485 = vmatpush1.msra.mxu0 0.0
    %486 = vmatprep.subr.mxu0 0.0
    %487 = vmatpush1.msra.mxu0 0.0
    %488 = vmatprep.subr.mxu0 0.0
    %489 = vmatpush1.msra.mxu0 0.0
    %490 = vmatprep.subr.mxu0 0.0
    %491 = vmatpush1.msra.mxu0 0.0
    %492 = vmatprep.subr.mxu0 0.0
    %493 = vmatpush1.msra.mxu0 0.0
    %494 = vmatprep.subr.mxu0 0.0
    %495 = vmatpush1.msra.mxu0 0.0
    %496 = vmatprep.subr.mxu0 0.0
    %497 = vmatpush1.msra.mxu0 0.0
    %498 = vmatprep.subr.mxu0 0.0
    %499 = vmatpush1.msra.mxu0 0.0
    %500 = vmatprep.mubr.f32.mxu0 0.0
    %501 = vmatmul.mubr.f32.gmra.mrb[0].mxu0 0.0
    %v502 = vpop.f32.mrb[0].mxu0
    %v503 = vadd.f32 0.0, %v502
    %v504 = vpop.f32.mrb[0].mxu0
    %v505 = vadd.f32 0.0, %v504
    %506 = vdwg.mxu0
    %507 = vmatprep.subr.mxu0 %v194
    %508 = vmatpush1.msra.mxu0 %v193
    %509 = vmatprep.subr.mxu0 %v198
    %510 = vmatpush1.msra.mxu0 %v197
    %511 = vmatprep.subr.mxu0 %v202
    %512 = vmatpush1.msra.mxu0 %v201
    %513 = vmatprep.subr.mxu0 %v206
    %514 = vmatpush1.msra.mxu0 %v205
    %515 = vmatprep.subr.mxu0 %v210
    %516 = vmatpush1.msra.mxu0 %v209
    %517 = vmatprep.subr.mxu0 %v214
    %518 = vmatpush1.msra.mxu0 %v213
    %519 = vmatprep.subr.mxu0 %v218
    %520 = vmatpush1.msra.mxu0 %v217
    %521 = vmatprep.subr.mxu0 %v222
    %522 = vmatpush1.msra.mxu0 %v221
    %523 = vmatprep.subr.mxu0 %v226
    %524 = vmatpush1.msra.mxu0 %v225
    %525 = vmatprep.subr.mxu0 %v230
    %526 = vmatpush1.msra.mxu0 %v229
    %527 = vmatprep.subr.mxu0 %v234
    %528 = vmatpush1.msra.mxu0 %v233
    %529 = vmatprep.subr.mxu0 %v238
    %530 = vmatpush1.msra.mxu0 %v237
    %531 = vmatprep.subr.mxu0 %v242
    %532 = vmatpush1.msra.mxu0 %v241
    %533 = vmatprep.subr.mxu0 %v246
    %534 = vmatpush1.msra.mxu0 %v245
    %535 = vmatprep.subr.mxu0 %v250
    %536 = vmatpush1.msra.mxu0 %v249
    %537 = vmatprep.subr.mxu0 %v254
    %538 = vmatpush1.msra.mxu0 %v253
    %539 = vmatprep.subr.mxu0 0.0
    %540 = vmatpush1.msra.mxu0 0.0
    %541 = vmatprep.subr.mxu0 0.0
    %542 = vmatpush1.msra.mxu0 0.0
    %543 = vmatprep.subr.mxu0 0.0
    %544 = vmatpush1.msra.mxu0 0.0
    %545 = vmatprep.subr.mxu0 0.0
    %546 = vmatpush1.msra.mxu0 0.0
    %547 = vmatprep.subr.mxu0 0.0
    %548 = vmatpush1.msra.mxu0 0.0
    %549 = vmatprep.subr.mxu0 0.0
    %550 = vmatpush1.msra.mxu0 0.0
    %551 = vmatprep.subr.mxu0 0.0
    %552 = vmatpush1.msra.mxu0 0.0
    %553 = vmatprep.subr.mxu0 0.0
    %554 = vmatpush1.msra.mxu0 0.0
    %555 = vmatprep.subr.mxu0 0.0
    %556 = vmatpush1.msra.mxu0 0.0
    %557 = vmatprep.subr.mxu0 0.0
    %558 = vmatpush1.msra.mxu0 0.0
    %559 = vmatprep.subr.mxu0 0.0
    %560 = vmatpush1.msra.mxu0 0.0
    %561 = vmatprep.subr.mxu0 0.0
    %562 = vmatpush1.msra.mxu0 0.0
    %563 = vmatprep.subr.mxu0 0.0
    %564 = vmatpush1.msra.mxu0 0.0
    %565 = vmatprep.subr.mxu0 0.0
    %566 = vmatpush1.msra.mxu0 0.0
    %567 = vmatprep.subr.mxu0 0.0
    %568 = vmatpush1.msra.mxu0 0.0
    %569 = vmatprep.subr.mxu0 0.0
    %570 = vmatpush1.msra.mxu0 0.0
    %571 = vmatprep.mubr.f32.mxu0 0.0
    %572 = vmatmul.mubr.f32.gmra.mrb[0].mxu0 0.0
    %v573 = vpop.f32.mrb[0].mxu0
    %v574 = vadd.f32 0.0, %v573
    %v575 = vpop.f32.mrb[0].mxu0
    %v576 = vadd.f32 0.0, %v575
    %577 = vdwg.mxu0
    %v578 = vadd.f32 %v361, %v503
    %v579 = vadd.f32 %v363, %v505
    %v580 = vadd.f32 %v432, %v574
    %v581 = vadd.f32 %v434, %v576
    %v582 = vxor.u32 %v578, 2147483648
    %v583 = vmul.f32 %v582, 1.442695
    %v584 = vpow.pop %v583
    %v585 = vadd.f32 %v584, 1.0
    %v586 = vrcp.pop %v585
    %v587 = vmul.f32 1.0, %v586
    %v588 = vxor.u32 %v579, 2147483648
    %v589 = vmul.f32 %v588, 1.442695
    %v590 = vpow.pop %v589
    %v591 = vadd.f32 %v590, 1.0
    %v592 = vrcp.pop %v591
    %v593 = vmul.f32 1.0, %v592
    %v594 = vtanh.pop %v580
    %v595 = vxor.u32 %v581, 2147483648
    %v596 = vmul.f32 %v595, 1.442695
    %v597 = vpow.pop %v596
    %v598 = vadd.f32 %v597, 1.0
    %v599 = vrcp.pop %v598
    %v600 = vmul.f32 1.0, %v599
    %v601 = vmul.f32 %v593, 0.0
    %v602 = vmul.f32 %v587, %v594
    %v603 = vadd.f32 %v601, %v602
    %v604 = vtanh.pop %v603
    %v605 = vmul.f32 %v600, %v604
    %606 = vst [vmem:[#allocation2] sm:$0x1] %v605
    %607 = vmatprep.subr.mxu0 %v192
    %608 = vmatpush1.msra.mxu0 %v191
    %609 = vmatprep.subr.mxu0 %v196
    %610 = vmatpush1.msra.mxu0 %v195
    %611 = vmatprep.subr.mxu0 %v200
    %612 = vmatpush1.msra.mxu0 %v199
    %613 = vmatprep.subr.mxu0 %v204
    %614 = vmatpush1.msra.mxu0 %v203
    %615 = vmatprep.subr.mxu0 %v208
    %616 = vmatpush1.msra.mxu0 %v207
    %617 = vmatprep.subr.mxu0 %v212
    %618 = vmatpush1.msra.mxu0 %v211
    %619 = vmatprep.subr.mxu0 %v216
    %620 = vmatpush1.msra.mxu0 %v215
    %621 = vmatprep.subr.mxu0 %v220
    %622 = vmatpush1.msra.mxu0 %v219
    %623 = vmatprep.subr.mxu0 %v224
    %624 = vmatpush1.msra.mxu0 %v223
    %625 = vmatprep.subr.mxu0 %v228
    %626 = vmatpush1.msra.mxu0 %v227
    %627 = vmatprep.subr.mxu0 %v232
    %628 = vmatpush1.msra.mxu0 %v231
    %629 = vmatprep.subr.mxu0 %v236
    %630 = vmatpush1.msra.mxu0 %v235
    %631 = vmatprep.subr.mxu0 %v240
    %632 = vmatpush1.msra.mxu0 %v239
    %633 = vmatprep.subr.mxu0 %v244
    %634 = vmatpush1.msra.mxu0 %v243
    %635 = vmatprep.subr.mxu0 %v248
    %636 = vmatpush1.msra.mxu0 %v247
    %637 = vmatprep.subr.mxu0 %v252
    %638 = vmatpush1.msra.mxu0 %v251
    %639 = vmatprep.subr.mxu0 0.0
    %640 = vmatpush1.msra.mxu0 0.0
    %641 = vmatprep.subr.mxu0 0.0
    %642 = vmatpush1.msra.mxu0 0.0
    %643 = vmatprep.subr.mxu0 0.0
    %644 = vmatpush1.msra.mxu0 0.0
    %645 = vmatprep.subr.mxu0 0.0
    %646 = vmatpush1.msra.mxu0 0.0
    %647 = vmatprep.subr.mxu0 0.0
    %648 = vmatpush1.msra.mxu0 0.0
    %649 = vmatprep.subr.mxu0 0.0
    %650 = vmatpush1.msra.mxu0 0.0
    %651 = vmatprep.subr.mxu0 0.0
    %652 = vmatpush1.msra.mxu0 0.0
    %653 = vmatprep.subr.mxu0 0.0
    %654 = vmatpush1.msra.mxu0 0.0
    %655 = vmatprep.subr.mxu0 0.0
    %656 = vmatpush1.msra.mxu0 0.0
    %657 = vmatprep.subr.mxu0 0.0
    %658 = vmatpush1.msra.mxu0 0.0
    %659 = vmatprep.subr.mxu0 0.0
    %660 = vmatpush1.msra.mxu0 0.0
    %661 = vmatprep.subr.mxu0 0.0
    %662 = vmatpush1.msra.mxu0 0.0
    %663 = vmatprep.subr.mxu0 0.0
    %664 = vmatpush1.msra.mxu0 0.0
    %665 = vmatprep.subr.mxu0 0.0
    %666 = vmatpush1.msra.mxu0 0.0
    %667 = vmatprep.subr.mxu0 0.0
    %668 = vmatpush1.msra.mxu0 0.0
    %669 = vmatprep.subr.mxu0 0.0
    %670 = vmatpush1.msra.mxu0 0.0
    %671 = vmatprep.mubr.f32.mxu0 0.0
    %672 = vmatmul.mubr.f32.gmra.mrb[0].mxu0 %v605
    %v673 = vpop.f32.mrb[0].mxu0
    %v674 = vadd.f32 0.0, %v673
    %v675 = vpop.f32.mrb[0].mxu0
    %v676 = vadd.f32 0.0, %v675
    %677 = vdwg.mxu0
    %678 = vmatprep.subr.mxu0 %v194
    %679 = vmatpush1.msra.mxu0 %v193
    %680 = vmatprep.subr.mxu0 %v198
    %681 = vmatpush1.msra.mxu0 %v197
    %682 = vmatprep.subr.mxu0 %v202
    %683 = vmatpush1.msra.mxu0 %v201
    %684 = vmatprep.subr.mxu0 %v206
    %685 = vmatpush1.msra.mxu0 %v205
    %686 = vmatprep.subr.mxu0 %v210
    %687 = vmatpush1.msra.mxu0 %v209
    %688 = vmatprep.subr.mxu0 %v214
    %689 = vmatpush1.msra.mxu0 %v213
    %690 = vmatprep.subr.mxu0 %v218
    %691 = vmatpush1.msra.mxu0 %v217
    %692 = vmatprep.subr.mxu0 %v222
    %693 = vmatpush1.msra.mxu0 %v221
    %694 = vmatprep.subr.mxu0 %v226
    %695 = vmatpush1.msra.mxu0 %v225
    %696 = vmatprep.subr.mxu0 %v230
    %697 = vmatpush1.msra.mxu0 %v229
    %698 = vmatprep.subr.mxu0 %v234
    %699 = vmatpush1.msra.mxu0 %v233
    %700 = vmatprep.subr.mxu0 %v238
    %701 = vmatpush1.msra.mxu0 %v237
    %702 = vmatprep.subr.mxu0 %v242
    %703 = vmatpush1.msra.mxu0 %v241
    %704 = vmatprep.subr.mxu0 %v246
    %705 = vmatpush1.msra.mxu0 %v245
    %706 = vmatprep.subr.mxu0 %v250
    %707 = vmatpush1.msra.mxu0 %v249
    %708 = vmatprep.subr.mxu0 %v254
    %709 = vmatpush1.msra.mxu0 %v253
    %710 = vmatprep.subr.mxu0 0.0
    %711 = vmatpush1.msra.mxu0 0.0
    %712 = vmatprep.subr.mxu0 0.0
    %713 = vmatpush1.msra.mxu0 0.0
    %714 = vmatprep.subr.mxu0 0.0
    %715 = vmatpush1.msra.mxu0 0.0
    %716 = vmatprep.subr.mxu0 0.0
    %717 = vmatpush1.msra.mxu0 0.0
    %718 = vmatprep.subr.mxu0 0.0
    %719 = vmatpush1.msra.mxu0 0.0
    %720 = vmatprep.subr.mxu0 0.0
    %721 = vmatpush1.msra.mxu0 0.0
    %722 = vmatprep.subr.mxu0 0.0
    %723 = vmatpush1.msra.mxu0 0.0
    %724 = vmatprep.subr.mxu0 0.0
    %725 = vmatpush1.msra.mxu0 0.0
    %726 = vmatprep.subr.mxu0 0.0
    %727 = vmatpush1.msra.mxu0 0.0
    %728 = vmatprep.subr.mxu0 0.0
    %729 = vmatpush1.msra.mxu0 0.0
    %730 = vmatprep.subr.mxu0 0.0
    %731 = vmatpush1.msra.mxu0 0.0
    %732 = vmatprep.subr.mxu0 0.0
    %733 = vmatpush1.msra.mxu0 0.0
    %734 = vmatprep.subr.mxu0 0.0
    %735 = vmatpush1.msra.mxu0 0.0
    %736 = vmatprep.subr.mxu0 0.0
    %737 = vmatpush1.msra.mxu0 0.0
    %738 = vmatprep.subr.mxu0 0.0
    %739 = vmatpush1.msra.mxu0 0.0
    %740 = vmatprep.subr.mxu0 0.0
    %741 = vmatpush1.msra.mxu0 0.0
    %742 = vmatprep.mubr.f32.mxu0 0.0
    %743 = vmatmul.mubr.f32.gmra.mrb[0].mxu0 %v605
    %v744 = vpop.f32.mrb[0].mxu0
    %v745 = vadd.f32 0.0, %v744
    %v746 = vpop.f32.mrb[0].mxu0
    %v747 = vadd.f32 0.0, %v746
    %748 = vdwg.mxu0
    %v753 = vrot.slane %v674, 7
    %v754 = vrot.slane %v676, 7
    %v755 = vrot.slane %v745, 7
    %v756 = vrot.slane %v747, 7
    %v761 = vadd.f32 %v361, %v753
    %v762 = vadd.f32 %v363, %v754
    %v763 = vadd.f32 %v432, %v755
    %v764 = vadd.f32 %v434, %v756
    %v765 = vxor.u32 %v761, 2147483648
    %v766 = vmul.f32 %v765, 1.442695
    %v767 = vpow.pop %v766
    %v768 = vadd.f32 %v767, 1.0
    %v769 = vrcp.pop %v768
    %v770 = vmul.f32 1.0, %v769
    %v771 = vxor.u32 %v762, 2147483648
    %v772 = vmul.f32 %v771, 1.442695
    %v773 = vpow.pop %v772
    %v774 = vadd.f32 %v773, 1.0
    %v775 = vrcp.pop %v774
    %v776 = vmul.f32 1.0, %v775
    %v777 = vtanh.pop %v763
    %v778 = vxor.u32 %v764, 2147483648
    %v779 = vmul.f32 %v778, 1.442695
    %v780 = vpow.pop %v779
    %v781 = vadd.f32 %v780, 1.0
    %v782 = vrcp.pop %v781
    %v783 = vmul.f32 1.0, %v782
    %v785 = vrot.slane %v603, 7
    %v787 = vmul.f32 %v776, %v785
    %v788 = vmul.f32 %v770, %v777
    %v789 = vadd.f32 %v787, %v788
    %v790 = vtanh.pop %v789
    %v791 = vmul.f32 %v783, %v790
    %792 = vst [vmem:[#allocation2] sm:$0x2] %v791
    %v794 = vrot.slane %v791, 1
    %796 = vmatprep.subr.mxu0 %v192
    %797 = vmatpush1.msra.mxu0 %v191
    %798 = vmatprep.subr.mxu0 %v196
    %799 = vmatpush1.msra.mxu0 %v195
    %800 = vmatprep.subr.mxu0 %v200
    %801 = vmatpush1.msra.mxu0 %v199
    %802 = vmatprep.subr.mxu0 %v204
    %803 = vmatpush1.msra.mxu0 %v203
    %804 = vmatprep.subr.mxu0 %v208
    %805 = vmatpush1.msra.mxu0 %v207
    %806 = vmatprep.subr.mxu0 %v212
    %807 = vmatpush1.msra.mxu0 %v211
    %808 = vmatprep.subr.mxu0 %v216
    %809 = vmatpush1.msra.mxu0 %v215
    %810 = vmatprep.subr.mxu0 %v220
    %811 = vmatpush1.msra.mxu0 %v219
    %812 = vmatprep.subr.mxu0 %v224
    %813 = vmatpush1.msra.mxu0 %v223
    %814 = vmatprep.subr.mxu0 %v228
    %815 = vmatpush1.msra.mxu0 %v227
    %816 = vmatprep.subr.mxu0 %v232
    %817 = vmatpush1.msra.mxu0 %v231
    %818 = vmatprep.subr.mxu0 %v236
    %819 = vmatpush1.msra.mxu0 %v235
    %820 = vmatprep.subr.mxu0 %v240
    %821 = vmatpush1.msra.mxu0 %v239
    %822 = vmatprep.subr.mxu0 %v244
    %823 = vmatpush1.msra.mxu0 %v243
    %824 = vmatprep.subr.mxu0 %v248
    %825 = vmatpush1.msra.mxu0 %v247
    %826 = vmatprep.subr.mxu0 %v252
    %827 = vmatpush1.msra.mxu0 %v251
    %828 = vmatprep.subr.mxu0 0.0
    %829 = vmatpush1.msra.mxu0 0.0
    %830 = vmatprep.subr.mxu0 0.0
    %831 = vmatpush1.msra.mxu0 0.0
    %832 = vmatprep.subr.mxu0 0.0
    %833 = vmatpush1.msra.mxu0 0.0
    %834 = vmatprep.subr.mxu0 0.0
    %835 = vmatpush1.msra.mxu0 0.0
    %836 = vmatprep.subr.mxu0 0.0
    %837 = vmatpush1.msra.mxu0 0.0
    %838 = vmatprep.subr.mxu0 0.0
    %839 = vmatpush1.msra.mxu0 0.0
    %840 = vmatprep.subr.mxu0 0.0
    %841 = vmatpush1.msra.mxu0 0.0
    %842 = vmatprep.subr.mxu0 0.0
    %843 = vmatpush1.msra.mxu0 0.0
    %844 = vmatprep.subr.mxu0 0.0
    %845 = vmatpush1.msra.mxu0 0.0
    %846 = vmatprep.subr.mxu0 0.0
    %847 = vmatpush1.msra.mxu0 0.0
    %848 = vmatprep.subr.mxu0 0.0
    %849 = vmatpush1.msra.mxu0 0.0
    %850 = vmatprep.subr.mxu0 0.0
    %851 = vmatpush1.msra.mxu0 0.0
    %852 = vmatprep.subr.mxu0 0.0
    %853 = vmatpush1.msra.mxu0 0.0
    %854 = vmatprep.subr.mxu0 0.0
    %855 = vmatpush1.msra.mxu0 0.0
    %856 = vmatprep.subr.mxu0 0.0
    %857 = vmatpush1.msra.mxu0 0.0
    %858 = vmatprep.subr.mxu0 0.0
    %859 = vmatpush1.msra.mxu0 0.0
    %860 = vmatprep.mubr.f32.mxu0 0.0
    %861 = vmatmul.mubr.f32.gmra.mrb[0].mxu0 %v794
    %v862 = vpop.f32.mrb[0].mxu0
    %v863 = vadd.f32 0.0, %v862
    %v864 = vpop.f32.mrb[0].mxu0
    %v865 = vadd.f32 0.0, %v864
    %866 = vdwg.mxu0
    %867 = vmatprep.subr.mxu0 %v194
    %868 = vmatpush1.msra.mxu0 %v193
    %869 = vmatprep.subr.mxu0 %v198
    %870 = vmatpush1.msra.mxu0 %v197
    %871 = vmatprep.subr.mxu0 %v202
    %872 = vmatpush1.msra.mxu0 %v201
    %873 = vmatprep.subr.mxu0 %v206
    %874 = vmatpush1.msra.mxu0 %v205
    %875 = vmatprep.subr.mxu0 %v210
    %876 = vmatpush1.msra.mxu0 %v209
    %877 = vmatprep.subr.mxu0 %v214
    %878 = vmatpush1.msra.mxu0 %v213
    %879 = vmatprep.subr.mxu0 %v218
    %880 = vmatpush1.msra.mxu0 %v217
    %881 = vmatprep.subr.mxu0 %v222
    %882 = vmatpush1.msra.mxu0 %v221
    %883 = vmatprep.subr.mxu0 %v226
    %884 = vmatpush1.msra.mxu0 %v225
    %885 = vmatprep.subr.mxu0 %v230
    %886 = vmatpush1.msra.mxu0 %v229
    %887 = vmatprep.subr.mxu0 %v234
    %888 = vmatpush1.msra.mxu0 %v233
    %889 = vmatprep.subr.mxu0 %v238
    %890 = vmatpush1.msra.mxu0 %v237
    %891 = vmatprep.subr.mxu0 %v242
    %892 = vmatpush1.msra.mxu0 %v241
    %893 = vmatprep.subr.mxu0 %v246
    %894 = vmatpush1.msra.mxu0 %v245
    %895 = vmatprep.subr.mxu0 %v250
    %896 = vmatpush1.msra.mxu0 %v249
    %897 = vmatprep.subr.mxu0 %v254
    %898 = vmatpush1.msra.mxu0 %v253
    %899 = vmatprep.subr.mxu0 0.0
    %900 = vmatpush1.msra.mxu0 0.0
    %901 = vmatprep.subr.mxu0 0.0
    %902 = vmatpush1.msra.mxu0 0.0
    %903 = vmatprep.subr.mxu0 0.0
    %904 = vmatpush1.msra.mxu0 0.0
    %905 = vmatprep.subr.mxu0 0.0
    %906 = vmatpush1.msra.mxu0 0.0
    %907 = vmatprep.subr.mxu0 0.0
    %908 = vmatpush1.msra.mxu0 0.0
    %909 = vmatprep.subr.mxu0 0.0
    %910 = vmatpush1.msra.mxu0 0.0
    %911 = vmatprep.subr.mxu0 0.0
    %912 = vmatpush1.msra.mxu0 0.0
    %913 = vmatprep.subr.mxu0 0.0
    %914 = vmatpush1.msra.mxu0 0.0
    %915 = vmatprep.subr.mxu0 0.0
    %916 = vmatpush1.msra.mxu0 0.0
    %917 = vmatprep.subr.mxu0 0.0
    %918 = vmatpush1.msra.mxu0 0.0
    %919 = vmatprep.subr.mxu0 0.0
    %920 = vmatpush1.msra.mxu0 0.0
    %921 = vmatprep.subr.mxu0 0.0
    %922 = vmatpush1.msra.mxu0 0.0
    %923 = vmatprep.subr.mxu0 0.0
    %924 = vmatpush1.msra.mxu0 0.0
    %925 = vmatprep.subr.mxu0 0.0
    %926 = vmatpush1.msra.mxu0 0.0
    %927 = vmatprep.subr.mxu0 0.0
    %928 = vmatpush1.msra.mxu0 0.0
    %929 = vmatprep.subr.mxu0 0.0
    %930 = vmatpush1.msra.mxu0 0.0
    %931 = vmatprep.mubr.f32.mxu0 0.0
    %932 = vmatmul.mubr.f32.gmra.mrb[0].mxu0 %v794
    %v933 = vpop.f32.mrb[0].mxu0
    %v934 = vadd.f32 0.0, %v933
    %v935 = vpop.f32.mrb[0].mxu0
    %v936 = vadd.f32 0.0, %v935
    %937 = vdwg.mxu0
    %v942 = vrot.slane %v863, 6
    %v943 = vrot.slane %v865, 6
    %v944 = vrot.slane %v934, 6
    %v945 = vrot.slane %v936, 6
    %v950 = vadd.f32 %v361, %v942
    %v951 = vadd.f32 %v363, %v943
    %v952 = vadd.f32 %v432, %v944
    %v953 = vadd.f32 %v434, %v945
    %v954 = vxor.u32 %v950, 2147483648
    %v955 = vmul.f32 %v954, 1.442695
    %v956 = vpow.pop %v955
    %v957 = vadd.f32 %v956, 1.0
    %v958 = vrcp.pop %v957
    %v959 = vmul.f32 1.0, %v958
    %v960 = vxor.u32 %v951, 2147483648
    %v961 = vmul.f32 %v960, 1.442695
    %v962 = vpow.pop %v961
    %v963 = vadd.f32 %v962, 1.0
    %v964 = vrcp.pop %v963
    %v965 = vmul.f32 1.0, %v964
    %v966 = vtanh.pop %v952
    %v967 = vxor.u32 %v953, 2147483648
    %v968 = vmul.f32 %v967, 1.442695
    %v969 = vpow.pop %v968
    %v970 = vadd.f32 %v969, 1.0
    %v971 = vrcp.pop %v970
    %v972 = vmul.f32 1.0, %v971
    %v974 = vrot.slane %v789, 7
    %v976 = vmul.f32 %v965, %v974
    %v977 = vmul.f32 %v959, %v966
    %v978 = vadd.f32 %v976, %v977
    %v979 = vtanh.pop %v978
    %v980 = vmul.f32 %v972, %v979
    %981 = vst [vmem:[#allocation2] sm:$0x4] %v980
    %v983 = vrot.slane %v980, 2
    %985 = vmatprep.subr.mxu0 %v192
    %986 = vmatpush1.msra.mxu0 %v191
    %987 = vmatprep.subr.mxu0 %v196
    %988 = vmatpush1.msra.mxu0 %v195
    %989 = vmatprep.subr.mxu0 %v200
    %990 = vmatpush1.msra.mxu0 %v199
    %991 = vmatprep.subr.mxu0 %v204
    %992 = vmatpush1.msra.mxu0 %v203
    %993 = vmatprep.subr.mxu0 %v208
    %994 = vmatpush1.msra.mxu0 %v207
    %995 = vmatprep.subr.mxu0 %v212
    %996 = vmatpush1.msra.mxu0 %v211
    %997 = vmatprep.subr.mxu0 %v216
    %998 = vmatpush1.msra.mxu0 %v215
    %999 = vmatprep.subr.mxu0 %v220
    %1000 = vmatpush1.msra.mxu0 %v219
    %1001 = vmatprep.subr.mxu0 %v224
    %1002 = vmatpush1.msra.mxu0 %v223
    %1003 = vmatprep.subr.mxu0 %v228
    %1004 = vmatpush1.msra.mxu0 %v227
    %1005 = vmatprep.subr.mxu0 %v232
    %1006 = vmatpush1.msra.mxu0 %v231
    %1007 = vmatprep.subr.mxu0 %v236
    %1008 = vmatpush1.msra.mxu0 %v235
    %1009 = vmatprep.subr.mxu0 %v240
    %1010 = vmatpush1.msra.mxu0 %v239
    %1011 = vmatprep.subr.mxu0 %v244
    %1012 = vmatpush1.msra.mxu0 %v243
    %1013 = vmatprep.subr.mxu0 %v248
    %1014 = vmatpush1.msra.mxu0 %v247
    %1015 = vmatprep.subr.mxu0 %v252
    %1016 = vmatpush1.msra.mxu0 %v251
    %1017 = vmatprep.subr.mxu0 0.0
    %1018 = vmatpush1.msra.mxu0 0.0
    %1019 = vmatprep.subr.mxu0 0.0
    %1020 = vmatpush1.msra.mxu0 0.0
    %1021 = vmatprep.subr.mxu0 0.0
    %1022 = vmatpush1.msra.mxu0 0.0
    %1023 = vmatprep.subr.mxu0 0.0
    %1024 = vmatpush1.msra.mxu0 0.0
    %1025 = vmatprep.subr.mxu0 0.0
    %1026 = vmatpush1.msra.mxu0 0.0
    %1027 = vmatprep.subr.mxu0 0.0
    %1028 = vmatpush1.msra.mxu0 0.0
    %1029 = vmatprep.subr.mxu0 0.0
    %1030 = vmatpush1.msra.mxu0 0.0
    %1031 = vmatprep.subr.mxu0 0.0
    %1032 = vmatpush1.msra.mxu0 0.0
    %1033 = vmatprep.subr.mxu0 0.0
    %1034 = vmatpush1.msra.mxu0 0.0
    %1035 = vmatprep.subr.mxu0 0.0
    %1036 = vmatpush1.msra.mxu0 0.0
    %1037 = vmatprep.subr.mxu0 0.0
    %1038 = vmatpush1.msra.mxu0 0.0
    %1039 = vmatprep.subr.mxu0 0.0
    %1040 = vmatpush1.msra.mxu0 0.0
    %1041 = vmatprep.subr.mxu0 0.0
    %1042 = vmatpush1.msra.mxu0 0.0
    %1043 = vmatprep.subr.mxu0 0.0
    %1044 = vmatpush1.msra.mxu0 0.0
    %1045 = vmatprep.subr.mxu0 0.0
    %1046 = vmatpush1.msra.mxu0 0.0
    %1047 = vmatprep.subr.mxu0 0.0
    %1048 = vmatpush1.msra.mxu0 0.0
    %1049 = vmatprep.mubr.f32.mxu0 0.0
    %1050 = vmatmul.mubr.f32.gmra.mrb[0].mxu0 %v983
    %v1051 = vpop.f32.mrb[0].mxu0
    %v1052 = vadd.f32 0.0, %v1051
    %v1053 = vpop.f32.mrb[0].mxu0
    %v1054 = vadd.f32 0.0, %v1053
    %1055 = vdwg.mxu0
    %1056 = vmatprep.subr.mxu0 %v194
    %1057 = vmatpush1.msra.mxu0 %v193
    %1058 = vmatprep.subr.mxu0 %v198
    %1059 = vmatpush1.msra.mxu0 %v197
    %1060 = vmatprep.subr.mxu0 %v202
    %1061 = vmatpush1.msra.mxu0 %v201
    %1062 = vmatprep.subr.mxu0 %v206
    %1063 = vmatpush1.msra.mxu0 %v205
    %1064 = vmatprep.subr.mxu0 %v210
    %1065 = vmatpush1.msra.mxu0 %v209
    %1066 = vmatprep.subr.mxu0 %v214
    %1067 = vmatpush1.msra.mxu0 %v213
    %1068 = vmatprep.subr.mxu0 %v218
    %1069 = vmatpush1.msra.mxu0 %v217
    %1070 = vmatprep.subr.mxu0 %v222
    %1071 = vmatpush1.msra.mxu0 %v221
    %1072 = vmatprep.subr.mxu0 %v226
    %1073 = vmatpush1.msra.mxu0 %v225
    %1074 = vmatprep.subr.mxu0 %v230
    %1075 = vmatpush1.msra.mxu0 %v229
    %1076 = vmatprep.subr.mxu0 %v234
    %1077 = vmatpush1.msra.mxu0 %v233
    %1078 = vmatprep.subr.mxu0 %v238
    %1079 = vmatpush1.msra.mxu0 %v237
    %1080 = vmatprep.subr.mxu0 %v242
    %1081 = vmatpush1.msra.mxu0 %v241
    %1082 = vmatprep.subr.mxu0 %v246
    %1083 = vmatpush1.msra.mxu0 %v245
    %1084 = vmatprep.subr.mxu0 %v250
    %1085 = vmatpush1.msra.mxu0 %v249
    %1086 = vmatprep.subr.mxu0 %v254
    %1087 = vmatpush1.msra.mxu0 %v253
    %1088 = vmatprep.subr.mxu0 0.0
    %1089 = vmatpush1.msra.mxu0 0.0
    %1090 = vmatprep.subr.mxu0 0.0
    %1091 = vmatpush1.msra.mxu0 0.0
    %1092 = vmatprep.subr.mxu0 0.0
    %1093 = vmatpush1.msra.mxu0 0.0
    %1094 = vmatprep.subr.mxu0 0.0
    %1095 = vmatpush1.msra.mxu0 0.0
    %1096 = vmatprep.subr.mxu0 0.0
    %1097 = vmatpush1.msra.mxu0 0.0
    %1098 = vmatprep.subr.mxu0 0.0
    %1099 = vmatpush1.msra.mxu0 0.0
    %1100 = vmatprep.subr.mxu0 0.0
    %1101 = vmatpush1.msra.mxu0 0.0
    %1102 = vmatprep.subr.mxu0 0.0
    %1103 = vmatpush1.msra.mxu0 0.0
    %1104 = vmatprep.subr.mxu0 0.0
    %1105 = vmatpush1.msra.mxu0 0.0
    %1106 = vmatprep.subr.mxu0 0.0
    %1107 = vmatpush1.msra.mxu0 0.0
    %1108 = vmatprep.subr.mxu0 0.0
    %1109 = vmatpush1.msra.mxu0 0.0
    %1110 = vmatprep.subr.mxu0 0.0
    %1111 = vmatpush1.msra.mxu0 0.0
    %1112 = vmatprep.subr.mxu0 0.0
    %1113 = vmatpush1.msra.mxu0 0.0
    %1114 = vmatprep.subr.mxu0 0.0
    %1115 = vmatpush1.msra.mxu0 0.0
    %1116 = vmatprep.subr.mxu0 0.0
    %1117 = vmatpush1.msra.mxu0 0.0
    %1118 = vmatprep.subr.mxu0 0.0
    %1119 = vmatpush1.msra.mxu0 0.0
    %1120 = vmatprep.mubr.f32.mxu0 0.0
    %1121 = vmatmul.mubr.f32.gmra.mrb[0].mxu0 %v983
    %v1122 = vpop.f32.mrb[0].mxu0
    %v1123 = vadd.f32 0.0, %v1122
    %v1124 = vpop.f32.mrb[0].mxu0
    %v1125 = vadd.f32 0.0, %v1124
    %1126 = vdwg.mxu0
    %v1131 = vrot.slane %v1052, 5
    %v1132 = vrot.slane %v1054, 5
    %v1133 = vrot.slane %v1123, 5
    %v1134 = vrot.slane %v1125, 5
    %v1139 = vadd.f32 %v361, %v1131
    %v1140 = vadd.f32 %v363, %v1132
    %v1141 = vadd.f32 %v432, %v1133
    %v1142 = vadd.f32 %v434, %v1134
    %v1143 = vxor.u32 %v1139, 2147483648
    %v1144 = vmul.f32 %v1143, 1.442695
    %v1145 = vpow.pop %v1144
    %v1146 = vadd.f32 %v1145, 1.0
    %v1147 = vrcp.pop %v1146
    %v1148 = vmul.f32 1.0, %v1147
    %v1149 = vxor.u32 %v1140, 2147483648
    %v1150 = vmul.f32 %v1149, 1.442695
    %v1151 = vpow.pop %v1150
    %v1152 = vadd.f32 %v1151, 1.0
    %v1153 = vrcp.pop %v1152
    %v1154 = vmul.f32 1.0, %v1153
    %v1155 = vtanh.pop %v1141
    %v1156 = vxor.u32 %v1142, 2147483648
    %v1157 = vmul.f32 %v1156, 1.442695
    %v1158 = vpow.pop %v1157
    %v1159 = vadd.f32 %v1158, 1.0
    %v1160 = vrcp.pop %v1159
    %v1161 = vmul.f32 1.0, %v1160
    %v1163 = vrot.slane %v978, 7
    %v1165 = vmul.f32 %v1154, %v1163
    %v1166 = vmul.f32 %v1148, %v1155
    %v1167 = vadd.f32 %v1165, %v1166
    %v1168 = vtanh.pop %v1167
    %v1169 = vmul.f32 %v1161, %v1168
    %1170 = vst [vmem:[#allocation2] sm:$0x8] %v1169
    %v1172 = vrot.slane %v1169, 3
    %1174 = vmatprep.subr.mxu0 %v192
    %1175 = vmatpush1.msra.mxu0 %v191
    %1176 = vmatprep.subr.mxu0 %v196
    %1177 = vmatpush1.msra.mxu0 %v195
    %1178 = vmatprep.subr.mxu0 %v200
    %1179 = vmatpush1.msra.mxu0 %v199
    %1180 = vmatprep.subr.mxu0 %v204
    %1181 = vmatpush1.msra.mxu0 %v203
    %1182 = vmatprep.subr.mxu0 %v208
    %1183 = vmatpush1.msra.mxu0 %v207
    %1184 = vmatprep.subr.mxu0 %v212
    %1185 = vmatpush1.msra.mxu0 %v211
    %1186 = vmatprep.subr.mxu0 %v216
    %1187 = vmatpush1.msra.mxu0 %v215
    %1188 = vmatprep.subr.mxu0 %v220
    %1189 = vmatpush1.msra.mxu0 %v219
    %1190 = vmatprep.subr.mxu0 %v224
    %1191 = vmatpush1.msra.mxu0 %v223
    %1192 = vmatprep.subr.mxu0 %v228
    %1193 = vmatpush1.msra.mxu0 %v227
    %1194 = vmatprep.subr.mxu0 %v232
    %1195 = vmatpush1.msra.mxu0 %v231
    %1196 = vmatprep.subr.mxu0 %v236
    %1197 = vmatpush1.msra.mxu0 %v235
    %1198 = vmatprep.subr.mxu0 %v240
    %1199 = vmatpush1.msra.mxu0 %v239
    %1200 = vmatprep.subr.mxu0 %v244
    %1201 = vmatpush1.msra.mxu0 %v243
    %1202 = vmatprep.subr.mxu0 %v248
    %1203 = vmatpush1.msra.mxu0 %v247
    %1204 = vmatprep.subr.mxu0 %v252
    %1205 = vmatpush1.msra.mxu0 %v251
    %1206 = vmatprep.subr.mxu0 0.0
    %1207 = vmatpush1.msra.mxu0 0.0
    %1208 = vmatprep.subr.mxu0 0.0
    %1209 = vmatpush1.msra.mxu0 0.0
    %1210 = vmatprep.subr.mxu0 0.0
    %1211 = vmatpush1.msra.mxu0 0.0
    %1212 = vmatprep.subr.mxu0 0.0
    %1213 = vmatpush1.msra.mxu0 0.0
    %1214 = vmatprep.subr.mxu0 0.0
    %1215 = vmatpush1.msra.mxu0 0.0
    %1216 = vmatprep.subr.mxu0 0.0
    %1217 = vmatpush1.msra.mxu0 0.0
    %1218 = vmatprep.subr.mxu0 0.0
    %1219 = vmatpush1.msra.mxu0 0.0
    %1220 = vmatprep.subr.mxu0 0.0
    %1221 = vmatpush1.msra.mxu0 0.0
    %1222 = vmatprep.subr.mxu0 0.0
    %1223 = vmatpush1.msra.mxu0 0.0
    %1224 = vmatprep.subr.mxu0 0.0
    %1225 = vmatpush1.msra.mxu0 0.0
    %1226 = vmatprep.subr.mxu0 0.0
    %1227 = vmatpush1.msra.mxu0 0.0
    %1228 = vmatprep.subr.mxu0 0.0
    %1229 = vmatpush1.msra.mxu0 0.0
    %1230 = vmatprep.subr.mxu0 0.0
    %1231 = vmatpush1.msra.mxu0 0.0
    %1232 = vmatprep.subr.mxu0 0.0
    %1233 = vmatpush1.msra.mxu0 0.0
    %1234 = vmatprep.subr.mxu0 0.0
    %1235 = vmatpush1.msra.mxu0 0.0
    %1236 = vmatprep.subr.mxu0 0.0
    %1237 = vmatpush1.msra.mxu0 0.0
    %1238 = vmatprep.mubr.f32.mxu0 0.0
    %1239 = vmatmul.mubr.f32.gmra.mrb[0].mxu0 %v1172
    %v1240 = vpop.f32.mrb[0].mxu0
    %v1241 = vadd.f32 0.0, %v1240
    %v1242 = vpop.f32.mrb[0].mxu0
    %v1243 = vadd.f32 0.0, %v1242
    %1244 = vdwg.mxu0
    %1245 = vmatprep.subr.mxu0 %v194
    %1246 = vmatpush1.msra.mxu0 %v193
    %1247 = vmatprep.subr.mxu0 %v198
    %1248 = vmatpush1.msra.mxu0 %v197
    %1249 = vmatprep.subr.mxu0 %v202
    %1250 = vmatpush1.msra.mxu0 %v201
    %1251 = vmatprep.subr.mxu0 %v206
    %1252 = vmatpush1.msra.mxu0 %v205
    %1253 = vmatprep.subr.mxu0 %v210
    %1254 = vmatpush1.msra.mxu0 %v209
    %1255 = vmatprep.subr.mxu0 %v214
    %1256 = vmatpush1.msra.mxu0 %v213
    %1257 = vmatprep.subr.mxu0 %v218
    %1258 = vmatpush1.msra.mxu0 %v217
    %1259 = vmatprep.subr.mxu0 %v222
    %1260 = vmatpush1.msra.mxu0 %v221
    %1261 = vmatprep.subr.mxu0 %v226
    %1262 = vmatpush1.msra.mxu0 %v225
    %1263 = vmatprep.subr.mxu0 %v230
    %1264 = vmatpush1.msra.mxu0 %v229
    %1265 = vmatprep.subr.mxu0 %v234
    %1266 = vmatpush1.msra.mxu0 %v233
    %1267 = vmatprep.subr.mxu0 %v238
    %1268 = vmatpush1.msra.mxu0 %v237
    %1269 = vmatprep.subr.mxu0 %v242
    %1270 = vmatpush1.msra.mxu0 %v241
    %1271 = vmatprep.subr.mxu0 %v246
    %1272 = vmatpush1.msra.mxu0 %v245
    %1273 = vmatprep.subr.mxu0 %v250
    %1274 = vmatpush1.msra.mxu0 %v249
    %1275 = vmatprep.subr.mxu0 %v254
    %1276 = vmatpush1.msra.mxu0 %v253
    %1277 = vmatprep.subr.mxu0 0.0
    %1278 = vmatpush1.msra.mxu0 0.0
    %1279 = vmatprep.subr.mxu0 0.0
    %1280 = vmatpush1.msra.mxu0 0.0
    %1281 = vmatprep.subr.mxu0 0.0
    %1282 = vmatpush1.msra.mxu0 0.0
    %1283 = vmatprep.subr.mxu0 0.0
    %1284 = vmatpush1.msra.mxu0 0.0
    %1285 = vmatprep.subr.mxu0 0.0
    %1286 = vmatpush1.msra.mxu0 0.0
    %1287 = vmatprep.subr.mxu0 0.0
    %1288 = vmatpush1.msra.mxu0 0.0
    %1289 = vmatprep.subr.mxu0 0.0
    %1290 = vmatpush1.msra.mxu0 0.0
    %1291 = vmatprep.subr.mxu0 0.0
    %1292 = vmatpush1.msra.mxu0 0.0
    %1293 = vmatprep.subr.mxu0 0.0
    %1294 = vmatpush1.msra.mxu0 0.0
    %1295 = vmatprep.subr.mxu0 0.0
    %1296 = vmatpush1.msra.mxu0 0.0
    %1297 = vmatprep.subr.mxu0 0.0
    %1298 = vmatpush1.msra.mxu0 0.0
    %1299 = vmatprep.subr.mxu0 0.0
    %1300 = vmatpush1.msra.mxu0 0.0
    %1301 = vmatprep.subr.mxu0 0.0
    %1302 = vmatpush1.msra.mxu0 0.0
    %1303 = vmatprep.subr.mxu0 0.0
    %1304 = vmatpush1.msra.mxu0 0.0
    %1305 = vmatprep.subr.mxu0 0.0
    %1306 = vmatpush1.msra.mxu0 0.0
    %1307 = vmatprep.subr.mxu0 0.0
    %1308 = vmatpush1.msra.mxu0 0.0
    %1309 = vmatprep.mubr.f32.mxu0 0.0
    %1310 = vmatmul.mubr.f32.gmra.mrb[0].mxu0 %v1172
    %v1311 = vpop.f32.mrb[0].mxu0
    %v1312 = vadd.f32 0.0, %v1311
    %v1313 = vpop.f32.mrb[0].mxu0
    %v1314 = vadd.f32 0.0, %v1313
    %1315 = vdwg.mxu0
    %v1320 = vrot.slane %v1241, 4
    %v1321 = vrot.slane %v1243, 4
    %v1322 = vrot.slane %v1312, 4
    %v1323 = vrot.slane %v1314, 4
    %v1328 = vadd.f32 %v361, %v1320
    %v1329 = vadd.f32 %v363, %v1321
    %v1330 = vadd.f32 %v432, %v1322
    %v1331 = vadd.f32 %v434, %v1323
    %v1332 = vxor.u32 %v1328, 2147483648
    %v1333 = vmul.f32 %v1332, 1.442695
    %v1334 = vpow.pop %v1333
    %v1335 = vadd.f32 %v1334, 1.0
    %v1336 = vrcp.pop %v1335
    %v1337 = vmul.f32 1.0, %v1336
    %v1338 = vxor.u32 %v1329, 2147483648
    %v1339 = vmul.f32 %v1338, 1.442695
    %v1340 = vpow.pop %v1339
    %v1341 = vadd.f32 %v1340, 1.0
    %v1342 = vrcp.pop %v1341
    %v1343 = vmul.f32 1.0, %v1342
    %v1344 = vtanh.pop %v1330
    %v1345 = vxor.u32 %v1331, 2147483648
    %v1346 = vmul.f32 %v1345, 1.442695
    %v1347 = vpow.pop %v1346
    %v1348 = vadd.f32 %v1347, 1.0
    %v1349 = vrcp.pop %v1348
    %v1350 = vmul.f32 1.0, %v1349
    %v1352 = vrot.slane %v1167, 7
    %v1354 = vmul.f32 %v1343, %v1352
    %v1355 = vmul.f32 %v1337, %v1344
    %v1356 = vadd.f32 %v1354, %v1355
    %v1357 = vtanh.pop %v1356
    %v1358 = vmul.f32 %v1350, %v1357
    %1359 = vst [vmem:[#allocation2] sm:$0x10] %v1358
    %v1361 = vrot.slane %v1358, 4
    %1363 = vmatprep.subr.mxu0 %v192
    %1364 = vmatpush1.msra.mxu0 %v191
    %1365 = vmatprep.subr.mxu0 %v196
    %1366 = vmatpush1.msra.mxu0 %v195
    %1367 = vmatprep.subr.mxu0 %v200
    %1368 = vmatpush1.msra.mxu0 %v199
    %1369 = vmatprep.subr.mxu0 %v204
    %1370 = vmatpush1.msra.mxu0 %v203
    %1371 = vmatprep.subr.mxu0 %v208
    %1372 = vmatpush1.msra.mxu0 %v207
    %1373 = vmatprep.subr.mxu0 %v212
    %1374 = vmatpush1.msra.mxu0 %v211
    %1375 = vmatprep.subr.mxu0 %v216
    %1376 = vmatpush1.msra.mxu0 %v215
    %1377 = vmatprep.subr.mxu0 %v220
    %1378 = vmatpush1.msra.mxu0 %v219
    %1379 = vmatprep.subr.mxu0 %v224
    %1380 = vmatpush1.msra.mxu0 %v223
    %1381 = vmatprep.subr.mxu0 %v228
    %1382 = vmatpush1.msra.mxu0 %v227
    %1383 = vmatprep.subr.mxu0 %v232
    %1384 = vmatpush1.msra.mxu0 %v231
    %1385 = vmatprep.subr.mxu0 %v236
    %1386 = vmatpush1.msra.mxu0 %v235
    %1387 = vmatprep.subr.mxu0 %v240
    %1388 = vmatpush1.msra.mxu0 %v239
    %1389 = vmatprep.subr.mxu0 %v244
    %1390 = vmatpush1.msra.mxu0 %v243
    %1391 = vmatprep.subr.mxu0 %v248
    %1392 = vmatpush1.msra.mxu0 %v247
    %1393 = vmatprep.subr.mxu0 %v252
    %1394 = vmatpush1.msra.mxu0 %v251
    %1395 = vmatprep.subr.mxu0 0.0
    %1396 = vmatpush1.msra.mxu0 0.0
    %1397 = vmatprep.subr.mxu0 0.0
    %1398 = vmatpush1.msra.mxu0 0.0
    %1399 = vmatprep.subr.mxu0 0.0
    %1400 = vmatpush1.msra.mxu0 0.0
    %1401 = vmatprep.subr.mxu0 0.0
    %1402 = vmatpush1.msra.mxu0 0.0
    %1403 = vmatprep.subr.mxu0 0.0
    %1404 = vmatpush1.msra.mxu0 0.0
    %1405 = vmatprep.subr.mxu0 0.0
    %1406 = vmatpush1.msra.mxu0 0.0
    %1407 = vmatprep.subr.mxu0 0.0
    %1408 = vmatpush1.msra.mxu0 0.0
    %1409 = vmatprep.subr.mxu0 0.0
    %1410 = vmatpush1.msra.mxu0 0.0
    %1411 = vmatprep.subr.mxu0 0.0
    %1412 = vmatpush1.msra.mxu0 0.0
    %1413 = vmatprep.subr.mxu0 0.0
    %1414 = vmatpush1.msra.mxu0 0.0
    %1415 = vmatprep.subr.mxu0 0.0
    %1416 = vmatpush1.msra.mxu0 0.0
    %1417 = vmatprep.subr.mxu0 0.0
    %1418 = vmatpush1.msra.mxu0 0.0
    %1419 = vmatprep.subr.mxu0 0.0
    %1420 = vmatpush1.msra.mxu0 0.0
    %1421 = vmatprep.subr.mxu0 0.0
    %1422 = vmatpush1.msra.mxu0 0.0
    %1423 = vmatprep.subr.mxu0 0.0
    %1424 = vmatpush1.msra.mxu0 0.0
    %1425 = vmatprep.subr.mxu0 0.0
    %1426 = vmatpush1.msra.mxu0 0.0
    %1427 = vmatprep.mubr.f32.mxu0 0.0
    %1428 = vmatmul.mubr.f32.gmra.mrb[0].mxu0 %v1361
    %v1429 = vpop.f32.mrb[0].mxu0
    %v1430 = vadd.f32 0.0, %v1429
    %v1431 = vpop.f32.mrb[0].mxu0
    %v1432 = vadd.f32 0.0, %v1431
    %1433 = vdwg.mxu0
    %1434 = vmatprep.subr.mxu0 %v194
    %1435 = vmatpush1.msra.mxu0 %v193
    %1436 = vmatprep.subr.mxu0 %v198
    %1437 = vmatpush1.msra.mxu0 %v197
    %1438 = vmatprep.subr.mxu0 %v202
    %1439 = vmatpush1.msra.mxu0 %v201
    %1440 = vmatprep.subr.mxu0 %v206
    %1441 = vmatpush1.msra.mxu0 %v205
    %1442 = vmatprep.subr.mxu0 %v210
    %1443 = vmatpush1.msra.mxu0 %v209
    %1444 = vmatprep.subr.mxu0 %v214
    %1445 = vmatpush1.msra.mxu0 %v213
    %1446 = vmatprep.subr.mxu0 %v218
    %1447 = vmatpush1.msra.mxu0 %v217
    %1448 = vmatprep.subr.mxu0 %v222
    %1449 = vmatpush1.msra.mxu0 %v221
    %1450 = vmatprep.subr.mxu0 %v226
    %1451 = vmatpush1.msra.mxu0 %v225
    %1452 = vmatprep.subr.mxu0 %v230
    %1453 = vmatpush1.msra.mxu0 %v229
    %1454 = vmatprep.subr.mxu0 %v234
    %1455 = vmatpush1.msra.mxu0 %v233
    %1456 = vmatprep.subr.mxu0 %v238
    %1457 = vmatpush1.msra.mxu0 %v237
    %1458 = vmatprep.subr.mxu0 %v242
    %1459 = vmatpush1.msra.mxu0 %v241
    %1460 = vmatprep.subr.mxu0 %v246
    %1461 = vmatpush1.msra.mxu0 %v245
    %1462 = vmatprep.subr.mxu0 %v250
    %1463 = vmatpush1.msra.mxu0 %v249
    %1464 = vmatprep.subr.mxu0 %v254
    %1465 = vmatpush1.msra.mxu0 %v253
    %1466 = vmatprep.subr.mxu0 0.0
    %1467 = vmatpush1.msra.mxu0 0.0
    %1468 = vmatprep.subr.mxu0 0.0
    %1469 = vmatpush1.msra.mxu0 0.0
    %1470 = vmatprep.subr.mxu0 0.0
    %1471 = vmatpush1.msra.mxu0 0.0
    %1472 = vmatprep.subr.mxu0 0.0
    %1473 = vmatpush1.msra.mxu0 0.0
    %1474 = vmatprep.subr.mxu0 0.0
    %1475 = vmatpush1.msra.mxu0 0.0
    %1476 = vmatprep.subr.mxu0 0.0
    %1477 = vmatpush1.msra.mxu0 0.0
    %1478 = vmatprep.subr.mxu0 0.0
    %1479 = vmatpush1.msra.mxu0 0.0
    %1480 = vmatprep.subr.mxu0 0.0
    %1481 = vmatpush1.msra.mxu0 0.0
    %1482 = vmatprep.subr.mxu0 0.0
    %1483 = vmatpush1.msra.mxu0 0.0
    %1484 = vmatprep.subr.mxu0 0.0
    %1485 = vmatpush1.msra.mxu0 0.0
    %1486 = vmatprep.subr.mxu0 0.0
    %1487 = vmatpush1.msra.mxu0 0.0
    %1488 = vmatprep.subr.mxu0 0.0
    %1489 = vmatpush1.msra.mxu0 0.0
    %1490 = vmatprep.subr.mxu0 0.0
    %1491 = vmatpush1.msra.mxu0 0.0
    %1492 = vmatprep.subr.mxu0 0.0
    %1493 = vmatpush1.msra.mxu0 0.0
    %1494 = vmatprep.subr.mxu0 0.0
    %1495 = vmatpush1.msra.mxu0 0.0
    %1496 = vmatprep.subr.mxu0 0.0
    %1497 = vmatpush1.msra.mxu0 0.0
    %1498 = vmatprep.mubr.f32.mxu0 0.0
    %1499 = vmatmul.mubr.f32.gmra.mrb[0].mxu0 %v1361
    %v1500 = vpop.f32.mrb[0].mxu0
    %v1501 = vadd.f32 0.0, %v1500
    %v1502 = vpop.f32.mrb[0].mxu0
    %v1503 = vadd.f32 0.0, %v1502
    %1504 = vdwg.mxu0
    %v1509 = vrot.slane %v1430, 3
    %v1510 = vrot.slane %v1432, 3
    %v1511 = vrot.slane %v1501, 3
    %v1512 = vrot.slane %v1503, 3
    %v1517 = vadd.f32 %v361, %v1509
    %v1518 = vadd.f32 %v363, %v1510
    %v1519 = vadd.f32 %v432, %v1511
    %v1520 = vadd.f32 %v434, %v1512
    %v1521 = vxor.u32 %v1517, 2147483648
    %v1522 = vmul.f32 %v1521, 1.442695
    %v1523 = vpow.pop %v1522
    %v1524 = vadd.f32 %v1523, 1.0
    %v1525 = vrcp.pop %v1524
    %v1526 = vmul.f32 1.0, %v1525
    %v1527 = vxor.u32 %v1518, 2147483648
    %v1528 = vmul.f32 %v1527, 1.442695
    %v1529 = vpow.pop %v1528
    %v1530 = vadd.f32 %v1529, 1.0
    %v1531 = vrcp.pop %v1530
    %v1532 = vmul.f32 1.0, %v1531
    %v1533 = vtanh.pop %v1519
    %v1534 = vxor.u32 %v1520, 2147483648
    %v1535 = vmul.f32 %v1534, 1.442695
    %v1536 = vpow.pop %v1535
    %v1537 = vadd.f32 %v1536, 1.0
    %v1538 = vrcp.pop %v1537
    %v1539 = vmul.f32 1.0, %v1538
    %v1541 = vrot.slane %v1356, 7
    %v1543 = vmul.f32 %v1532, %v1541
    %v1544 = vmul.f32 %v1526, %v1533
    %v1545 = vadd.f32 %v1543, %v1544
    %v1546 = vtanh.pop %v1545
    %v1547 = vmul.f32 %v1539, %v1546
    %1548 = vst [vmem:[#allocation2] sm:$0x20] %v1547
    %v1550 = vrot.slane %v1547, 5
    %1552 = vmatprep.subr.mxu0 %v192
    %1553 = vmatpush1.msra.mxu0 %v191
    %1554 = vmatprep.subr.mxu0 %v196
    %1555 = vmatpush1.msra.mxu0 %v195
    %1556 = vmatprep.subr.mxu0 %v200
    %1557 = vmatpush1.msra.mxu0 %v199
    %1558 = vmatprep.subr.mxu0 %v204
    %1559 = vmatpush1.msra.mxu0 %v203
    %1560 = vmatprep.subr.mxu0 %v208
    %1561 = vmatpush1.msra.mxu0 %v207
    %1562 = vmatprep.subr.mxu0 %v212
    %1563 = vmatpush1.msra.mxu0 %v211
    %1564 = vmatprep.subr.mxu0 %v216
    %1565 = vmatpush1.msra.mxu0 %v215
    %1566 = vmatprep.subr.mxu0 %v220
    %1567 = vmatpush1.msra.mxu0 %v219
    %1568 = vmatprep.subr.mxu0 %v224
    %1569 = vmatpush1.msra.mxu0 %v223
    %1570 = vmatprep.subr.mxu0 %v228
    %1571 = vmatpush1.msra.mxu0 %v227
    %1572 = vmatprep.subr.mxu0 %v232
    %1573 = vmatpush1.msra.mxu0 %v231
    %1574 = vmatprep.subr.mxu0 %v236
    %1575 = vmatpush1.msra.mxu0 %v235
    %1576 = vmatprep.subr.mxu0 %v240
    %1577 = vmatpush1.msra.mxu0 %v239
    %1578 = vmatprep.subr.mxu0 %v244
    %1579 = vmatpush1.msra.mxu0 %v243
    %1580 = vmatprep.subr.mxu0 %v248
    %1581 = vmatpush1.msra.mxu0 %v247
    %1582 = vmatprep.subr.mxu0 %v252
    %1583 = vmatpush1.msra.mxu0 %v251
    %1584 = vmatprep.subr.mxu0 0.0
    %1585 = vmatpush1.msra.mxu0 0.0
    %1586 = vmatprep.subr.mxu0 0.0
    %1587 = vmatpush1.msra.mxu0 0.0
    %1588 = vmatprep.subr.mxu0 0.0
    %1589 = vmatpush1.msra.mxu0 0.0
    %1590 = vmatprep.subr.mxu0 0.0
    %1591 = vmatpush1.msra.mxu0 0.0
    %1592 = vmatprep.subr.mxu0 0.0
    %1593 = vmatpush1.msra.mxu0 0.0
    %1594 = vmatprep.subr.mxu0 0.0
    %1595 = vmatpush1.msra.mxu0 0.0
    %1596 = vmatprep.subr.mxu0 0.0
    %1597 = vmatpush1.msra.mxu0 0.0
    %1598 = vmatprep.subr.mxu0 0.0
    %1599 = vmatpush1.msra.mxu0 0.0
    %1600 = vmatprep.subr.mxu0 0.0
    %1601 = vmatpush1.msra.mxu0 0.0
    %1602 = vmatprep.subr.mxu0 0.0
    %1603 = vmatpush1.msra.mxu0 0.0
    %1604 = vmatprep.subr.mxu0 0.0
    %1605 = vmatpush1.msra.mxu0 0.0
    %1606 = vmatprep.subr.mxu0 0.0
    %1607 = vmatpush1.msra.mxu0 0.0
    %1608 = vmatprep.subr.mxu0 0.0
    %1609 = vmatpush1.msra.mxu0 0.0
    %1610 = vmatprep.subr.mxu0 0.0
    %1611 = vmatpush1.msra.mxu0 0.0
    %1612 = vmatprep.subr.mxu0 0.0
    %1613 = vmatpush1.msra.mxu0 0.0
    %1614 = vmatprep.subr.mxu0 0.0
    %1615 = vmatpush1.msra.mxu0 0.0
    %1616 = vmatprep.mubr.f32.mxu0 0.0
    %1617 = vmatmul.mubr.f32.gmra.mrb[0].mxu0 %v1550
    %v1618 = vpop.f32.mrb[0].mxu0
    %v1619 = vadd.f32 0.0, %v1618
    %v1620 = vpop.f32.mrb[0].mxu0
    %v1621 = vadd.f32 0.0, %v1620
    %1622 = vdwg.mxu0
    %1623 = vmatprep.subr.mxu0 %v194
    %1624 = vmatpush1.msra.mxu0 %v193
    %1625 = vmatprep.subr.mxu0 %v198
    %1626 = vmatpush1.msra.mxu0 %v197
    %1627 = vmatprep.subr.mxu0 %v202
    %1628 = vmatpush1.msra.mxu0 %v201
    %1629 = vmatprep.subr.mxu0 %v206
    %1630 = vmatpush1.msra.mxu0 %v205
    %1631 = vmatprep.subr.mxu0 %v210
    %1632 = vmatpush1.msra.mxu0 %v209
    %1633 = vmatprep.subr.mxu0 %v214
    %1634 = vmatpush1.msra.mxu0 %v213
    %1635 = vmatprep.subr.mxu0 %v218
    %1636 = vmatpush1.msra.mxu0 %v217
    %1637 = vmatprep.subr.mxu0 %v222
    %1638 = vmatpush1.msra.mxu0 %v221
    %1639 = vmatprep.subr.mxu0 %v226
    %1640 = vmatpush1.msra.mxu0 %v225
    %1641 = vmatprep.subr.mxu0 %v230
    %1642 = vmatpush1.msra.mxu0 %v229
    %1643 = vmatprep.subr.mxu0 %v234
    %1644 = vmatpush1.msra.mxu0 %v233
    %1645 = vmatprep.subr.mxu0 %v238
    %1646 = vmatpush1.msra.mxu0 %v237
    %1647 = vmatprep.subr.mxu0 %v242
    %1648 = vmatpush1.msra.mxu0 %v241
    %1649 = vmatprep.subr.mxu0 %v246
    %1650 = vmatpush1.msra.mxu0 %v245
    %1651 = vmatprep.subr.mxu0 %v250
    %1652 = vmatpush1.msra.mxu0 %v249
    %1653 = vmatprep.subr.mxu0 %v254
    %1654 = vmatpush1.msra.mxu0 %v253
    %1655 = vmatprep.subr.mxu0 0.0
    %1656 = vmatpush1.msra.mxu0 0.0
    %1657 = vmatprep.subr.mxu0 0.0
    %1658 = vmatpush1.msra.mxu0 0.0
    %1659 = vmatprep.subr.mxu0 0.0
    %1660 = vmatpush1.msra.mxu0 0.0
    %1661 = vmatprep.subr.mxu0 0.0
    %1662 = vmatpush1.msra.mxu0 0.0
    %1663 = vmatprep.subr.mxu0 0.0
    %1664 = vmatpush1.msra.mxu0 0.0
    %1665 = vmatprep.subr.mxu0 0.0
    %1666 = vmatpush1.msra.mxu0 0.0
    %1667 = vmatprep.subr.mxu0 0.0
    %1668 = vmatpush1.msra.mxu0 0.0
    %1669 = vmatprep.subr.mxu0 0.0
    %1670 = vmatpush1.msra.mxu0 0.0
    %1671 = vmatprep.subr.mxu0 0.0
    %1672 = vmatpush1.msra.mxu0 0.0
    %1673 = vmatprep.subr.mxu0 0.0
    %1674 = vmatpush1.msra.mxu0 0.0
    %1675 = vmatprep.subr.mxu0 0.0
    %1676 = vmatpush1.msra.mxu0 0.0
    %1677 = vmatprep.subr.mxu0 0.0
    %1678 = vmatpush1.msra.mxu0 0.0
    %1679 = vmatprep.subr.mxu0 0.0
    %1680 = vmatpush1.msra.mxu0 0.0
    %1681 = vmatprep.subr.mxu0 0.0
    %1682 = vmatpush1.msra.mxu0 0.0
    %1683 = vmatprep.subr.mxu0 0.0
    %1684 = vmatpush1.msra.mxu0 0.0
    %1685 = vmatprep.subr.mxu0 0.0
    %1686 = vmatpush1.msra.mxu0 0.0
    %1687 = vmatprep.mubr.f32.mxu0 0.0
    %1688 = vmatmul.mubr.f32.gmra.mrb[0].mxu0 %v1550
    %v1689 = vpop.f32.mrb[0].mxu0
    %v1690 = vadd.f32 0.0, %v1689
    %v1691 = vpop.f32.mrb[0].mxu0
    %v1692 = vadd.f32 0.0, %v1691
    %1693 = vdwg.mxu0
    %v1698 = vrot.slane %v1619, 2
    %v1699 = vrot.slane %v1621, 2
    %v1700 = vrot.slane %v1690, 2
    %v1701 = vrot.slane %v1692, 2
    %v1706 = vadd.f32 %v361, %v1698
    %v1707 = vadd.f32 %v363, %v1699
    %v1708 = vadd.f32 %v432, %v1700
    %v1709 = vadd.f32 %v434, %v1701
    %v1710 = vxor.u32 %v1706, 2147483648
    %v1711 = vmul.f32 %v1710, 1.442695
    %v1712 = vpow.pop %v1711
    %v1713 = vadd.f32 %v1712, 1.0
    %v1714 = vrcp.pop %v1713
    %v1715 = vmul.f32 1.0, %v1714
    %v1716 = vxor.u32 %v1707, 2147483648
    %v1717 = vmul.f32 %v1716, 1.442695
    %v1718 = vpow.pop %v1717
    %v1719 = vadd.f32 %v1718, 1.0
    %v1720 = vrcp.pop %v1719
    %v1721 = vmul.f32 1.0, %v1720
    %v1722 = vtanh.pop %v1708
    %v1723 = vxor.u32 %v1709, 2147483648
    %v1724 = vmul.f32 %v1723, 1.442695
    %v1725 = vpow.pop %v1724
    %v1726 = vadd.f32 %v1725, 1.0
    %v1727 = vrcp.pop %v1726
    %v1728 = vmul.f32 1.0, %v1727
    %v1730 = vrot.slane %v1545, 7
    %v1732 = vmul.f32 %v1721, %v1730
    %v1733 = vmul.f32 %v1715, %v1722
    %v1734 = vadd.f32 %v1732, %v1733
    %v1735 = vtanh.pop %v1734
    %v1736 = vmul.f32 %v1728, %v1735
    %1737 = vst [vmem:[#allocation2] sm:$0x40] %v1736
    %v1739 = vrot.slane %v1736, 6
    %1741 = vmatprep.subr.mxu0 %v192
    %1742 = vmatpush1.msra.mxu0 %v191
    %1743 = vmatprep.subr.mxu0 %v196
    %1744 = vmatpush1.msra.mxu0 %v195
    %1745 = vmatprep.subr.mxu0 %v200
    %1746 = vmatpush1.msra.mxu0 %v199
    %1747 = vmatprep.subr.mxu0 %v204
    %1748 = vmatpush1.msra.mxu0 %v203
    %1749 = vmatprep.subr.mxu0 %v208
    %1750 = vmatpush1.msra.mxu0 %v207
    %1751 = vmatprep.subr.mxu0 %v212
    %1752 = vmatpush1.msra.mxu0 %v211
    %1753 = vmatprep.subr.mxu0 %v216
    %1754 = vmatpush1.msra.mxu0 %v215
    %1755 = vmatprep.subr.mxu0 %v220
    %1756 = vmatpush1.msra.mxu0 %v219
    %1757 = vmatprep.subr.mxu0 %v224
    %1758 = vmatpush1.msra.mxu0 %v223
    %1759 = vmatprep.subr.mxu0 %v228
    %1760 = vmatpush1.msra.mxu0 %v227
    %1761 = vmatprep.subr.mxu0 %v232
    %1762 = vmatpush1.msra.mxu0 %v231
    %1763 = vmatprep.subr.mxu0 %v236
    %1764 = vmatpush1.msra.mxu0 %v235
    %1765 = vmatprep.subr.mxu0 %v240
    %1766 = vmatpush1.msra.mxu0 %v239
    %1767 = vmatprep.subr.mxu0 %v244
    %1768 = vmatpush1.msra.mxu0 %v243
    %1769 = vmatprep.subr.mxu0 %v248
    %1770 = vmatpush1.msra.mxu0 %v247
    %1771 = vmatprep.subr.mxu0 %v252
    %1772 = vmatpush1.msra.mxu0 %v251
    %1773 = vmatprep.subr.mxu0 0.0
    %1774 = vmatpush1.msra.mxu0 0.0
    %1775 = vmatprep.subr.mxu0 0.0
    %1776 = vmatpush1.msra.mxu0 0.0
    %1777 = vmatprep.subr.mxu0 0.0
    %1778 = vmatpush1.msra.mxu0 0.0
    %1779 = vmatprep.subr.mxu0 0.0
    %1780 = vmatpush1.msra.mxu0 0.0
    %1781 = vmatprep.subr.mxu0 0.0
    %1782 = vmatpush1.msra.mxu0 0.0
    %1783 = vmatprep.subr.mxu0 0.0
    %1784 = vmatpush1.msra.mxu0 0.0
    %1785 = vmatprep.subr.mxu0 0.0
    %1786 = vmatpush1.msra.mxu0 0.0
    %1787 = vmatprep.subr.mxu0 0.0
    %1788 = vmatpush1.msra.mxu0 0.0
    %1789 = vmatprep.subr.mxu0 0.0
    %1790 = vmatpush1.msra.mxu0 0.0
    %1791 = vmatprep.subr.mxu0 0.0
    %1792 = vmatpush1.msra.mxu0 0.0
    %1793 = vmatprep.subr.mxu0 0.0
    %1794 = vmatpush1.msra.mxu0 0.0
    %1795 = vmatprep.subr.mxu0 0.0
    %1796 = vmatpush1.msra.mxu0 0.0
    %1797 = vmatprep.subr.mxu0 0.0
    %1798 = vmatpush1.msra.mxu0 0.0
    %1799 = vmatprep.subr.mxu0 0.0
    %1800 = vmatpush1.msra.mxu0 0.0
    %1801 = vmatprep.subr.mxu0 0.0
    %1802 = vmatpush1.msra.mxu0 0.0
    %1803 = vmatprep.subr.mxu0 0.0
    %1804 = vmatpush1.msra.mxu0 0.0
    %1805 = vmatprep.mubr.f32.mxu0 0.0
    %1806 = vmatmul.mubr.f32.gmra.mrb[0].mxu0 %v1739
    %v1807 = vpop.f32.mrb[0].mxu0
    %v1808 = vadd.f32 0.0, %v1807
    %v1809 = vpop.f32.mrb[0].mxu0
    %v1810 = vadd.f32 0.0, %v1809
    %1811 = vdwg.mxu0
    %1812 = vmatprep.subr.mxu0 %v194
    %1813 = vmatpush1.msra.mxu0 %v193
    %1814 = vmatprep.subr.mxu0 %v198
    %1815 = vmatpush1.msra.mxu0 %v197
    %1816 = vmatprep.subr.mxu0 %v202
    %1817 = vmatpush1.msra.mxu0 %v201
    %1818 = vmatprep.subr.mxu0 %v206
    %1819 = vmatpush1.msra.mxu0 %v205
    %1820 = vmatprep.subr.mxu0 %v210
    %1821 = vmatpush1.msra.mxu0 %v209
    %1822 = vmatprep.subr.mxu0 %v214
    %1823 = vmatpush1.msra.mxu0 %v213
    %1824 = vmatprep.subr.mxu0 %v218
    %1825 = vmatpush1.msra.mxu0 %v217
    %1826 = vmatprep.subr.mxu0 %v222
    %1827 = vmatpush1.msra.mxu0 %v221
    %1828 = vmatprep.subr.mxu0 %v226
    %1829 = vmatpush1.msra.mxu0 %v225
    %1830 = vmatprep.subr.mxu0 %v230
    %1831 = vmatpush1.msra.mxu0 %v229
    %1832 = vmatprep.subr.mxu0 %v234
    %1833 = vmatpush1.msra.mxu0 %v233
    %1834 = vmatprep.subr.mxu0 %v238
    %1835 = vmatpush1.msra.mxu0 %v237
    %1836 = vmatprep.subr.mxu0 %v242
    %1837 = vmatpush1.msra.mxu0 %v241
    %1838 = vmatprep.subr.mxu0 %v246
    %1839 = vmatpush1.msra.mxu0 %v245
    %1840 = vmatprep.subr.mxu0 %v250
    %1841 = vmatpush1.msra.mxu0 %v249
    %1842 = vmatprep.subr.mxu0 %v254
    %1843 = vmatpush1.msra.mxu0 %v253
    %1844 = vmatprep.subr.mxu0 0.0
    %1845 = vmatpush1.msra.mxu0 0.0
    %1846 = vmatprep.subr.mxu0 0.0
    %1847 = vmatpush1.msra.mxu0 0.0
    %1848 = vmatprep.subr.mxu0 0.0
    %1849 = vmatpush1.msra.mxu0 0.0
    %1850 = vmatprep.subr.mxu0 0.0
    %1851 = vmatpush1.msra.mxu0 0.0
    %1852 = vmatprep.subr.mxu0 0.0
    %1853 = vmatpush1.msra.mxu0 0.0
    %1854 = vmatprep.subr.mxu0 0.0
    %1855 = vmatpush1.msra.mxu0 0.0
    %1856 = vmatprep.subr.mxu0 0.0
    %1857 = vmatpush1.msra.mxu0 0.0
    %1858 = vmatprep.subr.mxu0 0.0
    %1859 = vmatpush1.msra.mxu0 0.0
    %1860 = vmatprep.subr.mxu0 0.0
    %1861 = vmatpush1.msra.mxu0 0.0
    %1862 = vmatprep.subr.mxu0 0.0
    %1863 = vmatpush1.msra.mxu0 0.0
    %1864 = vmatprep.subr.mxu0 0.0
    %1865 = vmatpush1.msra.mxu0 0.0
    %1866 = vmatprep.subr.mxu0 0.0
    %1867 = vmatpush1.msra.mxu0 0.0
    %1868 = vmatprep.subr.mxu0 0.0
    %1869 = vmatpush1.msra.mxu0 0.0
    %1870 = vmatprep.subr.mxu0 0.0
    %1871 = vmatpush1.msra.mxu0 0.0
    %1872 = vmatprep.subr.mxu0 0.0
    %1873 = vmatpush1.msra.mxu0 0.0
    %1874 = vmatprep.subr.mxu0 0.0
    %1875 = vmatpush1.msra.mxu0 0.0
    %1876 = vmatprep.mubr.f32.mxu0 0.0
    %1877 = vmatmul.mubr.f32.gmra.mrb[0].mxu0 %v1739
    %v1878 = vpop.f32.mrb[0].mxu0
    %v1879 = vadd.f32 0.0, %v1878
    %v1880 = vpop.f32.mrb[0].mxu0
    %v1881 = vadd.f32 0.0, %v1880
    %1882 = vdwg.mxu0
    %v1887 = vrot.slane %v1808, 1
    %v1888 = vrot.slane %v1810, 1
    %v1889 = vrot.slane %v1879, 1
    %v1890 = vrot.slane %v1881, 1
    %v1895 = vadd.f32 %v361, %v1887
    %v1896 = vadd.f32 %v363, %v1888
    %v1897 = vadd.f32 %v432, %v1889
    %v1898 = vadd.f32 %v434, %v1890
    %v1899 = vxor.u32 %v1895, 2147483648
    %v1900 = vmul.f32 %v1899, 1.442695
    %v1901 = vpow.pop %v1900
    %v1902 = vadd.f32 %v1901, 1.0
    %v1903 = vrcp.pop %v1902
    %v1904 = vmul.f32 1.0, %v1903
    %v1905 = vxor.u32 %v1896, 2147483648
    %v1906 = vmul.f32 %v1905, 1.442695
    %v1907 = vpow.pop %v1906
    %v1908 = vadd.f32 %v1907, 1.0
    %v1909 = vrcp.pop %v1908
    %v1910 = vmul.f32 1.0, %v1909
    %v1911 = vtanh.pop %v1897
    %v1912 = vxor.u32 %v1898, 2147483648
    %v1913 = vmul.f32 %v1912, 1.442695
    %v1914 = vpow.pop %v1913
    %v1915 = vadd.f32 %v1914, 1.0
    %v1916 = vrcp.pop %v1915
    %v1917 = vmul.f32 1.0, %v1916
    %v1919 = vrot.slane %v1734, 7
    %v1921 = vmul.f32 %v1910, %v1919
    %v1922 = vmul.f32 %v1904, %v1911
    %v1923 = vadd.f32 %v1921, %v1922
    %v1924 = vtanh.pop %v1923
    %v1925 = vmul.f32 %v1917, %v1924
    %1926 = vst [vmem:[#allocation2] sm:$0x80] %v1925
    %v1927 = vld [vmem:[#allocation2] sm:$0xff]
    %v1928 = vld [vmem:[#allocation8] sm:$0xff]
    %v1929 = vld [vmem:[#allocation8 + $0x8] sm:$0xff]
    %v1930 = vld [vmem:[#allocation8 + $0x10] sm:$0xff]
    %v1931 = vld [vmem:[#allocation8 + $0x18] sm:$0xff]
    %v1932 = vld [vmem:[#allocation8 + $0x20] sm:$0xff]
    %v1933 = vld [vmem:[#allocation8 + $0x28] sm:$0xff]
    %v1934 = vld [vmem:[#allocation8 + $0x30] sm:$0xff]
    %v1935 = vld [vmem:[#allocation8 + $0x38] sm:$0xff]
    %v1936 = vld [vmem:[#allocation8 + $0x40] sm:$0xff]
    %v1937 = vld [vmem:[#allocation8 + $0x48] sm:$0xff]
    %v1938 = vld [vmem:[#allocation8 + $0x50] sm:$0xff]
    %v1939 = vld [vmem:[#allocation8 + $0x58] sm:$0xff]
    %v1940 = vld [vmem:[#allocation8 + $0x60] sm:$0xff]
    %v1941 = vld [vmem:[#allocation8 + $0x68] sm:$0xff]
    %v1942 = vld [vmem:[#allocation8 + $0x70] sm:$0xff]
    %v1943 = vld [vmem:[#allocation8 + $0x78] sm:$0xff]
    %v1944 = vld [vmem:[#allocation8 + $0x80] sm:$0xff]
    %v1945 = vld [vmem:[#allocation8 + $0x88] sm:$0xff]
    %v1946 = vld [vmem:[#allocation8 + $0x90] sm:$0xff]
    %v1947 = vld [vmem:[#allocation8 + $0x98] sm:$0xff]
    %v1948 = vld [vmem:[#allocation8 + $0xa0] sm:$0xff]
    %v1949 = vld [vmem:[#allocation8 + $0xa8] sm:$0xff]
    %v1950 = vld [vmem:[#allocation8 + $0xb0] sm:$0xff]
    %v1951 = vld [vmem:[#allocation8 + $0xb8] sm:$0xff]
    %v1952 = vld [vmem:[#allocation8 + $0xc0] sm:$0xff]
    %v1953 = vld [vmem:[#allocation8 + $0xc8] sm:$0xff]
    %v1954 = vld [vmem:[#allocation8 + $0xd0] sm:$0xff]
    %v1955 = vld [vmem:[#allocation8 + $0xd8] sm:$0xff]
    %v1956 = vld [vmem:[#allocation8 + $0xe0] sm:$0xff]
    %v1957 = vld [vmem:[#allocation8 + $0xe8] sm:$0xff]
    %v1958 = vld [vmem:[#allocation8 + $0xf0] sm:$0xff]
    %v1959 = vld [vmem:[#allocation8 + $0xf8] sm:$0xff]
    %v1960 = vld [vmem:[#allocation8 + $0x100] sm:$0xff]
    %v1961 = vld [vmem:[#allocation8 + $0x108] sm:$0xff]
    %v1962 = vld [vmem:[#allocation8 + $0x110] sm:$0xff]
    %v1963 = vld [vmem:[#allocation8 + $0x118] sm:$0xff]
    %v1964 = vld [vmem:[#allocation8 + $0x120] sm:$0xff]
    %v1965 = vld [vmem:[#allocation8 + $0x128] sm:$0xff]
    %v1966 = vld [vmem:[#allocation8 + $0x130] sm:$0xff]
    %v1967 = vld [vmem:[#allocation8 + $0x138] sm:$0xff]
    %v1968 = vld [vmem:[#allocation8 + $0x140] sm:$0xff]
    %v1969 = vld [vmem:[#allocation8 + $0x148] sm:$0xff]
    %v1970 = vld [vmem:[#allocation8 + $0x150] sm:$0xff]
    %v1971 = vld [vmem:[#allocation8 + $0x158] sm:$0xff]
    %v1972 = vld [vmem:[#allocation8 + $0x160] sm:$0xff]
    %v1973 = vld [vmem:[#allocation8 + $0x168] sm:$0xff]
    %v1974 = vld [vmem:[#allocation8 + $0x170] sm:$0xff]
    %v1975 = vld [vmem:[#allocation8 + $0x178] sm:$0xff]
    %v1976 = vld [vmem:[#allocation8 + $0x180] sm:$0xff]
    %v1977 = vld [vmem:[#allocation8 + $0x188] sm:$0xff]
    %v1978 = vld [vmem:[#allocation8 + $0x190] sm:$0xff]
    %v1979 = vld [vmem:[#allocation8 + $0x198] sm:$0xff]
    %v1980 = vld [vmem:[#allocation8 + $0x1a0] sm:$0xff]
    %v1981 = vld [vmem:[#allocation8 + $0x1a8] sm:$0xff]
    %v1982 = vld [vmem:[#allocation8 + $0x1b0] sm:$0xff]
    %v1983 = vld [vmem:[#allocation8 + $0x1b8] sm:$0xff]
    %v1984 = vld [vmem:[#allocation8 + $0x1c0] sm:$0xff]
    %v1985 = vld [vmem:[#allocation8 + $0x1c8] sm:$0xff]
    %v1986 = vld [vmem:[#allocation8 + $0x1d0] sm:$0xff]
    %v1987 = vld [vmem:[#allocation8 + $0x1d8] sm:$0xff]
    %v1988 = vld [vmem:[#allocation8 + $0x1e0] sm:$0xff]
    %v1989 = vld [vmem:[#allocation8 + $0x1e8] sm:$0xff]
    %v1990 = vld [vmem:[#allocation8 + $0x1f0] sm:$0xff]
    %v1991 = vld [vmem:[#allocation8 + $0x1f8] sm:$0xff]
    %v1992 = vld [vmem:[#allocation9] sm:$0xff]
    %v1993 = vld [vmem:[#allocation9 + $0x8] sm:$0xff]
    %v1994 = vld [vmem:[#allocation9 + $0x10] sm:$0xff]
    %v1995 = vld [vmem:[#allocation9 + $0x18] sm:$0xff]
    %v1996 = vld [vmem:[#allocation9 + $0x20] sm:$0xff]
    %v1997 = vld [vmem:[#allocation9 + $0x28] sm:$0xff]
    %v1998 = vld [vmem:[#allocation9 + $0x30] sm:$0xff]
    %v1999 = vld [vmem:[#allocation9 + $0x38] sm:$0xff]
    %v2000 = vld [vmem:[#allocation9 + $0x40] sm:$0xff]
    %v2001 = vld [vmem:[#allocation9 + $0x48] sm:$0xff]
    %v2002 = vld [vmem:[#allocation9 + $0x50] sm:$0xff]
    %v2003 = vld [vmem:[#allocation9 + $0x58] sm:$0xff]
    %v2004 = vld [vmem:[#allocation9 + $0x60] sm:$0xff]
    %v2005 = vld [vmem:[#allocation9 + $0x68] sm:$0xff]
    %v2006 = vld [vmem:[#allocation9 + $0x70] sm:$0xff]
    %v2007 = vld [vmem:[#allocation9 + $0x78] sm:$0xff]
    %v2008 = vld [vmem:[#allocation9 + $0x80] sm:$0xff]
    %v2009 = vld [vmem:[#allocation9 + $0x88] sm:$0xff]
    %v2010 = vld [vmem:[#allocation9 + $0x90] sm:$0xff]
    %v2011 = vld [vmem:[#allocation9 + $0x98] sm:$0xff]
    %v2012 = vld [vmem:[#allocation9 + $0xa0] sm:$0xff]
    %v2013 = vld [vmem:[#allocation9 + $0xa8] sm:$0xff]
    %v2014 = vld [vmem:[#allocation9 + $0xb0] sm:$0xff]
    %v2015 = vld [vmem:[#allocation9 + $0xb8] sm:$0xff]
    %v2016 = vld [vmem:[#allocation9 + $0xc0] sm:$0xff]
    %v2017 = vld [vmem:[#allocation9 + $0xc8] sm:$0xff]
    %v2018 = vld [vmem:[#allocation9 + $0xd0] sm:$0xff]
    %v2019 = vld [vmem:[#allocation9 + $0xd8] sm:$0xff]
    %v2020 = vld [vmem:[#allocation9 + $0xe0] sm:$0xff]
    %v2021 = vld [vmem:[#allocation9 + $0xe8] sm:$0xff]
    %v2022 = vld [vmem:[#allocation9 + $0xf0] sm:$0xff]
    %v2023 = vld [vmem:[#allocation9 + $0xf8] sm:$0xff]
    %v2024 = vld [vmem:[#allocation9 + $0x100] sm:$0xff]
    %v2025 = vld [vmem:[#allocation9 + $0x108] sm:$0xff]
    %v2026 = vld [vmem:[#allocation9 + $0x110] sm:$0xff]
    %v2027 = vld [vmem:[#allocation9 + $0x118] sm:$0xff]
    %v2028 = vld [vmem:[#allocation9 + $0x120] sm:$0xff]
    %v2029 = vld [vmem:[#allocation9 + $0x128] sm:$0xff]
    %v2030 = vld [vmem:[#allocation9 + $0x130] sm:$0xff]
    %v2031 = vld [vmem:[#allocation9 + $0x138] sm:$0xff]
    %v2032 = vld [vmem:[#allocation9 + $0x140] sm:$0xff]
    %v2033 = vld [vmem:[#allocation9 + $0x148] sm:$0xff]
    %v2034 = vld [vmem:[#allocation9 + $0x150] sm:$0xff]
    %v2035 = vld [vmem:[#allocation9 + $0x158] sm:$0xff]
    %v2036 = vld [vmem:[#allocation9 + $0x160] sm:$0xff]
    %v2037 = vld [vmem:[#allocation9 + $0x168] sm:$0xff]
    %v2038 = vld [vmem:[#allocation9 + $0x170] sm:$0xff]
    %v2039 = vld [vmem:[#allocation9 + $0x178] sm:$0xff]
    %v2040 = vld [vmem:[#allocation9 + $0x180] sm:$0xff]
    %v2041 = vld [vmem:[#allocation9 + $0x188] sm:$0xff]
    %v2042 = vld [vmem:[#allocation9 + $0x190] sm:$0xff]
    %v2043 = vld [vmem:[#allocation9 + $0x198] sm:$0xff]
    %v2044 = vld [vmem:[#allocation9 + $0x1a0] sm:$0xff]
    %v2045 = vld [vmem:[#allocation9 + $0x1a8] sm:$0xff]
    %v2046 = vld [vmem:[#allocation9 + $0x1b0] sm:$0xff]
    %v2047 = vld [vmem:[#allocation9 + $0x1b8] sm:$0xff]
    %v2048 = vld [vmem:[#allocation9 + $0x1c0] sm:$0xff]
    %v2049 = vld [vmem:[#allocation9 + $0x1c8] sm:$0xff]
    %v2050 = vld [vmem:[#allocation9 + $0x1d0] sm:$0xff]
    %v2051 = vld [vmem:[#allocation9 + $0x1d8] sm:$0xff]
    %v2052 = vld [vmem:[#allocation9 + $0x1e0] sm:$0xff]
    %v2053 = vld [vmem:[#allocation9 + $0x1e8] sm:$0xff]
    %v2054 = vld [vmem:[#allocation9 + $0x1f0] sm:$0xff]
    %v2055 = vld [vmem:[#allocation9 + $0x1f8] sm:$0xff]
    %v2056 = vld [vmem:[%s6] sm:$0xf]
    %v2058 = vlaneseq
    %v2059 = vshrl.u32 %v2058, 7
    %v2060 = vsub.s32 0, %v2059
    %v2061 = vrot.slane %v2056, %v2060
    %v2062 = vlaneseq
    %v2063 = vshrl.u32 %v2062, 7
    %v2064 = vsub.s32 1, %v2063
    %v2065 = vrot.slane %v2056, %v2064
    %v2066 = vlaneseq
    %v2067 = vshrl.u32 %v2066, 7
    %v2068 = vsub.s32 2, %v2067
    %v2069 = vrot.slane %v2056, %v2068
    %v2070 = vlaneseq
    %v2071 = vshrl.u32 %v2070, 7
    %v2072 = vsub.s32 3, %v2071
    %v2073 = vrot.slane %v2056, %v2072
    %2078 = vmatprep.subr.mxu0 %v1929
    %2079 = vmatpush1.msra.mxu0 %v1928
    %2080 = vmatprep.subr.mxu0 %v1933
    %2081 = vmatpush1.msra.mxu0 %v1932
    %2082 = vmatprep.subr.mxu0 %v1937
    %2083 = vmatpush1.msra.mxu0 %v1936
    %2084 = vmatprep.subr.mxu0 %v1941
    %2085 = vmatpush1.msra.mxu0 %v1940
    %2086 = vmatprep.subr.mxu0 %v1945
    %2087 = vmatpush1.msra.mxu0 %v1944
    %2088 = vmatprep.subr.mxu0 %v1949
    %2089 = vmatpush1.msra.mxu0 %v1948
    %2090 = vmatprep.subr.mxu0 %v1953
    %2091 = vmatpush1.msra.mxu0 %v1952
    %2092 = vmatprep.subr.mxu0 %v1957
    %2093 = vmatpush1.msra.mxu0 %v1956
    %2094 = vmatprep.subr.mxu0 %v1961
    %2095 = vmatpush1.msra.mxu0 %v1960
    %2096 = vmatprep.subr.mxu0 %v1965
    %2097 = vmatpush1.msra.mxu0 %v1964
    %2098 = vmatprep.subr.mxu0 %v1969
    %2099 = vmatpush1.msra.mxu0 %v1968
    %2100 = vmatprep.subr.mxu0 %v1973
    %2101 = vmatpush1.msra.mxu0 %v1972
    %2102 = vmatprep.subr.mxu0 %v1977
    %2103 = vmatpush1.msra.mxu0 %v1976
    %2104 = vmatprep.subr.mxu0 %v1981
    %2105 = vmatpush1.msra.mxu0 %v1980
    %2106 = vmatprep.subr.mxu0 %v1985
    %2107 = vmatpush1.msra.mxu0 %v1984
    %2108 = vmatprep.subr.mxu0 %v1989
    %2109 = vmatpush1.msra.mxu0 %v1988
    %2110 = vmatprep.subr.mxu0 0.0
    %2111 = vmatpush1.msra.mxu0 0.0
    %2112 = vmatprep.subr.mxu0 0.0
    %2113 = vmatpush1.msra.mxu0 0.0
    %2114 = vmatprep.subr.mxu0 0.0
    %2115 = vmatpush1.msra.mxu0 0.0
    %2116 = vmatprep.subr.mxu0 0.0
    %2117 = vmatpush1.msra.mxu0 0.0
    %2118 = vmatprep.subr.mxu0 0.0
    %2119 = vmatpush1.msra.mxu0 0.0
    %2120 = vmatprep.subr.mxu0 0.0
    %2121 = vmatpush1.msra.mxu0 0.0
    %2122 = vmatprep.subr.mxu0 0.0
    %2123 = vmatpush1.msra.mxu0 0.0
    %2124 = vmatprep.subr.mxu0 0.0
    %2125 = vmatpush1.msra.mxu0 0.0
    %2126 = vmatprep.subr.mxu0 0.0
    %2127 = vmatpush1.msra.mxu0 0.0
    %2128 = vmatprep.subr.mxu0 0.0
    %2129 = vmatpush1.msra.mxu0 0.0
    %2130 = vmatprep.subr.mxu0 0.0
    %2131 = vmatpush1.msra.mxu0 0.0
    %2132 = vmatprep.subr.mxu0 0.0
    %2133 = vmatpush1.msra.mxu0 0.0
    %2134 = vmatprep.subr.mxu0 0.0
    %2135 = vmatpush1.msra.mxu0 0.0
    %2136 = vmatprep.subr.mxu0 0.0
    %2137 = vmatpush1.msra.mxu0 0.0
    %2138 = vmatprep.subr.mxu0 0.0
    %2139 = vmatpush1.msra.mxu0 0.0
    %2140 = vmatprep.subr.mxu0 0.0
    %2141 = vmatpush1.msra.mxu0 0.0
    %2142 = vmatprep.mubr.f32.mxu0 0.0
    %2143 = vmatmul.mubr.f32.gmra.mrb[0].mxu0 %v1927
    %v2144 = vpop.f32.mrb[0].mxu0
    %v2145 = vadd.f32 %v2061, %v2144
    %v2146 = vpop.f32.mrb[0].mxu0
    %v2147 = vadd.f32 %v2065, %v2146
    %2148 = vdwg.mxu0
    %2149 = vmatprep.subr.mxu0 %v1931
    %2150 = vmatpush1.msra.mxu0 %v1930
    %2151 = vmatprep.subr.mxu0 %v1935
    %2152 = vmatpush1.msra.mxu0 %v1934
    %2153 = vmatprep.subr.mxu0 %v1939
    %2154 = vmatpush1.msra.mxu0 %v1938
    %2155 = vmatprep.subr.mxu0 %v1943
    %2156 = vmatpush1.msra.mxu0 %v1942
    %2157 = vmatprep.subr.mxu0 %v1947
    %2158 = vmatpush1.msra.mxu0 %v1946
    %2159 = vmatprep.subr.mxu0 %v1951
    %2160 = vmatpush1.msra.mxu0 %v1950
    %2161 = vmatprep.subr.mxu0 %v1955
    %2162 = vmatpush1.msra.mxu0 %v1954
    %2163 = vmatprep.subr.mxu0 %v1959
    %2164 = vmatpush1.msra.mxu0 %v1958
    %2165 = vmatprep.subr.mxu0 %v1963
    %2166 = vmatpush1.msra.mxu0 %v1962
    %2167 = vmatprep.subr.mxu0 %v1967
    %2168 = vmatpush1.msra.mxu0 %v1966
    %2169 = vmatprep.subr.mxu0 %v1971
    %2170 = vmatpush1.msra.mxu0 %v1970
    %2171 = vmatprep.subr.mxu0 %v1975
    %2172 = vmatpush1.msra.mxu0 %v1974
    %2173 = vmatprep.subr.mxu0 %v1979
    %2174 = vmatpush1.msra.mxu0 %v1978
    %2175 = vmatprep.subr.mxu0 %v1983
    %2176 = vmatpush1.msra.mxu0 %v1982
    %2177 = vmatprep.subr.mxu0 %v1987
    %2178 = vmatpush1.msra.mxu0 %v1986
    %2179 = vmatprep.subr.mxu0 %v1991
    %2180 = vmatpush1.msra.mxu0 %v1990
    %2181 = vmatprep.subr.mxu0 0.0
    %2182 = vmatpush1.msra.mxu0 0.0
    %2183 = vmatprep.subr.mxu0 0.0
    %2184 = vmatpush1.msra.mxu0 0.0
    %2185 = vmatprep.subr.mxu0 0.0
    %2186 = vmatpush1.msra.mxu0 0.0
    %2187 = vmatprep.subr.mxu0 0.0
    %2188 = vmatpush1.msra.mxu0 0.0
    %2189 = vmatprep.subr.mxu0 0.0
    %2190 = vmatpush1.msra.mxu0 0.0
    %2191 = vmatprep.subr.mxu0 0.0
    %2192 = vmatpush1.msra.mxu0 0.0
    %2193 = vmatprep.subr.mxu0 0.0
    %2194 = vmatpush1.msra.mxu0 0.0
    %2195 = vmatprep.subr.mxu0 0.0
    %2196 = vmatpush1.msra.mxu0 0.0
    %2197 = vmatprep.subr.mxu0 0.0
    %2198 = vmatpush1.msra.mxu0 0.0
    %2199 = vmatprep.subr.mxu0 0.0
    %2200 = vmatpush1.msra.mxu0 0.0
    %2201 = vmatprep.subr.mxu0 0.0
    %2202 = vmatpush1.msra.mxu0 0.0
    %2203 = vmatprep.subr.mxu0 0.0
    %2204 = vmatpush1.msra.mxu0 0.0
    %2205 = vmatprep.subr.mxu0 0.0
    %2206 = vmatpush1.msra.mxu0 0.0
    %2207 = vmatprep.subr.mxu0 0.0
    %2208 = vmatpush1.msra.mxu0 0.0
    %2209 = vmatprep.subr.mxu0 0.0
    %2210 = vmatpush1.msra.mxu0 0.0
    %2211 = vmatprep.subr.mxu0 0.0
    %2212 = vmatpush1.msra.mxu0 0.0
    %2213 = vmatprep.mubr.f32.mxu0 0.0
    %2214 = vmatmul.mubr.f32.gmra.mrb[0].mxu0 %v1927
    %v2215 = vpop.f32.mrb[0].mxu0
    %v2216 = vadd.f32 %v2069, %v2215
    %v2217 = vpop.f32.mrb[0].mxu0
    %v2218 = vadd.f32 %v2073, %v2217
    %2219 = vdwg.mxu0
    %2220 = vmatprep.subr.mxu0 %v1993
    %2221 = vmatpush1.msra.mxu0 %v1992
    %2222 = vmatprep.subr.mxu0 %v1997
    %2223 = vmatpush1.msra.mxu0 %v1996
    %2224 = vmatprep.subr.mxu0 %v2001
    %2225 = vmatpush1.msra.mxu0 %v2000
    %2226 = vmatprep.subr.mxu0 %v2005
    %2227 = vmatpush1.msra.mxu0 %v2004
    %2228 = vmatprep.subr.mxu0 %v2009
    %2229 = vmatpush1.msra.mxu0 %v2008
    %2230 = vmatprep.subr.mxu0 %v2013
    %2231 = vmatpush1.msra.mxu0 %v2012
    %2232 = vmatprep.subr.mxu0 %v2017
    %2233 = vmatpush1.msra.mxu0 %v2016
    %2234 = vmatprep.subr.mxu0 %v2021
    %2235 = vmatpush1.msra.mxu0 %v2020
    %2236 = vmatprep.subr.mxu0 %v2025
    %2237 = vmatpush1.msra.mxu0 %v2024
    %2238 = vmatprep.subr.mxu0 %v2029
    %2239 = vmatpush1.msra.mxu0 %v2028
    %2240 = vmatprep.subr.mxu0 %v2033
    %2241 = vmatpush1.msra.mxu0 %v2032
    %2242 = vmatprep.subr.mxu0 %v2037
    %2243 = vmatpush1.msra.mxu0 %v2036
    %2244 = vmatprep.subr.mxu0 %v2041
    %2245 = vmatpush1.msra.mxu0 %v2040
    %2246 = vmatprep.subr.mxu0 %v2045
    %2247 = vmatpush1.msra.mxu0 %v2044
    %2248 = vmatprep.subr.mxu0 %v2049
    %2249 = vmatpush1.msra.mxu0 %v2048
    %2250 = vmatprep.subr.mxu0 %v2053
    %2251 = vmatpush1.msra.mxu0 %v2052
    %2252 = vmatprep.subr.mxu0 0.0
    %2253 = vmatpush1.msra.mxu0 0.0
    %2254 = vmatprep.subr.mxu0 0.0
    %2255 = vmatpush1.msra.mxu0 0.0
    %2256 = vmatprep.subr.mxu0 0.0
    %2257 = vmatpush1.msra.mxu0 0.0
    %2258 = vmatprep.subr.mxu0 0.0
    %2259 = vmatpush1.msra.mxu0 0.0
    %2260 = vmatprep.subr.mxu0 0.0
    %2261 = vmatpush1.msra.mxu0 0.0
    %2262 = vmatprep.subr.mxu0 0.0
    %2263 = vmatpush1.msra.mxu0 0.0
    %2264 = vmatprep.subr.mxu0 0.0
    %2265 = vmatpush1.msra.mxu0 0.0
    %2266 = vmatprep.subr.mxu0 0.0
    %2267 = vmatpush1.msra.mxu0 0.0
    %2268 = vmatprep.subr.mxu0 0.0
    %2269 = vmatpush1.msra.mxu0 0.0
    %2270 = vmatprep.subr.mxu0 0.0
    %2271 = vmatpush1.msra.mxu0 0.0
    %2272 = vmatprep.subr.mxu0 0.0
    %2273 = vmatpush1.msra.mxu0 0.0
    %2274 = vmatprep.subr.mxu0 0.0
    %2275 = vmatpush1.msra.mxu0 0.0
    %2276 = vmatprep.subr.mxu0 0.0
    %2277 = vmatpush1.msra.mxu0 0.0
    %2278 = vmatprep.subr.mxu0 0.0
    %2279 = vmatpush1.msra.mxu0 0.0
    %2280 = vmatprep.subr.mxu0 0.0
    %2281 = vmatpush1.msra.mxu0 0.0
    %2282 = vmatprep.subr.mxu0 0.0
    %2283 = vmatpush1.msra.mxu0 0.0
    %2284 = vmatprep.mubr.f32.mxu0 0.0
    %2285 = vmatmul.mubr.f32.gmra.mrb[0].mxu0 0.0
    %v2286 = vpop.f32.mrb[0].mxu0
    %v2287 = vadd.f32 0.0, %v2286
    %v2288 = vpop.f32.mrb[0].mxu0
    %v2289 = vadd.f32 0.0, %v2288
    %2290 = vdwg.mxu0
    %2291 = vmatprep.subr.mxu0 %v1995
    %2292 = vmatpush1.msra.mxu0 %v1994
    %2293 = vmatprep.subr.mxu0 %v1999
    %2294 = vmatpush1.msra.mxu0 %v1998
    %2295 = vmatprep.subr.mxu0 %v2003
    %2296 = vmatpush1.msra.mxu0 %v2002
    %2297 = vmatprep.subr.mxu0 %v2007
    %2298 = vmatpush1.msra.mxu0 %v2006
    %2299 = vmatprep.subr.mxu0 %v2011
    %2300 = vmatpush1.msra.mxu0 %v2010
    %2301 = vmatprep.subr.mxu0 %v2015
    %2302 = vmatpush1.msra.mxu0 %v2014
    %2303 = vmatprep.subr.mxu0 %v2019
    %2304 = vmatpush1.msra.mxu0 %v2018
    %2305 = vmatprep.subr.mxu0 %v2023
    %2306 = vmatpush1.msra.mxu0 %v2022
    %2307 = vmatprep.subr.mxu0 %v2027
    %2308 = vmatpush1.msra.mxu0 %v2026
    %2309 = vmatprep.subr.mxu0 %v2031
    %2310 = vmatpush1.msra.mxu0 %v2030
    %2311 = vmatprep.subr.mxu0 %v2035
    %2312 = vmatpush1.msra.mxu0 %v2034
    %2313 = vmatprep.subr.mxu0 %v2039
    %2314 = vmatpush1.msra.mxu0 %v2038
    %2315 = vmatprep.subr.mxu0 %v2043
    %2316 = vmatpush1.msra.mxu0 %v2042
    %2317 = vmatprep.subr.mxu0 %v2047
    %2318 = vmatpush1.msra.mxu0 %v2046
    %2319 = vmatprep.subr.mxu0 %v2051
    %2320 = vmatpush1.msra.mxu0 %v2050
    %2321 = vmatprep.subr.mxu0 %v2055
    %2322 = vmatpush1.msra.mxu0 %v2054
    %2323 = vmatprep.subr.mxu0 0.0
    %2324 = vmatpush1.msra.mxu0 0.0
    %2325 = vmatprep.subr.mxu0 0.0
    %2326 = vmatpush1.msra.mxu0 0.0
    %2327 = vmatprep.subr.mxu0 0.0
    %2328 = vmatpush1.msra.mxu0 0.0
    %2329 = vmatprep.subr.mxu0 0.0
    %2330 = vmatpush1.msra.mxu0 0.0
    %2331 = vmatprep.subr.mxu0 0.0
    %2332 = vmatpush1.msra.mxu0 0.0
    %2333 = vmatprep.subr.mxu0 0.0
    %2334 = vmatpush1.msra.mxu0 0.0
    %2335 = vmatprep.subr.mxu0 0.0
    %2336 = vmatpush1.msra.mxu0 0.0
    %2337 = vmatprep.subr.mxu0 0.0
    %2338 = vmatpush1.msra.mxu0 0.0
    %2339 = vmatprep.subr.mxu0 0.0
    %2340 = vmatpush1.msra.mxu0 0.0
    %2341 = vmatprep.subr.mxu0 0.0
    %2342 = vmatpush1.msra.mxu0 0.0
    %2343 = vmatprep.subr.mxu0 0.0
    %2344 = vmatpush1.msra.mxu0 0.0
    %2345 = vmatprep.subr.mxu0 0.0
    %2346 = vmatpush1.msra.mxu0 0.0
    %2347 = vmatprep.subr.mxu0 0.0
    %2348 = vmatpush1.msra.mxu0 0.0
    %2349 = vmatprep.subr.mxu0 0.0
    %2350 = vmatpush1.msra.mxu0 0.0
    %2351 = vmatprep.subr.mxu0 0.0
    %2352 = vmatpush1.msra.mxu0 0.0
    %2353 = vmatprep.subr.mxu0 0.0
    %2354 = vmatpush1.msra.mxu0 0.0
    %2355 = vmatprep.mubr.f32.mxu0 0.0
    %2356 = vmatmul.mubr.f32.gmra.mrb[0].mxu0 0.0
    %v2357 = vpop.f32.mrb[0].mxu0
    %v2358 = vadd.f32 0.0, %v2357
    %v2359 = vpop.f32.mrb[0].mxu0
    %v2360 = vadd.f32 0.0, %v2359
    %2361 = vdwg.mxu0
    %v2362 = vadd.f32 %v2145, %v2287
    %v2363 = vadd.f32 %v2147, %v2289
    %v2364 = vadd.f32 %v2216, %v2358
    %v2365 = vadd.f32 %v2218, %v2360
    %v2366 = vxor.u32 %v2362, 2147483648
    %v2367 = vmul.f32 %v2366, 1.442695
    %v2368 = vpow.pop %v2367
    %v2369 = vadd.f32 %v2368, 1.0
    %v2370 = vrcp.pop %v2369
    %v2371 = vmul.f32 1.0, %v2370
    %v2372 = vxor.u32 %v2363, 2147483648
    %v2373 = vmul.f32 %v2372, 1.442695
    %v2374 = vpow.pop %v2373
    %v2375 = vadd.f32 %v2374, 1.0
    %v2376 = vrcp.pop %v2375
    %v2377 = vmul.f32 1.0, %v2376
    %v2378 = vtanh.pop %v2364
    %v2379 = vxor.u32 %v2365, 2147483648
    %v2380 = vmul.f32 %v2379, 1.442695
    %v2381 = vpow.pop %v2380
    %v2382 = vadd.f32 %v2381, 1.0
    %v2383 = vrcp.pop %v2382
    %v2384 = vmul.f32 1.0, %v2383
    %v2385 = vmul.f32 %v2377, 0.0
    %v2386 = vmul.f32 %v2371, %v2378
    %v2387 = vadd.f32 %v2385, %v2386
    %v2388 = vtanh.pop %v2387
    %v2389 = vmul.f32 %v2384, %v2388
    %2390 = vst [vmem:[#allocation2] sm:$0x1] %v2389
    %2391 = vmatprep.subr.mxu0 %v1993
    %2392 = vmatpush1.msra.mxu0 %v1992
    %2393 = vmatprep.subr.mxu0 %v1997
    %2394 = vmatpush1.msra.mxu0 %v1996
    %2395 = vmatprep.subr.mxu0 %v2001
    %2396 = vmatpush1.msra.mxu0 %v2000
    %2397 = vmatprep.subr.mxu0 %v2005
    %2398 = vmatpush1.msra.mxu0 %v2004
    %2399 = vmatprep.subr.mxu0 %v2009
    %2400 = vmatpush1.msra.mxu0 %v2008
    %2401 = vmatprep.subr.mxu0 %v2013
    %2402 = vmatpush1.msra.mxu0 %v2012
    %2403 = vmatprep.subr.mxu0 %v2017
    %2404 = vmatpush1.msra.mxu0 %v2016
    %2405 = vmatprep.subr.mxu0 %v2021
    %2406 = vmatpush1.msra.mxu0 %v2020
    %2407 = vmatprep.subr.mxu0 %v2025
    %2408 = vmatpush1.msra.mxu0 %v2024
    %2409 = vmatprep.subr.mxu0 %v2029
    %2410 = vmatpush1.msra.mxu0 %v2028
    %2411 = vmatprep.subr.mxu0 %v2033
    %2412 = vmatpush1.msra.mxu0 %v2032
    %2413 = vmatprep.subr.mxu0 %v2037
    %2414 = vmatpush1.msra.mxu0 %v2036
    %2415 = vmatprep.subr.mxu0 %v2041
    %2416 = vmatpush1.msra.mxu0 %v2040
    %2417 = vmatprep.subr.mxu0 %v2045
    %2418 = vmatpush1.msra.mxu0 %v2044
    %2419 = vmatprep.subr.mxu0 %v2049
    %2420 = vmatpush1.msra.mxu0 %v2048
    %2421 = vmatprep.subr.mxu0 %v2053
    %2422 = vmatpush1.msra.mxu0 %v2052
    %2423 = vmatprep.subr.mxu0 0.0
    %2424 = vmatpush1.msra.mxu0 0.0
    %2425 = vmatprep.subr.mxu0 0.0
    %2426 = vmatpush1.msra.mxu0 0.0
    %2427 = vmatprep.subr.mxu0 0.0
    %2428 = vmatpush1.msra.mxu0 0.0
    %2429 = vmatprep.subr.mxu0 0.0
    %2430 = vmatpush1.msra.mxu0 0.0
    %2431 = vmatprep.subr.mxu0 0.0
    %2432 = vmatpush1.msra.mxu0 0.0
    %2433 = vmatprep.subr.mxu0 0.0
    %2434 = vmatpush1.msra.mxu0 0.0
    %2435 = vmatprep.subr.mxu0 0.0
    %2436 = vmatpush1.msra.mxu0 0.0
    %2437 = vmatprep.subr.mxu0 0.0
    %2438 = vmatpush1.msra.mxu0 0.0
    %2439 = vmatprep.subr.mxu0 0.0
    %2440 = vmatpush1.msra.mxu0 0.0
    %2441 = vmatprep.subr.mxu0 0.0
    %2442 = vmatpush1.msra.mxu0 0.0
    %2443 = vmatprep.subr.mxu0 0.0
    %2444 = vmatpush1.msra.mxu0 0.0
    %2445 = vmatprep.subr.mxu0 0.0
    %2446 = vmatpush1.msra.mxu0 0.0
    %2447 = vmatprep.subr.mxu0 0.0
    %2448 = vmatpush1.msra.mxu0 0.0
    %2449 = vmatprep.subr.mxu0 0.0
    %2450 = vmatpush1.msra.mxu0 0.0
    %2451 = vmatprep.subr.mxu0 0.0
    %2452 = vmatpush1.msra.mxu0 0.0
    %2453 = vmatprep.subr.mxu0 0.0
    %2454 = vmatpush1.msra.mxu0 0.0
    %2455 = vmatprep.mubr.f32.mxu0 0.0
    %2456 = vmatmul.mubr.f32.gmra.mrb[0].mxu0 %v2389
    %v2457 = vpop.f32.mrb[0].mxu0
    %v2458 = vadd.f32 0.0, %v2457
    %v2459 = vpop.f32.mrb[0].mxu0
    %v2460 = vadd.f32 0.0, %v2459
    %2461 = vdwg.mxu0
    %2462 = vmatprep.subr.mxu0 %v1995
    %2463 = vmatpush1.msra.mxu0 %v1994
    %2464 = vmatprep.subr.mxu0 %v1999
    %2465 = vmatpush1.msra.mxu0 %v1998
    %2466 = vmatprep.subr.mxu0 %v2003
    %2467 = vmatpush1.msra.mxu0 %v2002
    %2468 = vmatprep.subr.mxu0 %v2007
    %2469 = vmatpush1.msra.mxu0 %v2006
    %2470 = vmatprep.subr.mxu0 %v2011
    %2471 = vmatpush1.msra.mxu0 %v2010
    %2472 = vmatprep.subr.mxu0 %v2015
    %2473 = vmatpush1.msra.mxu0 %v2014
    %2474 = vmatprep.subr.mxu0 %v2019
    %2475 = vmatpush1.msra.mxu0 %v2018
    %2476 = vmatprep.subr.mxu0 %v2023
    %2477 = vmatpush1.msra.mxu0 %v2022
    %2478 = vmatprep.subr.mxu0 %v2027
    %2479 = vmatpush1.msra.mxu0 %v2026
    %2480 = vmatprep.subr.mxu0 %v2031
    %2481 = vmatpush1.msra.mxu0 %v2030
    %2482 = vmatprep.subr.mxu0 %v2035
    %2483 = vmatpush1.msra.mxu0 %v2034
    %2484 = vmatprep.subr.mxu0 %v2039
    %2485 = vmatpush1.msra.mxu0 %v2038
    %2486 = vmatprep.subr.mxu0 %v2043
    %2487 = vmatpush1.msra.mxu0 %v2042
    %2488 = vmatprep.subr.mxu0 %v2047
    %2489 = vmatpush1.msra.mxu0 %v2046
    %2490 = vmatprep.subr.mxu0 %v2051
    %2491 = vmatpush1.msra.mxu0 %v2050
    %2492 = vmatprep.subr.mxu0 %v2055
    %2493 = vmatpush1.msra.mxu0 %v2054
    %2494 = vmatprep.subr.mxu0 0.0
    %2495 = vmatpush1.msra.mxu0 0.0
    %2496 = vmatprep.subr.mxu0 0.0
    %2497 = vmatpush1.msra.mxu0 0.0
    %2498 = vmatprep.subr.mxu0 0.0
    %2499 = vmatpush1.msra.mxu0 0.0
    %2500 = vmatprep.subr.mxu0 0.0
    %2501 = vmatpush1.msra.mxu0 0.0
    %2502 = vmatprep.subr.mxu0 0.0
    %2503 = vmatpush1.msra.mxu0 0.0
    %2504 = vmatprep.subr.mxu0 0.0
    %2505 = vmatpush1.msra.mxu0 0.0
    %2506 = vmatprep.subr.mxu0 0.0
    %2507 = vmatpush1.msra.mxu0 0.0
    %2508 = vmatprep.subr.mxu0 0.0
    %2509 = vmatpush1.msra.mxu0 0.0
    %2510 = vmatprep.subr.mxu0 0.0
    %2511 = vmatpush1.msra.mxu0 0.0
    %2512 = vmatprep.subr.mxu0 0.0
    %2513 = vmatpush1.msra.mxu0 0.0
    %2514 = vmatprep.subr.mxu0 0.0
    %2515 = vmatpush1.msra.mxu0 0.0
    %2516 = vmatprep.subr.mxu0 0.0
    %2517 = vmatpush1.msra.mxu0 0.0
    %2518 = vmatprep.subr.mxu0 0.0
    %2519 = vmatpush1.msra.mxu0 0.0
    %2520 = vmatprep.subr.mxu0 0.0
    %2521 = vmatpush1.msra.mxu0 0.0
    %2522 = vmatprep.subr.mxu0 0.0
    %2523 = vmatpush1.msra.mxu0 0.0
    %2524 = vmatprep.subr.mxu0 0.0
    %2525 = vmatpush1.msra.mxu0 0.0
    %2526 = vmatprep.mubr.f32.mxu0 0.0
    %2527 = vmatmul.mubr.f32.gmra.mrb[0].mxu0 %v2389
    %v2528 = vpop.f32.mrb[0].mxu0
    %v2529 = vadd.f32 0.0, %v2528
    %v2530 = vpop.f32.mrb[0].mxu0
    %v2531 = vadd.f32 0.0, %v2530
    %2532 = vdwg.mxu0
    %v2537 = vrot.slane %v2458, 7
    %v2538 = vrot.slane %v2460, 7
    %v2539 = vrot.slane %v2529, 7
    %v2540 = vrot.slane %v2531, 7
    %v2545 = vadd.f32 %v2145, %v2537
    %v2546 = vadd.f32 %v2147, %v2538
    %v2547 = vadd.f32 %v2216, %v2539
    %v2548 = vadd.f32 %v2218, %v2540
    %v2549 = vxor.u32 %v2545, 2147483648
    %v2550 = vmul.f32 %v2549, 1.442695
    %v2551 = vpow.pop %v2550
    %v2552 = vadd.f32 %v2551, 1.0
    %v2553 = vrcp.pop %v2552
    %v2554 = vmul.f32 1.0, %v2553
    %v2555 = vxor.u32 %v2546, 2147483648
    %v2556 = vmul.f32 %v2555, 1.442695
    %v2557 = vpow.pop %v2556
    %v2558 = vadd.f32 %v2557, 1.0
    %v2559 = vrcp.pop %v2558
    %v2560 = vmul.f32 1.0, %v2559
    %v2561 = vtanh.pop %v2547
    %v2562 = vxor.u32 %v2548, 2147483648
    %v2563 = vmul.f32 %v2562, 1.442695
    %v2564 = vpow.pop %v2563
    %v2565 = vadd.f32 %v2564, 1.0
    %v2566 = vrcp.pop %v2565
    %v2567 = vmul.f32 1.0, %v2566
    %v2569 = vrot.slane %v2387, 7
    %v2571 = vmul.f32 %v2560, %v2569
    %v2572 = vmul.f32 %v2554, %v2561
    %v2573 = vadd.f32 %v2571, %v2572
    %v2574 = vtanh.pop %v2573
    %v2575 = vmul.f32 %v2567, %v2574
    %2576 = vst [vmem:[#allocation2] sm:$0x2] %v2575
    %v2578 = vrot.slane %v2575, 1
    %2580 = vmatprep.subr.mxu0 %v1993
    %2581 = vmatpush1.msra.mxu0 %v1992
    %2582 = vmatprep.subr.mxu0 %v1997
    %2583 = vmatpush1.msra.mxu0 %v1996
    %2584 = vmatprep.subr.mxu0 %v2001
    %2585 = vmatpush1.msra.mxu0 %v2000
    %2586 = vmatprep.subr.mxu0 %v2005
    %2587 = vmatpush1.msra.mxu0 %v2004
    %2588 = vmatprep.subr.mxu0 %v2009
    %2589 = vmatpush1.msra.mxu0 %v2008
    %2590 = vmatprep.subr.mxu0 %v2013
    %2591 = vmatpush1.msra.mxu0 %v2012
    %2592 = vmatprep.subr.mxu0 %v2017
    %2593 = vmatpush1.msra.mxu0 %v2016
    %2594 = vmatprep.subr.mxu0 %v2021
    %2595 = vmatpush1.msra.mxu0 %v2020
    %2596 = vmatprep.subr.mxu0 %v2025
    %2597 = vmatpush1.msra.mxu0 %v2024
    %2598 = vmatprep.subr.mxu0 %v2029
    %2599 = vmatpush1.msra.mxu0 %v2028
    %2600 = vmatprep.subr.mxu0 %v2033
    %2601 = vmatpush1.msra.mxu0 %v2032
    %2602 = vmatprep.subr.mxu0 %v2037
    %2603 = vmatpush1.msra.mxu0 %v2036
    %2604 = vmatprep.subr.mxu0 %v2041
    %2605 = vmatpush1.msra.mxu0 %v2040
    %2606 = vmatprep.subr.mxu0 %v2045
    %2607 = vmatpush1.msra.mxu0 %v2044
    %2608 = vmatprep.subr.mxu0 %v2049
    %2609 = vmatpush1.msra.mxu0 %v2048
    %2610 = vmatprep.subr.mxu0 %v2053
    %2611 = vmatpush1.msra.mxu0 %v2052
    %2612 = vmatprep.subr.mxu0 0.0
    %2613 = vmatpush1.msra.mxu0 0.0
    %2614 = vmatprep.subr.mxu0 0.0
    %2615 = vmatpush1.msra.mxu0 0.0
    %2616 = vmatprep.subr.mxu0 0.0
    %2617 = vmatpush1.msra.mxu0 0.0
    %2618 = vmatprep.subr.mxu0 0.0
    %2619 = vmatpush1.msra.mxu0 0.0
    %2620 = vmatprep.subr.mxu0 0.0
    %2621 = vmatpush1.msra.mxu0 0.0
    %2622 = vmatprep.subr.mxu0 0.0
    %2623 = vmatpush1.msra.mxu0 0.0
    %2624 = vmatprep.subr.mxu0 0.0
    %2625 = vmatpush1.msra.mxu0 0.0
    %2626 = vmatprep.subr.mxu0 0.0
    %2627 = vmatpush1.msra.mxu0 0.0
    %2628 = vmatprep.subr.mxu0 0.0
    %2629 = vmatpush1.msra.mxu0 0.0
    %2630 = vmatprep.subr.mxu0 0.0
    %2631 = vmatpush1.msra.mxu0 0.0
    %2632 = vmatprep.subr.mxu0 0.0
    %2633 = vmatpush1.msra.mxu0 0.0
    %2634 = vmatprep.subr.mxu0 0.0
    %2635 = vmatpush1.msra.mxu0 0.0
    %2636 = vmatprep.subr.mxu0 0.0
    %2637 = vmatpush1.msra.mxu0 0.0
    %2638 = vmatprep.subr.mxu0 0.0
    %2639 = vmatpush1.msra.mxu0 0.0
    %2640 = vmatprep.subr.mxu0 0.0
    %2641 = vmatpush1.msra.mxu0 0.0
    %2642 = vmatprep.subr.mxu0 0.0
    %2643 = vmatpush1.msra.mxu0 0.0
    %2644 = vmatprep.mubr.f32.mxu0 0.0
    %2645 = vmatmul.mubr.f32.gmra.mrb[0].mxu0 %v2578
    %v2646 = vpop.f32.mrb[0].mxu0
    %v2647 = vadd.f32 0.0, %v2646
    %v2648 = vpop.f32.mrb[0].mxu0
    %v2649 = vadd.f32 0.0, %v2648
    %2650 = vdwg.mxu0
    %2651 = vmatprep.subr.mxu0 %v1995
    %2652 = vmatpush1.msra.mxu0 %v1994
    %2653 = vmatprep.subr.mxu0 %v1999
    %2654 = vmatpush1.msra.mxu0 %v1998
    %2655 = vmatprep.subr.mxu0 %v2003
    %2656 = vmatpush1.msra.mxu0 %v2002
    %2657 = vmatprep.subr.mxu0 %v2007
    %2658 = vmatpush1.msra.mxu0 %v2006
    %2659 = vmatprep.subr.mxu0 %v2011
    %2660 = vmatpush1.msra.mxu0 %v2010
    %2661 = vmatprep.subr.mxu0 %v2015
    %2662 = vmatpush1.msra.mxu0 %v2014
    %2663 = vmatprep.subr.mxu0 %v2019
    %2664 = vmatpush1.msra.mxu0 %v2018
    %2665 = vmatprep.subr.mxu0 %v2023
    %2666 = vmatpush1.msra.mxu0 %v2022
    %2667 = vmatprep.subr.mxu0 %v2027
    %2668 = vmatpush1.msra.mxu0 %v2026
    %2669 = vmatprep.subr.mxu0 %v2031
    %2670 = vmatpush1.msra.mxu0 %v2030
    %2671 = vmatprep.subr.mxu0 %v2035
    %2672 = vmatpush1.msra.mxu0 %v2034
    %2673 = vmatprep.subr.mxu0 %v2039
    %2674 = vmatpush1.msra.mxu0 %v2038
    %2675 = vmatprep.subr.mxu0 %v2043
    %2676 = vmatpush1.msra.mxu0 %v2042
    %2677 = vmatprep.subr.mxu0 %v2047
    %2678 = vmatpush1.msra.mxu0 %v2046
    %2679 = vmatprep.subr.mxu0 %v2051
    %2680 = vmatpush1.msra.mxu0 %v2050
    %2681 = vmatprep.subr.mxu0 %v2055
    %2682 = vmatpush1.msra.mxu0 %v2054
    %2683 = vmatprep.subr.mxu0 0.0
    %2684 = vmatpush1.msra.mxu0 0.0
    %2685 = vmatprep.subr.mxu0 0.0
    %2686 = vmatpush1.msra.mxu0 0.0
    %2687 = vmatprep.subr.mxu0 0.0
    %2688 = vmatpush1.msra.mxu0 0.0
    %2689 = vmatprep.subr.mxu0 0.0
    %2690 = vmatpush1.msra.mxu0 0.0
    %2691 = vmatprep.subr.mxu0 0.0
    %2692 = vmatpush1.msra.mxu0 0.0
    %2693 = vmatprep.subr.mxu0 0.0
    %2694 = vmatpush1.msra.mxu0 0.0
    %2695 = vmatprep.subr.mxu0 0.0
    %2696 = vmatpush1.msra.mxu0 0.0
    %2697 = vmatprep.subr.mxu0 0.0
    %2698 = vmatpush1.msra.mxu0 0.0
    %2699 = vmatprep.subr.mxu0 0.0
    %2700 = vmatpush1.msra.mxu0 0.0
    %2701 = vmatprep.subr.mxu0 0.0
    %2702 = vmatpush1.msra.mxu0 0.0
    %2703 = vmatprep.subr.mxu0 0.0
    %2704 = vmatpush1.msra.mxu0 0.0
    %2705 = vmatprep.subr.mxu0 0.0
    %2706 = vmatpush1.msra.mxu0 0.0
    %2707 = vmatprep.subr.mxu0 0.0
    %2708 = vmatpush1.msra.mxu0 0.0
    %2709 = vmatprep.subr.mxu0 0.0
    %2710 = vmatpush1.msra.mxu0 0.0
    %2711 = vmatprep.subr.mxu0 0.0
    %2712 = vmatpush1.msra.mxu0 0.0
    %2713 = vmatprep.subr.mxu0 0.0
    %2714 = vmatpush1.msra.mxu0 0.0
    %2715 = vmatprep.mubr.f32.mxu0 0.0
    %2716 = vmatmul.mubr.f32.gmra.mrb[0].mxu0 %v2578
    %v2717 = vpop.f32.mrb[0].mxu0
    %v2718 = vadd.f32 0.0, %v2717
    %v2719 = vpop.f32.mrb[0].mxu0
    %v2720 = vadd.f32 0.0, %v2719
    %2721 = vdwg.mxu0
    %v2726 = vrot.slane %v2647, 6
    %v2727 = vrot.slane %v2649, 6
    %v2728 = vrot.slane %v2718, 6
    %v2729 = vrot.slane %v2720, 6
    %v2734 = vadd.f32 %v2145, %v2726
    %v2735 = vadd.f32 %v2147, %v2727
    %v2736 = vadd.f32 %v2216, %v2728
    %v2737 = vadd.f32 %v2218, %v2729
    %v2738 = vxor.u32 %v2734, 2147483648
    %v2739 = vmul.f32 %v2738, 1.442695
    %v2740 = vpow.pop %v2739
    %v2741 = vadd.f32 %v2740, 1.0
    %v2742 = vrcp.pop %v2741
    %v2743 = vmul.f32 1.0, %v2742
    %v2744 = vxor.u32 %v2735, 2147483648
    %v2745 = vmul.f32 %v2744, 1.442695
    %v2746 = vpow.pop %v2745
    %v2747 = vadd.f32 %v2746, 1.0
    %v2748 = vrcp.pop %v2747
    %v2749 = vmul.f32 1.0, %v2748
    %v2750 = vtanh.pop %v2736
    %v2751 = vxor.u32 %v2737, 2147483648
    %v2752 = vmul.f32 %v2751, 1.442695
    %v2753 = vpow.pop %v2752
    %v2754 = vadd.f32 %v2753, 1.0
    %v2755 = vrcp.pop %v2754
    %v2756 = vmul.f32 1.0, %v2755
    %v2758 = vrot.slane %v2573, 7
    %v2760 = vmul.f32 %v2749, %v2758
    %v2761 = vmul.f32 %v2743, %v2750
    %v2762 = vadd.f32 %v2760, %v2761
    %v2763 = vtanh.pop %v2762
    %v2764 = vmul.f32 %v2756, %v2763
    %2765 = vst [vmem:[#allocation2] sm:$0x4] %v2764
    %v2767 = vrot.slane %v2764, 2
    %2769 = vmatprep.subr.mxu0 %v1993
    %2770 = vmatpush1.msra.mxu0 %v1992
    %2771 = vmatprep.subr.mxu0 %v1997
    %2772 = vmatpush1.msra.mxu0 %v1996
    %2773 = vmatprep.subr.mxu0 %v2001
    %2774 = vmatpush1.msra.mxu0 %v2000
    %2775 = vmatprep.subr.mxu0 %v2005
    %2776 = vmatpush1.msra.mxu0 %v2004
    %2777 = vmatprep.subr.mxu0 %v2009
    %2778 = vmatpush1.msra.mxu0 %v2008
    %2779 = vmatprep.subr.mxu0 %v2013
    %2780 = vmatpush1.msra.mxu0 %v2012
    %2781 = vmatprep.subr.mxu0 %v2017
    %2782 = vmatpush1.msra.mxu0 %v2016
    %2783 = vmatprep.subr.mxu0 %v2021
    %2784 = vmatpush1.msra.mxu0 %v2020
    %2785 = vmatprep.subr.mxu0 %v2025
    %2786 = vmatpush1.msra.mxu0 %v2024
    %2787 = vmatprep.subr.mxu0 %v2029
    %2788 = vmatpush1.msra.mxu0 %v2028
    %2789 = vmatprep.subr.mxu0 %v2033
    %2790 = vmatpush1.msra.mxu0 %v2032
    %2791 = vmatprep.subr.mxu0 %v2037
    %2792 = vmatpush1.msra.mxu0 %v2036
    %2793 = vmatprep.subr.mxu0 %v2041
    %2794 = vmatpush1.msra.mxu0 %v2040
    %2795 = vmatprep.subr.mxu0 %v2045
    %2796 = vmatpush1.msra.mxu0 %v2044
    %2797 = vmatprep.subr.mxu0 %v2049
    %2798 = vmatpush1.msra.mxu0 %v2048
    %2799 = vmatprep.subr.mxu0 %v2053
    %2800 = vmatpush1.msra.mxu0 %v2052
    %2801 = vmatprep.subr.mxu0 0.0
    %2802 = vmatpush1.msra.mxu0 0.0
    %2803 = vmatprep.subr.mxu0 0.0
    %2804 = vmatpush1.msra.mxu0 0.0
    %2805 = vmatprep.subr.mxu0 0.0
    %2806 = vmatpush1.msra.mxu0 0.0
    %2807 = vmatprep.subr.mxu0 0.0
    %2808 = vmatpush1.msra.mxu0 0.0
    %2809 = vmatprep.subr.mxu0 0.0
    %2810 = vmatpush1.msra.mxu0 0.0
    %2811 = vmatprep.subr.mxu0 0.0
    %2812 = vmatpush1.msra.mxu0 0.0
    %2813 = vmatprep.subr.mxu0 0.0
    %2814 = vmatpush1.msra.mxu0 0.0
    %2815 = vmatprep.subr.mxu0 0.0
    %2816 = vmatpush1.msra.mxu0 0.0
    %2817 = vmatprep.subr.mxu0 0.0
    %2818 = vmatpush1.msra.mxu0 0.0
    %2819 = vmatprep.subr.mxu0 0.0
    %2820 = vmatpush1.msra.mxu0 0.0
    %2821 = vmatprep.subr.mxu0 0.0
    %2822 = vmatpush1.msra.mxu0 0.0
    %2823 = vmatprep.subr.mxu0 0.0
    %2824 = vmatpush1.msra.mxu0 0.0
    %2825 = vmatprep.subr.mxu0 0.0
    %2826 = vmatpush1.msra.mxu0 0.0
    %2827 = vmatprep.subr.mxu0 0.0
    %2828 = vmatpush1.msra.mxu0 0.0
    %2829 = vmatprep.subr.mxu0 0.0
    %2830 = vmatpush1.msra.mxu0 0.0
    %2831 = vmatprep.subr.mxu0 0.0
    %2832 = vmatpush1.msra.mxu0 0.0
    %2833 = vmatprep.mubr.f32.mxu0 0.0
    %2834 = vmatmul.mubr.f32.gmra.mrb[0].mxu0 %v2767
    %v2835 = vpop.f32.mrb[0].mxu0
    %v2836 = vadd.f32 0.0, %v2835
    %v2837 = vpop.f32.mrb[0].mxu0
    %v2838 = vadd.f32 0.0, %v2837
    %2839 = vdwg.mxu0
    %2840 = vmatprep.subr.mxu0 %v1995
    %2841 = vmatpush1.msra.mxu0 %v1994
    %2842 = vmatprep.subr.mxu0 %v1999
    %2843 = vmatpush1.msra.mxu0 %v1998
    %2844 = vmatprep.subr.mxu0 %v2003
    %2845 = vmatpush1.msra.mxu0 %v2002
    %2846 = vmatprep.subr.mxu0 %v2007
    %2847 = vmatpush1.msra.mxu0 %v2006
    %2848 = vmatprep.subr.mxu0 %v2011
    %2849 = vmatpush1.msra.mxu0 %v2010
    %2850 = vmatprep.subr.mxu0 %v2015
    %2851 = vmatpush1.msra.mxu0 %v2014
    %2852 = vmatprep.subr.mxu0 %v2019
    %2853 = vmatpush1.msra.mxu0 %v2018
    %2854 = vmatprep.subr.mxu0 %v2023
    %2855 = vmatpush1.msra.mxu0 %v2022
    %2856 = vmatprep.subr.mxu0 %v2027
    %2857 = vmatpush1.msra.mxu0 %v2026
    %2858 = vmatprep.subr.mxu0 %v2031
    %2859 = vmatpush1.msra.mxu0 %v2030
    %2860 = vmatprep.subr.mxu0 %v2035
    %2861 = vmatpush1.msra.mxu0 %v2034
    %2862 = vmatprep.subr.mxu0 %v2039
    %2863 = vmatpush1.msra.mxu0 %v2038
    %2864 = vmatprep.subr.mxu0 %v2043
    %2865 = vmatpush1.msra.mxu0 %v2042
    %2866 = vmatprep.subr.mxu0 %v2047
    %2867 = vmatpush1.msra.mxu0 %v2046
    %2868 = vmatprep.subr.mxu0 %v2051
    %2869 = vmatpush1.msra.mxu0 %v2050
    %2870 = vmatprep.subr.mxu0 %v2055
    %2871 = vmatpush1.msra.mxu0 %v2054
    %2872 = vmatprep.subr.mxu0 0.0
    %2873 = vmatpush1.msra.mxu0 0.0
    %2874 = vmatprep.subr.mxu0 0.0
    %2875 = vmatpush1.msra.mxu0 0.0
    %2876 = vmatprep.subr.mxu0 0.0
    %2877 = vmatpush1.msra.mxu0 0.0
    %2878 = vmatprep.subr.mxu0 0.0
    %2879 = vmatpush1.msra.mxu0 0.0
    %2880 = vmatprep.subr.mxu0 0.0
    %2881 = vmatpush1.msra.mxu0 0.0
    %2882 = vmatprep.subr.mxu0 0.0
    %2883 = vmatpush1.msra.mxu0 0.0
    %2884 = vmatprep.subr.mxu0 0.0
    %2885 = vmatpush1.msra.mxu0 0.0
    %2886 = vmatprep.subr.mxu0 0.0
    %2887 = vmatpush1.msra.mxu0 0.0
    %2888 = vmatprep.subr.mxu0 0.0
    %2889 = vmatpush1.msra.mxu0 0.0
    %2890 = vmatprep.subr.mxu0 0.0
    %2891 = vmatpush1.msra.mxu0 0.0
    %2892 = vmatprep.subr.mxu0 0.0
    %2893 = vmatpush1.msra.mxu0 0.0
    %2894 = vmatprep.subr.mxu0 0.0
    %2895 = vmatpush1.msra.mxu0 0.0
    %2896 = vmatprep.subr.mxu0 0.0
    %2897 = vmatpush1.msra.mxu0 0.0
    %2898 = vmatprep.subr.mxu0 0.0
    %2899 = vmatpush1.msra.mxu0 0.0
    %2900 = vmatprep.subr.mxu0 0.0
    %2901 = vmatpush1.msra.mxu0 0.0
    %2902 = vmatprep.subr.mxu0 0.0
    %2903 = vmatpush1.msra.mxu0 0.0
    %2904 = vmatprep.mubr.f32.mxu0 0.0
    %2905 = vmatmul.mubr.f32.gmra.mrb[0].mxu0 %v2767
    %v2906 = vpop.f32.mrb[0].mxu0
    %v2907 = vadd.f32 0.0, %v2906
    %v2908 = vpop.f32.mrb[0].mxu0
    %v2909 = vadd.f32 0.0, %v2908
    %2910 = vdwg.mxu0
    %v2915 = vrot.slane %v2836, 5
    %v2916 = vrot.slane %v2838, 5
    %v2917 = vrot.slane %v2907, 5
    %v2918 = vrot.slane %v2909, 5
    %v2923 = vadd.f32 %v2145, %v2915
    %v2924 = vadd.f32 %v2147, %v2916
    %v2925 = vadd.f32 %v2216, %v2917
    %v2926 = vadd.f32 %v2218, %v2918
    %v2927 = vxor.u32 %v2923, 2147483648
    %v2928 = vmul.f32 %v2927, 1.442695
    %v2929 = vpow.pop %v2928
    %v2930 = vadd.f32 %v2929, 1.0
    %v2931 = vrcp.pop %v2930
    %v2932 = vmul.f32 1.0, %v2931
    %v2933 = vxor.u32 %v2924, 2147483648
    %v2934 = vmul.f32 %v2933, 1.442695
    %v2935 = vpow.pop %v2934
    %v2936 = vadd.f32 %v2935, 1.0
    %v2937 = vrcp.pop %v2936
    %v2938 = vmul.f32 1.0, %v2937
    %v2939 = vtanh.pop %v2925
    %v2940 = vxor.u32 %v2926, 2147483648
    %v2941 = vmul.f32 %v2940, 1.442695
    %v2942 = vpow.pop %v2941
    %v2943 = vadd.f32 %v2942, 1.0
    %v2944 = vrcp.pop %v2943
    %v2945 = vmul.f32 1.0, %v2944
    %v2947 = vrot.slane %v2762, 7
    %v2949 = vmul.f32 %v2938, %v2947
    %v2950 = vmul.f32 %v2932, %v2939
    %v2951 = vadd.f32 %v2949, %v2950
    %v2952 = vtanh.pop %v2951
    %v2953 = vmul.f32 %v2945, %v2952
    %2954 = vst [vmem:[#allocation2] sm:$0x8] %v2953
    %v2956 = vrot.slane %v2953, 3
    %2958 = vmatprep.subr.mxu0 %v1993
    %2959 = vmatpush1.msra.mxu0 %v1992
    %2960 = vmatprep.subr.mxu0 %v1997
    %2961 = vmatpush1.msra.mxu0 %v1996
    %2962 = vmatprep.subr.mxu0 %v2001
    %2963 = vmatpush1.msra.mxu0 %v2000
    %2964 = vmatprep.subr.mxu0 %v2005
    %2965 = vmatpush1.msra.mxu0 %v2004
    %2966 = vmatprep.subr.mxu0 %v2009
    %2967 = vmatpush1.msra.mxu0 %v2008
    %2968 = vmatprep.subr.mxu0 %v2013
    %2969 = vmatpush1.msra.mxu0 %v2012
    %2970 = vmatprep.subr.mxu0 %v2017
    %2971 = vmatpush1.msra.mxu0 %v2016
    %2972 = vmatprep.subr.mxu0 %v2021
    %2973 = vmatpush1.msra.mxu0 %v2020
    %2974 = vmatprep.subr.mxu0 %v2025
    %2975 = vmatpush1.msra.mxu0 %v2024
    %2976 = vmatprep.subr.mxu0 %v2029
    %2977 = vmatpush1.msra.mxu0 %v2028
    %2978 = vmatprep.subr.mxu0 %v2033
    %2979 = vmatpush1.msra.mxu0 %v2032
    %2980 = vmatprep.subr.mxu0 %v2037
    %2981 = vmatpush1.msra.mxu0 %v2036
    %2982 = vmatprep.subr.mxu0 %v2041
    %2983 = vmatpush1.msra.mxu0 %v2040
    %2984 = vmatprep.subr.mxu0 %v2045
    %2985 = vmatpush1.msra.mxu0 %v2044
    %2986 = vmatprep.subr.mxu0 %v2049
    %2987 = vmatpush1.msra.mxu0 %v2048
    %2988 = vmatprep.subr.mxu0 %v2053
    %2989 = vmatpush1.msra.mxu0 %v2052
    %2990 = vmatprep.subr.mxu0 0.0
    %2991 = vmatpush1.msra.mxu0 0.0
    %2992 = vmatprep.subr.mxu0 0.0
    %2993 = vmatpush1.msra.mxu0 0.0
    %2994 = vmatprep.subr.mxu0 0.0
    %2995 = vmatpush1.msra.mxu0 0.0
    %2996 = vmatprep.subr.mxu0 0.0
    %2997 = vmatpush1.msra.mxu0 0.0
    %2998 = vmatprep.subr.mxu0 0.0
    %2999 = vmatpush1.msra.mxu0 0.0
    %3000 = vmatprep.subr.mxu0 0.0
    %3001 = vmatpush1.msra.mxu0 0.0
    %3002 = vmatprep.subr.mxu0 0.0
    %3003 = vmatpush1.msra.mxu0 0.0
    %3004 = vmatprep.subr.mxu0 0.0
    %3005 = vmatpush1.msra.mxu0 0.0
    %3006 = vmatprep.subr.mxu0 0.0
    %3007 = vmatpush1.msra.mxu0 0.0
    %3008 = vmatprep.subr.mxu0 0.0
    %3009 = vmatpush1.msra.mxu0 0.0
    %3010 = vmatprep.subr.mxu0 0.0
    %3011 = vmatpush1.msra.mxu0 0.0
    %3012 = vmatprep.subr.mxu0 0.0
    %3013 = vmatpush1.msra.mxu0 0.0
    %3014 = vmatprep.subr.mxu0 0.0
    %3015 = vmatpush1.msra.mxu0 0.0
    %3016 = vmatprep.subr.mxu0 0.0
    %3017 = vmatpush1.msra.mxu0 0.0
    %3018 = vmatprep.subr.mxu0 0.0
    %3019 = vmatpush1.msra.mxu0 0.0
    %3020 = vmatprep.subr.mxu0 0.0
    %3021 = vmatpush1.msra.mxu0 0.0
    %3022 = vmatprep.mubr.f32.mxu0 0.0
    %3023 = vmatmul.mubr.f32.gmra.mrb[0].mxu0 %v2956
    %v3024 = vpop.f32.mrb[0].mxu0
    %v3025 = vadd.f32 0.0, %v3024
    %v3026 = vpop.f32.mrb[0].mxu0
    %v3027 = vadd.f32 0.0, %v3026
    %3028 = vdwg.mxu0
    %3029 = vmatprep.subr.mxu0 %v1995
    %3030 = vmatpush1.msra.mxu0 %v1994
    %3031 = vmatprep.subr.mxu0 %v1999
    %3032 = vmatpush1.msra.mxu0 %v1998
    %3033 = vmatprep.subr.mxu0 %v2003
    %3034 = vmatpush1.msra.mxu0 %v2002
    %3035 = vmatprep.subr.mxu0 %v2007
    %3036 = vmatpush1.msra.mxu0 %v2006
    %3037 = vmatprep.subr.mxu0 %v2011
    %3038 = vmatpush1.msra.mxu0 %v2010
    %3039 = vmatprep.subr.mxu0 %v2015
    %3040 = vmatpush1.msra.mxu0 %v2014
    %3041 = vmatprep.subr.mxu0 %v2019
    %3042 = vmatpush1.msra.mxu0 %v2018
    %3043 = vmatprep.subr.mxu0 %v2023
    %3044 = vmatpush1.msra.mxu0 %v2022
    %3045 = vmatprep.subr.mxu0 %v2027
    %3046 = vmatpush1.msra.mxu0 %v2026
    %3047 = vmatprep.subr.mxu0 %v2031
    %3048 = vmatpush1.msra.mxu0 %v2030
    %3049 = vmatprep.subr.mxu0 %v2035
    %3050 = vmatpush1.msra.mxu0 %v2034
    %3051 = vmatprep.subr.mxu0 %v2039
    %3052 = vmatpush1.msra.mxu0 %v2038
    %3053 = vmatprep.subr.mxu0 %v2043
    %3054 = vmatpush1.msra.mxu0 %v2042
    %3055 = vmatprep.subr.mxu0 %v2047
    %3056 = vmatpush1.msra.mxu0 %v2046
    %3057 = vmatprep.subr.mxu0 %v2051
    %3058 = vmatpush1.msra.mxu0 %v2050
    %3059 = vmatprep.subr.mxu0 %v2055
    %3060 = vmatpush1.msra.mxu0 %v2054
    %3061 = vmatprep.subr.mxu0 0.0
    %3062 = vmatpush1.msra.mxu0 0.0
    %3063 = vmatprep.subr.mxu0 0.0
    %3064 = vmatpush1.msra.mxu0 0.0
    %3065 = vmatprep.subr.mxu0 0.0
    %3066 = vmatpush1.msra.mxu0 0.0
    %3067 = vmatprep.subr.mxu0 0.0
    %3068 = vmatpush1.msra.mxu0 0.0
    %3069 = vmatprep.subr.mxu0 0.0
    %3070 = vmatpush1.msra.mxu0 0.0
    %3071 = vmatprep.subr.mxu0 0.0
    %3072 = vmatpush1.msra.mxu0 0.0
    %3073 = vmatprep.subr.mxu0 0.0
    %3074 = vmatpush1.msra.mxu0 0.0
    %3075 = vmatprep.subr.mxu0 0.0
    %3076 = vmatpush1.msra.mxu0 0.0
    %3077 = vmatprep.subr.mxu0 0.0
    %3078 = vmatpush1.msra.mxu0 0.0
    %3079 = vmatprep.subr.mxu0 0.0
    %3080 = vmatpush1.msra.mxu0 0.0
    %3081 = vmatprep.subr.mxu0 0.0
    %3082 = vmatpush1.msra.mxu0 0.0
    %3083 = vmatprep.subr.mxu0 0.0
    %3084 = vmatpush1.msra.mxu0 0.0
    %3085 = vmatprep.subr.mxu0 0.0
    %3086 = vmatpush1.msra.mxu0 0.0
    %3087 = vmatprep.subr.mxu0 0.0
    %3088 = vmatpush1.msra.mxu0 0.0
    %3089 = vmatprep.subr.mxu0 0.0
    %3090 = vmatpush1.msra.mxu0 0.0
    %3091 = vmatprep.subr.mxu0 0.0
    %3092 = vmatpush1.msra.mxu0 0.0
    %3093 = vmatprep.mubr.f32.mxu0 0.0
    %3094 = vmatmul.mubr.f32.gmra.mrb[0].mxu0 %v2956
    %v3095 = vpop.f32.mrb[0].mxu0
    %v3096 = vadd.f32 0.0, %v3095
    %v3097 = vpop.f32.mrb[0].mxu0
    %v3098 = vadd.f32 0.0, %v3097
    %3099 = vdwg.mxu0
    %v3104 = vrot.slane %v3025, 4
    %v3105 = vrot.slane %v3027, 4
    %v3106 = vrot.slane %v3096, 4
    %v3107 = vrot.slane %v3098, 4
    %v3112 = vadd.f32 %v2145, %v3104
    %v3113 = vadd.f32 %v2147, %v3105
    %v3114 = vadd.f32 %v2216, %v3106
    %v3115 = vadd.f32 %v2218, %v3107
    %v3116 = vxor.u32 %v3112, 2147483648
    %v3117 = vmul.f32 %v3116, 1.442695
    %v3118 = vpow.pop %v3117
    %v3119 = vadd.f32 %v3118, 1.0
    %v3120 = vrcp.pop %v3119
    %v3121 = vmul.f32 1.0, %v3120
    %v3122 = vxor.u32 %v3113, 2147483648
    %v3123 = vmul.f32 %v3122, 1.442695
    %v3124 = vpow.pop %v3123
    %v3125 = vadd.f32 %v3124, 1.0
    %v3126 = vrcp.pop %v3125
    %v3127 = vmul.f32 1.0, %v3126
    %v3128 = vtanh.pop %v3114
    %v3129 = vxor.u32 %v3115, 2147483648
    %v3130 = vmul.f32 %v3129, 1.442695
    %v3131 = vpow.pop %v3130
    %v3132 = vadd.f32 %v3131, 1.0
    %v3133 = vrcp.pop %v3132
    %v3134 = vmul.f32 1.0, %v3133
    %v3136 = vrot.slane %v2951, 7
    %v3138 = vmul.f32 %v3127, %v3136
    %v3139 = vmul.f32 %v3121, %v3128
    %v3140 = vadd.f32 %v3138, %v3139
    %v3141 = vtanh.pop %v3140
    %v3142 = vmul.f32 %v3134, %v3141
    %3143 = vst [vmem:[#allocation2] sm:$0x10] %v3142
    %v3145 = vrot.slane %v3142, 4
    %3147 = vmatprep.subr.mxu0 %v1993
    %3148 = vmatpush1.msra.mxu0 %v1992
    %3149 = vmatprep.subr.mxu0 %v1997
    %3150 = vmatpush1.msra.mxu0 %v1996
    %3151 = vmatprep.subr.mxu0 %v2001
    %3152 = vmatpush1.msra.mxu0 %v2000
    %3153 = vmatprep.subr.mxu0 %v2005
    %3154 = vmatpush1.msra.mxu0 %v2004
    %3155 = vmatprep.subr.mxu0 %v2009
    %3156 = vmatpush1.msra.mxu0 %v2008
    %3157 = vmatprep.subr.mxu0 %v2013
    %3158 = vmatpush1.msra.mxu0 %v2012
    %3159 = vmatprep.subr.mxu0 %v2017
    %3160 = vmatpush1.msra.mxu0 %v2016
    %3161 = vmatprep.subr.mxu0 %v2021
    %3162 = vmatpush1.msra.mxu0 %v2020
    %3163 = vmatprep.subr.mxu0 %v2025
    %3164 = vmatpush1.msra.mxu0 %v2024
    %3165 = vmatprep.subr.mxu0 %v2029
    %3166 = vmatpush1.msra.mxu0 %v2028
    %3167 = vmatprep.subr.mxu0 %v2033
    %3168 = vmatpush1.msra.mxu0 %v2032
    %3169 = vmatprep.subr.mxu0 %v2037
    %3170 = vmatpush1.msra.mxu0 %v2036
    %3171 = vmatprep.subr.mxu0 %v2041
    %3172 = vmatpush1.msra.mxu0 %v2040
    %3173 = vmatprep.subr.mxu0 %v2045
    %3174 = vmatpush1.msra.mxu0 %v2044
    %3175 = vmatprep.subr.mxu0 %v2049
    %3176 = vmatpush1.msra.mxu0 %v2048
    %3177 = vmatprep.subr.mxu0 %v2053
    %3178 = vmatpush1.msra.mxu0 %v2052
    %3179 = vmatprep.subr.mxu0 0.0
    %3180 = vmatpush1.msra.mxu0 0.0
    %3181 = vmatprep.subr.mxu0 0.0
    %3182 = vmatpush1.msra.mxu0 0.0
    %3183 = vmatprep.subr.mxu0 0.0
    %3184 = vmatpush1.msra.mxu0 0.0
    %3185 = vmatprep.subr.mxu0 0.0
    %3186 = vmatpush1.msra.mxu0 0.0
    %3187 = vmatprep.subr.mxu0 0.0
    %3188 = vmatpush1.msra.mxu0 0.0
    %3189 = vmatprep.subr.mxu0 0.0
    %3190 = vmatpush1.msra.mxu0 0.0
    %3191 = vmatprep.subr.mxu0 0.0
    %3192 = vmatpush1.msra.mxu0 0.0
    %3193 = vmatprep.subr.mxu0 0.0
    %3194 = vmatpush1.msra.mxu0 0.0
    %3195 = vmatprep.subr.mxu0 0.0
    %3196 = vmatpush1.msra.mxu0 0.0
    %3197 = vmatprep.subr.mxu0 0.0
    %3198 = vmatpush1.msra.mxu0 0.0
    %3199 = vmatprep.subr.mxu0 0.0
    %3200 = vmatpush1.msra.mxu0 0.0
    %3201 = vmatprep.subr.mxu0 0.0
    %3202 = vmatpush1.msra.mxu0 0.0
    %3203 = vmatprep.subr.mxu0 0.0
    %3204 = vmatpush1.msra.mxu0 0.0
    %3205 = vmatprep.subr.mxu0 0.0
    %3206 = vmatpush1.msra.mxu0 0.0
    %3207 = vmatprep.subr.mxu0 0.0
    %3208 = vmatpush1.msra.mxu0 0.0
    %3209 = vmatprep.subr.mxu0 0.0
    %3210 = vmatpush1.msra.mxu0 0.0
    %3211 = vmatprep.mubr.f32.mxu0 0.0
    %3212 = vmatmul.mubr.f32.gmra.mrb[0].mxu0 %v3145
    %v3213 = vpop.f32.mrb[0].mxu0
    %v3214 = vadd.f32 0.0, %v3213
    %v3215 = vpop.f32.mrb[0].mxu0
    %v3216 = vadd.f32 0.0, %v3215
    %3217 = vdwg.mxu0
    %3218 = vmatprep.subr.mxu0 %v1995
    %3219 = vmatpush1.msra.mxu0 %v1994
    %3220 = vmatprep.subr.mxu0 %v1999
    %3221 = vmatpush1.msra.mxu0 %v1998
    %3222 = vmatprep.subr.mxu0 %v2003
    %3223 = vmatpush1.msra.mxu0 %v2002
    %3224 = vmatprep.subr.mxu0 %v2007
    %3225 = vmatpush1.msra.mxu0 %v2006
    %3226 = vmatprep.subr.mxu0 %v2011
    %3227 = vmatpush1.msra.mxu0 %v2010
    %3228 = vmatprep.subr.mxu0 %v2015
    %3229 = vmatpush1.msra.mxu0 %v2014
    %3230 = vmatprep.subr.mxu0 %v2019
    %3231 = vmatpush1.msra.mxu0 %v2018
    %3232 = vmatprep.subr.mxu0 %v2023
    %3233 = vmatpush1.msra.mxu0 %v2022
    %3234 = vmatprep.subr.mxu0 %v2027
    %3235 = vmatpush1.msra.mxu0 %v2026
    %3236 = vmatprep.subr.mxu0 %v2031
    %3237 = vmatpush1.msra.mxu0 %v2030
    %3238 = vmatprep.subr.mxu0 %v2035
    %3239 = vmatpush1.msra.mxu0 %v2034
    %3240 = vmatprep.subr.mxu0 %v2039
    %3241 = vmatpush1.msra.mxu0 %v2038
    %3242 = vmatprep.subr.mxu0 %v2043
    %3243 = vmatpush1.msra.mxu0 %v2042
    %3244 = vmatprep.subr.mxu0 %v2047
    %3245 = vmatpush1.msra.mxu0 %v2046
    %3246 = vmatprep.subr.mxu0 %v2051
    %3247 = vmatpush1.msra.mxu0 %v2050
    %3248 = vmatprep.subr.mxu0 %v2055
    %3249 = vmatpush1.msra.mxu0 %v2054
    %3250 = vmatprep.subr.mxu0 0.0
    %3251 = vmatpush1.msra.mxu0 0.0
    %3252 = vmatprep.subr.mxu0 0.0
    %3253 = vmatpush1.msra.mxu0 0.0
    %3254 = vmatprep.subr.mxu0 0.0
    %3255 = vmatpush1.msra.mxu0 0.0
    %3256 = vmatprep.subr.mxu0 0.0
    %3257 = vmatpush1.msra.mxu0 0.0
    %3258 = vmatprep.subr.mxu0 0.0
    %3259 = vmatpush1.msra.mxu0 0.0
    %3260 = vmatprep.subr.mxu0 0.0
    %3261 = vmatpush1.msra.mxu0 0.0
    %3262 = vmatprep.subr.mxu0 0.0
    %3263 = vmatpush1.msra.mxu0 0.0
    %3264 = vmatprep.subr.mxu0 0.0
    %3265 = vmatpush1.msra.mxu0 0.0
    %3266 = vmatprep.subr.mxu0 0.0
    %3267 = vmatpush1.msra.mxu0 0.0
    %3268 = vmatprep.subr.mxu0 0.0
    %3269 = vmatpush1.msra.mxu0 0.0
    %3270 = vmatprep.subr.mxu0 0.0
    %3271 = vmatpush1.msra.mxu0 0.0
    %3272 = vmatprep.subr.mxu0 0.0
    %3273 = vmatpush1.msra.mxu0 0.0
    %3274 = vmatprep.subr.mxu0 0.0
    %3275 = vmatpush1.msra.mxu0 0.0
    %3276 = vmatprep.subr.mxu0 0.0
    %3277 = vmatpush1.msra.mxu0 0.0
    %3278 = vmatprep.subr.mxu0 0.0
    %3279 = vmatpush1.msra.mxu0 0.0
    %3280 = vmatprep.subr.mxu0 0.0
    %3281 = vmatpush1.msra.mxu0 0.0
    %3282 = vmatprep.mubr.f32.mxu0 0.0
    %3283 = vmatmul.mubr.f32.gmra.mrb[0].mxu0 %v3145
    %v3284 = vpop.f32.mrb[0].mxu0
    %v3285 = vadd.f32 0.0, %v3284
    %v3286 = vpop.f32.mrb[0].mxu0
    %v3287 = vadd.f32 0.0, %v3286
    %3288 = vdwg.mxu0
    %v3293 = vrot.slane %v3214, 3
    %v3294 = vrot.slane %v3216, 3
    %v3295 = vrot.slane %v3285, 3
    %v3296 = vrot.slane %v3287, 3
    %v3301 = vadd.f32 %v2145, %v3293
    %v3302 = vadd.f32 %v2147, %v3294
    %v3303 = vadd.f32 %v2216, %v3295
    %v3304 = vadd.f32 %v2218, %v3296
    %v3305 = vxor.u32 %v3301, 2147483648
    %v3306 = vmul.f32 %v3305, 1.442695
    %v3307 = vpow.pop %v3306
    %v3308 = vadd.f32 %v3307, 1.0
    %v3309 = vrcp.pop %v3308
    %v3310 = vmul.f32 1.0, %v3309
    %v3311 = vxor.u32 %v3302, 2147483648
    %v3312 = vmul.f32 %v3311, 1.442695
    %v3313 = vpow.pop %v3312
    %v3314 = vadd.f32 %v3313, 1.0
    %v3315 = vrcp.pop %v3314
    %v3316 = vmul.f32 1.0, %v3315
    %v3317 = vtanh.pop %v3303
    %v3318 = vxor.u32 %v3304, 2147483648
    %v3319 = vmul.f32 %v3318, 1.442695
    %v3320 = vpow.pop %v3319
    %v3321 = vadd.f32 %v3320, 1.0
    %v3322 = vrcp.pop %v3321
    %v3323 = vmul.f32 1.0, %v3322
    %v3325 = vrot.slane %v3140, 7
    %v3327 = vmul.f32 %v3316, %v3325
    %v3328 = vmul.f32 %v3310, %v3317
    %v3329 = vadd.f32 %v3327, %v3328
    %v3330 = vtanh.pop %v3329
    %v3331 = vmul.f32 %v3323, %v3330
    %3332 = vst [vmem:[#allocation2] sm:$0x20] %v3331
    %v3334 = vrot.slane %v3331, 5
    %3336 = vmatprep.subr.mxu0 %v1993
    %3337 = vmatpush1.msra.mxu0 %v1992
    %3338 = vmatprep.subr.mxu0 %v1997
    %3339 = vmatpush1.msra.mxu0 %v1996
    %3340 = vmatprep.subr.mxu0 %v2001
    %3341 = vmatpush1.msra.mxu0 %v2000
    %3342 = vmatprep.subr.mxu0 %v2005
    %3343 = vmatpush1.msra.mxu0 %v2004
    %3344 = vmatprep.subr.mxu0 %v2009
    %3345 = vmatpush1.msra.mxu0 %v2008
    %3346 = vmatprep.subr.mxu0 %v2013
    %3347 = vmatpush1.msra.mxu0 %v2012
    %3348 = vmatprep.subr.mxu0 %v2017
    %3349 = vmatpush1.msra.mxu0 %v2016
    %3350 = vmatprep.subr.mxu0 %v2021
    %3351 = vmatpush1.msra.mxu0 %v2020
    %3352 = vmatprep.subr.mxu0 %v2025
    %3353 = vmatpush1.msra.mxu0 %v2024
    %3354 = vmatprep.subr.mxu0 %v2029
    %3355 = vmatpush1.msra.mxu0 %v2028
    %3356 = vmatprep.subr.mxu0 %v2033
    %3357 = vmatpush1.msra.mxu0 %v2032
    %3358 = vmatprep.subr.mxu0 %v2037
    %3359 = vmatpush1.msra.mxu0 %v2036
    %3360 = vmatprep.subr.mxu0 %v2041
    %3361 = vmatpush1.msra.mxu0 %v2040
    %3362 = vmatprep.subr.mxu0 %v2045
    %3363 = vmatpush1.msra.mxu0 %v2044
    %3364 = vmatprep.subr.mxu0 %v2049
    %3365 = vmatpush1.msra.mxu0 %v2048
    %3366 = vmatprep.subr.mxu0 %v2053
    %3367 = vmatpush1.msra.mxu0 %v2052
    %3368 = vmatprep.subr.mxu0 0.0
    %3369 = vmatpush1.msra.mxu0 0.0
    %3370 = vmatprep.subr.mxu0 0.0
    %3371 = vmatpush1.msra.mxu0 0.0
    %3372 = vmatprep.subr.mxu0 0.0
    %3373 = vmatpush1.msra.mxu0 0.0
    %3374 = vmatprep.subr.mxu0 0.0
    %3375 = vmatpush1.msra.mxu0 0.0
    %3376 = vmatprep.subr.mxu0 0.0
    %3377 = vmatpush1.msra.mxu0 0.0
    %3378 = vmatprep.subr.mxu0 0.0
    %3379 = vmatpush1.msra.mxu0 0.0
    %3380 = vmatprep.subr.mxu0 0.0
    %3381 = vmatpush1.msra.mxu0 0.0
    %3382 = vmatprep.subr.mxu0 0.0
    %3383 = vmatpush1.msra.mxu0 0.0
    %3384 = vmatprep.subr.mxu0 0.0
    %3385 = vmatpush1.msra.mxu0 0.0
    %3386 = vmatprep.subr.mxu0 0.0
    %3387 = vmatpush1.msra.mxu0 0.0
    %3388 = vmatprep.subr.mxu0 0.0
    %3389 = vmatpush1.msra.mxu0 0.0
    %3390 = vmatprep.subr.mxu0 0.0
    %3391 = vmatpush1.msra.mxu0 0.0
    %3392 = vmatprep.subr.mxu0 0.0
    %3393 = vmatpush1.msra.mxu0 0.0
    %3394 = vmatprep.subr.mxu0 0.0
    %3395 = vmatpush1.msra.mxu0 0.0
    %3396 = vmatprep.subr.mxu0 0.0
    %3397 = vmatpush1.msra.mxu0 0.0
    %3398 = vmatprep.subr.mxu0 0.0
    %3399 = vmatpush1.msra.mxu0 0.0
    %3400 = vmatprep.mubr.f32.mxu0 0.0
    %3401 = vmatmul.mubr.f32.gmra.mrb[0].mxu0 %v3334
    %v3402 = vpop.f32.mrb[0].mxu0
    %v3403 = vadd.f32 0.0, %v3402
    %v3404 = vpop.f32.mrb[0].mxu0
    %v3405 = vadd.f32 0.0, %v3404
    %3406 = vdwg.mxu0
    %3407 = vmatprep.subr.mxu0 %v1995
    %3408 = vmatpush1.msra.mxu0 %v1994
    %3409 = vmatprep.subr.mxu0 %v1999
    %3410 = vmatpush1.msra.mxu0 %v1998
    %3411 = vmatprep.subr.mxu0 %v2003
    %3412 = vmatpush1.msra.mxu0 %v2002
    %3413 = vmatprep.subr.mxu0 %v2007
    %3414 = vmatpush1.msra.mxu0 %v2006
    %3415 = vmatprep.subr.mxu0 %v2011
    %3416 = vmatpush1.msra.mxu0 %v2010
    %3417 = vmatprep.subr.mxu0 %v2015
    %3418 = vmatpush1.msra.mxu0 %v2014
    %3419 = vmatprep.subr.mxu0 %v2019
    %3420 = vmatpush1.msra.mxu0 %v2018
    %3421 = vmatprep.subr.mxu0 %v2023
    %3422 = vmatpush1.msra.mxu0 %v2022
    %3423 = vmatprep.subr.mxu0 %v2027
    %3424 = vmatpush1.msra.mxu0 %v2026
    %3425 = vmatprep.subr.mxu0 %v2031
    %3426 = vmatpush1.msra.mxu0 %v2030
    %3427 = vmatprep.subr.mxu0 %v2035
    %3428 = vmatpush1.msra.mxu0 %v2034
    %3429 = vmatprep.subr.mxu0 %v2039
    %3430 = vmatpush1.msra.mxu0 %v2038
    %3431 = vmatprep.subr.mxu0 %v2043
    %3432 = vmatpush1.msra.mxu0 %v2042
    %3433 = vmatprep.subr.mxu0 %v2047
    %3434 = vmatpush1.msra.mxu0 %v2046
    %3435 = vmatprep.subr.mxu0 %v2051
    %3436 = vmatpush1.msra.mxu0 %v2050
    %3437 = vmatprep.subr.mxu0 %v2055
    %3438 = vmatpush1.msra.mxu0 %v2054
    %3439 = vmatprep.subr.mxu0 0.0
    %3440 = vmatpush1.msra.mxu0 0.0
    %3441 = vmatprep.subr.mxu0 0.0
    %3442 = vmatpush1.msra.mxu0 0.0
    %3443 = vmatprep.subr.mxu0 0.0
    %3444 = vmatpush1.msra.mxu0 0.0
    %3445 = vmatprep.subr.mxu0 0.0
    %3446 = vmatpush1.msra.mxu0 0.0
    %3447 = vmatprep.subr.mxu0 0.0
    %3448 = vmatpush1.msra.mxu0 0.0
    %3449 = vmatprep.subr.mxu0 0.0
    %3450 = vmatpush1.msra.mxu0 0.0
    %3451 = vmatprep.subr.mxu0 0.0
    %3452 = vmatpush1.msra.mxu0 0.0
    %3453 = vmatprep.subr.mxu0 0.0
    %3454 = vmatpush1.msra.mxu0 0.0
    %3455 = vmatprep.subr.mxu0 0.0
    %3456 = vmatpush1.msra.mxu0 0.0
    %3457 = vmatprep.subr.mxu0 0.0
    %3458 = vmatpush1.msra.mxu0 0.0
    %3459 = vmatprep.subr.mxu0 0.0
    %3460 = vmatpush1.msra.mxu0 0.0
    %3461 = vmatprep.subr.mxu0 0.0
    %3462 = vmatpush1.msra.mxu0 0.0
    %3463 = vmatprep.subr.mxu0 0.0
    %3464 = vmatpush1.msra.mxu0 0.0
    %3465 = vmatprep.subr.mxu0 0.0
    %3466 = vmatpush1.msra.mxu0 0.0
    %3467 = vmatprep.subr.mxu0 0.0
    %3468 = vmatpush1.msra.mxu0 0.0
    %3469 = vmatprep.subr.mxu0 0.0
    %3470 = vmatpush1.msra.mxu0 0.0
    %3471 = vmatprep.mubr.f32.mxu0 0.0
    %3472 = vmatmul.mubr.f32.gmra.mrb[0].mxu0 %v3334
    %v3473 = vpop.f32.mrb[0].mxu0
    %v3474 = vadd.f32 0.0, %v3473
    %v3475 = vpop.f32.mrb[0].mxu0
    %v3476 = vadd.f32 0.0, %v3475
    %3477 = vdwg.mxu0
    %v3482 = vrot.slane %v3403, 2
    %v3483 = vrot.slane %v3405, 2
    %v3484 = vrot.slane %v3474, 2
    %v3485 = vrot.slane %v3476, 2
    %v3490 = vadd.f32 %v2145, %v3482
    %v3491 = vadd.f32 %v2147, %v3483
    %v3492 = vadd.f32 %v2216, %v3484
    %v3493 = vadd.f32 %v2218, %v3485
    %v3494 = vxor.u32 %v3490, 2147483648
    %v3495 = vmul.f32 %v3494, 1.442695
    %v3496 = vpow.pop %v3495
    %v3497 = vadd.f32 %v3496, 1.0
    %v3498 = vrcp.pop %v3497
    %v3499 = vmul.f32 1.0, %v3498
    %v3500 = vxor.u32 %v3491, 2147483648
    %v3501 = vmul.f32 %v3500, 1.442695
    %v3502 = vpow.pop %v3501
    %v3503 = vadd.f32 %v3502, 1.0
    %v3504 = vrcp.pop %v3503
    %v3505 = vmul.f32 1.0, %v3504
    %v3506 = vtanh.pop %v3492
    %v3507 = vxor.u32 %v3493, 2147483648
    %v3508 = vmul.f32 %v3507, 1.442695
    %v3509 = vpow.pop %v3508
    %v3510 = vadd.f32 %v3509, 1.0
    %v3511 = vrcp.pop %v3510
    %v3512 = vmul.f32 1.0, %v3511
    %v3514 = vrot.slane %v3329, 7
    %v3516 = vmul.f32 %v3505, %v3514
    %v3517 = vmul.f32 %v3499, %v3506
    %v3518 = vadd.f32 %v3516, %v3517
    %v3519 = vtanh.pop %v3518
    %v3520 = vmul.f32 %v3512, %v3519
    %3521 = vst [vmem:[#allocation2] sm:$0x40] %v3520
    %v3523 = vrot.slane %v3520, 6
    %3525 = vmatprep.subr.mxu0 %v1993
    %3526 = vmatpush1.msra.mxu0 %v1992
    %3527 = vmatprep.subr.mxu0 %v1997
    %3528 = vmatpush1.msra.mxu0 %v1996
    %3529 = vmatprep.subr.mxu0 %v2001
    %3530 = vmatpush1.msra.mxu0 %v2000
    %3531 = vmatprep.subr.mxu0 %v2005
    %3532 = vmatpush1.msra.mxu0 %v2004
    %3533 = vmatprep.subr.mxu0 %v2009
    %3534 = vmatpush1.msra.mxu0 %v2008
    %3535 = vmatprep.subr.mxu0 %v2013
    %3536 = vmatpush1.msra.mxu0 %v2012
    %3537 = vmatprep.subr.mxu0 %v2017
    %3538 = vmatpush1.msra.mxu0 %v2016
    %3539 = vmatprep.subr.mxu0 %v2021
    %3540 = vmatpush1.msra.mxu0 %v2020
    %3541 = vmatprep.subr.mxu0 %v2025
    %3542 = vmatpush1.msra.mxu0 %v2024
    %3543 = vmatprep.subr.mxu0 %v2029
    %3544 = vmatpush1.msra.mxu0 %v2028
    %3545 = vmatprep.subr.mxu0 %v2033
    %3546 = vmatpush1.msra.mxu0 %v2032
    %3547 = vmatprep.subr.mxu0 %v2037
    %3548 = vmatpush1.msra.mxu0 %v2036
    %3549 = vmatprep.subr.mxu0 %v2041
    %3550 = vmatpush1.msra.mxu0 %v2040
    %3551 = vmatprep.subr.mxu0 %v2045
    %3552 = vmatpush1.msra.mxu0 %v2044
    %3553 = vmatprep.subr.mxu0 %v2049
    %3554 = vmatpush1.msra.mxu0 %v2048
    %3555 = vmatprep.subr.mxu0 %v2053
    %3556 = vmatpush1.msra.mxu0 %v2052
    %3557 = vmatprep.subr.mxu0 0.0
    %3558 = vmatpush1.msra.mxu0 0.0
    %3559 = vmatprep.subr.mxu0 0.0
    %3560 = vmatpush1.msra.mxu0 0.0
    %3561 = vmatprep.subr.mxu0 0.0
    %3562 = vmatpush1.msra.mxu0 0.0
    %3563 = vmatprep.subr.mxu0 0.0
    %3564 = vmatpush1.msra.mxu0 0.0
    %3565 = vmatprep.subr.mxu0 0.0
    %3566 = vmatpush1.msra.mxu0 0.0
    %3567 = vmatprep.subr.mxu0 0.0
    %3568 = vmatpush1.msra.mxu0 0.0
    %3569 = vmatprep.subr.mxu0 0.0
    %3570 = vmatpush1.msra.mxu0 0.0
    %3571 = vmatprep.subr.mxu0 0.0
    %3572 = vmatpush1.msra.mxu0 0.0
    %3573 = vmatprep.subr.mxu0 0.0
    %3574 = vmatpush1.msra.mxu0 0.0
    %3575 = vmatprep.subr.mxu0 0.0
    %3576 = vmatpush1.msra.mxu0 0.0
    %3577 = vmatprep.subr.mxu0 0.0
    %3578 = vmatpush1.msra.mxu0 0.0
    %3579 = vmatprep.subr.mxu0 0.0
    %3580 = vmatpush1.msra.mxu0 0.0
    %3581 = vmatprep.subr.mxu0 0.0
    %3582 = vmatpush1.msra.mxu0 0.0
    %3583 = vmatprep.subr.mxu0 0.0
    %3584 = vmatpush1.msra.mxu0 0.0
    %3585 = vmatprep.subr.mxu0 0.0
    %3586 = vmatpush1.msra.mxu0 0.0
    %3587 = vmatprep.subr.mxu0 0.0
    %3588 = vmatpush1.msra.mxu0 0.0
    %3589 = vmatprep.mubr.f32.mxu0 0.0
    %3590 = vmatmul.mubr.f32.gmra.mrb[0].mxu0 %v3523
    %v3591 = vpop.f32.mrb[0].mxu0
    %v3592 = vadd.f32 0.0, %v3591
    %v3593 = vpop.f32.mrb[0].mxu0
    %v3594 = vadd.f32 0.0, %v3593
    %3595 = vdwg.mxu0
    %3596 = vmatprep.subr.mxu0 %v1995
    %3597 = vmatpush1.msra.mxu0 %v1994
    %3598 = vmatprep.subr.mxu0 %v1999
    %3599 = vmatpush1.msra.mxu0 %v1998
    %3600 = vmatprep.subr.mxu0 %v2003
    %3601 = vmatpush1.msra.mxu0 %v2002
    %3602 = vmatprep.subr.mxu0 %v2007
    %3603 = vmatpush1.msra.mxu0 %v2006
    %3604 = vmatprep.subr.mxu0 %v2011
    %3605 = vmatpush1.msra.mxu0 %v2010
    %3606 = vmatprep.subr.mxu0 %v2015
    %3607 = vmatpush1.msra.mxu0 %v2014
    %3608 = vmatprep.subr.mxu0 %v2019
    %3609 = vmatpush1.msra.mxu0 %v2018
    %3610 = vmatprep.subr.mxu0 %v2023
    %3611 = vmatpush1.msra.mxu0 %v2022
    %3612 = vmatprep.subr.mxu0 %v2027
    %3613 = vmatpush1.msra.mxu0 %v2026
    %3614 = vmatprep.subr.mxu0 %v2031
    %3615 = vmatpush1.msra.mxu0 %v2030
    %3616 = vmatprep.subr.mxu0 %v2035
    %3617 = vmatpush1.msra.mxu0 %v2034
    %3618 = vmatprep.subr.mxu0 %v2039
    %3619 = vmatpush1.msra.mxu0 %v2038
    %3620 = vmatprep.subr.mxu0 %v2043
    %3621 = vmatpush1.msra.mxu0 %v2042
    %3622 = vmatprep.subr.mxu0 %v2047
    %3623 = vmatpush1.msra.mxu0 %v2046
    %3624 = vmatprep.subr.mxu0 %v2051
    %3625 = vmatpush1.msra.mxu0 %v2050
    %3626 = vmatprep.subr.mxu0 %v2055
    %3627 = vmatpush1.msra.mxu0 %v2054
    %3628 = vmatprep.subr.mxu0 0.0
    %3629 = vmatpush1.msra.mxu0 0.0
    %3630 = vmatprep.subr.mxu0 0.0
    %3631 = vmatpush1.msra.mxu0 0.0
    %3632 = vmatprep.subr.mxu0 0.0
    %3633 = vmatpush1.msra.mxu0 0.0
    %3634 = vmatprep.subr.mxu0 0.0
    %3635 = vmatpush1.msra.mxu0 0.0
    %3636 = vmatprep.subr.mxu0 0.0
    %3637 = vmatpush1.msra.mxu0 0.0
    %3638 = vmatprep.subr.mxu0 0.0
    %3639 = vmatpush1.msra.mxu0 0.0
    %3640 = vmatprep.subr.mxu0 0.0
    %3641 = vmatpush1.msra.mxu0 0.0
    %3642 = vmatprep.subr.mxu0 0.0
    %3643 = vmatpush1.msra.mxu0 0.0
    %3644 = vmatprep.subr.mxu0 0.0
    %3645 = vmatpush1.msra.mxu0 0.0
    %3646 = vmatprep.subr.mxu0 0.0
    %3647 = vmatpush1.msra.mxu0 0.0
    %3648 = vmatprep.subr.mxu0 0.0
    %3649 = vmatpush1.msra.mxu0 0.0
    %3650 = vmatprep.subr.mxu0 0.0
    %3651 = vmatpush1.msra.mxu0 0.0
    %3652 = vmatprep.subr.mxu0 0.0
    %3653 = vmatpush1.msra.mxu0 0.0
    %3654 = vmatprep.subr.mxu0 0.0
    %3655 = vmatpush1.msra.mxu0 0.0
    %3656 = vmatprep.subr.mxu0 0.0
    %3657 = vmatpush1.msra.mxu0 0.0
    %3658 = vmatprep.subr.mxu0 0.0
    %3659 = vmatpush1.msra.mxu0 0.0
    %3660 = vmatprep.mubr.f32.mxu0 0.0
    %3661 = vmatmul.mubr.f32.gmra.mrb[0].mxu0 %v3523
    %v3662 = vpop.f32.mrb[0].mxu0
    %v3663 = vadd.f32 0.0, %v3662
    %v3664 = vpop.f32.mrb[0].mxu0
    %v3665 = vadd.f32 0.0, %v3664
    %3666 = vdwg.mxu0
    %v3671 = vrot.slane %v3592, 1
    %v3672 = vrot.slane %v3594, 1
    %v3673 = vrot.slane %v3663, 1
    %v3674 = vrot.slane %v3665, 1
    %v3679 = vadd.f32 %v2145, %v3671
    %v3680 = vadd.f32 %v2147, %v3672
    %v3681 = vadd.f32 %v2216, %v3673
    %v3682 = vadd.f32 %v2218, %v3674
    %v3683 = vxor.u32 %v3679, 2147483648
    %v3684 = vmul.f32 %v3683, 1.442695
    %v3685 = vpow.pop %v3684
    %v3686 = vadd.f32 %v3685, 1.0
    %v3687 = vrcp.pop %v3686
    %v3688 = vmul.f32 1.0, %v3687
    %v3689 = vxor.u32 %v3680, 2147483648
    %v3690 = vmul.f32 %v3689, 1.442695
    %v3691 = vpow.pop %v3690
    %v3692 = vadd.f32 %v3691, 1.0
    %v3693 = vrcp.pop %v3692
    %v3694 = vmul.f32 1.0, %v3693
    %v3695 = vtanh.pop %v3681
    %v3696 = vxor.u32 %v3682, 2147483648
    %v3697 = vmul.f32 %v3696, 1.442695
    %v3698 = vpow.pop %v3697
    %v3699 = vadd.f32 %v3698, 1.0
    %v3700 = vrcp.pop %v3699
    %v3701 = vmul.f32 1.0, %v3700
    %v3703 = vrot.slane %v3518, 7
    %v3705 = vmul.f32 %v3694, %v3703
    %v3706 = vmul.f32 %v3688, %v3695
    %v3707 = vadd.f32 %v3705, %v3706
    %v3708 = vtanh.pop %v3707
    %v3709 = vmul.f32 %v3701, %v3708
    %3710 = vst [vmem:[#allocation2] sm:$0x80] %v3709
    %v3711 = vld [vmem:[#allocation2] sm:$0xff]
    %v3713 = vlaneseq
    %v3714 = vshrl.u32 %v3713, 7
    %v3715 = vsub.s32 0, %v3714
    %v3716 = vrot.slane %v120, %v3715
    %v3717 = vlaneseq
    %v3718 = vshrl.u32 %v3717, 7
    %v3719 = vsub.s32 1, %v3718
    %v3720 = vrot.slane %v120, %v3719
    %3723 = vmatprep.subr.mxu0 %v89
    %3724 = vmatpush1.msra.mxu0 %v88
    %3725 = vmatprep.subr.mxu0 %v91
    %3726 = vmatpush1.msra.mxu0 %v90
    %3727 = vmatprep.subr.mxu0 %v93
    %3728 = vmatpush1.msra.mxu0 %v92
    %3729 = vmatprep.subr.mxu0 %v95
    %3730 = vmatpush1.msra.mxu0 %v94
    %3731 = vmatprep.subr.mxu0 %v97
    %3732 = vmatpush1.msra.mxu0 %v96
    %3733 = vmatprep.subr.mxu0 %v99
    %3734 = vmatpush1.msra.mxu0 %v98
    %3735 = vmatprep.subr.mxu0 %v101
    %3736 = vmatpush1.msra.mxu0 %v100
    %3737 = vmatprep.subr.mxu0 %v103
    %3738 = vmatpush1.msra.mxu0 %v102
    %3739 = vmatprep.subr.mxu0 %v105
    %3740 = vmatpush1.msra.mxu0 %v104
    %3741 = vmatprep.subr.mxu0 %v107
    %3742 = vmatpush1.msra.mxu0 %v106
    %3743 = vmatprep.subr.mxu0 %v109
    %3744 = vmatpush1.msra.mxu0 %v108
    %3745 = vmatprep.subr.mxu0 %v111
    %3746 = vmatpush1.msra.mxu0 %v110
    %3747 = vmatprep.subr.mxu0 %v113
    %3748 = vmatpush1.msra.mxu0 %v112
    %3749 = vmatprep.subr.mxu0 %v115
    %3750 = vmatpush1.msra.mxu0 %v114
    %3751 = vmatprep.subr.mxu0 %v117
    %3752 = vmatpush1.msra.mxu0 %v116
    %3753 = vmatprep.subr.mxu0 %v119
    %3754 = vmatpush1.msra.mxu0 %v118
    %3755 = vmatprep.subr.mxu0 0.0
    %3756 = vmatpush1.msra.mxu0 0.0
    %3757 = vmatprep.subr.mxu0 0.0
    %3758 = vmatpush1.msra.mxu0 0.0
    %3759 = vmatprep.subr.mxu0 0.0
    %3760 = vmatpush1.msra.mxu0 0.0
    %3761 = vmatprep.subr.mxu0 0.0
    %3762 = vmatpush1.msra.mxu0 0.0
    %3763 = vmatprep.subr.mxu0 0.0
    %3764 = vmatpush1.msra.mxu0 0.0
    %3765 = vmatprep.subr.mxu0 0.0
    %3766 = vmatpush1.msra.mxu0 0.0
    %3767 = vmatprep.subr.mxu0 0.0
    %3768 = vmatpush1.msra.mxu0 0.0
    %3769 = vmatprep.subr.mxu0 0.0
    %3770 = vmatpush1.msra.mxu0 0.0
    %3771 = vmatprep.subr.mxu0 0.0
    %3772 = vmatpush1.msra.mxu0 0.0
    %3773 = vmatprep.subr.mxu0 0.0
    %3774 = vmatpush1.msra.mxu0 0.0
    %3775 = vmatprep.subr.mxu0 0.0
    %3776 = vmatpush1.msra.mxu0 0.0
    %3777 = vmatprep.subr.mxu0 0.0
    %3778 = vmatpush1.msra.mxu0 0.0
    %3779 = vmatprep.subr.mxu0 0.0
    %3780 = vmatpush1.msra.mxu0 0.0
    %3781 = vmatprep.subr.mxu0 0.0
    %3782 = vmatpush1.msra.mxu0 0.0
    %3783 = vmatprep.subr.mxu0 0.0
    %3784 = vmatpush1.msra.mxu0 0.0
    %3785 = vmatprep.subr.mxu0 0.0
    %3786 = vmatpush1.msra.mxu0 0.0
    %3787 = vmatprep.mubr.f32.mxu0 0.0
    %3788 = vmatmul.mubr.f32.gmra.mrb[0].mxu0 %v3711
    %v3789 = vpop.f32.mrb[0].mxu0
    %v3790 = vadd.f32 %v3716, %v3789
    %v3791 = vpop.f32.mrb[0].mxu0
    %v3792 = vadd.f32 %v3720, %v3791
    %3793 = vdwg.mxu0
    %s3794 = scalar_lea.vmem %s0, 16
    %v3795 = vld [vmem:[%s3794] sm:$0xff]
    %v3796 = vld [vmem:[%s3794 + $0x8] sm:$0xff]
    %v3797 = vld [vmem:[#allocation3] sm:$0xff]
    %v3798 = vld [vmem:[#allocation3 + $0x8] sm:$0xff]
    %v3799 = vld [vmem:[#allocation3 + $0x10] sm:$0xff]
    %v3800 = vld [vmem:[#allocation3 + $0x18] sm:$0xff]
    %v3801 = vld [vmem:[#allocation3 + $0x20] sm:$0xff]
    %v3802 = vld [vmem:[#allocation3 + $0x28] sm:$0xff]
    %v3803 = vld [vmem:[#allocation3 + $0x30] sm:$0xff]
    %v3804 = vld [vmem:[#allocation3 + $0x38] sm:$0xff]
    %v3805 = vld [vmem:[#allocation3 + $0x40] sm:$0xff]
    %v3806 = vld [vmem:[#allocation3 + $0x48] sm:$0xff]
    %v3807 = vld [vmem:[#allocation3 + $0x50] sm:$0xff]
    %v3808 = vld [vmem:[#allocation3 + $0x58] sm:$0xff]
    %v3809 = vld [vmem:[#allocation3 + $0x60] sm:$0xff]
    %v3810 = vld [vmem:[#allocation3 + $0x68] sm:$0xff]
    %v3811 = vld [vmem:[#allocation3 + $0x70] sm:$0xff]
    %v3812 = vld [vmem:[#allocation3 + $0x78] sm:$0xff]
    %v3813 = vld [vmem:[#allocation3 + $0x80] sm:$0xff]
    %v3814 = vld [vmem:[#allocation3 + $0x88] sm:$0xff]
    %v3815 = vld [vmem:[#allocation3 + $0x90] sm:$0xff]
    %v3816 = vld [vmem:[#allocation3 + $0x98] sm:$0xff]
    %v3817 = vld [vmem:[#allocation3 + $0xa0] sm:$0xff]
    %v3818 = vld [vmem:[#allocation3 + $0xa8] sm:$0xff]
    %v3819 = vld [vmem:[#allocation3 + $0xb0] sm:$0xff]
    %v3820 = vld [vmem:[#allocation3 + $0xb8] sm:$0xff]
    %v3821 = vld [vmem:[#allocation3 + $0xc0] sm:$0xff]
    %v3822 = vld [vmem:[#allocation3 + $0xc8] sm:$0xff]
    %v3823 = vld [vmem:[#allocation3 + $0xd0] sm:$0xff]
    %v3824 = vld [vmem:[#allocation3 + $0xd8] sm:$0xff]
    %v3825 = vld [vmem:[#allocation3 + $0xe0] sm:$0xff]
    %v3826 = vld [vmem:[#allocation3 + $0xe8] sm:$0xff]
    %v3827 = vld [vmem:[#allocation3 + $0xf0] sm:$0xff]
    %v3828 = vld [vmem:[#allocation3 + $0xf8] sm:$0xff]
    %v3829 = vld [vmem:[#allocation3 + $0x100] sm:$0xff]
    %v3830 = vld [vmem:[#allocation3 + $0x108] sm:$0xff]
    %v3831 = vld [vmem:[#allocation3 + $0x110] sm:$0xff]
    %v3832 = vld [vmem:[#allocation3 + $0x118] sm:$0xff]
    %v3833 = vld [vmem:[#allocation3 + $0x120] sm:$0xff]
    %v3834 = vld [vmem:[#allocation3 + $0x128] sm:$0xff]
    %v3835 = vld [vmem:[#allocation3 + $0x130] sm:$0xff]
    %v3836 = vld [vmem:[#allocation3 + $0x138] sm:$0xff]
    %v3837 = vld [vmem:[#allocation3 + $0x140] sm:$0xff]
    %v3838 = vld [vmem:[#allocation3 + $0x148] sm:$0xff]
    %v3839 = vld [vmem:[#allocation3 + $0x150] sm:$0xff]
    %v3840 = vld [vmem:[#allocation3 + $0x158] sm:$0xff]
    %v3841 = vld [vmem:[#allocation3 + $0x160] sm:$0xff]
    %v3842 = vld [vmem:[#allocation3 + $0x168] sm:$0xff]
    %v3843 = vld [vmem:[#allocation3 + $0x170] sm:$0xff]
    %v3844 = vld [vmem:[#allocation3 + $0x178] sm:$0xff]
    %v3845 = vld [vmem:[#allocation3 + $0x180] sm:$0xff]
    %v3846 = vld [vmem:[#allocation3 + $0x188] sm:$0xff]
    %v3847 = vld [vmem:[#allocation3 + $0x190] sm:$0xff]
    %v3848 = vld [vmem:[#allocation3 + $0x198] sm:$0xff]
    %v3849 = vld [vmem:[#allocation3 + $0x1a0] sm:$0xff]
    %v3850 = vld [vmem:[#allocation3 + $0x1a8] sm:$0xff]
    %v3851 = vld [vmem:[#allocation3 + $0x1b0] sm:$0xff]
    %v3852 = vld [vmem:[#allocation3 + $0x1b8] sm:$0xff]
    %v3853 = vld [vmem:[#allocation3 + $0x1c0] sm:$0xff]
    %v3854 = vld [vmem:[#allocation3 + $0x1c8] sm:$0xff]
    %v3855 = vld [vmem:[#allocation3 + $0x1d0] sm:$0xff]
    %v3856 = vld [vmem:[#allocation3 + $0x1d8] sm:$0xff]
    %v3857 = vld [vmem:[#allocation3 + $0x1e0] sm:$0xff]
    %v3858 = vld [vmem:[#allocation3 + $0x1e8] sm:$0xff]
    %v3859 = vld [vmem:[#allocation3 + $0x1f0] sm:$0xff]
    %v3860 = vld [vmem:[#allocation3 + $0x1f8] sm:$0xff]
    %v3861 = vld [vmem:[#allocation3 + $0x200] sm:$0x1]
    %v3862 = vld [vmem:[#allocation3 + $0x208] sm:$0x1]
    %v3863 = vld [vmem:[#allocation3 + $0x210] sm:$0x1]
    %v3864 = vld [vmem:[#allocation3 + $0x218] sm:$0x1]
    %v3865 = vld [vmem:[#allocation6] sm:$0xff]
    %v3866 = vld [vmem:[#allocation6 + $0x8] sm:$0xff]
    %v3867 = vld [vmem:[#allocation6 + $0x10] sm:$0xff]
    %v3868 = vld [vmem:[#allocation6 + $0x18] sm:$0xff]
    %v3869 = vld [vmem:[#allocation6 + $0x20] sm:$0xff]
    %v3870 = vld [vmem:[#allocation6 + $0x28] sm:$0xff]
    %v3871 = vld [vmem:[#allocation6 + $0x30] sm:$0xff]
    %v3872 = vld [vmem:[#allocation6 + $0x38] sm:$0xff]
    %v3873 = vld [vmem:[#allocation6 + $0x40] sm:$0xff]
    %v3874 = vld [vmem:[#allocation6 + $0x48] sm:$0xff]
    %v3875 = vld [vmem:[#allocation6 + $0x50] sm:$0xff]
    %v3876 = vld [vmem:[#allocation6 + $0x58] sm:$0xff]
    %v3877 = vld [vmem:[#allocation6 + $0x60] sm:$0xff]
    %v3878 = vld [vmem:[#allocation6 + $0x68] sm:$0xff]
    %v3879 = vld [vmem:[#allocation6 + $0x70] sm:$0xff]
    %v3880 = vld [vmem:[#allocation6 + $0x78] sm:$0xff]
    %v3881 = vld [vmem:[#allocation6 + $0x80] sm:$0xff]
    %v3882 = vld [vmem:[#allocation6 + $0x88] sm:$0xff]
    %v3883 = vld [vmem:[#allocation6 + $0x90] sm:$0xff]
    %v3884 = vld [vmem:[#allocation6 + $0x98] sm:$0xff]
    %v3885 = vld [vmem:[#allocation6 + $0xa0] sm:$0xff]
    %v3886 = vld [vmem:[#allocation6 + $0xa8] sm:$0xff]
    %v3887 = vld [vmem:[#allocation6 + $0xb0] sm:$0xff]
    %v3888 = vld [vmem:[#allocation6 + $0xb8] sm:$0xff]
    %v3889 = vld [vmem:[#allocation6 + $0xc0] sm:$0xff]
    %v3890 = vld [vmem:[#allocation6 + $0xc8] sm:$0xff]
    %v3891 = vld [vmem:[#allocation6 + $0xd0] sm:$0xff]
    %v3892 = vld [vmem:[#allocation6 + $0xd8] sm:$0xff]
    %v3893 = vld [vmem:[#allocation6 + $0xe0] sm:$0xff]
    %v3894 = vld [vmem:[#allocation6 + $0xe8] sm:$0xff]
    %v3895 = vld [vmem:[#allocation6 + $0xf0] sm:$0xff]
    %v3896 = vld [vmem:[#allocation6 + $0xf8] sm:$0xff]
    %v3897 = vld [vmem:[#allocation6 + $0x100] sm:$0xff]
    %v3898 = vld [vmem:[#allocation6 + $0x108] sm:$0xff]
    %v3899 = vld [vmem:[#allocation6 + $0x110] sm:$0xff]
    %v3900 = vld [vmem:[#allocation6 + $0x118] sm:$0xff]
    %v3901 = vld [vmem:[#allocation6 + $0x120] sm:$0xff]
    %v3902 = vld [vmem:[#allocation6 + $0x128] sm:$0xff]
    %v3903 = vld [vmem:[#allocation6 + $0x130] sm:$0xff]
    %v3904 = vld [vmem:[#allocation6 + $0x138] sm:$0xff]
    %v3905 = vld [vmem:[#allocation6 + $0x140] sm:$0xff]
    %v3906 = vld [vmem:[#allocation6 + $0x148] sm:$0xff]
    %v3907 = vld [vmem:[#allocation6 + $0x150] sm:$0xff]
    %v3908 = vld [vmem:[#allocation6 + $0x158] sm:$0xff]
    %v3909 = vld [vmem:[#allocation6 + $0x160] sm:$0xff]
    %v3910 = vld [vmem:[#allocation6 + $0x168] sm:$0xff]
    %v3911 = vld [vmem:[#allocation6 + $0x170] sm:$0xff]
    %v3912 = vld [vmem:[#allocation6 + $0x178] sm:$0xff]
    %v3913 = vld [vmem:[#allocation6 + $0x180] sm:$0xff]
    %v3914 = vld [vmem:[#allocation6 + $0x188] sm:$0xff]
    %v3915 = vld [vmem:[#allocation6 + $0x190] sm:$0xff]
    %v3916 = vld [vmem:[#allocation6 + $0x198] sm:$0xff]
    %v3917 = vld [vmem:[#allocation6 + $0x1a0] sm:$0xff]
    %v3918 = vld [vmem:[#allocation6 + $0x1a8] sm:$0xff]
    %v3919 = vld [vmem:[#allocation6 + $0x1b0] sm:$0xff]
    %v3920 = vld [vmem:[#allocation6 + $0x1b8] sm:$0xff]
    %v3921 = vld [vmem:[#allocation6 + $0x1c0] sm:$0xff]
    %v3922 = vld [vmem:[#allocation6 + $0x1c8] sm:$0xff]
    %v3923 = vld [vmem:[#allocation6 + $0x1d0] sm:$0xff]
    %v3924 = vld [vmem:[#allocation6 + $0x1d8] sm:$0xff]
    %v3925 = vld [vmem:[#allocation6 + $0x1e0] sm:$0xff]
    %v3926 = vld [vmem:[#allocation6 + $0x1e8] sm:$0xff]
    %v3927 = vld [vmem:[#allocation6 + $0x1f0] sm:$0xff]
    %v3928 = vld [vmem:[#allocation6 + $0x1f8] sm:$0xff]
    %v3929 = vld [vmem:[%s3] sm:$0xf]
    %v3931 = vlaneseq
    %v3932 = vshrl.u32 %v3931, 7
    %v3933 = vsub.s32 0, %v3932
    %v3934 = vrot.slane %v3929, %v3933
    %v3935 = vlaneseq
    %v3936 = vshrl.u32 %v3935, 7
    %v3937 = vsub.s32 1, %v3936
    %v3938 = vrot.slane %v3929, %v3937
    %v3939 = vlaneseq
    %v3940 = vshrl.u32 %v3939, 7
    %v3941 = vsub.s32 2, %v3940
    %v3942 = vrot.slane %v3929, %v3941
    %v3943 = vlaneseq
    %v3944 = vshrl.u32 %v3943, 7
    %v3945 = vsub.s32 3, %v3944
    %v3946 = vrot.slane %v3929, %v3945
    %v3952 = vsel %vm277, %v3796, 0
    %v3955 = vsel %vm281, %v3861, 0
    %v3958 = vsel %vm281, %v3862, 0
    %v3961 = vsel %vm281, %v3863, 0
    %v3964 = vsel %vm281, %v3864, 0
    %3966 = vmatprep.subr.mxu0 %v3798
    %3967 = vmatpush1.msra.mxu0 %v3797
    %3968 = vmatprep.subr.mxu0 %v3802
    %3969 = vmatpush1.msra.mxu0 %v3801
    %3970 = vmatprep.subr.mxu0 %v3806
    %3971 = vmatpush1.msra.mxu0 %v3805
    %3972 = vmatprep.subr.mxu0 %v3810
    %3973 = vmatpush1.msra.mxu0 %v3809
    %3974 = vmatprep.subr.mxu0 %v3814
    %3975 = vmatpush1.msra.mxu0 %v3813
    %3976 = vmatprep.subr.mxu0 %v3818
    %3977 = vmatpush1.msra.mxu0 %v3817
    %3978 = vmatprep.subr.mxu0 %v3822
    %3979 = vmatpush1.msra.mxu0 %v3821
    %3980 = vmatprep.subr.mxu0 %v3826
    %3981 = vmatpush1.msra.mxu0 %v3825
    %3982 = vmatprep.subr.mxu0 %v3830
    %3983 = vmatpush1.msra.mxu0 %v3829
    %3984 = vmatprep.subr.mxu0 %v3834
    %3985 = vmatpush1.msra.mxu0 %v3833
    %3986 = vmatprep.subr.mxu0 %v3838
    %3987 = vmatpush1.msra.mxu0 %v3837
    %3988 = vmatprep.subr.mxu0 %v3842
    %3989 = vmatpush1.msra.mxu0 %v3841
    %3990 = vmatprep.subr.mxu0 %v3846
    %3991 = vmatpush1.msra.mxu0 %v3845
    %3992 = vmatprep.subr.mxu0 %v3850
    %3993 = vmatpush1.msra.mxu0 %v3849
    %3994 = vmatprep.subr.mxu0 %v3854
    %3995 = vmatpush1.msra.mxu0 %v3853
    %3996 = vmatprep.subr.mxu0 %v3858
    %3997 = vmatpush1.msra.mxu0 %v3857
    %3998 = vmatprep.subr.mxu0 %v3958
    %3999 = vmatpush1.msra.mxu0 %v3955
    %4000 = vmatprep.subr.mxu0 0.0
    %4001 = vmatpush1.msra.mxu0 0.0
    %4002 = vmatprep.subr.mxu0 0.0
    %4003 = vmatpush1.msra.mxu0 0.0
    %4004 = vmatprep.subr.mxu0 0.0
    %4005 = vmatpush1.msra.mxu0 0.0
    %4006 = vmatprep.subr.mxu0 0.0
    %4007 = vmatpush1.msra.mxu0 0.0
    %4008 = vmatprep.subr.mxu0 0.0
    %4009 = vmatpush1.msra.mxu0 0.0
    %4010 = vmatprep.subr.mxu0 0.0
    %4011 = vmatpush1.msra.mxu0 0.0
    %4012 = vmatprep.subr.mxu0 0.0
    %4013 = vmatpush1.msra.mxu0 0.0
    %4014 = vmatprep.subr.mxu0 0.0
    %4015 = vmatpush1.msra.mxu0 0.0
    %4016 = vmatprep.subr.mxu0 0.0
    %4017 = vmatpush1.msra.mxu0 0.0
    %4018 = vmatprep.subr.mxu0 0.0
    %4019 = vmatpush1.msra.mxu0 0.0
    %4020 = vmatprep.subr.mxu0 0.0
    %4021 = vmatpush1.msra.mxu0 0.0
    %4022 = vmatprep.subr.mxu0 0.0
    %4023 = vmatpush1.msra.mxu0 0.0
    %4024 = vmatprep.subr.mxu0 0.0
    %4025 = vmatpush1.msra.mxu0 0.0
    %4026 = vmatprep.subr.mxu0 0.0
    %4027 = vmatpush1.msra.mxu0 0.0
    %4028 = vmatprep.subr.mxu0 0.0
    %4029 = vmatpush1.msra.mxu0 0.0
    %4030 = vmatprep.mubr.f32.mxu0 %v3952
    %4031 = vmatmul.mubr.f32.gmra.mrb[0].mxu0 %v3795
    %v4032 = vpop.f32.mrb[0].mxu0
    %v4033 = vadd.f32 %v3934, %v4032
    %v4034 = vpop.f32.mrb[0].mxu0
    %v4035 = vadd.f32 %v3938, %v4034
    %4036 = vdwg.mxu0
    %4037 = vmatprep.subr.mxu0 %v3800
    %4038 = vmatpush1.msra.mxu0 %v3799
    %4039 = vmatprep.subr.mxu0 %v3804
    %4040 = vmatpush1.msra.mxu0 %v3803
    %4041 = vmatprep.subr.mxu0 %v3808
    %4042 = vmatpush1.msra.mxu0 %v3807
    %4043 = vmatprep.subr.mxu0 %v3812
    %4044 = vmatpush1.msra.mxu0 %v3811
    %4045 = vmatprep.subr.mxu0 %v3816
    %4046 = vmatpush1.msra.mxu0 %v3815
    %4047 = vmatprep.subr.mxu0 %v3820
    %4048 = vmatpush1.msra.mxu0 %v3819
    %4049 = vmatprep.subr.mxu0 %v3824
    %4050 = vmatpush1.msra.mxu0 %v3823
    %4051 = vmatprep.subr.mxu0 %v3828
    %4052 = vmatpush1.msra.mxu0 %v3827
    %4053 = vmatprep.subr.mxu0 %v3832
    %4054 = vmatpush1.msra.mxu0 %v3831
    %4055 = vmatprep.subr.mxu0 %v3836
    %4056 = vmatpush1.msra.mxu0 %v3835
    %4057 = vmatprep.subr.mxu0 %v3840
    %4058 = vmatpush1.msra.mxu0 %v3839
    %4059 = vmatprep.subr.mxu0 %v3844
    %4060 = vmatpush1.msra.mxu0 %v3843
    %4061 = vmatprep.subr.mxu0 %v3848
    %4062 = vmatpush1.msra.mxu0 %v3847
    %4063 = vmatprep.subr.mxu0 %v3852
    %4064 = vmatpush1.msra.mxu0 %v3851
    %4065 = vmatprep.subr.mxu0 %v3856
    %4066 = vmatpush1.msra.mxu0 %v3855
    %4067 = vmatprep.subr.mxu0 %v3860
    %4068 = vmatpush1.msra.mxu0 %v3859
    %4069 = vmatprep.subr.mxu0 %v3964
    %4070 = vmatpush1.msra.mxu0 %v3961
    %4071 = vmatprep.subr.mxu0 0.0
    %4072 = vmatpush1.msra.mxu0 0.0
    %4073 = vmatprep.subr.mxu0 0.0
    %4074 = vmatpush1.msra.mxu0 0.0
    %4075 = vmatprep.subr.mxu0 0.0
    %4076 = vmatpush1.msra.mxu0 0.0
    %4077 = vmatprep.subr.mxu0 0.0
    %4078 = vmatpush1.msra.mxu0 0.0
    %4079 = vmatprep.subr.mxu0 0.0
    %4080 = vmatpush1.msra.mxu0 0.0
    %4081 = vmatprep.subr.mxu0 0.0
    %4082 = vmatpush1.msra.mxu0 0.0
    %4083 = vmatprep.subr.mxu0 0.0
    %4084 = vmatpush1.msra.mxu0 0.0
    %4085 = vmatprep.subr.mxu0 0.0
    %4086 = vmatpush1.msra.mxu0 0.0
    %4087 = vmatprep.subr.mxu0 0.0
    %4088 = vmatpush1.msra.mxu0 0.0
    %4089 = vmatprep.subr.mxu0 0.0
    %4090 = vmatpush1.msra.mxu0 0.0
    %4091 = vmatprep.subr.mxu0 0.0
    %4092 = vmatpush1.msra.mxu0 0.0
    %4093 = vmatprep.subr.mxu0 0.0
    %4094 = vmatpush1.msra.mxu0 0.0
    %4095 = vmatprep.subr.mxu0 0.0
    %4096 = vmatpush1.msra.mxu0 0.0
    %4097 = vmatprep.subr.mxu0 0.0
    %4098 = vmatpush1.msra.mxu0 0.0
    %4099 = vmatprep.subr.mxu0 0.0
    %4100 = vmatpush1.msra.mxu0 0.0
    %4101 = vmatprep.mubr.f32.mxu0 %v3952
    %4102 = vmatmul.mubr.f32.gmra.mrb[0].mxu0 %v3795
    %v4103 = vpop.f32.mrb[0].mxu0
    %v4104 = vadd.f32 %v3942, %v4103
    %v4105 = vpop.f32.mrb[0].mxu0
    %v4106 = vadd.f32 %v3946, %v4105
    %4107 = vdwg.mxu0
    %4108 = vmatprep.subr.mxu0 %v3866
    %4109 = vmatpush1.msra.mxu0 %v3865
    %4110 = vmatprep.subr.mxu0 %v3870
    %4111 = vmatpush1.msra.mxu0 %v3869
    %4112 = vmatprep.subr.mxu0 %v3874
    %4113 = vmatpush1.msra.mxu0 %v3873
    %4114 = vmatprep.subr.mxu0 %v3878
    %4115 = vmatpush1.msra.mxu0 %v3877
    %4116 = vmatprep.subr.mxu0 %v3882
    %4117 = vmatpush1.msra.mxu0 %v3881
    %4118 = vmatprep.subr.mxu0 %v3886
    %4119 = vmatpush1.msra.mxu0 %v3885
    %4120 = vmatprep.subr.mxu0 %v3890
    %4121 = vmatpush1.msra.mxu0 %v3889
    %4122 = vmatprep.subr.mxu0 %v3894
    %4123 = vmatpush1.msra.mxu0 %v3893
    %4124 = vmatprep.subr.mxu0 %v3898
    %4125 = vmatpush1.msra.mxu0 %v3897
    %4126 = vmatprep.subr.mxu0 %v3902
    %4127 = vmatpush1.msra.mxu0 %v3901
    %4128 = vmatprep.subr.mxu0 %v3906
    %4129 = vmatpush1.msra.mxu0 %v3905
    %4130 = vmatprep.subr.mxu0 %v3910
    %4131 = vmatpush1.msra.mxu0 %v3909
    %4132 = vmatprep.subr.mxu0 %v3914
    %4133 = vmatpush1.msra.mxu0 %v3913
    %4134 = vmatprep.subr.mxu0 %v3918
    %4135 = vmatpush1.msra.mxu0 %v3917
    %4136 = vmatprep.subr.mxu0 %v3922
    %4137 = vmatpush1.msra.mxu0 %v3921
    %4138 = vmatprep.subr.mxu0 %v3926
    %4139 = vmatpush1.msra.mxu0 %v3925
    %4140 = vmatprep.subr.mxu0 0.0
    %4141 = vmatpush1.msra.mxu0 0.0
    %4142 = vmatprep.subr.mxu0 0.0
    %4143 = vmatpush1.msra.mxu0 0.0
    %4144 = vmatprep.subr.mxu0 0.0
    %4145 = vmatpush1.msra.mxu0 0.0
    %4146 = vmatprep.subr.mxu0 0.0
    %4147 = vmatpush1.msra.mxu0 0.0
    %4148 = vmatprep.subr.mxu0 0.0
    %4149 = vmatpush1.msra.mxu0 0.0
    %4150 = vmatprep.subr.mxu0 0.0
    %4151 = vmatpush1.msra.mxu0 0.0
    %4152 = vmatprep.subr.mxu0 0.0
    %4153 = vmatpush1.msra.mxu0 0.0
    %4154 = vmatprep.subr.mxu0 0.0
    %4155 = vmatpush1.msra.mxu0 0.0
    %4156 = vmatprep.subr.mxu0 0.0
    %4157 = vmatpush1.msra.mxu0 0.0
    %4158 = vmatprep.subr.mxu0 0.0
    %4159 = vmatpush1.msra.mxu0 0.0
    %4160 = vmatprep.subr.mxu0 0.0
    %4161 = vmatpush1.msra.mxu0 0.0
    %4162 = vmatprep.subr.mxu0 0.0
    %4163 = vmatpush1.msra.mxu0 0.0
    %4164 = vmatprep.subr.mxu0 0.0
    %4165 = vmatpush1.msra.mxu0 0.0
    %4166 = vmatprep.subr.mxu0 0.0
    %4167 = vmatpush1.msra.mxu0 0.0
    %4168 = vmatprep.subr.mxu0 0.0
    %4169 = vmatpush1.msra.mxu0 0.0
    %4170 = vmatprep.subr.mxu0 0.0
    %4171 = vmatpush1.msra.mxu0 0.0
    %4172 = vmatprep.mubr.f32.mxu0 0.0
    %4173 = vmatmul.mubr.f32.gmra.mrb[0].mxu0 0.0
    %v4174 = vpop.f32.mrb[0].mxu0
    %v4175 = vadd.f32 0.0, %v4174
    %v4176 = vpop.f32.mrb[0].mxu0
    %v4177 = vadd.f32 0.0, %v4176
    %4178 = vdwg.mxu0
    %4179 = vmatprep.subr.mxu0 %v3868
    %4180 = vmatpush1.msra.mxu0 %v3867
    %4181 = vmatprep.subr.mxu0 %v3872
    %4182 = vmatpush1.msra.mxu0 %v3871
    %4183 = vmatprep.subr.mxu0 %v3876
    %4184 = vmatpush1.msra.mxu0 %v3875
    %4185 = vmatprep.subr.mxu0 %v3880
    %4186 = vmatpush1.msra.mxu0 %v3879
    %4187 = vmatprep.subr.mxu0 %v3884
    %4188 = vmatpush1.msra.mxu0 %v3883
    %4189 = vmatprep.subr.mxu0 %v3888
    %4190 = vmatpush1.msra.mxu0 %v3887
    %4191 = vmatprep.subr.mxu0 %v3892
    %4192 = vmatpush1.msra.mxu0 %v3891
    %4193 = vmatprep.subr.mxu0 %v3896
    %4194 = vmatpush1.msra.mxu0 %v3895
    %4195 = vmatprep.subr.mxu0 %v3900
    %4196 = vmatpush1.msra.mxu0 %v3899
    %4197 = vmatprep.subr.mxu0 %v3904
    %4198 = vmatpush1.msra.mxu0 %v3903
    %4199 = vmatprep.subr.mxu0 %v3908
    %4200 = vmatpush1.msra.mxu0 %v3907
    %4201 = vmatprep.subr.mxu0 %v3912
    %4202 = vmatpush1.msra.mxu0 %v3911
    %4203 = vmatprep.subr.mxu0 %v3916
    %4204 = vmatpush1.msra.mxu0 %v3915
    %4205 = vmatprep.subr.mxu0 %v3920
    %4206 = vmatpush1.msra.mxu0 %v3919
    %4207 = vmatprep.subr.mxu0 %v3924
    %4208 = vmatpush1.msra.mxu0 %v3923
    %4209 = vmatprep.subr.mxu0 %v3928
    %4210 = vmatpush1.msra.mxu0 %v3927
    %4211 = vmatprep.subr.mxu0 0.0
    %4212 = vmatpush1.msra.mxu0 0.0
    %4213 = vmatprep.subr.mxu0 0.0
    %4214 = vmatpush1.msra.mxu0 0.0
    %4215 = vmatprep.subr.mxu0 0.0
    %4216 = vmatpush1.msra.mxu0 0.0
    %4217 = vmatprep.subr.mxu0 0.0
    %4218 = vmatpush1.msra.mxu0 0.0
    %4219 = vmatprep.subr.mxu0 0.0
    %4220 = vmatpush1.msra.mxu0 0.0
    %4221 = vmatprep.subr.mxu0 0.0
    %4222 = vmatpush1.msra.mxu0 0.0
    %4223 = vmatprep.subr.mxu0 0.0
    %4224 = vmatpush1.msra.mxu0 0.0
    %4225 = vmatprep.subr.mxu0 0.0
    %4226 = vmatpush1.msra.mxu0 0.0
    %4227 = vmatprep.subr.mxu0 0.0
    %4228 = vmatpush1.msra.mxu0 0.0
    %4229 = vmatprep.subr.mxu0 0.0
    %4230 = vmatpush1.msra.mxu0 0.0
    %4231 = vmatprep.subr.mxu0 0.0
    %4232 = vmatpush1.msra.mxu0 0.0
    %4233 = vmatprep.subr.mxu0 0.0
    %4234 = vmatpush1.msra.mxu0 0.0
    %4235 = vmatprep.subr.mxu0 0.0
    %4236 = vmatpush1.msra.mxu0 0.0
    %4237 = vmatprep.subr.mxu0 0.0
    %4238 = vmatpush1.msra.mxu0 0.0
    %4239 = vmatprep.subr.mxu0 0.0
    %4240 = vmatpush1.msra.mxu0 0.0
    %4241 = vmatprep.subr.mxu0 0.0
    %4242 = vmatpush1.msra.mxu0 0.0
    %4243 = vmatprep.mubr.f32.mxu0 0.0
    %4244 = vmatmul.mubr.f32.gmra.mrb[0].mxu0 0.0
    %v4245 = vpop.f32.mrb[0].mxu0
    %v4246 = vadd.f32 0.0, %v4245
    %v4247 = vpop.f32.mrb[0].mxu0
    %v4248 = vadd.f32 0.0, %v4247
    %4249 = vdwg.mxu0
    %v4250 = vadd.f32 %v4033, %v4175
    %v4251 = vadd.f32 %v4035, %v4177
    %v4252 = vadd.f32 %v4104, %v4246
    %v4253 = vadd.f32 %v4106, %v4248
    %v4254 = vxor.u32 %v4250, 2147483648
    %v4255 = vmul.f32 %v4254, 1.442695
    %v4256 = vpow.pop %v4255
    %v4257 = vadd.f32 %v4256, 1.0
    %v4258 = vrcp.pop %v4257
    %v4259 = vmul.f32 1.0, %v4258
    %v4260 = vxor.u32 %v4251, 2147483648
    %v4261 = vmul.f32 %v4260, 1.442695
    %v4262 = vpow.pop %v4261
    %v4263 = vadd.f32 %v4262, 1.0
    %v4264 = vrcp.pop %v4263
    %v4265 = vmul.f32 1.0, %v4264
    %v4266 = vtanh.pop %v4252
    %v4267 = vxor.u32 %v4253, 2147483648
    %v4268 = vmul.f32 %v4267, 1.442695
    %v4269 = vpow.pop %v4268
    %v4270 = vadd.f32 %v4269, 1.0
    %v4271 = vrcp.pop %v4270
    %v4272 = vmul.f32 1.0, %v4271
    %v4273 = vmul.f32 %v4265, 0.0
    %v4274 = vmul.f32 %v4259, %v4266
    %v4275 = vadd.f32 %v4273, %v4274
    %v4276 = vtanh.pop %v4275
    %v4277 = vmul.f32 %v4272, %v4276
    %4278 = vst [vmem:[#allocation2] sm:$0x1] %v4277
    %4279 = vmatprep.subr.mxu0 %v3866
    %4280 = vmatpush1.msra.mxu0 %v3865
    %4281 = vmatprep.subr.mxu0 %v3870
    %4282 = vmatpush1.msra.mxu0 %v3869
    %4283 = vmatprep.subr.mxu0 %v3874
    %4284 = vmatpush1.msra.mxu0 %v3873
    %4285 = vmatprep.subr.mxu0 %v3878
    %4286 = vmatpush1.msra.mxu0 %v3877
    %4287 = vmatprep.subr.mxu0 %v3882
    %4288 = vmatpush1.msra.mxu0 %v3881
    %4289 = vmatprep.subr.mxu0 %v3886
    %4290 = vmatpush1.msra.mxu0 %v3885
    %4291 = vmatprep.subr.mxu0 %v3890
    %4292 = vmatpush1.msra.mxu0 %v3889
    %4293 = vmatprep.subr.mxu0 %v3894
    %4294 = vmatpush1.msra.mxu0 %v3893
    %4295 = vmatprep.subr.mxu0 %v3898
    %4296 = vmatpush1.msra.mxu0 %v3897
    %4297 = vmatprep.subr.mxu0 %v3902
    %4298 = vmatpush1.msra.mxu0 %v3901
    %4299 = vmatprep.subr.mxu0 %v3906
    %4300 = vmatpush1.msra.mxu0 %v3905
    %4301 = vmatprep.subr.mxu0 %v3910
    %4302 = vmatpush1.msra.mxu0 %v3909
    %4303 = vmatprep.subr.mxu0 %v3914
    %4304 = vmatpush1.msra.mxu0 %v3913
    %4305 = vmatprep.subr.mxu0 %v3918
    %4306 = vmatpush1.msra.mxu0 %v3917
    %4307 = vmatprep.subr.mxu0 %v3922
    %4308 = vmatpush1.msra.mxu0 %v3921
    %4309 = vmatprep.subr.mxu0 %v3926
    %4310 = vmatpush1.msra.mxu0 %v3925
    %4311 = vmatprep.subr.mxu0 0.0
    %4312 = vmatpush1.msra.mxu0 0.0
    %4313 = vmatprep.subr.mxu0 0.0
    %4314 = vmatpush1.msra.mxu0 0.0
    %4315 = vmatprep.subr.mxu0 0.0
    %4316 = vmatpush1.msra.mxu0 0.0
    %4317 = vmatprep.subr.mxu0 0.0
    %4318 = vmatpush1.msra.mxu0 0.0
    %4319 = vmatprep.subr.mxu0 0.0
    %4320 = vmatpush1.msra.mxu0 0.0
    %4321 = vmatprep.subr.mxu0 0.0
    %4322 = vmatpush1.msra.mxu0 0.0
    %4323 = vmatprep.subr.mxu0 0.0
    %4324 = vmatpush1.msra.mxu0 0.0
    %4325 = vmatprep.subr.mxu0 0.0
    %4326 = vmatpush1.msra.mxu0 0.0
    %4327 = vmatprep.subr.mxu0 0.0
    %4328 = vmatpush1.msra.mxu0 0.0
    %4329 = vmatprep.subr.mxu0 0.0
    %4330 = vmatpush1.msra.mxu0 0.0
    %4331 = vmatprep.subr.mxu0 0.0
    %4332 = vmatpush1.msra.mxu0 0.0
    %4333 = vmatprep.subr.mxu0 0.0
    %4334 = vmatpush1.msra.mxu0 0.0
    %4335 = vmatprep.subr.mxu0 0.0
    %4336 = vmatpush1.msra.mxu0 0.0
    %4337 = vmatprep.subr.mxu0 0.0
    %4338 = vmatpush1.msra.mxu0 0.0
    %4339 = vmatprep.subr.mxu0 0.0
    %4340 = vmatpush1.msra.mxu0 0.0
    %4341 = vmatprep.subr.mxu0 0.0
    %4342 = vmatpush1.msra.mxu0 0.0
    %4343 = vmatprep.mubr.f32.mxu0 0.0
    %4344 = vmatmul.mubr.f32.gmra.mrb[0].mxu0 %v4277
    %v4345 = vpop.f32.mrb[0].mxu0
    %v4346 = vadd.f32 0.0, %v4345
    %v4347 = vpop.f32.mrb[0].mxu0
    %v4348 = vadd.f32 0.0, %v4347
    %4349 = vdwg.mxu0
    %4350 = vmatprep.subr.mxu0 %v3868
    %4351 = vmatpush1.msra.mxu0 %v3867
    %4352 = vmatprep.subr.mxu0 %v3872
    %4353 = vmatpush1.msra.mxu0 %v3871
    %4354 = vmatprep.subr.mxu0 %v3876
    %4355 = vmatpush1.msra.mxu0 %v3875
    %4356 = vmatprep.subr.mxu0 %v3880
    %4357 = vmatpush1.msra.mxu0 %v3879
    %4358 = vmatprep.subr.mxu0 %v3884
    %4359 = vmatpush1.msra.mxu0 %v3883
    %4360 = vmatprep.subr.mxu0 %v3888
    %4361 = vmatpush1.msra.mxu0 %v3887
    %4362 = vmatprep.subr.mxu0 %v3892
    %4363 = vmatpush1.msra.mxu0 %v3891
    %4364 = vmatprep.subr.mxu0 %v3896
    %4365 = vmatpush1.msra.mxu0 %v3895
    %4366 = vmatprep.subr.mxu0 %v3900
    %4367 = vmatpush1.msra.mxu0 %v3899
    %4368 = vmatprep.subr.mxu0 %v3904
    %4369 = vmatpush1.msra.mxu0 %v3903
    %4370 = vmatprep.subr.mxu0 %v3908
    %4371 = vmatpush1.msra.mxu0 %v3907
    %4372 = vmatprep.subr.mxu0 %v3912
    %4373 = vmatpush1.msra.mxu0 %v3911
    %4374 = vmatprep.subr.mxu0 %v3916
    %4375 = vmatpush1.msra.mxu0 %v3915
    %4376 = vmatprep.subr.mxu0 %v3920
    %4377 = vmatpush1.msra.mxu0 %v3919
    %4378 = vmatprep.subr.mxu0 %v3924
    %4379 = vmatpush1.msra.mxu0 %v3923
    %4380 = vmatprep.subr.mxu0 %v3928
    %4381 = vmatpush1.msra.mxu0 %v3927
    %4382 = vmatprep.subr.mxu0 0.0
    %4383 = vmatpush1.msra.mxu0 0.0
    %4384 = vmatprep.subr.mxu0 0.0
    %4385 = vmatpush1.msra.mxu0 0.0
    %4386 = vmatprep.subr.mxu0 0.0
    %4387 = vmatpush1.msra.mxu0 0.0
    %4388 = vmatprep.subr.mxu0 0.0
    %4389 = vmatpush1.msra.mxu0 0.0
    %4390 = vmatprep.subr.mxu0 0.0
    %4391 = vmatpush1.msra.mxu0 0.0
    %4392 = vmatprep.subr.mxu0 0.0
    %4393 = vmatpush1.msra.mxu0 0.0
    %4394 = vmatprep.subr.mxu0 0.0
    %4395 = vmatpush1.msra.mxu0 0.0
    %4396 = vmatprep.subr.mxu0 0.0
    %4397 = vmatpush1.msra.mxu0 0.0
    %4398 = vmatprep.subr.mxu0 0.0
    %4399 = vmatpush1.msra.mxu0 0.0
    %4400 = vmatprep.subr.mxu0 0.0
    %4401 = vmatpush1.msra.mxu0 0.0
    %4402 = vmatprep.subr.mxu0 0.0
    %4403 = vmatpush1.msra.mxu0 0.0
    %4404 = vmatprep.subr.mxu0 0.0
    %4405 = vmatpush1.msra.mxu0 0.0
    %4406 = vmatprep.subr.mxu0 0.0
    %4407 = vmatpush1.msra.mxu0 0.0
    %4408 = vmatprep.subr.mxu0 0.0
    %4409 = vmatpush1.msra.mxu0 0.0
    %4410 = vmatprep.subr.mxu0 0.0
    %4411 = vmatpush1.msra.mxu0 0.0
    %4412 = vmatprep.subr.mxu0 0.0
    %4413 = vmatpush1.msra.mxu0 0.0
    %4414 = vmatprep.mubr.f32.mxu0 0.0
    %4415 = vmatmul.mubr.f32.gmra.mrb[0].mxu0 %v4277
    %v4416 = vpop.f32.mrb[0].mxu0
    %v4417 = vadd.f32 0.0, %v4416
    %v4418 = vpop.f32.mrb[0].mxu0
    %v4419 = vadd.f32 0.0, %v4418
    %4420 = vdwg.mxu0
    %v4425 = vrot.slane %v4346, 7
    %v4426 = vrot.slane %v4348, 7
    %v4427 = vrot.slane %v4417, 7
    %v4428 = vrot.slane %v4419, 7
    %v4433 = vadd.f32 %v4033, %v4425
    %v4434 = vadd.f32 %v4035, %v4426
    %v4435 = vadd.f32 %v4104, %v4427
    %v4436 = vadd.f32 %v4106, %v4428
    %v4437 = vxor.u32 %v4433, 2147483648
    %v4438 = vmul.f32 %v4437, 1.442695
    %v4439 = vpow.pop %v4438
    %v4440 = vadd.f32 %v4439, 1.0
    %v4441 = vrcp.pop %v4440
    %v4442 = vmul.f32 1.0, %v4441
    %v4443 = vxor.u32 %v4434, 2147483648
    %v4444 = vmul.f32 %v4443, 1.442695
    %v4445 = vpow.pop %v4444
    %v4446 = vadd.f32 %v4445, 1.0
    %v4447 = vrcp.pop %v4446
    %v4448 = vmul.f32 1.0, %v4447
    %v4449 = vtanh.pop %v4435
    %v4450 = vxor.u32 %v4436, 2147483648
    %v4451 = vmul.f32 %v4450, 1.442695
    %v4452 = vpow.pop %v4451
    %v4453 = vadd.f32 %v4452, 1.0
    %v4454 = vrcp.pop %v4453
    %v4455 = vmul.f32 1.0, %v4454
    %v4457 = vrot.slane %v4275, 7
    %v4459 = vmul.f32 %v4448, %v4457
    %v4460 = vmul.f32 %v4442, %v4449
    %v4461 = vadd.f32 %v4459, %v4460
    %v4462 = vtanh.pop %v4461
    %v4463 = vmul.f32 %v4455, %v4462
    %4464 = vst [vmem:[#allocation2] sm:$0x2] %v4463
    %v4466 = vrot.slane %v4463, 1
    %4468 = vmatprep.subr.mxu0 %v3866
    %4469 = vmatpush1.msra.mxu0 %v3865
    %4470 = vmatprep.subr.mxu0 %v3870
    %4471 = vmatpush1.msra.mxu0 %v3869
    %4472 = vmatprep.subr.mxu0 %v3874
    %4473 = vmatpush1.msra.mxu0 %v3873
    %4474 = vmatprep.subr.mxu0 %v3878
    %4475 = vmatpush1.msra.mxu0 %v3877
    %4476 = vmatprep.subr.mxu0 %v3882
    %4477 = vmatpush1.msra.mxu0 %v3881
    %4478 = vmatprep.subr.mxu0 %v3886
    %4479 = vmatpush1.msra.mxu0 %v3885
    %4480 = vmatprep.subr.mxu0 %v3890
    %4481 = vmatpush1.msra.mxu0 %v3889
    %4482 = vmatprep.subr.mxu0 %v3894
    %4483 = vmatpush1.msra.mxu0 %v3893
    %4484 = vmatprep.subr.mxu0 %v3898
    %4485 = vmatpush1.msra.mxu0 %v3897
    %4486 = vmatprep.subr.mxu0 %v3902
    %4487 = vmatpush1.msra.mxu0 %v3901
    %4488 = vmatprep.subr.mxu0 %v3906
    %4489 = vmatpush1.msra.mxu0 %v3905
    %4490 = vmatprep.subr.mxu0 %v3910
    %4491 = vmatpush1.msra.mxu0 %v3909
    %4492 = vmatprep.subr.mxu0 %v3914
    %4493 = vmatpush1.msra.mxu0 %v3913
    %4494 = vmatprep.subr.mxu0 %v3918
    %4495 = vmatpush1.msra.mxu0 %v3917
    %4496 = vmatprep.subr.mxu0 %v3922
    %4497 = vmatpush1.msra.mxu0 %v3921
    %4498 = vmatprep.subr.mxu0 %v3926
    %4499 = vmatpush1.msra.mxu0 %v3925
    %4500 = vmatprep.subr.mxu0 0.0
    %4501 = vmatpush1.msra.mxu0 0.0
    %4502 = vmatprep.subr.mxu0 0.0
    %4503 = vmatpush1.msra.mxu0 0.0
    %4504 = vmatprep.subr.mxu0 0.0
    %4505 = vmatpush1.msra.mxu0 0.0
    %4506 = vmatprep.subr.mxu0 0.0
    %4507 = vmatpush1.msra.mxu0 0.0
    %4508 = vmatprep.subr.mxu0 0.0
    %4509 = vmatpush1.msra.mxu0 0.0
    %4510 = vmatprep.subr.mxu0 0.0
    %4511 = vmatpush1.msra.mxu0 0.0
    %4512 = vmatprep.subr.mxu0 0.0
    %4513 = vmatpush1.msra.mxu0 0.0
    %4514 = vmatprep.subr.mxu0 0.0
    %4515 = vmatpush1.msra.mxu0 0.0
    %4516 = vmatprep.subr.mxu0 0.0
    %4517 = vmatpush1.msra.mxu0 0.0
    %4518 = vmatprep.subr.mxu0 0.0
    %4519 = vmatpush1.msra.mxu0 0.0
    %4520 = vmatprep.subr.mxu0 0.0
    %4521 = vmatpush1.msra.mxu0 0.0
    %4522 = vmatprep.subr.mxu0 0.0
    %4523 = vmatpush1.msra.mxu0 0.0
    %4524 = vmatprep.subr.mxu0 0.0
    %4525 = vmatpush1.msra.mxu0 0.0
    %4526 = vmatprep.subr.mxu0 0.0
    %4527 = vmatpush1.msra.mxu0 0.0
    %4528 = vmatprep.subr.mxu0 0.0
    %4529 = vmatpush1.msra.mxu0 0.0
    %4530 = vmatprep.subr.mxu0 0.0
    %4531 = vmatpush1.msra.mxu0 0.0
    %4532 = vmatprep.mubr.f32.mxu0 0.0
    %4533 = vmatmul.mubr.f32.gmra.mrb[0].mxu0 %v4466
    %v4534 = vpop.f32.mrb[0].mxu0
    %v4535 = vadd.f32 0.0, %v4534
    %v4536 = vpop.f32.mrb[0].mxu0
    %v4537 = vadd.f32 0.0, %v4536
    %4538 = vdwg.mxu0
    %4539 = vmatprep.subr.mxu0 %v3868
    %4540 = vmatpush1.msra.mxu0 %v3867
    %4541 = vmatprep.subr.mxu0 %v3872
    %4542 = vmatpush1.msra.mxu0 %v3871
    %4543 = vmatprep.subr.mxu0 %v3876
    %4544 = vmatpush1.msra.mxu0 %v3875
    %4545 = vmatprep.subr.mxu0 %v3880
    %4546 = vmatpush1.msra.mxu0 %v3879
    %4547 = vmatprep.subr.mxu0 %v3884
    %4548 = vmatpush1.msra.mxu0 %v3883
    %4549 = vmatprep.subr.mxu0 %v3888
    %4550 = vmatpush1.msra.mxu0 %v3887
    %4551 = vmatprep.subr.mxu0 %v3892
    %4552 = vmatpush1.msra.mxu0 %v3891
    %4553 = vmatprep.subr.mxu0 %v3896
    %4554 = vmatpush1.msra.mxu0 %v3895
    %4555 = vmatprep.subr.mxu0 %v3900
    %4556 = vmatpush1.msra.mxu0 %v3899
    %4557 = vmatprep.subr.mxu0 %v3904
    %4558 = vmatpush1.msra.mxu0 %v3903
    %4559 = vmatprep.subr.mxu0 %v3908
    %4560 = vmatpush1.msra.mxu0 %v3907
    %4561 = vmatprep.subr.mxu0 %v3912
    %4562 = vmatpush1.msra.mxu0 %v3911
    %4563 = vmatprep.subr.mxu0 %v3916
    %4564 = vmatpush1.msra.mxu0 %v3915
    %4565 = vmatprep.subr.mxu0 %v3920
    %4566 = vmatpush1.msra.mxu0 %v3919
    %4567 = vmatprep.subr.mxu0 %v3924
    %4568 = vmatpush1.msra.mxu0 %v3923
    %4569 = vmatprep.subr.mxu0 %v3928
    %4570 = vmatpush1.msra.mxu0 %v3927
    %4571 = vmatprep.subr.mxu0 0.0
    %4572 = vmatpush1.msra.mxu0 0.0
    %4573 = vmatprep.subr.mxu0 0.0
    %4574 = vmatpush1.msra.mxu0 0.0
    %4575 = vmatprep.subr.mxu0 0.0
    %4576 = vmatpush1.msra.mxu0 0.0
    %4577 = vmatprep.subr.mxu0 0.0
    %4578 = vmatpush1.msra.mxu0 0.0
    %4579 = vmatprep.subr.mxu0 0.0
    %4580 = vmatpush1.msra.mxu0 0.0
    %4581 = vmatprep.subr.mxu0 0.0
    %4582 = vmatpush1.msra.mxu0 0.0
    %4583 = vmatprep.subr.mxu0 0.0
    %4584 = vmatpush1.msra.mxu0 0.0
    %4585 = vmatprep.subr.mxu0 0.0
    %4586 = vmatpush1.msra.mxu0 0.0
    %4587 = vmatprep.subr.mxu0 0.0
    %4588 = vmatpush1.msra.mxu0 0.0
    %4589 = vmatprep.subr.mxu0 0.0
    %4590 = vmatpush1.msra.mxu0 0.0
    %4591 = vmatprep.subr.mxu0 0.0
    %4592 = vmatpush1.msra.mxu0 0.0
    %4593 = vmatprep.subr.mxu0 0.0
    %4594 = vmatpush1.msra.mxu0 0.0
    %4595 = vmatprep.subr.mxu0 0.0
    %4596 = vmatpush1.msra.mxu0 0.0
    %4597 = vmatprep.subr.mxu0 0.0
    %4598 = vmatpush1.msra.mxu0 0.0
    %4599 = vmatprep.subr.mxu0 0.0
    %4600 = vmatpush1.msra.mxu0 0.0
    %4601 = vmatprep.subr.mxu0 0.0
    %4602 = vmatpush1.msra.mxu0 0.0
    %4603 = vmatprep.mubr.f32.mxu0 0.0
    %4604 = vmatmul.mubr.f32.gmra.mrb[0].mxu0 %v4466
    %v4605 = vpop.f32.mrb[0].mxu0
    %v4606 = vadd.f32 0.0, %v4605
    %v4607 = vpop.f32.mrb[0].mxu0
    %v4608 = vadd.f32 0.0, %v4607
    %4609 = vdwg.mxu0
    %v4614 = vrot.slane %v4535, 6
    %v4615 = vrot.slane %v4537, 6
    %v4616 = vrot.slane %v4606, 6
    %v4617 = vrot.slane %v4608, 6
    %v4622 = vadd.f32 %v4033, %v4614
    %v4623 = vadd.f32 %v4035, %v4615
    %v4624 = vadd.f32 %v4104, %v4616
    %v4625 = vadd.f32 %v4106, %v4617
    %v4626 = vxor.u32 %v4622, 2147483648
    %v4627 = vmul.f32 %v4626, 1.442695
    %v4628 = vpow.pop %v4627
    %v4629 = vadd.f32 %v4628, 1.0
    %v4630 = vrcp.pop %v4629
    %v4631 = vmul.f32 1.0, %v4630
    %v4632 = vxor.u32 %v4623, 2147483648
    %v4633 = vmul.f32 %v4632, 1.442695
    %v4634 = vpow.pop %v4633
    %v4635 = vadd.f32 %v4634, 1.0
    %v4636 = vrcp.pop %v4635
    %v4637 = vmul.f32 1.0, %v4636
    %v4638 = vtanh.pop %v4624
    %v4639 = vxor.u32 %v4625, 2147483648
    %v4640 = vmul.f32 %v4639, 1.442695
    %v4641 = vpow.pop %v4640
    %v4642 = vadd.f32 %v4641, 1.0
    %v4643 = vrcp.pop %v4642
    %v4644 = vmul.f32 1.0, %v4643
    %v4646 = vrot.slane %v4461, 7
    %v4648 = vmul.f32 %v4637, %v4646
    %v4649 = vmul.f32 %v4631, %v4638
    %v4650 = vadd.f32 %v4648, %v4649
    %v4651 = vtanh.pop %v4650
    %v4652 = vmul.f32 %v4644, %v4651
    %4653 = vst [vmem:[#allocation2] sm:$0x4] %v4652
    %v4655 = vrot.slane %v4652, 2
    %4657 = vmatprep.subr.mxu0 %v3866
    %4658 = vmatpush1.msra.mxu0 %v3865
    %4659 = vmatprep.subr.mxu0 %v3870
    %4660 = vmatpush1.msra.mxu0 %v3869
    %4661 = vmatprep.subr.mxu0 %v3874
    %4662 = vmatpush1.msra.mxu0 %v3873
    %4663 = vmatprep.subr.mxu0 %v3878
    %4664 = vmatpush1.msra.mxu0 %v3877
    %4665 = vmatprep.subr.mxu0 %v3882
    %4666 = vmatpush1.msra.mxu0 %v3881
    %4667 = vmatprep.subr.mxu0 %v3886
    %4668 = vmatpush1.msra.mxu0 %v3885
    %4669 = vmatprep.subr.mxu0 %v3890
    %4670 = vmatpush1.msra.mxu0 %v3889
    %4671 = vmatprep.subr.mxu0 %v3894
    %4672 = vmatpush1.msra.mxu0 %v3893
    %4673 = vmatprep.subr.mxu0 %v3898
    %4674 = vmatpush1.msra.mxu0 %v3897
    %4675 = vmatprep.subr.mxu0 %v3902
    %4676 = vmatpush1.msra.mxu0 %v3901
    %4677 = vmatprep.subr.mxu0 %v3906
    %4678 = vmatpush1.msra.mxu0 %v3905
    %4679 = vmatprep.subr.mxu0 %v3910
    %4680 = vmatpush1.msra.mxu0 %v3909
    %4681 = vmatprep.subr.mxu0 %v3914
    %4682 = vmatpush1.msra.mxu0 %v3913
    %4683 = vmatprep.subr.mxu0 %v3918
    %4684 = vmatpush1.msra.mxu0 %v3917
    %4685 = vmatprep.subr.mxu0 %v3922
    %4686 = vmatpush1.msra.mxu0 %v3921
    %4687 = vmatprep.subr.mxu0 %v3926
    %4688 = vmatpush1.msra.mxu0 %v3925
    %4689 = vmatprep.subr.mxu0 0.0
    %4690 = vmatpush1.msra.mxu0 0.0
    %4691 = vmatprep.subr.mxu0 0.0
    %4692 = vmatpush1.msra.mxu0 0.0
    %4693 = vmatprep.subr.mxu0 0.0
    %4694 = vmatpush1.msra.mxu0 0.0
    %4695 = vmatprep.subr.mxu0 0.0
    %4696 = vmatpush1.msra.mxu0 0.0
    %4697 = vmatprep.subr.mxu0 0.0
    %4698 = vmatpush1.msra.mxu0 0.0
    %4699 = vmatprep.subr.mxu0 0.0
    %4700 = vmatpush1.msra.mxu0 0.0
    %4701 = vmatprep.subr.mxu0 0.0
    %4702 = vmatpush1.msra.mxu0 0.0
    %4703 = vmatprep.subr.mxu0 0.0
    %4704 = vmatpush1.msra.mxu0 0.0
    %4705 = vmatprep.subr.mxu0 0.0
    %4706 = vmatpush1.msra.mxu0 0.0
    %4707 = vmatprep.subr.mxu0 0.0
    %4708 = vmatpush1.msra.mxu0 0.0
    %4709 = vmatprep.subr.mxu0 0.0
    %4710 = vmatpush1.msra.mxu0 0.0
    %4711 = vmatprep.subr.mxu0 0.0
    %4712 = vmatpush1.msra.mxu0 0.0
    %4713 = vmatprep.subr.mxu0 0.0
    %4714 = vmatpush1.msra.mxu0 0.0
    %4715 = vmatprep.subr.mxu0 0.0
    %4716 = vmatpush1.msra.mxu0 0.0
    %4717 = vmatprep.subr.mxu0 0.0
    %4718 = vmatpush1.msra.mxu0 0.0
    %4719 = vmatprep.subr.mxu0 0.0
    %4720 = vmatpush1.msra.mxu0 0.0
    %4721 = vmatprep.mubr.f32.mxu0 0.0
    %4722 = vmatmul.mubr.f32.gmra.mrb[0].mxu0 %v4655
    %v4723 = vpop.f32.mrb[0].mxu0
    %v4724 = vadd.f32 0.0, %v4723
    %v4725 = vpop.f32.mrb[0].mxu0
    %v4726 = vadd.f32 0.0, %v4725
    %4727 = vdwg.mxu0
    %4728 = vmatprep.subr.mxu0 %v3868
    %4729 = vmatpush1.msra.mxu0 %v3867
    %4730 = vmatprep.subr.mxu0 %v3872
    %4731 = vmatpush1.msra.mxu0 %v3871
    %4732 = vmatprep.subr.mxu0 %v3876
    %4733 = vmatpush1.msra.mxu0 %v3875
    %4734 = vmatprep.subr.mxu0 %v3880
    %4735 = vmatpush1.msra.mxu0 %v3879
    %4736 = vmatprep.subr.mxu0 %v3884
    %4737 = vmatpush1.msra.mxu0 %v3883
    %4738 = vmatprep.subr.mxu0 %v3888
    %4739 = vmatpush1.msra.mxu0 %v3887
    %4740 = vmatprep.subr.mxu0 %v3892
    %4741 = vmatpush1.msra.mxu0 %v3891
    %4742 = vmatprep.subr.mxu0 %v3896
    %4743 = vmatpush1.msra.mxu0 %v3895
    %4744 = vmatprep.subr.mxu0 %v3900
    %4745 = vmatpush1.msra.mxu0 %v3899
    %4746 = vmatprep.subr.mxu0 %v3904
    %4747 = vmatpush1.msra.mxu0 %v3903
    %4748 = vmatprep.subr.mxu0 %v3908
    %4749 = vmatpush1.msra.mxu0 %v3907
    %4750 = vmatprep.subr.mxu0 %v3912
    %4751 = vmatpush1.msra.mxu0 %v3911
    %4752 = vmatprep.subr.mxu0 %v3916
    %4753 = vmatpush1.msra.mxu0 %v3915
    %4754 = vmatprep.subr.mxu0 %v3920
    %4755 = vmatpush1.msra.mxu0 %v3919
    %4756 = vmatprep.subr.mxu0 %v3924
    %4757 = vmatpush1.msra.mxu0 %v3923
    %4758 = vmatprep.subr.mxu0 %v3928
    %4759 = vmatpush1.msra.mxu0 %v3927
    %4760 = vmatprep.subr.mxu0 0.0
    %4761 = vmatpush1.msra.mxu0 0.0
    %4762 = vmatprep.subr.mxu0 0.0
    %4763 = vmatpush1.msra.mxu0 0.0
    %4764 = vmatprep.subr.mxu0 0.0
    %4765 = vmatpush1.msra.mxu0 0.0
    %4766 = vmatprep.subr.mxu0 0.0
    %4767 = vmatpush1.msra.mxu0 0.0
    %4768 = vmatprep.subr.mxu0 0.0
    %4769 = vmatpush1.msra.mxu0 0.0
    %4770 = vmatprep.subr.mxu0 0.0
    %4771 = vmatpush1.msra.mxu0 0.0
    %4772 = vmatprep.subr.mxu0 0.0
    %4773 = vmatpush1.msra.mxu0 0.0
    %4774 = vmatprep.subr.mxu0 0.0
    %4775 = vmatpush1.msra.mxu0 0.0
    %4776 = vmatprep.subr.mxu0 0.0
    %4777 = vmatpush1.msra.mxu0 0.0
    %4778 = vmatprep.subr.mxu0 0.0
    %4779 = vmatpush1.msra.mxu0 0.0
    %4780 = vmatprep.subr.mxu0 0.0
    %4781 = vmatpush1.msra.mxu0 0.0
    %4782 = vmatprep.subr.mxu0 0.0
    %4783 = vmatpush1.msra.mxu0 0.0
    %4784 = vmatprep.subr.mxu0 0.0
    %4785 = vmatpush1.msra.mxu0 0.0
    %4786 = vmatprep.subr.mxu0 0.0
    %4787 = vmatpush1.msra.mxu0 0.0
    %4788 = vmatprep.subr.mxu0 0.0
    %4789 = vmatpush1.msra.mxu0 0.0
    %4790 = vmatprep.subr.mxu0 0.0
    %4791 = vmatpush1.msra.mxu0 0.0
    %4792 = vmatprep.mubr.f32.mxu0 0.0
    %4793 = vmatmul.mubr.f32.gmra.mrb[0].mxu0 %v4655
    %v4794 = vpop.f32.mrb[0].mxu0
    %v4795 = vadd.f32 0.0, %v4794
    %v4796 = vpop.f32.mrb[0].mxu0
    %v4797 = vadd.f32 0.0, %v4796
    %4798 = vdwg.mxu0
    %v4803 = vrot.slane %v4724, 5
    %v4804 = vrot.slane %v4726, 5
    %v4805 = vrot.slane %v4795, 5
    %v4806 = vrot.slane %v4797, 5
    %v4811 = vadd.f32 %v4033, %v4803
    %v4812 = vadd.f32 %v4035, %v4804
    %v4813 = vadd.f32 %v4104, %v4805
    %v4814 = vadd.f32 %v4106, %v4806
    %v4815 = vxor.u32 %v4811, 2147483648
    %v4816 = vmul.f32 %v4815, 1.442695
    %v4817 = vpow.pop %v4816
    %v4818 = vadd.f32 %v4817, 1.0
    %v4819 = vrcp.pop %v4818
    %v4820 = vmul.f32 1.0, %v4819
    %v4821 = vxor.u32 %v4812, 2147483648
    %v4822 = vmul.f32 %v4821, 1.442695
    %v4823 = vpow.pop %v4822
    %v4824 = vadd.f32 %v4823, 1.0
    %v4825 = vrcp.pop %v4824
    %v4826 = vmul.f32 1.0, %v4825
    %v4827 = vtanh.pop %v4813
    %v4828 = vxor.u32 %v4814, 2147483648
    %v4829 = vmul.f32 %v4828, 1.442695
    %v4830 = vpow.pop %v4829
    %v4831 = vadd.f32 %v4830, 1.0
    %v4832 = vrcp.pop %v4831
    %v4833 = vmul.f32 1.0, %v4832
    %v4835 = vrot.slane %v4650, 7
    %v4837 = vmul.f32 %v4826, %v4835
    %v4838 = vmul.f32 %v4820, %v4827
    %v4839 = vadd.f32 %v4837, %v4838
    %v4840 = vtanh.pop %v4839
    %v4841 = vmul.f32 %v4833, %v4840
    %4842 = vst [vmem:[#allocation2] sm:$0x8] %v4841
    %v4844 = vrot.slane %v4841, 3
    %4846 = vmatprep.subr.mxu0 %v3866
    %4847 = vmatpush1.msra.mxu0 %v3865
    %4848 = vmatprep.subr.mxu0 %v3870
    %4849 = vmatpush1.msra.mxu0 %v3869
    %4850 = vmatprep.subr.mxu0 %v3874
    %4851 = vmatpush1.msra.mxu0 %v3873
    %4852 = vmatprep.subr.mxu0 %v3878
    %4853 = vmatpush1.msra.mxu0 %v3877
    %4854 = vmatprep.subr.mxu0 %v3882
    %4855 = vmatpush1.msra.mxu0 %v3881
    %4856 = vmatprep.subr.mxu0 %v3886
    %4857 = vmatpush1.msra.mxu0 %v3885
    %4858 = vmatprep.subr.mxu0 %v3890
    %4859 = vmatpush1.msra.mxu0 %v3889
    %4860 = vmatprep.subr.mxu0 %v3894
    %4861 = vmatpush1.msra.mxu0 %v3893
    %4862 = vmatprep.subr.mxu0 %v3898
    %4863 = vmatpush1.msra.mxu0 %v3897
    %4864 = vmatprep.subr.mxu0 %v3902
    %4865 = vmatpush1.msra.mxu0 %v3901
    %4866 = vmatprep.subr.mxu0 %v3906
    %4867 = vmatpush1.msra.mxu0 %v3905
    %4868 = vmatprep.subr.mxu0 %v3910
    %4869 = vmatpush1.msra.mxu0 %v3909
    %4870 = vmatprep.subr.mxu0 %v3914
    %4871 = vmatpush1.msra.mxu0 %v3913
    %4872 = vmatprep.subr.mxu0 %v3918
    %4873 = vmatpush1.msra.mxu0 %v3917
    %4874 = vmatprep.subr.mxu0 %v3922
    %4875 = vmatpush1.msra.mxu0 %v3921
    %4876 = vmatprep.subr.mxu0 %v3926
    %4877 = vmatpush1.msra.mxu0 %v3925
    %4878 = vmatprep.subr.mxu0 0.0
    %4879 = vmatpush1.msra.mxu0 0.0
    %4880 = vmatprep.subr.mxu0 0.0
    %4881 = vmatpush1.msra.mxu0 0.0
    %4882 = vmatprep.subr.mxu0 0.0
    %4883 = vmatpush1.msra.mxu0 0.0
    %4884 = vmatprep.subr.mxu0 0.0
    %4885 = vmatpush1.msra.mxu0 0.0
    %4886 = vmatprep.subr.mxu0 0.0
    %4887 = vmatpush1.msra.mxu0 0.0
    %4888 = vmatprep.subr.mxu0 0.0
    %4889 = vmatpush1.msra.mxu0 0.0
    %4890 = vmatprep.subr.mxu0 0.0
    %4891 = vmatpush1.msra.mxu0 0.0
    %4892 = vmatprep.subr.mxu0 0.0
    %4893 = vmatpush1.msra.mxu0 0.0
    %4894 = vmatprep.subr.mxu0 0.0
    %4895 = vmatpush1.msra.mxu0 0.0
    %4896 = vmatprep.subr.mxu0 0.0
    %4897 = vmatpush1.msra.mxu0 0.0
    %4898 = vmatprep.subr.mxu0 0.0
    %4899 = vmatpush1.msra.mxu0 0.0
    %4900 = vmatprep.subr.mxu0 0.0
    %4901 = vmatpush1.msra.mxu0 0.0
    %4902 = vmatprep.subr.mxu0 0.0
    %4903 = vmatpush1.msra.mxu0 0.0
    %4904 = vmatprep.subr.mxu0 0.0
    %4905 = vmatpush1.msra.mxu0 0.0
    %4906 = vmatprep.subr.mxu0 0.0
    %4907 = vmatpush1.msra.mxu0 0.0
    %4908 = vmatprep.subr.mxu0 0.0
    %4909 = vmatpush1.msra.mxu0 0.0
    %4910 = vmatprep.mubr.f32.mxu0 0.0
    %4911 = vmatmul.mubr.f32.gmra.mrb[0].mxu0 %v4844
    %v4912 = vpop.f32.mrb[0].mxu0
    %v4913 = vadd.f32 0.0, %v4912
    %v4914 = vpop.f32.mrb[0].mxu0
    %v4915 = vadd.f32 0.0, %v4914
    %4916 = vdwg.mxu0
    %4917 = vmatprep.subr.mxu0 %v3868
    %4918 = vmatpush1.msra.mxu0 %v3867
    %4919 = vmatprep.subr.mxu0 %v3872
    %4920 = vmatpush1.msra.mxu0 %v3871
    %4921 = vmatprep.subr.mxu0 %v3876
    %4922 = vmatpush1.msra.mxu0 %v3875
    %4923 = vmatprep.subr.mxu0 %v3880
    %4924 = vmatpush1.msra.mxu0 %v3879
    %4925 = vmatprep.subr.mxu0 %v3884
    %4926 = vmatpush1.msra.mxu0 %v3883
    %4927 = vmatprep.subr.mxu0 %v3888
    %4928 = vmatpush1.msra.mxu0 %v3887
    %4929 = vmatprep.subr.mxu0 %v3892
    %4930 = vmatpush1.msra.mxu0 %v3891
    %4931 = vmatprep.subr.mxu0 %v3896
    %4932 = vmatpush1.msra.mxu0 %v3895
    %4933 = vmatprep.subr.mxu0 %v3900
    %4934 = vmatpush1.msra.mxu0 %v3899
    %4935 = vmatprep.subr.mxu0 %v3904
    %4936 = vmatpush1.msra.mxu0 %v3903
    %4937 = vmatprep.subr.mxu0 %v3908
    %4938 = vmatpush1.msra.mxu0 %v3907
    %4939 = vmatprep.subr.mxu0 %v3912
    %4940 = vmatpush1.msra.mxu0 %v3911
    %4941 = vmatprep.subr.mxu0 %v3916
    %4942 = vmatpush1.msra.mxu0 %v3915
    %4943 = vmatprep.subr.mxu0 %v3920
    %4944 = vmatpush1.msra.mxu0 %v3919
    %4945 = vmatprep.subr.mxu0 %v3924
    %4946 = vmatpush1.msra.mxu0 %v3923
    %4947 = vmatprep.subr.mxu0 %v3928
    %4948 = vmatpush1.msra.mxu0 %v3927
    %4949 = vmatprep.subr.mxu0 0.0
    %4950 = vmatpush1.msra.mxu0 0.0
    %4951 = vmatprep.subr.mxu0 0.0
    %4952 = vmatpush1.msra.mxu0 0.0
    %4953 = vmatprep.subr.mxu0 0.0
    %4954 = vmatpush1.msra.mxu0 0.0
    %4955 = vmatprep.subr.mxu0 0.0
    %4956 = vmatpush1.msra.mxu0 0.0
    %4957 = vmatprep.subr.mxu0 0.0
    %4958 = vmatpush1.msra.mxu0 0.0
    %4959 = vmatprep.subr.mxu0 0.0
    %4960 = vmatpush1.msra.mxu0 0.0
    %4961 = vmatprep.subr.mxu0 0.0
    %4962 = vmatpush1.msra.mxu0 0.0
    %4963 = vmatprep.subr.mxu0 0.0
    %4964 = vmatpush1.msra.mxu0 0.0
    %4965 = vmatprep.subr.mxu0 0.0
    %4966 = vmatpush1.msra.mxu0 0.0
    %4967 = vmatprep.subr.mxu0 0.0
    %4968 = vmatpush1.msra.mxu0 0.0
    %4969 = vmatprep.subr.mxu0 0.0
    %4970 = vmatpush1.msra.mxu0 0.0
    %4971 = vmatprep.subr.mxu0 0.0
    %4972 = vmatpush1.msra.mxu0 0.0
    %4973 = vmatprep.subr.mxu0 0.0
    %4974 = vmatpush1.msra.mxu0 0.0
    %4975 = vmatprep.subr.mxu0 0.0
    %4976 = vmatpush1.msra.mxu0 0.0
    %4977 = vmatprep.subr.mxu0 0.0
    %4978 = vmatpush1.msra.mxu0 0.0
    %4979 = vmatprep.subr.mxu0 0.0
    %4980 = vmatpush1.msra.mxu0 0.0
    %4981 = vmatprep.mubr.f32.mxu0 0.0
    %4982 = vmatmul.mubr.f32.gmra.mrb[0].mxu0 %v4844
    %v4983 = vpop.f32.mrb[0].mxu0
    %v4984 = vadd.f32 0.0, %v4983
    %v4985 = vpop.f32.mrb[0].mxu0
    %v4986 = vadd.f32 0.0, %v4985
    %4987 = vdwg.mxu0
    %v4992 = vrot.slane %v4913, 4
    %v4993 = vrot.slane %v4915, 4
    %v4994 = vrot.slane %v4984, 4
    %v4995 = vrot.slane %v4986, 4
    %v5000 = vadd.f32 %v4033, %v4992
    %v5001 = vadd.f32 %v4035, %v4993
    %v5002 = vadd.f32 %v4104, %v4994
    %v5003 = vadd.f32 %v4106, %v4995
    %v5004 = vxor.u32 %v5000, 2147483648
    %v5005 = vmul.f32 %v5004, 1.442695
    %v5006 = vpow.pop %v5005
    %v5007 = vadd.f32 %v5006, 1.0
    %v5008 = vrcp.pop %v5007
    %v5009 = vmul.f32 1.0, %v5008
    %v5010 = vxor.u32 %v5001, 2147483648
    %v5011 = vmul.f32 %v5010, 1.442695
    %v5012 = vpow.pop %v5011
    %v5013 = vadd.f32 %v5012, 1.0
    %v5014 = vrcp.pop %v5013
    %v5015 = vmul.f32 1.0, %v5014
    %v5016 = vtanh.pop %v5002
    %v5017 = vxor.u32 %v5003, 2147483648
    %v5018 = vmul.f32 %v5017, 1.442695
    %v5019 = vpow.pop %v5018
    %v5020 = vadd.f32 %v5019, 1.0
    %v5021 = vrcp.pop %v5020
    %v5022 = vmul.f32 1.0, %v5021
    %v5024 = vrot.slane %v4839, 7
    %v5026 = vmul.f32 %v5015, %v5024
    %v5027 = vmul.f32 %v5009, %v5016
    %v5028 = vadd.f32 %v5026, %v5027
    %v5029 = vtanh.pop %v5028
    %v5030 = vmul.f32 %v5022, %v5029
    %5031 = vst [vmem:[#allocation2] sm:$0x10] %v5030
    %v5033 = vrot.slane %v5030, 4
    %5035 = vmatprep.subr.mxu0 %v3866
    %5036 = vmatpush1.msra.mxu0 %v3865
    %5037 = vmatprep.subr.mxu0 %v3870
    %5038 = vmatpush1.msra.mxu0 %v3869
    %5039 = vmatprep.subr.mxu0 %v3874
    %5040 = vmatpush1.msra.mxu0 %v3873
    %5041 = vmatprep.subr.mxu0 %v3878
    %5042 = vmatpush1.msra.mxu0 %v3877
    %5043 = vmatprep.subr.mxu0 %v3882
    %5044 = vmatpush1.msra.mxu0 %v3881
    %5045 = vmatprep.subr.mxu0 %v3886
    %5046 = vmatpush1.msra.mxu0 %v3885
    %5047 = vmatprep.subr.mxu0 %v3890
    %5048 = vmatpush1.msra.mxu0 %v3889
    %5049 = vmatprep.subr.mxu0 %v3894
    %5050 = vmatpush1.msra.mxu0 %v3893
    %5051 = vmatprep.subr.mxu0 %v3898
    %5052 = vmatpush1.msra.mxu0 %v3897
    %5053 = vmatprep.subr.mxu0 %v3902
    %5054 = vmatpush1.msra.mxu0 %v3901
    %5055 = vmatprep.subr.mxu0 %v3906
    %5056 = vmatpush1.msra.mxu0 %v3905
    %5057 = vmatprep.subr.mxu0 %v3910
    %5058 = vmatpush1.msra.mxu0 %v3909
    %5059 = vmatprep.subr.mxu0 %v3914
    %5060 = vmatpush1.msra.mxu0 %v3913
    %5061 = vmatprep.subr.mxu0 %v3918
    %5062 = vmatpush1.msra.mxu0 %v3917
    %5063 = vmatprep.subr.mxu0 %v3922
    %5064 = vmatpush1.msra.mxu0 %v3921
    %5065 = vmatprep.subr.mxu0 %v3926
    %5066 = vmatpush1.msra.mxu0 %v3925
    %5067 = vmatprep.subr.mxu0 0.0
    %5068 = vmatpush1.msra.mxu0 0.0
    %5069 = vmatprep.subr.mxu0 0.0
    %5070 = vmatpush1.msra.mxu0 0.0
    %5071 = vmatprep.subr.mxu0 0.0
    %5072 = vmatpush1.msra.mxu0 0.0
    %5073 = vmatprep.subr.mxu0 0.0
    %5074 = vmatpush1.msra.mxu0 0.0
    %5075 = vmatprep.subr.mxu0 0.0
    %5076 = vmatpush1.msra.mxu0 0.0
    %5077 = vmatprep.subr.mxu0 0.0
    %5078 = vmatpush1.msra.mxu0 0.0
    %5079 = vmatprep.subr.mxu0 0.0
    %5080 = vmatpush1.msra.mxu0 0.0
    %5081 = vmatprep.subr.mxu0 0.0
    %5082 = vmatpush1.msra.mxu0 0.0
    %5083 = vmatprep.subr.mxu0 0.0
    %5084 = vmatpush1.msra.mxu0 0.0
    %5085 = vmatprep.subr.mxu0 0.0
    %5086 = vmatpush1.msra.mxu0 0.0
    %5087 = vmatprep.subr.mxu0 0.0
    %5088 = vmatpush1.msra.mxu0 0.0
    %5089 = vmatprep.subr.mxu0 0.0
    %5090 = vmatpush1.msra.mxu0 0.0
    %5091 = vmatprep.subr.mxu0 0.0
    %5092 = vmatpush1.msra.mxu0 0.0
    %5093 = vmatprep.subr.mxu0 0.0
    %5094 = vmatpush1.msra.mxu0 0.0
    %5095 = vmatprep.subr.mxu0 0.0
    %5096 = vmatpush1.msra.mxu0 0.0
    %5097 = vmatprep.subr.mxu0 0.0
    %5098 = vmatpush1.msra.mxu0 0.0
    %5099 = vmatprep.mubr.f32.mxu0 0.0
    %5100 = vmatmul.mubr.f32.gmra.mrb[0].mxu0 %v5033
    %v5101 = vpop.f32.mrb[0].mxu0
    %v5102 = vadd.f32 0.0, %v5101
    %v5103 = vpop.f32.mrb[0].mxu0
    %v5104 = vadd.f32 0.0, %v5103
    %5105 = vdwg.mxu0
    %5106 = vmatprep.subr.mxu0 %v3868
    %5107 = vmatpush1.msra.mxu0 %v3867
    %5108 = vmatprep.subr.mxu0 %v3872
    %5109 = vmatpush1.msra.mxu0 %v3871
    %5110 = vmatprep.subr.mxu0 %v3876
    %5111 = vmatpush1.msra.mxu0 %v3875
    %5112 = vmatprep.subr.mxu0 %v3880
    %5113 = vmatpush1.msra.mxu0 %v3879
    %5114 = vmatprep.subr.mxu0 %v3884
    %5115 = vmatpush1.msra.mxu0 %v3883
    %5116 = vmatprep.subr.mxu0 %v3888
    %5117 = vmatpush1.msra.mxu0 %v3887
    %5118 = vmatprep.subr.mxu0 %v3892
    %5119 = vmatpush1.msra.mxu0 %v3891
    %5120 = vmatprep.subr.mxu0 %v3896
    %5121 = vmatpush1.msra.mxu0 %v3895
    %5122 = vmatprep.subr.mxu0 %v3900
    %5123 = vmatpush1.msra.mxu0 %v3899
    %5124 = vmatprep.subr.mxu0 %v3904
    %5125 = vmatpush1.msra.mxu0 %v3903
    %5126 = vmatprep.subr.mxu0 %v3908
    %5127 = vmatpush1.msra.mxu0 %v3907
    %5128 = vmatprep.subr.mxu0 %v3912
    %5129 = vmatpush1.msra.mxu0 %v3911
    %5130 = vmatprep.subr.mxu0 %v3916
    %5131 = vmatpush1.msra.mxu0 %v3915
    %5132 = vmatprep.subr.mxu0 %v3920
    %5133 = vmatpush1.msra.mxu0 %v3919
    %5134 = vmatprep.subr.mxu0 %v3924
    %5135 = vmatpush1.msra.mxu0 %v3923
    %5136 = vmatprep.subr.mxu0 %v3928
    %5137 = vmatpush1.msra.mxu0 %v3927
    %5138 = vmatprep.subr.mxu0 0.0
    %5139 = vmatpush1.msra.mxu0 0.0
    %5140 = vmatprep.subr.mxu0 0.0
    %5141 = vmatpush1.msra.mxu0 0.0
    %5142 = vmatprep.subr.mxu0 0.0
    %5143 = vmatpush1.msra.mxu0 0.0
    %5144 = vmatprep.subr.mxu0 0.0
    %5145 = vmatpush1.msra.mxu0 0.0
    %5146 = vmatprep.subr.mxu0 0.0
    %5147 = vmatpush1.msra.mxu0 0.0
    %5148 = vmatprep.subr.mxu0 0.0
    %5149 = vmatpush1.msra.mxu0 0.0
    %5150 = vmatprep.subr.mxu0 0.0
    %5151 = vmatpush1.msra.mxu0 0.0
    %5152 = vmatprep.subr.mxu0 0.0
    %5153 = vmatpush1.msra.mxu0 0.0
    %5154 = vmatprep.subr.mxu0 0.0
    %5155 = vmatpush1.msra.mxu0 0.0
    %5156 = vmatprep.subr.mxu0 0.0
    %5157 = vmatpush1.msra.mxu0 0.0
    %5158 = vmatprep.subr.mxu0 0.0
    %5159 = vmatpush1.msra.mxu0 0.0
    %5160 = vmatprep.subr.mxu0 0.0
    %5161 = vmatpush1.msra.mxu0 0.0
    %5162 = vmatprep.subr.mxu0 0.0
    %5163 = vmatpush1.msra.mxu0 0.0
    %5164 = vmatprep.subr.mxu0 0.0
    %5165 = vmatpush1.msra.mxu0 0.0
    %5166 = vmatprep.subr.mxu0 0.0
    %5167 = vmatpush1.msra.mxu0 0.0
    %5168 = vmatprep.subr.mxu0 0.0
    %5169 = vmatpush1.msra.mxu0 0.0
    %5170 = vmatprep.mubr.f32.mxu0 0.0
    %5171 = vmatmul.mubr.f32.gmra.mrb[0].mxu0 %v5033
    %v5172 = vpop.f32.mrb[0].mxu0
    %v5173 = vadd.f32 0.0, %v5172
    %v5174 = vpop.f32.mrb[0].mxu0
    %v5175 = vadd.f32 0.0, %v5174
    %5176 = vdwg.mxu0
    %v5181 = vrot.slane %v5102, 3
    %v5182 = vrot.slane %v5104, 3
    %v5183 = vrot.slane %v5173, 3
    %v5184 = vrot.slane %v5175, 3
    %v5189 = vadd.f32 %v4033, %v5181
    %v5190 = vadd.f32 %v4035, %v5182
    %v5191 = vadd.f32 %v4104, %v5183
    %v5192 = vadd.f32 %v4106, %v5184
    %v5193 = vxor.u32 %v5189, 2147483648
    %v5194 = vmul.f32 %v5193, 1.442695
    %v5195 = vpow.pop %v5194
    %v5196 = vadd.f32 %v5195, 1.0
    %v5197 = vrcp.pop %v5196
    %v5198 = vmul.f32 1.0, %v5197
    %v5199 = vxor.u32 %v5190, 2147483648
    %v5200 = vmul.f32 %v5199, 1.442695
    %v5201 = vpow.pop %v5200
    %v5202 = vadd.f32 %v5201, 1.0
    %v5203 = vrcp.pop %v5202
    %v5204 = vmul.f32 1.0, %v5203
    %v5205 = vtanh.pop %v5191
    %v5206 = vxor.u32 %v5192, 2147483648
    %v5207 = vmul.f32 %v5206, 1.442695
    %v5208 = vpow.pop %v5207
    %v5209 = vadd.f32 %v5208, 1.0
    %v5210 = vrcp.pop %v5209
    %v5211 = vmul.f32 1.0, %v5210
    %v5213 = vrot.slane %v5028, 7
    %v5215 = vmul.f32 %v5204, %v5213
    %v5216 = vmul.f32 %v5198, %v5205
    %v5217 = vadd.f32 %v5215, %v5216
    %v5218 = vtanh.pop %v5217
    %v5219 = vmul.f32 %v5211, %v5218
    %5220 = vst [vmem:[#allocation2] sm:$0x20] %v5219
    %v5222 = vrot.slane %v5219, 5
    %5224 = vmatprep.subr.mxu0 %v3866
    %5225 = vmatpush1.msra.mxu0 %v3865
    %5226 = vmatprep.subr.mxu0 %v3870
    %5227 = vmatpush1.msra.mxu0 %v3869
    %5228 = vmatprep.subr.mxu0 %v3874
    %5229 = vmatpush1.msra.mxu0 %v3873
    %5230 = vmatprep.subr.mxu0 %v3878
    %5231 = vmatpush1.msra.mxu0 %v3877
    %5232 = vmatprep.subr.mxu0 %v3882
    %5233 = vmatpush1.msra.mxu0 %v3881
    %5234 = vmatprep.subr.mxu0 %v3886
    %5235 = vmatpush1.msra.mxu0 %v3885
    %5236 = vmatprep.subr.mxu0 %v3890
    %5237 = vmatpush1.msra.mxu0 %v3889
    %5238 = vmatprep.subr.mxu0 %v3894
    %5239 = vmatpush1.msra.mxu0 %v3893
    %5240 = vmatprep.subr.mxu0 %v3898
    %5241 = vmatpush1.msra.mxu0 %v3897
    %5242 = vmatprep.subr.mxu0 %v3902
    %5243 = vmatpush1.msra.mxu0 %v3901
    %5244 = vmatprep.subr.mxu0 %v3906
    %5245 = vmatpush1.msra.mxu0 %v3905
    %5246 = vmatprep.subr.mxu0 %v3910
    %5247 = vmatpush1.msra.mxu0 %v3909
    %5248 = vmatprep.subr.mxu0 %v3914
    %5249 = vmatpush1.msra.mxu0 %v3913
    %5250 = vmatprep.subr.mxu0 %v3918
    %5251 = vmatpush1.msra.mxu0 %v3917
    %5252 = vmatprep.subr.mxu0 %v3922
    %5253 = vmatpush1.msra.mxu0 %v3921
    %5254 = vmatprep.subr.mxu0 %v3926
    %5255 = vmatpush1.msra.mxu0 %v3925
    %5256 = vmatprep.subr.mxu0 0.0
    %5257 = vmatpush1.msra.mxu0 0.0
    %5258 = vmatprep.subr.mxu0 0.0
    %5259 = vmatpush1.msra.mxu0 0.0
    %5260 = vmatprep.subr.mxu0 0.0
    %5261 = vmatpush1.msra.mxu0 0.0
    %5262 = vmatprep.subr.mxu0 0.0
    %5263 = vmatpush1.msra.mxu0 0.0
    %5264 = vmatprep.subr.mxu0 0.0
    %5265 = vmatpush1.msra.mxu0 0.0
    %5266 = vmatprep.subr.mxu0 0.0
    %5267 = vmatpush1.msra.mxu0 0.0
    %5268 = vmatprep.subr.mxu0 0.0
    %5269 = vmatpush1.msra.mxu0 0.0
    %5270 = vmatprep.subr.mxu0 0.0
    %5271 = vmatpush1.msra.mxu0 0.0
    %5272 = vmatprep.subr.mxu0 0.0
    %5273 = vmatpush1.msra.mxu0 0.0
    %5274 = vmatprep.subr.mxu0 0.0
    %5275 = vmatpush1.msra.mxu0 0.0
    %5276 = vmatprep.subr.mxu0 0.0
    %5277 = vmatpush1.msra.mxu0 0.0
    %5278 = vmatprep.subr.mxu0 0.0
    %5279 = vmatpush1.msra.mxu0 0.0
    %5280 = vmatprep.subr.mxu0 0.0
    %5281 = vmatpush1.msra.mxu0 0.0
    %5282 = vmatprep.subr.mxu0 0.0
    %5283 = vmatpush1.msra.mxu0 0.0
    %5284 = vmatprep.subr.mxu0 0.0
    %5285 = vmatpush1.msra.mxu0 0.0
    %5286 = vmatprep.subr.mxu0 0.0
    %5287 = vmatpush1.msra.mxu0 0.0
    %5288 = vmatprep.mubr.f32.mxu0 0.0
    %5289 = vmatmul.mubr.f32.gmra.mrb[0].mxu0 %v5222
    %v5290 = vpop.f32.mrb[0].mxu0
    %v5291 = vadd.f32 0.0, %v5290
    %v5292 = vpop.f32.mrb[0].mxu0
    %v5293 = vadd.f32 0.0, %v5292
    %5294 = vdwg.mxu0
    %5295 = vmatprep.subr.mxu0 %v3868
    %5296 = vmatpush1.msra.mxu0 %v3867
    %5297 = vmatprep.subr.mxu0 %v3872
    %5298 = vmatpush1.msra.mxu0 %v3871
    %5299 = vmatprep.subr.mxu0 %v3876
    %5300 = vmatpush1.msra.mxu0 %v3875
    %5301 = vmatprep.subr.mxu0 %v3880
    %5302 = vmatpush1.msra.mxu0 %v3879
    %5303 = vmatprep.subr.mxu0 %v3884
    %5304 = vmatpush1.msra.mxu0 %v3883
    %5305 = vmatprep.subr.mxu0 %v3888
    %5306 = vmatpush1.msra.mxu0 %v3887
    %5307 = vmatprep.subr.mxu0 %v3892
    %5308 = vmatpush1.msra.mxu0 %v3891
    %5309 = vmatprep.subr.mxu0 %v3896
    %5310 = vmatpush1.msra.mxu0 %v3895
    %5311 = vmatprep.subr.mxu0 %v3900
    %5312 = vmatpush1.msra.mxu0 %v3899
    %5313 = vmatprep.subr.mxu0 %v3904
    %5314 = vmatpush1.msra.mxu0 %v3903
    %5315 = vmatprep.subr.mxu0 %v3908
    %5316 = vmatpush1.msra.mxu0 %v3907
    %5317 = vmatprep.subr.mxu0 %v3912
    %5318 = vmatpush1.msra.mxu0 %v3911
    %5319 = vmatprep.subr.mxu0 %v3916
    %5320 = vmatpush1.msra.mxu0 %v3915
    %5321 = vmatprep.subr.mxu0 %v3920
    %5322 = vmatpush1.msra.mxu0 %v3919
    %5323 = vmatprep.subr.mxu0 %v3924
    %5324 = vmatpush1.msra.mxu0 %v3923
    %5325 = vmatprep.subr.mxu0 %v3928
    %5326 = vmatpush1.msra.mxu0 %v3927
    %5327 = vmatprep.subr.mxu0 0.0
    %5328 = vmatpush1.msra.mxu0 0.0
    %5329 = vmatprep.subr.mxu0 0.0
    %5330 = vmatpush1.msra.mxu0 0.0
    %5331 = vmatprep.subr.mxu0 0.0
    %5332 = vmatpush1.msra.mxu0 0.0
    %5333 = vmatprep.subr.mxu0 0.0
    %5334 = vmatpush1.msra.mxu0 0.0
    %5335 = vmatprep.subr.mxu0 0.0
    %5336 = vmatpush1.msra.mxu0 0.0
    %5337 = vmatprep.subr.mxu0 0.0
    %5338 = vmatpush1.msra.mxu0 0.0
    %5339 = vmatprep.subr.mxu0 0.0
    %5340 = vmatpush1.msra.mxu0 0.0
    %5341 = vmatprep.subr.mxu0 0.0
    %5342 = vmatpush1.msra.mxu0 0.0
    %5343 = vmatprep.subr.mxu0 0.0
    %5344 = vmatpush1.msra.mxu0 0.0
    %5345 = vmatprep.subr.mxu0 0.0
    %5346 = vmatpush1.msra.mxu0 0.0
    %5347 = vmatprep.subr.mxu0 0.0
    %5348 = vmatpush1.msra.mxu0 0.0
    %5349 = vmatprep.subr.mxu0 0.0
    %5350 = vmatpush1.msra.mxu0 0.0
    %5351 = vmatprep.subr.mxu0 0.0
    %5352 = vmatpush1.msra.mxu0 0.0
    %5353 = vmatprep.subr.mxu0 0.0
    %5354 = vmatpush1.msra.mxu0 0.0
    %5355 = vmatprep.subr.mxu0 0.0
    %5356 = vmatpush1.msra.mxu0 0.0
    %5357 = vmatprep.subr.mxu0 0.0
    %5358 = vmatpush1.msra.mxu0 0.0
    %5359 = vmatprep.mubr.f32.mxu0 0.0
    %5360 = vmatmul.mubr.f32.gmra.mrb[0].mxu0 %v5222
    %v5361 = vpop.f32.mrb[0].mxu0
    %v5362 = vadd.f32 0.0, %v5361
    %v5363 = vpop.f32.mrb[0].mxu0
    %v5364 = vadd.f32 0.0, %v5363
    %5365 = vdwg.mxu0
    %v5370 = vrot.slane %v5291, 2
    %v5371 = vrot.slane %v5293, 2
    %v5372 = vrot.slane %v5362, 2
    %v5373 = vrot.slane %v5364, 2
    %v5378 = vadd.f32 %v4033, %v5370
    %v5379 = vadd.f32 %v4035, %v5371
    %v5380 = vadd.f32 %v4104, %v5372
    %v5381 = vadd.f32 %v4106, %v5373
    %v5382 = vxor.u32 %v5378, 2147483648
    %v5383 = vmul.f32 %v5382, 1.442695
    %v5384 = vpow.pop %v5383
    %v5385 = vadd.f32 %v5384, 1.0
    %v5386 = vrcp.pop %v5385
    %v5387 = vmul.f32 1.0, %v5386
    %v5388 = vxor.u32 %v5379, 2147483648
    %v5389 = vmul.f32 %v5388, 1.442695
    %v5390 = vpow.pop %v5389
    %v5391 = vadd.f32 %v5390, 1.0
    %v5392 = vrcp.pop %v5391
    %v5393 = vmul.f32 1.0, %v5392
    %v5394 = vtanh.pop %v5380
    %v5395 = vxor.u32 %v5381, 2147483648
    %v5396 = vmul.f32 %v5395, 1.442695
    %v5397 = vpow.pop %v5396
    %v5398 = vadd.f32 %v5397, 1.0
    %v5399 = vrcp.pop %v5398
    %v5400 = vmul.f32 1.0, %v5399
    %v5402 = vrot.slane %v5217, 7
    %v5404 = vmul.f32 %v5393, %v5402
    %v5405 = vmul.f32 %v5387, %v5394
    %v5406 = vadd.f32 %v5404, %v5405
    %v5407 = vtanh.pop %v5406
    %v5408 = vmul.f32 %v5400, %v5407
    %5409 = vst [vmem:[#allocation2] sm:$0x40] %v5408
    %v5411 = vrot.slane %v5408, 6
    %5413 = vmatprep.subr.mxu0 %v3866
    %5414 = vmatpush1.msra.mxu0 %v3865
    %5415 = vmatprep.subr.mxu0 %v3870
    %5416 = vmatpush1.msra.mxu0 %v3869
    %5417 = vmatprep.subr.mxu0 %v3874
    %5418 = vmatpush1.msra.mxu0 %v3873
    %5419 = vmatprep.subr.mxu0 %v3878
    %5420 = vmatpush1.msra.mxu0 %v3877
    %5421 = vmatprep.subr.mxu0 %v3882
    %5422 = vmatpush1.msra.mxu0 %v3881
    %5423 = vmatprep.subr.mxu0 %v3886
    %5424 = vmatpush1.msra.mxu0 %v3885
    %5425 = vmatprep.subr.mxu0 %v3890
    %5426 = vmatpush1.msra.mxu0 %v3889
    %5427 = vmatprep.subr.mxu0 %v3894
    %5428 = vmatpush1.msra.mxu0 %v3893
    %5429 = vmatprep.subr.mxu0 %v3898
    %5430 = vmatpush1.msra.mxu0 %v3897
    %5431 = vmatprep.subr.mxu0 %v3902
    %5432 = vmatpush1.msra.mxu0 %v3901
    %5433 = vmatprep.subr.mxu0 %v3906
    %5434 = vmatpush1.msra.mxu0 %v3905
    %5435 = vmatprep.subr.mxu0 %v3910
    %5436 = vmatpush1.msra.mxu0 %v3909
    %5437 = vmatprep.subr.mxu0 %v3914
    %5438 = vmatpush1.msra.mxu0 %v3913
    %5439 = vmatprep.subr.mxu0 %v3918
    %5440 = vmatpush1.msra.mxu0 %v3917
    %5441 = vmatprep.subr.mxu0 %v3922
    %5442 = vmatpush1.msra.mxu0 %v3921
    %5443 = vmatprep.subr.mxu0 %v3926
    %5444 = vmatpush1.msra.mxu0 %v3925
    %5445 = vmatprep.subr.mxu0 0.0
    %5446 = vmatpush1.msra.mxu0 0.0
    %5447 = vmatprep.subr.mxu0 0.0
    %5448 = vmatpush1.msra.mxu0 0.0
    %5449 = vmatprep.subr.mxu0 0.0
    %5450 = vmatpush1.msra.mxu0 0.0
    %5451 = vmatprep.subr.mxu0 0.0
    %5452 = vmatpush1.msra.mxu0 0.0
    %5453 = vmatprep.subr.mxu0 0.0
    %5454 = vmatpush1.msra.mxu0 0.0
    %5455 = vmatprep.subr.mxu0 0.0
    %5456 = vmatpush1.msra.mxu0 0.0
    %5457 = vmatprep.subr.mxu0 0.0
    %5458 = vmatpush1.msra.mxu0 0.0
    %5459 = vmatprep.subr.mxu0 0.0
    %5460 = vmatpush1.msra.mxu0 0.0
    %5461 = vmatprep.subr.mxu0 0.0
    %5462 = vmatpush1.msra.mxu0 0.0
    %5463 = vmatprep.subr.mxu0 0.0
    %5464 = vmatpush1.msra.mxu0 0.0
    %5465 = vmatprep.subr.mxu0 0.0
    %5466 = vmatpush1.msra.mxu0 0.0
    %5467 = vmatprep.subr.mxu0 0.0
    %5468 = vmatpush1.msra.mxu0 0.0
    %5469 = vmatprep.subr.mxu0 0.0
    %5470 = vmatpush1.msra.mxu0 0.0
    %5471 = vmatprep.subr.mxu0 0.0
    %5472 = vmatpush1.msra.mxu0 0.0
    %5473 = vmatprep.subr.mxu0 0.0
    %5474 = vmatpush1.msra.mxu0 0.0
    %5475 = vmatprep.subr.mxu0 0.0
    %5476 = vmatpush1.msra.mxu0 0.0
    %5477 = vmatprep.mubr.f32.mxu0 0.0
    %5478 = vmatmul.mubr.f32.gmra.mrb[0].mxu0 %v5411
    %v5479 = vpop.f32.mrb[0].mxu0
    %v5480 = vadd.f32 0.0, %v5479
    %v5481 = vpop.f32.mrb[0].mxu0
    %v5482 = vadd.f32 0.0, %v5481
    %5483 = vdwg.mxu0
    %5484 = vmatprep.subr.mxu0 %v3868
    %5485 = vmatpush1.msra.mxu0 %v3867
    %5486 = vmatprep.subr.mxu0 %v3872
    %5487 = vmatpush1.msra.mxu0 %v3871
    %5488 = vmatprep.subr.mxu0 %v3876
    %5489 = vmatpush1.msra.mxu0 %v3875
    %5490 = vmatprep.subr.mxu0 %v3880
    %5491 = vmatpush1.msra.mxu0 %v3879
    %5492 = vmatprep.subr.mxu0 %v3884
    %5493 = vmatpush1.msra.mxu0 %v3883
    %5494 = vmatprep.subr.mxu0 %v3888
    %5495 = vmatpush1.msra.mxu0 %v3887
    %5496 = vmatprep.subr.mxu0 %v3892
    %5497 = vmatpush1.msra.mxu0 %v3891
    %5498 = vmatprep.subr.mxu0 %v3896
    %5499 = vmatpush1.msra.mxu0 %v3895
    %5500 = vmatprep.subr.mxu0 %v3900
    %5501 = vmatpush1.msra.mxu0 %v3899
    %5502 = vmatprep.subr.mxu0 %v3904
    %5503 = vmatpush1.msra.mxu0 %v3903
    %5504 = vmatprep.subr.mxu0 %v3908
    %5505 = vmatpush1.msra.mxu0 %v3907
    %5506 = vmatprep.subr.mxu0 %v3912
    %5507 = vmatpush1.msra.mxu0 %v3911
    %5508 = vmatprep.subr.mxu0 %v3916
    %5509 = vmatpush1.msra.mxu0 %v3915
    %5510 = vmatprep.subr.mxu0 %v3920
    %5511 = vmatpush1.msra.mxu0 %v3919
    %5512 = vmatprep.subr.mxu0 %v3924
    %5513 = vmatpush1.msra.mxu0 %v3923
    %5514 = vmatprep.subr.mxu0 %v3928
    %5515 = vmatpush1.msra.mxu0 %v3927
    %5516 = vmatprep.subr.mxu0 0.0
    %5517 = vmatpush1.msra.mxu0 0.0
    %5518 = vmatprep.subr.mxu0 0.0
    %5519 = vmatpush1.msra.mxu0 0.0
    %5520 = vmatprep.subr.mxu0 0.0
    %5521 = vmatpush1.msra.mxu0 0.0
    %5522 = vmatprep.subr.mxu0 0.0
    %5523 = vmatpush1.msra.mxu0 0.0
    %5524 = vmatprep.subr.mxu0 0.0
    %5525 = vmatpush1.msra.mxu0 0.0
    %5526 = vmatprep.subr.mxu0 0.0
    %5527 = vmatpush1.msra.mxu0 0.0
    %5528 = vmatprep.subr.mxu0 0.0
    %5529 = vmatpush1.msra.mxu0 0.0
    %5530 = vmatprep.subr.mxu0 0.0
    %5531 = vmatpush1.msra.mxu0 0.0
    %5532 = vmatprep.subr.mxu0 0.0
    %5533 = vmatpush1.msra.mxu0 0.0
    %5534 = vmatprep.subr.mxu0 0.0
    %5535 = vmatpush1.msra.mxu0 0.0
    %5536 = vmatprep.subr.mxu0 0.0
    %5537 = vmatpush1.msra.mxu0 0.0
    %5538 = vmatprep.subr.mxu0 0.0
    %5539 = vmatpush1.msra.mxu0 0.0
    %5540 = vmatprep.subr.mxu0 0.0
    %5541 = vmatpush1.msra.mxu0 0.0
    %5542 = vmatprep.subr.mxu0 0.0
    %5543 = vmatpush1.msra.mxu0 0.0
    %5544 = vmatprep.subr.mxu0 0.0
    %5545 = vmatpush1.msra.mxu0 0.0
    %5546 = vmatprep.subr.mxu0 0.0
    %5547 = vmatpush1.msra.mxu0 0.0
    %5548 = vmatprep.mubr.f32.mxu0 0.0
    %5549 = vmatmul.mubr.f32.gmra.mrb[0].mxu0 %v5411
    %v5550 = vpop.f32.mrb[0].mxu0
    %v5551 = vadd.f32 0.0, %v5550
    %v5552 = vpop.f32.mrb[0].mxu0
    %v5553 = vadd.f32 0.0, %v5552
    %5554 = vdwg.mxu0
    %v5559 = vrot.slane %v5480, 1
    %v5560 = vrot.slane %v5482, 1
    %v5561 = vrot.slane %v5551, 1
    %v5562 = vrot.slane %v5553, 1
    %v5567 = vadd.f32 %v4033, %v5559
    %v5568 = vadd.f32 %v4035, %v5560
    %v5569 = vadd.f32 %v4104, %v5561
    %v5570 = vadd.f32 %v4106, %v5562
    %v5571 = vxor.u32 %v5567, 2147483648
    %v5572 = vmul.f32 %v5571, 1.442695
    %v5573 = vpow.pop %v5572
    %v5574 = vadd.f32 %v5573, 1.0
    %v5575 = vrcp.pop %v5574
    %v5576 = vmul.f32 1.0, %v5575
    %v5577 = vxor.u32 %v5568, 2147483648
    %v5578 = vmul.f32 %v5577, 1.442695
    %v5579 = vpow.pop %v5578
    %v5580 = vadd.f32 %v5579, 1.0
    %v5581 = vrcp.pop %v5580
    %v5582 = vmul.f32 1.0, %v5581
    %v5583 = vtanh.pop %v5569
    %v5584 = vxor.u32 %v5570, 2147483648
    %v5585 = vmul.f32 %v5584, 1.442695
    %v5586 = vpow.pop %v5585
    %v5587 = vadd.f32 %v5586, 1.0
    %v5588 = vrcp.pop %v5587
    %v5589 = vmul.f32 1.0, %v5588
    %v5591 = vrot.slane %v5406, 7
    %v5593 = vmul.f32 %v5582, %v5591
    %v5594 = vmul.f32 %v5576, %v5583
    %v5595 = vadd.f32 %v5593, %v5594
    %v5596 = vtanh.pop %v5595
    %v5597 = vmul.f32 %v5589, %v5596
    %5598 = vst [vmem:[#allocation2] sm:$0x80] %v5597
    %v5599 = vld [vmem:[#allocation2] sm:$0xff]
    %v5600 = vld [vmem:[#allocation8] sm:$0xff]
    %v5601 = vld [vmem:[#allocation8 + $0x8] sm:$0xff]
    %v5602 = vld [vmem:[#allocation8 + $0x10] sm:$0xff]
    %v5603 = vld [vmem:[#allocation8 + $0x18] sm:$0xff]
    %v5604 = vld [vmem:[#allocation8 + $0x20] sm:$0xff]
    %v5605 = vld [vmem:[#allocation8 + $0x28] sm:$0xff]
    %v5606 = vld [vmem:[#allocation8 + $0x30] sm:$0xff]
    %v5607 = vld [vmem:[#allocation8 + $0x38] sm:$0xff]
    %v5608 = vld [vmem:[#allocation8 + $0x40] sm:$0xff]
    %v5609 = vld [vmem:[#allocation8 + $0x48] sm:$0xff]
    %v5610 = vld [vmem:[#allocation8 + $0x50] sm:$0xff]
    %v5611 = vld [vmem:[#allocation8 + $0x58] sm:$0xff]
    %v5612 = vld [vmem:[#allocation8 + $0x60] sm:$0xff]
    %v5613 = vld [vmem:[#allocation8 + $0x68] sm:$0xff]
    %v5614 = vld [vmem:[#allocation8 + $0x70] sm:$0xff]
    %v5615 = vld [vmem:[#allocation8 + $0x78] sm:$0xff]
    %v5616 = vld [vmem:[#allocation8 + $0x80] sm:$0xff]
    %v5617 = vld [vmem:[#allocation8 + $0x88] sm:$0xff]
    %v5618 = vld [vmem:[#allocation8 + $0x90] sm:$0xff]
    %v5619 = vld [vmem:[#allocation8 + $0x98] sm:$0xff]
    %v5620 = vld [vmem:[#allocation8 + $0xa0] sm:$0xff]
    %v5621 = vld [vmem:[#allocation8 + $0xa8] sm:$0xff]
    %v5622 = vld [vmem:[#allocation8 + $0xb0] sm:$0xff]
    %v5623 = vld [vmem:[#allocation8 + $0xb8] sm:$0xff]
    %v5624 = vld [vmem:[#allocation8 + $0xc0] sm:$0xff]
    %v5625 = vld [vmem:[#allocation8 + $0xc8] sm:$0xff]
    %v5626 = vld [vmem:[#allocation8 + $0xd0] sm:$0xff]
    %v5627 = vld [vmem:[#allocation8 + $0xd8] sm:$0xff]
    %v5628 = vld [vmem:[#allocation8 + $0xe0] sm:$0xff]
    %v5629 = vld [vmem:[#allocation8 + $0xe8] sm:$0xff]
    %v5630 = vld [vmem:[#allocation8 + $0xf0] sm:$0xff]
    %v5631 = vld [vmem:[#allocation8 + $0xf8] sm:$0xff]
    %v5632 = vld [vmem:[#allocation8 + $0x100] sm:$0xff]
    %v5633 = vld [vmem:[#allocation8 + $0x108] sm:$0xff]
    %v5634 = vld [vmem:[#allocation8 + $0x110] sm:$0xff]
    %v5635 = vld [vmem:[#allocation8 + $0x118] sm:$0xff]
    %v5636 = vld [vmem:[#allocation8 + $0x120] sm:$0xff]
    %v5637 = vld [vmem:[#allocation8 + $0x128] sm:$0xff]
    %v5638 = vld [vmem:[#allocation8 + $0x130] sm:$0xff]
    %v5639 = vld [vmem:[#allocation8 + $0x138] sm:$0xff]
    %v5640 = vld [vmem:[#allocation8 + $0x140] sm:$0xff]
    %v5641 = vld [vmem:[#allocation8 + $0x148] sm:$0xff]
    %v5642 = vld [vmem:[#allocation8 + $0x150] sm:$0xff]
    %v5643 = vld [vmem:[#allocation8 + $0x158] sm:$0xff]
    %v5644 = vld [vmem:[#allocation8 + $0x160] sm:$0xff]
    %v5645 = vld [vmem:[#allocation8 + $0x168] sm:$0xff]
    %v5646 = vld [vmem:[#allocation8 + $0x170] sm:$0xff]
    %v5647 = vld [vmem:[#allocation8 + $0x178] sm:$0xff]
    %v5648 = vld [vmem:[#allocation8 + $0x180] sm:$0xff]
    %v5649 = vld [vmem:[#allocation8 + $0x188] sm:$0xff]
    %v5650 = vld [vmem:[#allocation8 + $0x190] sm:$0xff]
    %v5651 = vld [vmem:[#allocation8 + $0x198] sm:$0xff]
    %v5652 = vld [vmem:[#allocation8 + $0x1a0] sm:$0xff]
    %v5653 = vld [vmem:[#allocation8 + $0x1a8] sm:$0xff]
    %v5654 = vld [vmem:[#allocation8 + $0x1b0] sm:$0xff]
    %v5655 = vld [vmem:[#allocation8 + $0x1b8] sm:$0xff]
    %v5656 = vld [vmem:[#allocation8 + $0x1c0] sm:$0xff]
    %v5657 = vld [vmem:[#allocation8 + $0x1c8] sm:$0xff]
    %v5658 = vld [vmem:[#allocation8 + $0x1d0] sm:$0xff]
    %v5659 = vld [vmem:[#allocation8 + $0x1d8] sm:$0xff]
    %v5660 = vld [vmem:[#allocation8 + $0x1e0] sm:$0xff]
    %v5661 = vld [vmem:[#allocation8 + $0x1e8] sm:$0xff]
    %v5662 = vld [vmem:[#allocation8 + $0x1f0] sm:$0xff]
    %v5663 = vld [vmem:[#allocation8 + $0x1f8] sm:$0xff]
    %v5664 = vld [vmem:[#allocation9] sm:$0xff]
    %v5665 = vld [vmem:[#allocation9 + $0x8] sm:$0xff]
    %v5666 = vld [vmem:[#allocation9 + $0x10] sm:$0xff]
    %v5667 = vld [vmem:[#allocation9 + $0x18] sm:$0xff]
    %v5668 = vld [vmem:[#allocation9 + $0x20] sm:$0xff]
    %v5669 = vld [vmem:[#allocation9 + $0x28] sm:$0xff]
    %v5670 = vld [vmem:[#allocation9 + $0x30] sm:$0xff]
    %v5671 = vld [vmem:[#allocation9 + $0x38] sm:$0xff]
    %v5672 = vld [vmem:[#allocation9 + $0x40] sm:$0xff]
    %v5673 = vld [vmem:[#allocation9 + $0x48] sm:$0xff]
    %v5674 = vld [vmem:[#allocation9 + $0x50] sm:$0xff]
    %v5675 = vld [vmem:[#allocation9 + $0x58] sm:$0xff]
    %v5676 = vld [vmem:[#allocation9 + $0x60] sm:$0xff]
    %v5677 = vld [vmem:[#allocation9 + $0x68] sm:$0xff]
    %v5678 = vld [vmem:[#allocation9 + $0x70] sm:$0xff]
    %v5679 = vld [vmem:[#allocation9 + $0x78] sm:$0xff]
    %v5680 = vld [vmem:[#allocation9 + $0x80] sm:$0xff]
    %v5681 = vld [vmem:[#allocation9 + $0x88] sm:$0xff]
    %v5682 = vld [vmem:[#allocation9 + $0x90] sm:$0xff]
    %v5683 = vld [vmem:[#allocation9 + $0x98] sm:$0xff]
    %v5684 = vld [vmem:[#allocation9 + $0xa0] sm:$0xff]
    %v5685 = vld [vmem:[#allocation9 + $0xa8] sm:$0xff]
    %v5686 = vld [vmem:[#allocation9 + $0xb0] sm:$0xff]
    %v5687 = vld [vmem:[#allocation9 + $0xb8] sm:$0xff]
    %v5688 = vld [vmem:[#allocation9 + $0xc0] sm:$0xff]
    %v5689 = vld [vmem:[#allocation9 + $0xc8] sm:$0xff]
    %v5690 = vld [vmem:[#allocation9 + $0xd0] sm:$0xff]
    %v5691 = vld [vmem:[#allocation9 + $0xd8] sm:$0xff]
    %v5692 = vld [vmem:[#allocation9 + $0xe0] sm:$0xff]
    %v5693 = vld [vmem:[#allocation9 + $0xe8] sm:$0xff]
    %v5694 = vld [vmem:[#allocation9 + $0xf0] sm:$0xff]
    %v5695 = vld [vmem:[#allocation9 + $0xf8] sm:$0xff]
    %v5696 = vld [vmem:[#allocation9 + $0x100] sm:$0xff]
    %v5697 = vld [vmem:[#allocation9 + $0x108] sm:$0xff]
    %v5698 = vld [vmem:[#allocation9 + $0x110] sm:$0xff]
    %v5699 = vld [vmem:[#allocation9 + $0x118] sm:$0xff]
    %v5700 = vld [vmem:[#allocation9 + $0x120] sm:$0xff]
    %v5701 = vld [vmem:[#allocation9 + $0x128] sm:$0xff]
    %v5702 = vld [vmem:[#allocation9 + $0x130] sm:$0xff]
    %v5703 = vld [vmem:[#allocation9 + $0x138] sm:$0xff]
    %v5704 = vld [vmem:[#allocation9 + $0x140] sm:$0xff]
    %v5705 = vld [vmem:[#allocation9 + $0x148] sm:$0xff]
    %v5706 = vld [vmem:[#allocation9 + $0x150] sm:$0xff]
    %v5707 = vld [vmem:[#allocation9 + $0x158] sm:$0xff]
    %v5708 = vld [vmem:[#allocation9 + $0x160] sm:$0xff]
    %v5709 = vld [vmem:[#allocation9 + $0x168] sm:$0xff]
    %v5710 = vld [vmem:[#allocation9 + $0x170] sm:$0xff]
    %v5711 = vld [vmem:[#allocation9 + $0x178] sm:$0xff]
    %v5712 = vld [vmem:[#allocation9 + $0x180] sm:$0xff]
    %v5713 = vld [vmem:[#allocation9 + $0x188] sm:$0xff]
    %v5714 = vld [vmem:[#allocation9 + $0x190] sm:$0xff]
    %v5715 = vld [vmem:[#allocation9 + $0x198] sm:$0xff]
    %v5716 = vld [vmem:[#allocation9 + $0x1a0] sm:$0xff]
    %v5717 = vld [vmem:[#allocation9 + $0x1a8] sm:$0xff]
    %v5718 = vld [vmem:[#allocation9 + $0x1b0] sm:$0xff]
    %v5719 = vld [vmem:[#allocation9 + $0x1b8] sm:$0xff]
    %v5720 = vld [vmem:[#allocation9 + $0x1c0] sm:$0xff]
    %v5721 = vld [vmem:[#allocation9 + $0x1c8] sm:$0xff]
    %v5722 = vld [vmem:[#allocation9 + $0x1d0] sm:$0xff]
    %v5723 = vld [vmem:[#allocation9 + $0x1d8] sm:$0xff]
    %v5724 = vld [vmem:[#allocation9 + $0x1e0] sm:$0xff]
    %v5725 = vld [vmem:[#allocation9 + $0x1e8] sm:$0xff]
    %v5726 = vld [vmem:[#allocation9 + $0x1f0] sm:$0xff]
    %v5727 = vld [vmem:[#allocation9 + $0x1f8] sm:$0xff]
    %v5728 = vld [vmem:[%s6] sm:$0xf]
    %v5730 = vlaneseq
    %v5731 = vshrl.u32 %v5730, 7
    %v5732 = vsub.s32 0, %v5731
    %v5733 = vrot.slane %v5728, %v5732
    %v5734 = vlaneseq
    %v5735 = vshrl.u32 %v5734, 7
    %v5736 = vsub.s32 1, %v5735
    %v5737 = vrot.slane %v5728, %v5736
    %v5738 = vlaneseq
    %v5739 = vshrl.u32 %v5738, 7
    %v5740 = vsub.s32 2, %v5739
    %v5741 = vrot.slane %v5728, %v5740
    %v5742 = vlaneseq
    %v5743 = vshrl.u32 %v5742, 7
    %v5744 = vsub.s32 3, %v5743
    %v5745 = vrot.slane %v5728, %v5744
    %5750 = vmatprep.subr.mxu0 %v5601
    %5751 = vmatpush1.msra.mxu0 %v5600
    %5752 = vmatprep.subr.mxu0 %v5605
    %5753 = vmatpush1.msra.mxu0 %v5604
    %5754 = vmatprep.subr.mxu0 %v5609
    %5755 = vmatpush1.msra.mxu0 %v5608
    %5756 = vmatprep.subr.mxu0 %v5613
    %5757 = vmatpush1.msra.mxu0 %v5612
    %5758 = vmatprep.subr.mxu0 %v5617
    %5759 = vmatpush1.msra.mxu0 %v5616
    %5760 = vmatprep.subr.mxu0 %v5621
    %5761 = vmatpush1.msra.mxu0 %v5620
    %5762 = vmatprep.subr.mxu0 %v5625
    %5763 = vmatpush1.msra.mxu0 %v5624
    %5764 = vmatprep.subr.mxu0 %v5629
    %5765 = vmatpush1.msra.mxu0 %v5628
    %5766 = vmatprep.subr.mxu0 %v5633
    %5767 = vmatpush1.msra.mxu0 %v5632
    %5768 = vmatprep.subr.mxu0 %v5637
    %5769 = vmatpush1.msra.mxu0 %v5636
    %5770 = vmatprep.subr.mxu0 %v5641
    %5771 = vmatpush1.msra.mxu0 %v5640
    %5772 = vmatprep.subr.mxu0 %v5645
    %5773 = vmatpush1.msra.mxu0 %v5644
    %5774 = vmatprep.subr.mxu0 %v5649
    %5775 = vmatpush1.msra.mxu0 %v5648
    %5776 = vmatprep.subr.mxu0 %v5653
    %5777 = vmatpush1.msra.mxu0 %v5652
    %5778 = vmatprep.subr.mxu0 %v5657
    %5779 = vmatpush1.msra.mxu0 %v5656
    %5780 = vmatprep.subr.mxu0 %v5661
    %5781 = vmatpush1.msra.mxu0 %v5660
    %5782 = vmatprep.subr.mxu0 0.0
    %5783 = vmatpush1.msra.mxu0 0.0
    %5784 = vmatprep.subr.mxu0 0.0
    %5785 = vmatpush1.msra.mxu0 0.0
    %5786 = vmatprep.subr.mxu0 0.0
    %5787 = vmatpush1.msra.mxu0 0.0
    %5788 = vmatprep.subr.mxu0 0.0
    %5789 = vmatpush1.msra.mxu0 0.0
    %5790 = vmatprep.subr.mxu0 0.0
    %5791 = vmatpush1.msra.mxu0 0.0
    %5792 = vmatprep.subr.mxu0 0.0
    %5793 = vmatpush1.msra.mxu0 0.0
    %5794 = vmatprep.subr.mxu0 0.0
    %5795 = vmatpush1.msra.mxu0 0.0
    %5796 = vmatprep.subr.mxu0 0.0
    %5797 = vmatpush1.msra.mxu0 0.0
    %5798 = vmatprep.subr.mxu0 0.0
    %5799 = vmatpush1.msra.mxu0 0.0
    %5800 = vmatprep.subr.mxu0 0.0
    %5801 = vmatpush1.msra.mxu0 0.0
    %5802 = vmatprep.subr.mxu0 0.0
    %5803 = vmatpush1.msra.mxu0 0.0
    %5804 = vmatprep.subr.mxu0 0.0
    %5805 = vmatpush1.msra.mxu0 0.0
    %5806 = vmatprep.subr.mxu0 0.0
    %5807 = vmatpush1.msra.mxu0 0.0
    %5808 = vmatprep.subr.mxu0 0.0
    %5809 = vmatpush1.msra.mxu0 0.0
    %5810 = vmatprep.subr.mxu0 0.0
    %5811 = vmatpush1.msra.mxu0 0.0
    %5812 = vmatprep.subr.mxu0 0.0
    %5813 = vmatpush1.msra.mxu0 0.0
    %5814 = vmatprep.mubr.f32.mxu0 0.0
    %5815 = vmatmul.mubr.f32.gmra.mrb[0].mxu0 %v5599
    %v5816 = vpop.f32.mrb[0].mxu0
    %v5817 = vadd.f32 %v5733, %v5816
    %v5818 = vpop.f32.mrb[0].mxu0
    %v5819 = vadd.f32 %v5737, %v5818
    %5820 = vdwg.mxu0
    %5821 = vmatprep.subr.mxu0 %v5603
    %5822 = vmatpush1.msra.mxu0 %v5602
    %5823 = vmatprep.subr.mxu0 %v5607
    %5824 = vmatpush1.msra.mxu0 %v5606
    %5825 = vmatprep.subr.mxu0 %v5611
    %5826 = vmatpush1.msra.mxu0 %v5610
    %5827 = vmatprep.subr.mxu0 %v5615
    %5828 = vmatpush1.msra.mxu0 %v5614
    %5829 = vmatprep.subr.mxu0 %v5619
    %5830 = vmatpush1.msra.mxu0 %v5618
    %5831 = vmatprep.subr.mxu0 %v5623
    %5832 = vmatpush1.msra.mxu0 %v5622
    %5833 = vmatprep.subr.mxu0 %v5627
    %5834 = vmatpush1.msra.mxu0 %v5626
    %5835 = vmatprep.subr.mxu0 %v5631
    %5836 = vmatpush1.msra.mxu0 %v5630
    %5837 = vmatprep.subr.mxu0 %v5635
    %5838 = vmatpush1.msra.mxu0 %v5634
    %5839 = vmatprep.subr.mxu0 %v5639
    %5840 = vmatpush1.msra.mxu0 %v5638
    %5841 = vmatprep.subr.mxu0 %v5643
    %5842 = vmatpush1.msra.mxu0 %v5642
    %5843 = vmatprep.subr.mxu0 %v5647
    %5844 = vmatpush1.msra.mxu0 %v5646
    %5845 = vmatprep.subr.mxu0 %v5651
    %5846 = vmatpush1.msra.mxu0 %v5650
    %5847 = vmatprep.subr.mxu0 %v5655
    %5848 = vmatpush1.msra.mxu0 %v5654
    %5849 = vmatprep.subr.mxu0 %v5659
    %5850 = vmatpush1.msra.mxu0 %v5658
    %5851 = vmatprep.subr.mxu0 %v5663
    %5852 = vmatpush1.msra.mxu0 %v5662
    %5853 = vmatprep.subr.mxu0 0.0
    %5854 = vmatpush1.msra.mxu0 0.0
    %5855 = vmatprep.subr.mxu0 0.0
    %5856 = vmatpush1.msra.mxu0 0.0
    %5857 = vmatprep.subr.mxu0 0.0
    %5858 = vmatpush1.msra.mxu0 0.0
    %5859 = vmatprep.subr.mxu0 0.0
    %5860 = vmatpush1.msra.mxu0 0.0
    %5861 = vmatprep.subr.mxu0 0.0
    %5862 = vmatpush1.msra.mxu0 0.0
    %5863 = vmatprep.subr.mxu0 0.0
    %5864 = vmatpush1.msra.mxu0 0.0
    %5865 = vmatprep.subr.mxu0 0.0
    %5866 = vmatpush1.msra.mxu0 0.0
    %5867 = vmatprep.subr.mxu0 0.0
    %5868 = vmatpush1.msra.mxu0 0.0
    %5869 = vmatprep.subr.mxu0 0.0
    %5870 = vmatpush1.msra.mxu0 0.0
    %5871 = vmatprep.subr.mxu0 0.0
    %5872 = vmatpush1.msra.mxu0 0.0
    %5873 = vmatprep.subr.mxu0 0.0
    %5874 = vmatpush1.msra.mxu0 0.0
    %5875 = vmatprep.subr.mxu0 0.0
    %5876 = vmatpush1.msra.mxu0 0.0
    %5877 = vmatprep.subr.mxu0 0.0
    %5878 = vmatpush1.msra.mxu0 0.0
    %5879 = vmatprep.subr.mxu0 0.0
    %5880 = vmatpush1.msra.mxu0 0.0
    %5881 = vmatprep.subr.mxu0 0.0
    %5882 = vmatpush1.msra.mxu0 0.0
    %5883 = vmatprep.subr.mxu0 0.0
    %5884 = vmatpush1.msra.mxu0 0.0
    %5885 = vmatprep.mubr.f32.mxu0 0.0
    %5886 = vmatmul.mubr.f32.gmra.mrb[0].mxu0 %v5599
    %v5887 = vpop.f32.mrb[0].mxu0
    %v5888 = vadd.f32 %v5741, %v5887
    %v5889 = vpop.f32.mrb[0].mxu0
    %v5890 = vadd.f32 %v5745, %v5889
    %5891 = vdwg.mxu0
    %5892 = vmatprep.subr.mxu0 %v5665
    %5893 = vmatpush1.msra.mxu0 %v5664
    %5894 = vmatprep.subr.mxu0 %v5669
    %5895 = vmatpush1.msra.mxu0 %v5668
    %5896 = vmatprep.subr.mxu0 %v5673
    %5897 = vmatpush1.msra.mxu0 %v5672
    %5898 = vmatprep.subr.mxu0 %v5677
    %5899 = vmatpush1.msra.mxu0 %v5676
    %5900 = vmatprep.subr.mxu0 %v5681
    %5901 = vmatpush1.msra.mxu0 %v5680
    %5902 = vmatprep.subr.mxu0 %v5685
    %5903 = vmatpush1.msra.mxu0 %v5684
    %5904 = vmatprep.subr.mxu0 %v5689
    %5905 = vmatpush1.msra.mxu0 %v5688
    %5906 = vmatprep.subr.mxu0 %v5693
    %5907 = vmatpush1.msra.mxu0 %v5692
    %5908 = vmatprep.subr.mxu0 %v5697
    %5909 = vmatpush1.msra.mxu0 %v5696
    %5910 = vmatprep.subr.mxu0 %v5701
    %5911 = vmatpush1.msra.mxu0 %v5700
    %5912 = vmatprep.subr.mxu0 %v5705
    %5913 = vmatpush1.msra.mxu0 %v5704
    %5914 = vmatprep.subr.mxu0 %v5709
    %5915 = vmatpush1.msra.mxu0 %v5708
    %5916 = vmatprep.subr.mxu0 %v5713
    %5917 = vmatpush1.msra.mxu0 %v5712
    %5918 = vmatprep.subr.mxu0 %v5717
    %5919 = vmatpush1.msra.mxu0 %v5716
    %5920 = vmatprep.subr.mxu0 %v5721
    %5921 = vmatpush1.msra.mxu0 %v5720
    %5922 = vmatprep.subr.mxu0 %v5725
    %5923 = vmatpush1.msra.mxu0 %v5724
    %5924 = vmatprep.subr.mxu0 0.0
    %5925 = vmatpush1.msra.mxu0 0.0
    %5926 = vmatprep.subr.mxu0 0.0
    %5927 = vmatpush1.msra.mxu0 0.0
    %5928 = vmatprep.subr.mxu0 0.0
    %5929 = vmatpush1.msra.mxu0 0.0
    %5930 = vmatprep.subr.mxu0 0.0
    %5931 = vmatpush1.msra.mxu0 0.0
    %5932 = vmatprep.subr.mxu0 0.0
    %5933 = vmatpush1.msra.mxu0 0.0
    %5934 = vmatprep.subr.mxu0 0.0
    %5935 = vmatpush1.msra.mxu0 0.0
    %5936 = vmatprep.subr.mxu0 0.0
    %5937 = vmatpush1.msra.mxu0 0.0
    %5938 = vmatprep.subr.mxu0 0.0
    %5939 = vmatpush1.msra.mxu0 0.0
    %5940 = vmatprep.subr.mxu0 0.0
    %5941 = vmatpush1.msra.mxu0 0.0
    %5942 = vmatprep.subr.mxu0 0.0
    %5943 = vmatpush1.msra.mxu0 0.0
    %5944 = vmatprep.subr.mxu0 0.0
    %5945 = vmatpush1.msra.mxu0 0.0
    %5946 = vmatprep.subr.mxu0 0.0
    %5947 = vmatpush1.msra.mxu0 0.0
    %5948 = vmatprep.subr.mxu0 0.0
    %5949 = vmatpush1.msra.mxu0 0.0
    %5950 = vmatprep.subr.mxu0 0.0
    %5951 = vmatpush1.msra.mxu0 0.0
    %5952 = vmatprep.subr.mxu0 0.0
    %5953 = vmatpush1.msra.mxu0 0.0
    %5954 = vmatprep.subr.mxu0 0.0
    %5955 = vmatpush1.msra.mxu0 0.0
    %5956 = vmatprep.mubr.f32.mxu0 0.0
    %5957 = vmatmul.mubr.f32.gmra.mrb[0].mxu0 0.0
    %v5958 = vpop.f32.mrb[0].mxu0
    %v5959 = vadd.f32 0.0, %v5958
    %v5960 = vpop.f32.mrb[0].mxu0
    %v5961 = vadd.f32 0.0, %v5960
    %5962 = vdwg.mxu0
    %5963 = vmatprep.subr.mxu0 %v5667
    %5964 = vmatpush1.msra.mxu0 %v5666
    %5965 = vmatprep.subr.mxu0 %v5671
    %5966 = vmatpush1.msra.mxu0 %v5670
    %5967 = vmatprep.subr.mxu0 %v5675
    %5968 = vmatpush1.msra.mxu0 %v5674
    %5969 = vmatprep.subr.mxu0 %v5679
    %5970 = vmatpush1.msra.mxu0 %v5678
    %5971 = vmatprep.subr.mxu0 %v5683
    %5972 = vmatpush1.msra.mxu0 %v5682
    %5973 = vmatprep.subr.mxu0 %v5687
    %5974 = vmatpush1.msra.mxu0 %v5686
    %5975 = vmatprep.subr.mxu0 %v5691
    %5976 = vmatpush1.msra.mxu0 %v5690
    %5977 = vmatprep.subr.mxu0 %v5695
    %5978 = vmatpush1.msra.mxu0 %v5694
    %5979 = vmatprep.subr.mxu0 %v5699
    %5980 = vmatpush1.msra.mxu0 %v5698
    %5981 = vmatprep.subr.mxu0 %v5703
    %5982 = vmatpush1.msra.mxu0 %v5702
    %5983 = vmatprep.subr.mxu0 %v5707
    %5984 = vmatpush1.msra.mxu0 %v5706
    %5985 = vmatprep.subr.mxu0 %v5711
    %5986 = vmatpush1.msra.mxu0 %v5710
    %5987 = vmatprep.subr.mxu0 %v5715
    %5988 = vmatpush1.msra.mxu0 %v5714
    %5989 = vmatprep.subr.mxu0 %v5719
    %5990 = vmatpush1.msra.mxu0 %v5718
    %5991 = vmatprep.subr.mxu0 %v5723
    %5992 = vmatpush1.msra.mxu0 %v5722
    %5993 = vmatprep.subr.mxu0 %v5727
    %5994 = vmatpush1.msra.mxu0 %v5726
    %5995 = vmatprep.subr.mxu0 0.0
    %5996 = vmatpush1.msra.mxu0 0.0
    %5997 = vmatprep.subr.mxu0 0.0
    %5998 = vmatpush1.msra.mxu0 0.0
    %5999 = vmatprep.subr.mxu0 0.0
    %6000 = vmatpush1.msra.mxu0 0.0
    %6001 = vmatprep.subr.mxu0 0.0
    %6002 = vmatpush1.msra.mxu0 0.0
    %6003 = vmatprep.subr.mxu0 0.0
    %6004 = vmatpush1.msra.mxu0 0.0
    %6005 = vmatprep.subr.mxu0 0.0
    %6006 = vmatpush1.msra.mxu0 0.0
    %6007 = vmatprep.subr.mxu0 0.0
    %6008 = vmatpush1.msra.mxu0 0.0
    %6009 = vmatprep.subr.mxu0 0.0
    %6010 = vmatpush1.msra.mxu0 0.0
    %6011 = vmatprep.subr.mxu0 0.0
    %6012 = vmatpush1.msra.mxu0 0.0
    %6013 = vmatprep.subr.mxu0 0.0
    %6014 = vmatpush1.msra.mxu0 0.0
    %6015 = vmatprep.subr.mxu0 0.0
    %6016 = vmatpush1.msra.mxu0 0.0
    %6017 = vmatprep.subr.mxu0 0.0
    %6018 = vmatpush1.msra.mxu0 0.0
    %6019 = vmatprep.subr.mxu0 0.0
    %6020 = vmatpush1.msra.mxu0 0.0
    %6021 = vmatprep.subr.mxu0 0.0
    %6022 = vmatpush1.msra.mxu0 0.0
    %6023 = vmatprep.subr.mxu0 0.0
    %6024 = vmatpush1.msra.mxu0 0.0
    %6025 = vmatprep.subr.mxu0 0.0
    %6026 = vmatpush1.msra.mxu0 0.0
    %6027 = vmatprep.mubr.f32.mxu0 0.0
    %6028 = vmatmul.mubr.f32.gmra.mrb[0].mxu0 0.0
    %v6029 = vpop.f32.mrb[0].mxu0
    %v6030 = vadd.f32 0.0, %v6029
    %v6031 = vpop.f32.mrb[0].mxu0
    %v6032 = vadd.f32 0.0, %v6031
    %6033 = vdwg.mxu0
    %v6034 = vadd.f32 %v5817, %v5959
    %v6035 = vadd.f32 %v5819, %v5961
    %v6036 = vadd.f32 %v5888, %v6030
    %v6037 = vadd.f32 %v5890, %v6032
    %v6038 = vxor.u32 %v6034, 2147483648
    %v6039 = vmul.f32 %v6038, 1.442695
    %v6040 = vpow.pop %v6039
    %v6041 = vadd.f32 %v6040, 1.0
    %v6042 = vrcp.pop %v6041
    %v6043 = vmul.f32 1.0, %v6042
    %v6044 = vxor.u32 %v6035, 2147483648
    %v6045 = vmul.f32 %v6044, 1.442695
    %v6046 = vpow.pop %v6045
    %v6047 = vadd.f32 %v6046, 1.0
    %v6048 = vrcp.pop %v6047
    %v6049 = vmul.f32 1.0, %v6048
    %v6050 = vtanh.pop %v6036
    %v6051 = vxor.u32 %v6037, 2147483648
    %v6052 = vmul.f32 %v6051, 1.442695
    %v6053 = vpow.pop %v6052
    %v6054 = vadd.f32 %v6053, 1.0
    %v6055 = vrcp.pop %v6054
    %v6056 = vmul.f32 1.0, %v6055
    %v6057 = vmul.f32 %v6049, 0.0
    %v6058 = vmul.f32 %v6043, %v6050
    %v6059 = vadd.f32 %v6057, %v6058
    %v6060 = vtanh.pop %v6059
    %v6061 = vmul.f32 %v6056, %v6060
    %6062 = vst [vmem:[#allocation2] sm:$0x1] %v6061
    %6063 = vmatprep.subr.mxu0 %v5665
    %6064 = vmatpush1.msra.mxu0 %v5664
    %6065 = vmatprep.subr.mxu0 %v5669
    %6066 = vmatpush1.msra.mxu0 %v5668
    %6067 = vmatprep.subr.mxu0 %v5673
    %6068 = vmatpush1.msra.mxu0 %v5672
    %6069 = vmatprep.subr.mxu0 %v5677
    %6070 = vmatpush1.msra.mxu0 %v5676
    %6071 = vmatprep.subr.mxu0 %v5681
    %6072 = vmatpush1.msra.mxu0 %v5680
    %6073 = vmatprep.subr.mxu0 %v5685
    %6074 = vmatpush1.msra.mxu0 %v5684
    %6075 = vmatprep.subr.mxu0 %v5689
    %6076 = vmatpush1.msra.mxu0 %v5688
    %6077 = vmatprep.subr.mxu0 %v5693
    %6078 = vmatpush1.msra.mxu0 %v5692
    %6079 = vmatprep.subr.mxu0 %v5697
    %6080 = vmatpush1.msra.mxu0 %v5696
    %6081 = vmatprep.subr.mxu0 %v5701
    %6082 = vmatpush1.msra.mxu0 %v5700
    %6083 = vmatprep.subr.mxu0 %v5705
    %6084 = vmatpush1.msra.mxu0 %v5704
    %6085 = vmatprep.subr.mxu0 %v5709
    %6086 = vmatpush1.msra.mxu0 %v5708
    %6087 = vmatprep.subr.mxu0 %v5713
    %6088 = vmatpush1.msra.mxu0 %v5712
    %6089 = vmatprep.subr.mxu0 %v5717
    %6090 = vmatpush1.msra.mxu0 %v5716
    %6091 = vmatprep.subr.mxu0 %v5721
    %6092 = vmatpush1.msra.mxu0 %v5720
    %6093 = vmatprep.subr.mxu0 %v5725
    %6094 = vmatpush1.msra.mxu0 %v5724
    %6095 = vmatprep.subr.mxu0 0.0
    %6096 = vmatpush1.msra.mxu0 0.0
    %6097 = vmatprep.subr.mxu0 0.0
    %6098 = vmatpush1.msra.mxu0 0.0
    %6099 = vmatprep.subr.mxu0 0.0
    %6100 = vmatpush1.msra.mxu0 0.0
    %6101 = vmatprep.subr.mxu0 0.0
    %6102 = vmatpush1.msra.mxu0 0.0
    %6103 = vmatprep.subr.mxu0 0.0
    %6104 = vmatpush1.msra.mxu0 0.0
    %6105 = vmatprep.subr.mxu0 0.0
    %6106 = vmatpush1.msra.mxu0 0.0
    %6107 = vmatprep.subr.mxu0 0.0
    %6108 = vmatpush1.msra.mxu0 0.0
    %6109 = vmatprep.subr.mxu0 0.0
    %6110 = vmatpush1.msra.mxu0 0.0
    %6111 = vmatprep.subr.mxu0 0.0
    %6112 = vmatpush1.msra.mxu0 0.0
    %6113 = vmatprep.subr.mxu0 0.0
    %6114 = vmatpush1.msra.mxu0 0.0
    %6115 = vmatprep.subr.mxu0 0.0
    %6116 = vmatpush1.msra.mxu0 0.0
    %6117 = vmatprep.subr.mxu0 0.0
    %6118 = vmatpush1.msra.mxu0 0.0
    %6119 = vmatprep.subr.mxu0 0.0
    %6120 = vmatpush1.msra.mxu0 0.0
    %6121 = vmatprep.subr.mxu0 0.0
    %6122 = vmatpush1.msra.mxu0 0.0
    %6123 = vmatprep.subr.mxu0 0.0
    %6124 = vmatpush1.msra.mxu0 0.0
    %6125 = vmatprep.subr.mxu0 0.0
    %6126 = vmatpush1.msra.mxu0 0.0
    %6127 = vmatprep.mubr.f32.mxu0 0.0
    %6128 = vmatmul.mubr.f32.gmra.mrb[0].mxu0 %v6061
    %v6129 = vpop.f32.mrb[0].mxu0
    %v6130 = vadd.f32 0.0, %v6129
    %v6131 = vpop.f32.mrb[0].mxu0
    %v6132 = vadd.f32 0.0, %v6131
    %6133 = vdwg.mxu0
    %6134 = vmatprep.subr.mxu0 %v5667
    %6135 = vmatpush1.msra.mxu0 %v5666
    %6136 = vmatprep.subr.mxu0 %v5671
    %6137 = vmatpush1.msra.mxu0 %v5670
    %6138 = vmatprep.subr.mxu0 %v5675
    %6139 = vmatpush1.msra.mxu0 %v5674
    %6140 = vmatprep.subr.mxu0 %v5679
    %6141 = vmatpush1.msra.mxu0 %v5678
    %6142 = vmatprep.subr.mxu0 %v5683
    %6143 = vmatpush1.msra.mxu0 %v5682
    %6144 = vmatprep.subr.mxu0 %v5687
    %6145 = vmatpush1.msra.mxu0 %v5686
    %6146 = vmatprep.subr.mxu0 %v5691
    %6147 = vmatpush1.msra.mxu0 %v5690
    %6148 = vmatprep.subr.mxu0 %v5695
    %6149 = vmatpush1.msra.mxu0 %v5694
    %6150 = vmatprep.subr.mxu0 %v5699
    %6151 = vmatpush1.msra.mxu0 %v5698
    %6152 = vmatprep.subr.mxu0 %v5703
    %6153 = vmatpush1.msra.mxu0 %v5702
    %6154 = vmatprep.subr.mxu0 %v5707
    %6155 = vmatpush1.msra.mxu0 %v5706
    %6156 = vmatprep.subr.mxu0 %v5711
    %6157 = vmatpush1.msra.mxu0 %v5710
    %6158 = vmatprep.subr.mxu0 %v5715
    %6159 = vmatpush1.msra.mxu0 %v5714
    %6160 = vmatprep.subr.mxu0 %v5719
    %6161 = vmatpush1.msra.mxu0 %v5718
    %6162 = vmatprep.subr.mxu0 %v5723
    %6163 = vmatpush1.msra.mxu0 %v5722
    %6164 = vmatprep.subr.mxu0 %v5727
    %6165 = vmatpush1.msra.mxu0 %v5726
    %6166 = vmatprep.subr.mxu0 0.0
    %6167 = vmatpush1.msra.mxu0 0.0
    %6168 = vmatprep.subr.mxu0 0.0
    %6169 = vmatpush1.msra.mxu0 0.0
    %6170 = vmatprep.subr.mxu0 0.0
    %6171 = vmatpush1.msra.mxu0 0.0
    %6172 = vmatprep.subr.mxu0 0.0
    %6173 = vmatpush1.msra.mxu0 0.0
    %6174 = vmatprep.subr.mxu0 0.0
    %6175 = vmatpush1.msra.mxu0 0.0
    %6176 = vmatprep.subr.mxu0 0.0
    %6177 = vmatpush1.msra.mxu0 0.0
    %6178 = vmatprep.subr.mxu0 0.0
    %6179 = vmatpush1.msra.mxu0 0.0
    %6180 = vmatprep.subr.mxu0 0.0
    %6181 = vmatpush1.msra.mxu0 0.0
    %6182 = vmatprep.subr.mxu0 0.0
    %6183 = vmatpush1.msra.mxu0 0.0
    %6184 = vmatprep.subr.mxu0 0.0
    %6185 = vmatpush1.msra.mxu0 0.0
    %6186 = vmatprep.subr.mxu0 0.0
    %6187 = vmatpush1.msra.mxu0 0.0
    %6188 = vmatprep.subr.mxu0 0.0
    %6189 = vmatpush1.msra.mxu0 0.0
    %6190 = vmatprep.subr.mxu0 0.0
    %6191 = vmatpush1.msra.mxu0 0.0
    %6192 = vmatprep.subr.mxu0 0.0
    %6193 = vmatpush1.msra.mxu0 0.0
    %6194 = vmatprep.subr.mxu0 0.0
    %6195 = vmatpush1.msra.mxu0 0.0
    %6196 = vmatprep.subr.mxu0 0.0
    %6197 = vmatpush1.msra.mxu0 0.0
    %6198 = vmatprep.mubr.f32.mxu0 0.0
    %6199 = vmatmul.mubr.f32.gmra.mrb[0].mxu0 %v6061
    %v6200 = vpop.f32.mrb[0].mxu0
    %v6201 = vadd.f32 0.0, %v6200
    %v6202 = vpop.f32.mrb[0].mxu0
    %v6203 = vadd.f32 0.0, %v6202
    %6204 = vdwg.mxu0
    %v6209 = vrot.slane %v6130, 7
    %v6210 = vrot.slane %v6132, 7
    %v6211 = vrot.slane %v6201, 7
    %v6212 = vrot.slane %v6203, 7
    %v6217 = vadd.f32 %v5817, %v6209
    %v6218 = vadd.f32 %v5819, %v6210
    %v6219 = vadd.f32 %v5888, %v6211
    %v6220 = vadd.f32 %v5890, %v6212
    %v6221 = vxor.u32 %v6217, 2147483648
    %v6222 = vmul.f32 %v6221, 1.442695
    %v6223 = vpow.pop %v6222
    %v6224 = vadd.f32 %v6223, 1.0
    %v6225 = vrcp.pop %v6224
    %v6226 = vmul.f32 1.0, %v6225
    %v6227 = vxor.u32 %v6218, 2147483648
    %v6228 = vmul.f32 %v6227, 1.442695
    %v6229 = vpow.pop %v6228
    %v6230 = vadd.f32 %v6229, 1.0
    %v6231 = vrcp.pop %v6230
    %v6232 = vmul.f32 1.0, %v6231
    %v6233 = vtanh.pop %v6219
    %v6234 = vxor.u32 %v6220, 2147483648
    %v6235 = vmul.f32 %v6234, 1.442695
    %v6236 = vpow.pop %v6235
    %v6237 = vadd.f32 %v6236, 1.0
    %v6238 = vrcp.pop %v6237
    %v6239 = vmul.f32 1.0, %v6238
    %v6241 = vrot.slane %v6059, 7
    %v6243 = vmul.f32 %v6232, %v6241
    %v6244 = vmul.f32 %v6226, %v6233
    %v6245 = vadd.f32 %v6243, %v6244
    %v6246 = vtanh.pop %v6245
    %v6247 = vmul.f32 %v6239, %v6246
    %6248 = vst [vmem:[#allocation2] sm:$0x2] %v6247
    %v6250 = vrot.slane %v6247, 1
    %6252 = vmatprep.subr.mxu0 %v5665
    %6253 = vmatpush1.msra.mxu0 %v5664
    %6254 = vmatprep.subr.mxu0 %v5669
    %6255 = vmatpush1.msra.mxu0 %v5668
    %6256 = vmatprep.subr.mxu0 %v5673
    %6257 = vmatpush1.msra.mxu0 %v5672
    %6258 = vmatprep.subr.mxu0 %v5677
    %6259 = vmatpush1.msra.mxu0 %v5676
    %6260 = vmatprep.subr.mxu0 %v5681
    %6261 = vmatpush1.msra.mxu0 %v5680
    %6262 = vmatprep.subr.mxu0 %v5685
    %6263 = vmatpush1.msra.mxu0 %v5684
    %6264 = vmatprep.subr.mxu0 %v5689
    %6265 = vmatpush1.msra.mxu0 %v5688
    %6266 = vmatprep.subr.mxu0 %v5693
    %6267 = vmatpush1.msra.mxu0 %v5692
    %6268 = vmatprep.subr.mxu0 %v5697
    %6269 = vmatpush1.msra.mxu0 %v5696
    %6270 = vmatprep.subr.mxu0 %v5701
    %6271 = vmatpush1.msra.mxu0 %v5700
    %6272 = vmatprep.subr.mxu0 %v5705
    %6273 = vmatpush1.msra.mxu0 %v5704
    %6274 = vmatprep.subr.mxu0 %v5709
    %6275 = vmatpush1.msra.mxu0 %v5708
    %6276 = vmatprep.subr.mxu0 %v5713
    %6277 = vmatpush1.msra.mxu0 %v5712
    %6278 = vmatprep.subr.mxu0 %v5717
    %6279 = vmatpush1.msra.mxu0 %v5716
    %6280 = vmatprep.subr.mxu0 %v5721
    %6281 = vmatpush1.msra.mxu0 %v5720
    %6282 = vmatprep.subr.mxu0 %v5725
    %6283 = vmatpush1.msra.mxu0 %v5724
    %6284 = vmatprep.subr.mxu0 0.0
    %6285 = vmatpush1.msra.mxu0 0.0
    %6286 = vmatprep.subr.mxu0 0.0
    %6287 = vmatpush1.msra.mxu0 0.0
    %6288 = vmatprep.subr.mxu0 0.0
    %6289 = vmatpush1.msra.mxu0 0.0
    %6290 = vmatprep.subr.mxu0 0.0
    %6291 = vmatpush1.msra.mxu0 0.0
    %6292 = vmatprep.subr.mxu0 0.0
    %6293 = vmatpush1.msra.mxu0 0.0
    %6294 = vmatprep.subr.mxu0 0.0
    %6295 = vmatpush1.msra.mxu0 0.0
    %6296 = vmatprep.subr.mxu0 0.0
    %6297 = vmatpush1.msra.mxu0 0.0
    %6298 = vmatprep.subr.mxu0 0.0
    %6299 = vmatpush1.msra.mxu0 0.0
    %6300 = vmatprep.subr.mxu0 0.0
    %6301 = vmatpush1.msra.mxu0 0.0
    %6302 = vmatprep.subr.mxu0 0.0
    %6303 = vmatpush1.msra.mxu0 0.0
    %6304 = vmatprep.subr.mxu0 0.0
    %6305 = vmatpush1.msra.mxu0 0.0
    %6306 = vmatprep.subr.mxu0 0.0
    %6307 = vmatpush1.msra.mxu0 0.0
    %6308 = vmatprep.subr.mxu0 0.0
    %6309 = vmatpush1.msra.mxu0 0.0
    %6310 = vmatprep.subr.mxu0 0.0
    %6311 = vmatpush1.msra.mxu0 0.0
    %6312 = vmatprep.subr.mxu0 0.0
    %6313 = vmatpush1.msra.mxu0 0.0
    %6314 = vmatprep.subr.mxu0 0.0
    %6315 = vmatpush1.msra.mxu0 0.0
    %6316 = vmatprep.mubr.f32.mxu0 0.0
    %6317 = vmatmul.mubr.f32.gmra.mrb[0].mxu0 %v6250
    %v6318 = vpop.f32.mrb[0].mxu0
    %v6319 = vadd.f32 0.0, %v6318
    %v6320 = vpop.f32.mrb[0].mxu0
    %v6321 = vadd.f32 0.0, %v6320
    %6322 = vdwg.mxu0
    %6323 = vmatprep.subr.mxu0 %v5667
    %6324 = vmatpush1.msra.mxu0 %v5666
    %6325 = vmatprep.subr.mxu0 %v5671
    %6326 = vmatpush1.msra.mxu0 %v5670
    %6327 = vmatprep.subr.mxu0 %v5675
    %6328 = vmatpush1.msra.mxu0 %v5674
    %6329 = vmatprep.subr.mxu0 %v5679
    %6330 = vmatpush1.msra.mxu0 %v5678
    %6331 = vmatprep.subr.mxu0 %v5683
    %6332 = vmatpush1.msra.mxu0 %v5682
    %6333 = vmatprep.subr.mxu0 %v5687
    %6334 = vmatpush1.msra.mxu0 %v5686
    %6335 = vmatprep.subr.mxu0 %v5691
    %6336 = vmatpush1.msra.mxu0 %v5690
    %6337 = vmatprep.subr.mxu0 %v5695
    %6338 = vmatpush1.msra.mxu0 %v5694
    %6339 = vmatprep.subr.mxu0 %v5699
    %6340 = vmatpush1.msra.mxu0 %v5698
    %6341 = vmatprep.subr.mxu0 %v5703
    %6342 = vmatpush1.msra.mxu0 %v5702
    %6343 = vmatprep.subr.mxu0 %v5707
    %6344 = vmatpush1.msra.mxu0 %v5706
    %6345 = vmatprep.subr.mxu0 %v5711
    %6346 = vmatpush1.msra.mxu0 %v5710
    %6347 = vmatprep.subr.mxu0 %v5715
    %6348 = vmatpush1.msra.mxu0 %v5714
    %6349 = vmatprep.subr.mxu0 %v5719
    %6350 = vmatpush1.msra.mxu0 %v5718
    %6351 = vmatprep.subr.mxu0 %v5723
    %6352 = vmatpush1.msra.mxu0 %v5722
    %6353 = vmatprep.subr.mxu0 %v5727
    %6354 = vmatpush1.msra.mxu0 %v5726
    %6355 = vmatprep.subr.mxu0 0.0
    %6356 = vmatpush1.msra.mxu0 0.0
    %6357 = vmatprep.subr.mxu0 0.0
    %6358 = vmatpush1.msra.mxu0 0.0
    %6359 = vmatprep.subr.mxu0 0.0
    %6360 = vmatpush1.msra.mxu0 0.0
    %6361 = vmatprep.subr.mxu0 0.0
    %6362 = vmatpush1.msra.mxu0 0.0
    %6363 = vmatprep.subr.mxu0 0.0
    %6364 = vmatpush1.msra.mxu0 0.0
    %6365 = vmatprep.subr.mxu0 0.0
    %6366 = vmatpush1.msra.mxu0 0.0
    %6367 = vmatprep.subr.mxu0 0.0
    %6368 = vmatpush1.msra.mxu0 0.0
    %6369 = vmatprep.subr.mxu0 0.0
    %6370 = vmatpush1.msra.mxu0 0.0
    %6371 = vmatprep.subr.mxu0 0.0
    %6372 = vmatpush1.msra.mxu0 0.0
    %6373 = vmatprep.subr.mxu0 0.0
    %6374 = vmatpush1.msra.mxu0 0.0
    %6375 = vmatprep.subr.mxu0 0.0
    %6376 = vmatpush1.msra.mxu0 0.0
    %6377 = vmatprep.subr.mxu0 0.0
    %6378 = vmatpush1.msra.mxu0 0.0
    %6379 = vmatprep.subr.mxu0 0.0
    %6380 = vmatpush1.msra.mxu0 0.0
    %6381 = vmatprep.subr.mxu0 0.0
    %6382 = vmatpush1.msra.mxu0 0.0
    %6383 = vmatprep.subr.mxu0 0.0
    %6384 = vmatpush1.msra.mxu0 0.0
    %6385 = vmatprep.subr.mxu0 0.0
    %6386 = vmatpush1.msra.mxu0 0.0
    %6387 = vmatprep.mubr.f32.mxu0 0.0
    %6388 = vmatmul.mubr.f32.gmra.mrb[0].mxu0 %v6250
    %v6389 = vpop.f32.mrb[0].mxu0
    %v6390 = vadd.f32 0.0, %v6389
    %v6391 = vpop.f32.mrb[0].mxu0
    %v6392 = vadd.f32 0.0, %v6391
    %6393 = vdwg.mxu0
    %v6398 = vrot.slane %v6319, 6
    %v6399 = vrot.slane %v6321, 6
    %v6400 = vrot.slane %v6390, 6
    %v6401 = vrot.slane %v6392, 6
    %v6406 = vadd.f32 %v5817, %v6398
    %v6407 = vadd.f32 %v5819, %v6399
    %v6408 = vadd.f32 %v5888, %v6400
    %v6409 = vadd.f32 %v5890, %v6401
    %v6410 = vxor.u32 %v6406, 2147483648
    %v6411 = vmul.f32 %v6410, 1.442695
    %v6412 = vpow.pop %v6411
    %v6413 = vadd.f32 %v6412, 1.0
    %v6414 = vrcp.pop %v6413
    %v6415 = vmul.f32 1.0, %v6414
    %v6416 = vxor.u32 %v6407, 2147483648
    %v6417 = vmul.f32 %v6416, 1.442695
    %v6418 = vpow.pop %v6417
    %v6419 = vadd.f32 %v6418, 1.0
    %v6420 = vrcp.pop %v6419
    %v6421 = vmul.f32 1.0, %v6420
    %v6422 = vtanh.pop %v6408
    %v6423 = vxor.u32 %v6409, 2147483648
    %v6424 = vmul.f32 %v6423, 1.442695
    %v6425 = vpow.pop %v6424
    %v6426 = vadd.f32 %v6425, 1.0
    %v6427 = vrcp.pop %v6426
    %v6428 = vmul.f32 1.0, %v6427
    %v6430 = vrot.slane %v6245, 7
    %v6432 = vmul.f32 %v6421, %v6430
    %v6433 = vmul.f32 %v6415, %v6422
    %v6434 = vadd.f32 %v6432, %v6433
    %v6435 = vtanh.pop %v6434
    %v6436 = vmul.f32 %v6428, %v6435
    %6437 = vst [vmem:[#allocation2] sm:$0x4] %v6436
    %v6439 = vrot.slane %v6436, 2
    %6441 = vmatprep.subr.mxu0 %v5665
    %6442 = vmatpush1.msra.mxu0 %v5664
    %6443 = vmatprep.subr.mxu0 %v5669
    %6444 = vmatpush1.msra.mxu0 %v5668
    %6445 = vmatprep.subr.mxu0 %v5673
    %6446 = vmatpush1.msra.mxu0 %v5672
    %6447 = vmatprep.subr.mxu0 %v5677
    %6448 = vmatpush1.msra.mxu0 %v5676
    %6449 = vmatprep.subr.mxu0 %v5681
    %6450 = vmatpush1.msra.mxu0 %v5680
    %6451 = vmatprep.subr.mxu0 %v5685
    %6452 = vmatpush1.msra.mxu0 %v5684
    %6453 = vmatprep.subr.mxu0 %v5689
    %6454 = vmatpush1.msra.mxu0 %v5688
    %6455 = vmatprep.subr.mxu0 %v5693
    %6456 = vmatpush1.msra.mxu0 %v5692
    %6457 = vmatprep.subr.mxu0 %v5697
    %6458 = vmatpush1.msra.mxu0 %v5696
    %6459 = vmatprep.subr.mxu0 %v5701
    %6460 = vmatpush1.msra.mxu0 %v5700
    %6461 = vmatprep.subr.mxu0 %v5705
    %6462 = vmatpush1.msra.mxu0 %v5704
    %6463 = vmatprep.subr.mxu0 %v5709
    %6464 = vmatpush1.msra.mxu0 %v5708
    %6465 = vmatprep.subr.mxu0 %v5713
    %6466 = vmatpush1.msra.mxu0 %v5712
    %6467 = vmatprep.subr.mxu0 %v5717
    %6468 = vmatpush1.msra.mxu0 %v5716
    %6469 = vmatprep.subr.mxu0 %v5721
    %6470 = vmatpush1.msra.mxu0 %v5720
    %6471 = vmatprep.subr.mxu0 %v5725
    %6472 = vmatpush1.msra.mxu0 %v5724
    %6473 = vmatprep.subr.mxu0 0.0
    %6474 = vmatpush1.msra.mxu0 0.0
    %6475 = vmatprep.subr.mxu0 0.0
    %6476 = vmatpush1.msra.mxu0 0.0
    %6477 = vmatprep.subr.mxu0 0.0
    %6478 = vmatpush1.msra.mxu0 0.0
    %6479 = vmatprep.subr.mxu0 0.0
    %6480 = vmatpush1.msra.mxu0 0.0
    %6481 = vmatprep.subr.mxu0 0.0
    %6482 = vmatpush1.msra.mxu0 0.0
    %6483 = vmatprep.subr.mxu0 0.0
    %6484 = vmatpush1.msra.mxu0 0.0
    %6485 = vmatprep.subr.mxu0 0.0
    %6486 = vmatpush1.msra.mxu0 0.0
    %6487 = vmatprep.subr.mxu0 0.0
    %6488 = vmatpush1.msra.mxu0 0.0
    %6489 = vmatprep.subr.mxu0 0.0
    %6490 = vmatpush1.msra.mxu0 0.0
    %6491 = vmatprep.subr.mxu0 0.0
    %6492 = vmatpush1.msra.mxu0 0.0
    %6493 = vmatprep.subr.mxu0 0.0
    %6494 = vmatpush1.msra.mxu0 0.0
    %6495 = vmatprep.subr.mxu0 0.0
    %6496 = vmatpush1.msra.mxu0 0.0
    %6497 = vmatprep.subr.mxu0 0.0
    %6498 = vmatpush1.msra.mxu0 0.0
    %6499 = vmatprep.subr.mxu0 0.0
    %6500 = vmatpush1.msra.mxu0 0.0
    %6501 = vmatprep.subr.mxu0 0.0
    %6502 = vmatpush1.msra.mxu0 0.0
    %6503 = vmatprep.subr.mxu0 0.0
    %6504 = vmatpush1.msra.mxu0 0.0
    %6505 = vmatprep.mubr.f32.mxu0 0.0
    %6506 = vmatmul.mubr.f32.gmra.mrb[0].mxu0 %v6439
    %v6507 = vpop.f32.mrb[0].mxu0
    %v6508 = vadd.f32 0.0, %v6507
    %v6509 = vpop.f32.mrb[0].mxu0
    %v6510 = vadd.f32 0.0, %v6509
    %6511 = vdwg.mxu0
    %6512 = vmatprep.subr.mxu0 %v5667
    %6513 = vmatpush1.msra.mxu0 %v5666
    %6514 = vmatprep.subr.mxu0 %v5671
    %6515 = vmatpush1.msra.mxu0 %v5670
    %6516 = vmatprep.subr.mxu0 %v5675
    %6517 = vmatpush1.msra.mxu0 %v5674
    %6518 = vmatprep.subr.mxu0 %v5679
    %6519 = vmatpush1.msra.mxu0 %v5678
    %6520 = vmatprep.subr.mxu0 %v5683
    %6521 = vmatpush1.msra.mxu0 %v5682
    %6522 = vmatprep.subr.mxu0 %v5687
    %6523 = vmatpush1.msra.mxu0 %v5686
    %6524 = vmatprep.subr.mxu0 %v5691
    %6525 = vmatpush1.msra.mxu0 %v5690
    %6526 = vmatprep.subr.mxu0 %v5695
    %6527 = vmatpush1.msra.mxu0 %v5694
    %6528 = vmatprep.subr.mxu0 %v5699
    %6529 = vmatpush1.msra.mxu0 %v5698
    %6530 = vmatprep.subr.mxu0 %v5703
    %6531 = vmatpush1.msra.mxu0 %v5702
    %6532 = vmatprep.subr.mxu0 %v5707
    %6533 = vmatpush1.msra.mxu0 %v5706
    %6534 = vmatprep.subr.mxu0 %v5711
    %6535 = vmatpush1.msra.mxu0 %v5710
    %6536 = vmatprep.subr.mxu0 %v5715
    %6537 = vmatpush1.msra.mxu0 %v5714
    %6538 = vmatprep.subr.mxu0 %v5719
    %6539 = vmatpush1.msra.mxu0 %v5718
    %6540 = vmatprep.subr.mxu0 %v5723
    %6541 = vmatpush1.msra.mxu0 %v5722
    %6542 = vmatprep.subr.mxu0 %v5727
    %6543 = vmatpush1.msra.mxu0 %v5726
    %6544 = vmatprep.subr.mxu0 0.0
    %6545 = vmatpush1.msra.mxu0 0.0
    %6546 = vmatprep.subr.mxu0 0.0
    %6547 = vmatpush1.msra.mxu0 0.0
    %6548 = vmatprep.subr.mxu0 0.0
    %6549 = vmatpush1.msra.mxu0 0.0
    %6550 = vmatprep.subr.mxu0 0.0
    %6551 = vmatpush1.msra.mxu0 0.0
    %6552 = vmatprep.subr.mxu0 0.0
    %6553 = vmatpush1.msra.mxu0 0.0
    %6554 = vmatprep.subr.mxu0 0.0
    %6555 = vmatpush1.msra.mxu0 0.0
    %6556 = vmatprep.subr.mxu0 0.0
    %6557 = vmatpush1.msra.mxu0 0.0
    %6558 = vmatprep.subr.mxu0 0.0
    %6559 = vmatpush1.msra.mxu0 0.0
    %6560 = vmatprep.subr.mxu0 0.0
    %6561 = vmatpush1.msra.mxu0 0.0
    %6562 = vmatprep.subr.mxu0 0.0
    %6563 = vmatpush1.msra.mxu0 0.0
    %6564 = vmatprep.subr.mxu0 0.0
    %6565 = vmatpush1.msra.mxu0 0.0
    %6566 = vmatprep.subr.mxu0 0.0
    %6567 = vmatpush1.msra.mxu0 0.0
    %6568 = vmatprep.subr.mxu0 0.0
    %6569 = vmatpush1.msra.mxu0 0.0
    %6570 = vmatprep.subr.mxu0 0.0
    %6571 = vmatpush1.msra.mxu0 0.0
    %6572 = vmatprep.subr.mxu0 0.0
    %6573 = vmatpush1.msra.mxu0 0.0
    %6574 = vmatprep.subr.mxu0 0.0
    %6575 = vmatpush1.msra.mxu0 0.0
    %6576 = vmatprep.mubr.f32.mxu0 0.0
    %6577 = vmatmul.mubr.f32.gmra.mrb[0].mxu0 %v6439
    %v6578 = vpop.f32.mrb[0].mxu0
    %v6579 = vadd.f32 0.0, %v6578
    %v6580 = vpop.f32.mrb[0].mxu0
    %v6581 = vadd.f32 0.0, %v6580
    %6582 = vdwg.mxu0
    %v6587 = vrot.slane %v6508, 5
    %v6588 = vrot.slane %v6510, 5
    %v6589 = vrot.slane %v6579, 5
    %v6590 = vrot.slane %v6581, 5
    %v6595 = vadd.f32 %v5817, %v6587
    %v6596 = vadd.f32 %v5819, %v6588
    %v6597 = vadd.f32 %v5888, %v6589
    %v6598 = vadd.f32 %v5890, %v6590
    %v6599 = vxor.u32 %v6595, 2147483648
    %v6600 = vmul.f32 %v6599, 1.442695
    %v6601 = vpow.pop %v6600
    %v6602 = vadd.f32 %v6601, 1.0
    %v6603 = vrcp.pop %v6602
    %v6604 = vmul.f32 1.0, %v6603
    %v6605 = vxor.u32 %v6596, 2147483648
    %v6606 = vmul.f32 %v6605, 1.442695
    %v6607 = vpow.pop %v6606
    %v6608 = vadd.f32 %v6607, 1.0
    %v6609 = vrcp.pop %v6608
    %v6610 = vmul.f32 1.0, %v6609
    %v6611 = vtanh.pop %v6597
    %v6612 = vxor.u32 %v6598, 2147483648
    %v6613 = vmul.f32 %v6612, 1.442695
    %v6614 = vpow.pop %v6613
    %v6615 = vadd.f32 %v6614, 1.0
    %v6616 = vrcp.pop %v6615
    %v6617 = vmul.f32 1.0, %v6616
    %v6619 = vrot.slane %v6434, 7
    %v6621 = vmul.f32 %v6610, %v6619
    %v6622 = vmul.f32 %v6604, %v6611
    %v6623 = vadd.f32 %v6621, %v6622
    %v6624 = vtanh.pop %v6623
    %v6625 = vmul.f32 %v6617, %v6624
    %6626 = vst [vmem:[#allocation2] sm:$0x8] %v6625
    %v6628 = vrot.slane %v6625, 3
    %6630 = vmatprep.subr.mxu0 %v5665
    %6631 = vmatpush1.msra.mxu0 %v5664
    %6632 = vmatprep.subr.mxu0 %v5669
    %6633 = vmatpush1.msra.mxu0 %v5668
    %6634 = vmatprep.subr.mxu0 %v5673
    %6635 = vmatpush1.msra.mxu0 %v5672
    %6636 = vmatprep.subr.mxu0 %v5677
    %6637 = vmatpush1.msra.mxu0 %v5676
    %6638 = vmatprep.subr.mxu0 %v5681
    %6639 = vmatpush1.msra.mxu0 %v5680
    %6640 = vmatprep.subr.mxu0 %v5685
    %6641 = vmatpush1.msra.mxu0 %v5684
    %6642 = vmatprep.subr.mxu0 %v5689
    %6643 = vmatpush1.msra.mxu0 %v5688
    %6644 = vmatprep.subr.mxu0 %v5693
    %6645 = vmatpush1.msra.mxu0 %v5692
    %6646 = vmatprep.subr.mxu0 %v5697
    %6647 = vmatpush1.msra.mxu0 %v5696
    %6648 = vmatprep.subr.mxu0 %v5701
    %6649 = vmatpush1.msra.mxu0 %v5700
    %6650 = vmatprep.subr.mxu0 %v5705
    %6651 = vmatpush1.msra.mxu0 %v5704
    %6652 = vmatprep.subr.mxu0 %v5709
    %6653 = vmatpush1.msra.mxu0 %v5708
    %6654 = vmatprep.subr.mxu0 %v5713
    %6655 = vmatpush1.msra.mxu0 %v5712
    %6656 = vmatprep.subr.mxu0 %v5717
    %6657 = vmatpush1.msra.mxu0 %v5716
    %6658 = vmatprep.subr.mxu0 %v5721
    %6659 = vmatpush1.msra.mxu0 %v5720
    %6660 = vmatprep.subr.mxu0 %v5725
    %6661 = vmatpush1.msra.mxu0 %v5724
    %6662 = vmatprep.subr.mxu0 0.0
    %6663 = vmatpush1.msra.mxu0 0.0
    %6664 = vmatprep.subr.mxu0 0.0
    %6665 = vmatpush1.msra.mxu0 0.0
    %6666 = vmatprep.subr.mxu0 0.0
    %6667 = vmatpush1.msra.mxu0 0.0
    %6668 = vmatprep.subr.mxu0 0.0
    %6669 = vmatpush1.msra.mxu0 0.0
    %6670 = vmatprep.subr.mxu0 0.0
    %6671 = vmatpush1.msra.mxu0 0.0
    %6672 = vmatprep.subr.mxu0 0.0
    %6673 = vmatpush1.msra.mxu0 0.0
    %6674 = vmatprep.subr.mxu0 0.0
    %6675 = vmatpush1.msra.mxu0 0.0
    %6676 = vmatprep.subr.mxu0 0.0
    %6677 = vmatpush1.msra.mxu0 0.0
    %6678 = vmatprep.subr.mxu0 0.0
    %6679 = vmatpush1.msra.mxu0 0.0
    %6680 = vmatprep.subr.mxu0 0.0
    %6681 = vmatpush1.msra.mxu0 0.0
    %6682 = vmatprep.subr.mxu0 0.0
    %6683 = vmatpush1.msra.mxu0 0.0
    %6684 = vmatprep.subr.mxu0 0.0
    %6685 = vmatpush1.msra.mxu0 0.0
    %6686 = vmatprep.subr.mxu0 0.0
    %6687 = vmatpush1.msra.mxu0 0.0
    %6688 = vmatprep.subr.mxu0 0.0
    %6689 = vmatpush1.msra.mxu0 0.0
    %6690 = vmatprep.subr.mxu0 0.0
    %6691 = vmatpush1.msra.mxu0 0.0
    %6692 = vmatprep.subr.mxu0 0.0
    %6693 = vmatpush1.msra.mxu0 0.0
    %6694 = vmatprep.mubr.f32.mxu0 0.0
    %6695 = vmatmul.mubr.f32.gmra.mrb[0].mxu0 %v6628
    %v6696 = vpop.f32.mrb[0].mxu0
    %v6697 = vadd.f32 0.0, %v6696
    %v6698 = vpop.f32.mrb[0].mxu0
    %v6699 = vadd.f32 0.0, %v6698
    %6700 = vdwg.mxu0
    %6701 = vmatprep.subr.mxu0 %v5667
    %6702 = vmatpush1.msra.mxu0 %v5666
    %6703 = vmatprep.subr.mxu0 %v5671
    %6704 = vmatpush1.msra.mxu0 %v5670
    %6705 = vmatprep.subr.mxu0 %v5675
    %6706 = vmatpush1.msra.mxu0 %v5674
    %6707 = vmatprep.subr.mxu0 %v5679
    %6708 = vmatpush1.msra.mxu0 %v5678
    %6709 = vmatprep.subr.mxu0 %v5683
    %6710 = vmatpush1.msra.mxu0 %v5682
    %6711 = vmatprep.subr.mxu0 %v5687
    %6712 = vmatpush1.msra.mxu0 %v5686
    %6713 = vmatprep.subr.mxu0 %v5691
    %6714 = vmatpush1.msra.mxu0 %v5690
    %6715 = vmatprep.subr.mxu0 %v5695
    %6716 = vmatpush1.msra.mxu0 %v5694
    %6717 = vmatprep.subr.mxu0 %v5699
    %6718 = vmatpush1.msra.mxu0 %v5698
    %6719 = vmatprep.subr.mxu0 %v5703
    %6720 = vmatpush1.msra.mxu0 %v5702
    %6721 = vmatprep.subr.mxu0 %v5707
    %6722 = vmatpush1.msra.mxu0 %v5706
    %6723 = vmatprep.subr.mxu0 %v5711
    %6724 = vmatpush1.msra.mxu0 %v5710
    %6725 = vmatprep.subr.mxu0 %v5715
    %6726 = vmatpush1.msra.mxu0 %v5714
    %6727 = vmatprep.subr.mxu0 %v5719
    %6728 = vmatpush1.msra.mxu0 %v5718
    %6729 = vmatprep.subr.mxu0 %v5723
    %6730 = vmatpush1.msra.mxu0 %v5722
    %6731 = vmatprep.subr.mxu0 %v5727
    %6732 = vmatpush1.msra.mxu0 %v5726
    %6733 = vmatprep.subr.mxu0 0.0
    %6734 = vmatpush1.msra.mxu0 0.0
    %6735 = vmatprep.subr.mxu0 0.0
    %6736 = vmatpush1.msra.mxu0 0.0
    %6737 = vmatprep.subr.mxu0 0.0
    %6738 = vmatpush1.msra.mxu0 0.0
    %6739 = vmatprep.subr.mxu0 0.0
    %6740 = vmatpush1.msra.mxu0 0.0
    %6741 = vmatprep.subr.mxu0 0.0
    %6742 = vmatpush1.msra.mxu0 0.0
    %6743 = vmatprep.subr.mxu0 0.0
    %6744 = vmatpush1.msra.mxu0 0.0
    %6745 = vmatprep.subr.mxu0 0.0
    %6746 = vmatpush1.msra.mxu0 0.0
    %6747 = vmatprep.subr.mxu0 0.0
    %6748 = vmatpush1.msra.mxu0 0.0
    %6749 = vmatprep.subr.mxu0 0.0
    %6750 = vmatpush1.msra.mxu0 0.0
    %6751 = vmatprep.subr.mxu0 0.0
    %6752 = vmatpush1.msra.mxu0 0.0
    %6753 = vmatprep.subr.mxu0 0.0
    %6754 = vmatpush1.msra.mxu0 0.0
    %6755 = vmatprep.subr.mxu0 0.0
    %6756 = vmatpush1.msra.mxu0 0.0
    %6757 = vmatprep.subr.mxu0 0.0
    %6758 = vmatpush1.msra.mxu0 0.0
    %6759 = vmatprep.subr.mxu0 0.0
    %6760 = vmatpush1.msra.mxu0 0.0
    %6761 = vmatprep.subr.mxu0 0.0
    %6762 = vmatpush1.msra.mxu0 0.0
    %6763 = vmatprep.subr.mxu0 0.0
    %6764 = vmatpush1.msra.mxu0 0.0
    %6765 = vmatprep.mubr.f32.mxu0 0.0
    %6766 = vmatmul.mubr.f32.gmra.mrb[0].mxu0 %v6628
    %v6767 = vpop.f32.mrb[0].mxu0
    %v6768 = vadd.f32 0.0, %v6767
    %v6769 = vpop.f32.mrb[0].mxu0
    %v6770 = vadd.f32 0.0, %v6769
    %6771 = vdwg.mxu0
    %v6776 = vrot.slane %v6697, 4
    %v6777 = vrot.slane %v6699, 4
    %v6778 = vrot.slane %v6768, 4
    %v6779 = vrot.slane %v6770, 4
    %v6784 = vadd.f32 %v5817, %v6776
    %v6785 = vadd.f32 %v5819, %v6777
    %v6786 = vadd.f32 %v5888, %v6778
    %v6787 = vadd.f32 %v5890, %v6779
    %v6788 = vxor.u32 %v6784, 2147483648
    %v6789 = vmul.f32 %v6788, 1.442695
    %v6790 = vpow.pop %v6789
    %v6791 = vadd.f32 %v6790, 1.0
    %v6792 = vrcp.pop %v6791
    %v6793 = vmul.f32 1.0, %v6792
    %v6794 = vxor.u32 %v6785, 2147483648
    %v6795 = vmul.f32 %v6794, 1.442695
    %v6796 = vpow.pop %v6795
    %v6797 = vadd.f32 %v6796, 1.0
    %v6798 = vrcp.pop %v6797
    %v6799 = vmul.f32 1.0, %v6798
    %v6800 = vtanh.pop %v6786
    %v6801 = vxor.u32 %v6787, 2147483648
    %v6802 = vmul.f32 %v6801, 1.442695
    %v6803 = vpow.pop %v6802
    %v6804 = vadd.f32 %v6803, 1.0
    %v6805 = vrcp.pop %v6804
    %v6806 = vmul.f32 1.0, %v6805
    %v6808 = vrot.slane %v6623, 7
    %v6810 = vmul.f32 %v6799, %v6808
    %v6811 = vmul.f32 %v6793, %v6800
    %v6812 = vadd.f32 %v6810, %v6811
    %v6813 = vtanh.pop %v6812
    %v6814 = vmul.f32 %v6806, %v6813
    %6815 = vst [vmem:[#allocation2] sm:$0x10] %v6814
    %v6817 = vrot.slane %v6814, 4
    %6819 = vmatprep.subr.mxu0 %v5665
    %6820 = vmatpush1.msra.mxu0 %v5664
    %6821 = vmatprep.subr.mxu0 %v5669
    %6822 = vmatpush1.msra.mxu0 %v5668
    %6823 = vmatprep.subr.mxu0 %v5673
    %6824 = vmatpush1.msra.mxu0 %v5672
    %6825 = vmatprep.subr.mxu0 %v5677
    %6826 = vmatpush1.msra.mxu0 %v5676
    %6827 = vmatprep.subr.mxu0 %v5681
    %6828 = vmatpush1.msra.mxu0 %v5680
    %6829 = vmatprep.subr.mxu0 %v5685
    %6830 = vmatpush1.msra.mxu0 %v5684
    %6831 = vmatprep.subr.mxu0 %v5689
    %6832 = vmatpush1.msra.mxu0 %v5688
    %6833 = vmatprep.subr.mxu0 %v5693
    %6834 = vmatpush1.msra.mxu0 %v5692
    %6835 = vmatprep.subr.mxu0 %v5697
    %6836 = vmatpush1.msra.mxu0 %v5696
    %6837 = vmatprep.subr.mxu0 %v5701
    %6838 = vmatpush1.msra.mxu0 %v5700
    %6839 = vmatprep.subr.mxu0 %v5705
    %6840 = vmatpush1.msra.mxu0 %v5704
    %6841 = vmatprep.subr.mxu0 %v5709
    %6842 = vmatpush1.msra.mxu0 %v5708
    %6843 = vmatprep.subr.mxu0 %v5713
    %6844 = vmatpush1.msra.mxu0 %v5712
    %6845 = vmatprep.subr.mxu0 %v5717
    %6846 = vmatpush1.msra.mxu0 %v5716
    %6847 = vmatprep.subr.mxu0 %v5721
    %6848 = vmatpush1.msra.mxu0 %v5720
    %6849 = vmatprep.subr.mxu0 %v5725
    %6850 = vmatpush1.msra.mxu0 %v5724
    %6851 = vmatprep.subr.mxu0 0.0
    %6852 = vmatpush1.msra.mxu0 0.0
    %6853 = vmatprep.subr.mxu0 0.0
    %6854 = vmatpush1.msra.mxu0 0.0
    %6855 = vmatprep.subr.mxu0 0.0
    %6856 = vmatpush1.msra.mxu0 0.0
    %6857 = vmatprep.subr.mxu0 0.0
    %6858 = vmatpush1.msra.mxu0 0.0
    %6859 = vmatprep.subr.mxu0 0.0
    %6860 = vmatpush1.msra.mxu0 0.0
    %6861 = vmatprep.subr.mxu0 0.0
    %6862 = vmatpush1.msra.mxu0 0.0
    %6863 = vmatprep.subr.mxu0 0.0
    %6864 = vmatpush1.msra.mxu0 0.0
    %6865 = vmatprep.subr.mxu0 0.0
    %6866 = vmatpush1.msra.mxu0 0.0
    %6867 = vmatprep.subr.mxu0 0.0
    %6868 = vmatpush1.msra.mxu0 0.0
    %6869 = vmatprep.subr.mxu0 0.0
    %6870 = vmatpush1.msra.mxu0 0.0
    %6871 = vmatprep.subr.mxu0 0.0
    %6872 = vmatpush1.msra.mxu0 0.0
    %6873 = vmatprep.subr.mxu0 0.0
    %6874 = vmatpush1.msra.mxu0 0.0
    %6875 = vmatprep.subr.mxu0 0.0
    %6876 = vmatpush1.msra.mxu0 0.0
    %6877 = vmatprep.subr.mxu0 0.0
    %6878 = vmatpush1.msra.mxu0 0.0
    %6879 = vmatprep.subr.mxu0 0.0
    %6880 = vmatpush1.msra.mxu0 0.0
    %6881 = vmatprep.subr.mxu0 0.0
    %6882 = vmatpush1.msra.mxu0 0.0
    %6883 = vmatprep.mubr.f32.mxu0 0.0
    %6884 = vmatmul.mubr.f32.gmra.mrb[0].mxu0 %v6817
    %v6885 = vpop.f32.mrb[0].mxu0
    %v6886 = vadd.f32 0.0, %v6885
    %v6887 = vpop.f32.mrb[0].mxu0
    %v6888 = vadd.f32 0.0, %v6887
    %6889 = vdwg.mxu0
    %6890 = vmatprep.subr.mxu0 %v5667
    %6891 = vmatpush1.msra.mxu0 %v5666
    %6892 = vmatprep.subr.mxu0 %v5671
    %6893 = vmatpush1.msra.mxu0 %v5670
    %6894 = vmatprep.subr.mxu0 %v5675
    %6895 = vmatpush1.msra.mxu0 %v5674
    %6896 = vmatprep.subr.mxu0 %v5679
    %6897 = vmatpush1.msra.mxu0 %v5678
    %6898 = vmatprep.subr.mxu0 %v5683
    %6899 = vmatpush1.msra.mxu0 %v5682
    %6900 = vmatprep.subr.mxu0 %v5687
    %6901 = vmatpush1.msra.mxu0 %v5686
    %6902 = vmatprep.subr.mxu0 %v5691
    %6903 = vmatpush1.msra.mxu0 %v5690
    %6904 = vmatprep.subr.mxu0 %v5695
    %6905 = vmatpush1.msra.mxu0 %v5694
    %6906 = vmatprep.subr.mxu0 %v5699
    %6907 = vmatpush1.msra.mxu0 %v5698
    %6908 = vmatprep.subr.mxu0 %v5703
    %6909 = vmatpush1.msra.mxu0 %v5702
    %6910 = vmatprep.subr.mxu0 %v5707
    %6911 = vmatpush1.msra.mxu0 %v5706
    %6912 = vmatprep.subr.mxu0 %v5711
    %6913 = vmatpush1.msra.mxu0 %v5710
    %6914 = vmatprep.subr.mxu0 %v5715
    %6915 = vmatpush1.msra.mxu0 %v5714
    %6916 = vmatprep.subr.mxu0 %v5719
    %6917 = vmatpush1.msra.mxu0 %v5718
    %6918 = vmatprep.subr.mxu0 %v5723
    %6919 = vmatpush1.msra.mxu0 %v5722
    %6920 = vmatprep.subr.mxu0 %v5727
    %6921 = vmatpush1.msra.mxu0 %v5726
    %6922 = vmatprep.subr.mxu0 0.0
    %6923 = vmatpush1.msra.mxu0 0.0
    %6924 = vmatprep.subr.mxu0 0.0
    %6925 = vmatpush1.msra.mxu0 0.0
    %6926 = vmatprep.subr.mxu0 0.0
    %6927 = vmatpush1.msra.mxu0 0.0
    %6928 = vmatprep.subr.mxu0 0.0
    %6929 = vmatpush1.msra.mxu0 0.0
    %6930 = vmatprep.subr.mxu0 0.0
    %6931 = vmatpush1.msra.mxu0 0.0
    %6932 = vmatprep.subr.mxu0 0.0
    %6933 = vmatpush1.msra.mxu0 0.0
    %6934 = vmatprep.subr.mxu0 0.0
    %6935 = vmatpush1.msra.mxu0 0.0
    %6936 = vmatprep.subr.mxu0 0.0
    %6937 = vmatpush1.msra.mxu0 0.0
    %6938 = vmatprep.subr.mxu0 0.0
    %6939 = vmatpush1.msra.mxu0 0.0
    %6940 = vmatprep.subr.mxu0 0.0
    %6941 = vmatpush1.msra.mxu0 0.0
    %6942 = vmatprep.subr.mxu0 0.0
    %6943 = vmatpush1.msra.mxu0 0.0
    %6944 = vmatprep.subr.mxu0 0.0
    %6945 = vmatpush1.msra.mxu0 0.0
    %6946 = vmatprep.subr.mxu0 0.0
    %6947 = vmatpush1.msra.mxu0 0.0
    %6948 = vmatprep.subr.mxu0 0.0
    %6949 = vmatpush1.msra.mxu0 0.0
    %6950 = vmatprep.subr.mxu0 0.0
    %6951 = vmatpush1.msra.mxu0 0.0
    %6952 = vmatprep.subr.mxu0 0.0
    %6953 = vmatpush1.msra.mxu0 0.0
    %6954 = vmatprep.mubr.f32.mxu0 0.0
    %6955 = vmatmul.mubr.f32.gmra.mrb[0].mxu0 %v6817
    %v6956 = vpop.f32.mrb[0].mxu0
    %v6957 = vadd.f32 0.0, %v6956
    %v6958 = vpop.f32.mrb[0].mxu0
    %v6959 = vadd.f32 0.0, %v6958
    %6960 = vdwg.mxu0
    %v6965 = vrot.slane %v6886, 3
    %v6966 = vrot.slane %v6888, 3
    %v6967 = vrot.slane %v6957, 3
    %v6968 = vrot.slane %v6959, 3
    %v6973 = vadd.f32 %v5817, %v6965
    %v6974 = vadd.f32 %v5819, %v6966
    %v6975 = vadd.f32 %v5888, %v6967
    %v6976 = vadd.f32 %v5890, %v6968
    %v6977 = vxor.u32 %v6973, 2147483648
    %v6978 = vmul.f32 %v6977, 1.442695
    %v6979 = vpow.pop %v6978
    %v6980 = vadd.f32 %v6979, 1.0
    %v6981 = vrcp.pop %v6980
    %v6982 = vmul.f32 1.0, %v6981
    %v6983 = vxor.u32 %v6974, 2147483648
    %v6984 = vmul.f32 %v6983, 1.442695
    %v6985 = vpow.pop %v6984
    %v6986 = vadd.f32 %v6985, 1.0
    %v6987 = vrcp.pop %v6986
    %v6988 = vmul.f32 1.0, %v6987
    %v6989 = vtanh.pop %v6975
    %v6990 = vxor.u32 %v6976, 2147483648
    %v6991 = vmul.f32 %v6990, 1.442695
    %v6992 = vpow.pop %v6991
    %v6993 = vadd.f32 %v6992, 1.0
    %v6994 = vrcp.pop %v6993
    %v6995 = vmul.f32 1.0, %v6994
    %v6997 = vrot.slane %v6812, 7
    %v6999 = vmul.f32 %v6988, %v6997
    %v7000 = vmul.f32 %v6982, %v6989
    %v7001 = vadd.f32 %v6999, %v7000
    %v7002 = vtanh.pop %v7001
    %v7003 = vmul.f32 %v6995, %v7002
    %7004 = vst [vmem:[#allocation2] sm:$0x20] %v7003
    %v7006 = vrot.slane %v7003, 5
    %7008 = vmatprep.subr.mxu0 %v5665
    %7009 = vmatpush1.msra.mxu0 %v5664
    %7010 = vmatprep.subr.mxu0 %v5669
    %7011 = vmatpush1.msra.mxu0 %v5668
    %7012 = vmatprep.subr.mxu0 %v5673
    %7013 = vmatpush1.msra.mxu0 %v5672
    %7014 = vmatprep.subr.mxu0 %v5677
    %7015 = vmatpush1.msra.mxu0 %v5676
    %7016 = vmatprep.subr.mxu0 %v5681
    %7017 = vmatpush1.msra.mxu0 %v5680
    %7018 = vmatprep.subr.mxu0 %v5685
    %7019 = vmatpush1.msra.mxu0 %v5684
    %7020 = vmatprep.subr.mxu0 %v5689
    %7021 = vmatpush1.msra.mxu0 %v5688
    %7022 = vmatprep.subr.mxu0 %v5693
    %7023 = vmatpush1.msra.mxu0 %v5692
    %7024 = vmatprep.subr.mxu0 %v5697
    %7025 = vmatpush1.msra.mxu0 %v5696
    %7026 = vmatprep.subr.mxu0 %v5701
    %7027 = vmatpush1.msra.mxu0 %v5700
    %7028 = vmatprep.subr.mxu0 %v5705
    %7029 = vmatpush1.msra.mxu0 %v5704
    %7030 = vmatprep.subr.mxu0 %v5709
    %7031 = vmatpush1.msra.mxu0 %v5708
    %7032 = vmatprep.subr.mxu0 %v5713
    %7033 = vmatpush1.msra.mxu0 %v5712
    %7034 = vmatprep.subr.mxu0 %v5717
    %7035 = vmatpush1.msra.mxu0 %v5716
    %7036 = vmatprep.subr.mxu0 %v5721
    %7037 = vmatpush1.msra.mxu0 %v5720
    %7038 = vmatprep.subr.mxu0 %v5725
    %7039 = vmatpush1.msra.mxu0 %v5724
    %7040 = vmatprep.subr.mxu0 0.0
    %7041 = vmatpush1.msra.mxu0 0.0
    %7042 = vmatprep.subr.mxu0 0.0
    %7043 = vmatpush1.msra.mxu0 0.0
    %7044 = vmatprep.subr.mxu0 0.0
    %7045 = vmatpush1.msra.mxu0 0.0
    %7046 = vmatprep.subr.mxu0 0.0
    %7047 = vmatpush1.msra.mxu0 0.0
    %7048 = vmatprep.subr.mxu0 0.0
    %7049 = vmatpush1.msra.mxu0 0.0
    %7050 = vmatprep.subr.mxu0 0.0
    %7051 = vmatpush1.msra.mxu0 0.0
    %7052 = vmatprep.subr.mxu0 0.0
    %7053 = vmatpush1.msra.mxu0 0.0
    %7054 = vmatprep.subr.mxu0 0.0
    %7055 = vmatpush1.msra.mxu0 0.0
    %7056 = vmatprep.subr.mxu0 0.0
    %7057 = vmatpush1.msra.mxu0 0.0
    %7058 = vmatprep.subr.mxu0 0.0
    %7059 = vmatpush1.msra.mxu0 0.0
    %7060 = vmatprep.subr.mxu0 0.0
    %7061 = vmatpush1.msra.mxu0 0.0
    %7062 = vmatprep.subr.mxu0 0.0
    %7063 = vmatpush1.msra.mxu0 0.0
    %7064 = vmatprep.subr.mxu0 0.0
    %7065 = vmatpush1.msra.mxu0 0.0
    %7066 = vmatprep.subr.mxu0 0.0
    %7067 = vmatpush1.msra.mxu0 0.0
    %7068 = vmatprep.subr.mxu0 0.0
    %7069 = vmatpush1.msra.mxu0 0.0
    %7070 = vmatprep.subr.mxu0 0.0
    %7071 = vmatpush1.msra.mxu0 0.0
    %7072 = vmatprep.mubr.f32.mxu0 0.0
    %7073 = vmatmul.mubr.f32.gmra.mrb[0].mxu0 %v7006
    %v7074 = vpop.f32.mrb[0].mxu0
    %v7075 = vadd.f32 0.0, %v7074
    %v7076 = vpop.f32.mrb[0].mxu0
    %v7077 = vadd.f32 0.0, %v7076
    %7078 = vdwg.mxu0
    %7079 = vmatprep.subr.mxu0 %v5667
    %7080 = vmatpush1.msra.mxu0 %v5666
    %7081 = vmatprep.subr.mxu0 %v5671
    %7082 = vmatpush1.msra.mxu0 %v5670
    %7083 = vmatprep.subr.mxu0 %v5675
    %7084 = vmatpush1.msra.mxu0 %v5674
    %7085 = vmatprep.subr.mxu0 %v5679
    %7086 = vmatpush1.msra.mxu0 %v5678
    %7087 = vmatprep.subr.mxu0 %v5683
    %7088 = vmatpush1.msra.mxu0 %v5682
    %7089 = vmatprep.subr.mxu0 %v5687
    %7090 = vmatpush1.msra.mxu0 %v5686
    %7091 = vmatprep.subr.mxu0 %v5691
    %7092 = vmatpush1.msra.mxu0 %v5690
    %7093 = vmatprep.subr.mxu0 %v5695
    %7094 = vmatpush1.msra.mxu0 %v5694
    %7095 = vmatprep.subr.mxu0 %v5699
    %7096 = vmatpush1.msra.mxu0 %v5698
    %7097 = vmatprep.subr.mxu0 %v5703
    %7098 = vmatpush1.msra.mxu0 %v5702
    %7099 = vmatprep.subr.mxu0 %v5707
    %7100 = vmatpush1.msra.mxu0 %v5706
    %7101 = vmatprep.subr.mxu0 %v5711
    %7102 = vmatpush1.msra.mxu0 %v5710
    %7103 = vmatprep.subr.mxu0 %v5715
    %7104 = vmatpush1.msra.mxu0 %v5714
    %7105 = vmatprep.subr.mxu0 %v5719
    %7106 = vmatpush1.msra.mxu0 %v5718
    %7107 = vmatprep.subr.mxu0 %v5723
    %7108 = vmatpush1.msra.mxu0 %v5722
    %7109 = vmatprep.subr.mxu0 %v5727
    %7110 = vmatpush1.msra.mxu0 %v5726
    %7111 = vmatprep.subr.mxu0 0.0
    %7112 = vmatpush1.msra.mxu0 0.0
    %7113 = vmatprep.subr.mxu0 0.0
    %7114 = vmatpush1.msra.mxu0 0.0
    %7115 = vmatprep.subr.mxu0 0.0
    %7116 = vmatpush1.msra.mxu0 0.0
    %7117 = vmatprep.subr.mxu0 0.0
    %7118 = vmatpush1.msra.mxu0 0.0
    %7119 = vmatprep.subr.mxu0 0.0
    %7120 = vmatpush1.msra.mxu0 0.0
    %7121 = vmatprep.subr.mxu0 0.0
    %7122 = vmatpush1.msra.mxu0 0.0
    %7123 = vmatprep.subr.mxu0 0.0
    %7124 = vmatpush1.msra.mxu0 0.0
    %7125 = vmatprep.subr.mxu0 0.0
    %7126 = vmatpush1.msra.mxu0 0.0
    %7127 = vmatprep.subr.mxu0 0.0
    %7128 = vmatpush1.msra.mxu0 0.0
    %7129 = vmatprep.subr.mxu0 0.0
    %7130 = vmatpush1.msra.mxu0 0.0
    %7131 = vmatprep.subr.mxu0 0.0
    %7132 = vmatpush1.msra.mxu0 0.0
    %7133 = vmatprep.subr.mxu0 0.0
    %7134 = vmatpush1.msra.mxu0 0.0
    %7135 = vmatprep.subr.mxu0 0.0
    %7136 = vmatpush1.msra.mxu0 0.0
    %7137 = vmatprep.subr.mxu0 0.0
    %7138 = vmatpush1.msra.mxu0 0.0
    %7139 = vmatprep.subr.mxu0 0.0
    %7140 = vmatpush1.msra.mxu0 0.0
    %7141 = vmatprep.subr.mxu0 0.0
    %7142 = vmatpush1.msra.mxu0 0.0
    %7143 = vmatprep.mubr.f32.mxu0 0.0
    %7144 = vmatmul.mubr.f32.gmra.mrb[0].mxu0 %v7006
    %v7145 = vpop.f32.mrb[0].mxu0
    %v7146 = vadd.f32 0.0, %v7145
    %v7147 = vpop.f32.mrb[0].mxu0
    %v7148 = vadd.f32 0.0, %v7147
    %7149 = vdwg.mxu0
    %v7154 = vrot.slane %v7075, 2
    %v7155 = vrot.slane %v7077, 2
    %v7156 = vrot.slane %v7146, 2
    %v7157 = vrot.slane %v7148, 2
    %v7162 = vadd.f32 %v5817, %v7154
    %v7163 = vadd.f32 %v5819, %v7155
    %v7164 = vadd.f32 %v5888, %v7156
    %v7165 = vadd.f32 %v5890, %v7157
    %v7166 = vxor.u32 %v7162, 2147483648
    %v7167 = vmul.f32 %v7166, 1.442695
    %v7168 = vpow.pop %v7167
    %v7169 = vadd.f32 %v7168, 1.0
    %v7170 = vrcp.pop %v7169
    %v7171 = vmul.f32 1.0, %v7170
    %v7172 = vxor.u32 %v7163, 2147483648
    %v7173 = vmul.f32 %v7172, 1.442695
    %v7174 = vpow.pop %v7173
    %v7175 = vadd.f32 %v7174, 1.0
    %v7176 = vrcp.pop %v7175
    %v7177 = vmul.f32 1.0, %v7176
    %v7178 = vtanh.pop %v7164
    %v7179 = vxor.u32 %v7165, 2147483648
    %v7180 = vmul.f32 %v7179, 1.442695
    %v7181 = vpow.pop %v7180
    %v7182 = vadd.f32 %v7181, 1.0
    %v7183 = vrcp.pop %v7182
    %v7184 = vmul.f32 1.0, %v7183
    %v7186 = vrot.slane %v7001, 7
    %v7188 = vmul.f32 %v7177, %v7186
    %v7189 = vmul.f32 %v7171, %v7178
    %v7190 = vadd.f32 %v7188, %v7189
    %v7191 = vtanh.pop %v7190
    %v7192 = vmul.f32 %v7184, %v7191
    %7193 = vst [vmem:[#allocation2] sm:$0x40] %v7192
    %v7195 = vrot.slane %v7192, 6
    %7197 = vmatprep.subr.mxu0 %v5665
    %7198 = vmatpush1.msra.mxu0 %v5664
    %7199 = vmatprep.subr.mxu0 %v5669
    %7200 = vmatpush1.msra.mxu0 %v5668
    %7201 = vmatprep.subr.mxu0 %v5673
    %7202 = vmatpush1.msra.mxu0 %v5672
    %7203 = vmatprep.subr.mxu0 %v5677
    %7204 = vmatpush1.msra.mxu0 %v5676
    %7205 = vmatprep.subr.mxu0 %v5681
    %7206 = vmatpush1.msra.mxu0 %v5680
    %7207 = vmatprep.subr.mxu0 %v5685
    %7208 = vmatpush1.msra.mxu0 %v5684
    %7209 = vmatprep.subr.mxu0 %v5689
    %7210 = vmatpush1.msra.mxu0 %v5688
    %7211 = vmatprep.subr.mxu0 %v5693
    %7212 = vmatpush1.msra.mxu0 %v5692
    %7213 = vmatprep.subr.mxu0 %v5697
    %7214 = vmatpush1.msra.mxu0 %v5696
    %7215 = vmatprep.subr.mxu0 %v5701
    %7216 = vmatpush1.msra.mxu0 %v5700
    %7217 = vmatprep.subr.mxu0 %v5705
    %7218 = vmatpush1.msra.mxu0 %v5704
    %7219 = vmatprep.subr.mxu0 %v5709
    %7220 = vmatpush1.msra.mxu0 %v5708
    %7221 = vmatprep.subr.mxu0 %v5713
    %7222 = vmatpush1.msra.mxu0 %v5712
    %7223 = vmatprep.subr.mxu0 %v5717
    %7224 = vmatpush1.msra.mxu0 %v5716
    %7225 = vmatprep.subr.mxu0 %v5721
    %7226 = vmatpush1.msra.mxu0 %v5720
    %7227 = vmatprep.subr.mxu0 %v5725
    %7228 = vmatpush1.msra.mxu0 %v5724
    %7229 = vmatprep.subr.mxu0 0.0
    %7230 = vmatpush1.msra.mxu0 0.0
    %7231 = vmatprep.subr.mxu0 0.0
    %7232 = vmatpush1.msra.mxu0 0.0
    %7233 = vmatprep.subr.mxu0 0.0
    %7234 = vmatpush1.msra.mxu0 0.0
    %7235 = vmatprep.subr.mxu0 0.0
    %7236 = vmatpush1.msra.mxu0 0.0
    %7237 = vmatprep.subr.mxu0 0.0
    %7238 = vmatpush1.msra.mxu0 0.0
    %7239 = vmatprep.subr.mxu0 0.0
    %7240 = vmatpush1.msra.mxu0 0.0
    %7241 = vmatprep.subr.mxu0 0.0
    %7242 = vmatpush1.msra.mxu0 0.0
    %7243 = vmatprep.subr.mxu0 0.0
    %7244 = vmatpush1.msra.mxu0 0.0
    %7245 = vmatprep.subr.mxu0 0.0
    %7246 = vmatpush1.msra.mxu0 0.0
    %7247 = vmatprep.subr.mxu0 0.0
    %7248 = vmatpush1.msra.mxu0 0.0
    %7249 = vmatprep.subr.mxu0 0.0
    %7250 = vmatpush1.msra.mxu0 0.0
    %7251 = vmatprep.subr.mxu0 0.0
    %7252 = vmatpush1.msra.mxu0 0.0
    %7253 = vmatprep.subr.mxu0 0.0
    %7254 = vmatpush1.msra.mxu0 0.0
    %7255 = vmatprep.subr.mxu0 0.0
    %7256 = vmatpush1.msra.mxu0 0.0
    %7257 = vmatprep.subr.mxu0 0.0
    %7258 = vmatpush1.msra.mxu0 0.0
    %7259 = vmatprep.subr.mxu0 0.0
    %7260 = vmatpush1.msra.mxu0 0.0
    %7261 = vmatprep.mubr.f32.mxu0 0.0
    %7262 = vmatmul.mubr.f32.gmra.mrb[0].mxu0 %v7195
    %v7263 = vpop.f32.mrb[0].mxu0
    %v7264 = vadd.f32 0.0, %v7263
    %v7265 = vpop.f32.mrb[0].mxu0
    %v7266 = vadd.f32 0.0, %v7265
    %7267 = vdwg.mxu0
    %7268 = vmatprep.subr.mxu0 %v5667
    %7269 = vmatpush1.msra.mxu0 %v5666
    %7270 = vmatprep.subr.mxu0 %v5671
    %7271 = vmatpush1.msra.mxu0 %v5670
    %7272 = vmatprep.subr.mxu0 %v5675
    %7273 = vmatpush1.msra.mxu0 %v5674
    %7274 = vmatprep.subr.mxu0 %v5679
    %7275 = vmatpush1.msra.mxu0 %v5678
    %7276 = vmatprep.subr.mxu0 %v5683
    %7277 = vmatpush1.msra.mxu0 %v5682
    %7278 = vmatprep.subr.mxu0 %v5687
    %7279 = vmatpush1.msra.mxu0 %v5686
    %7280 = vmatprep.subr.mxu0 %v5691
    %7281 = vmatpush1.msra.mxu0 %v5690
    %7282 = vmatprep.subr.mxu0 %v5695
    %7283 = vmatpush1.msra.mxu0 %v5694
    %7284 = vmatprep.subr.mxu0 %v5699
    %7285 = vmatpush1.msra.mxu0 %v5698
    %7286 = vmatprep.subr.mxu0 %v5703
    %7287 = vmatpush1.msra.mxu0 %v5702
    %7288 = vmatprep.subr.mxu0 %v5707
    %7289 = vmatpush1.msra.mxu0 %v5706
    %7290 = vmatprep.subr.mxu0 %v5711
    %7291 = vmatpush1.msra.mxu0 %v5710
    %7292 = vmatprep.subr.mxu0 %v5715
    %7293 = vmatpush1.msra.mxu0 %v5714
    %7294 = vmatprep.subr.mxu0 %v5719
    %7295 = vmatpush1.msra.mxu0 %v5718
    %7296 = vmatprep.subr.mxu0 %v5723
    %7297 = vmatpush1.msra.mxu0 %v5722
    %7298 = vmatprep.subr.mxu0 %v5727
    %7299 = vmatpush1.msra.mxu0 %v5726
    %7300 = vmatprep.subr.mxu0 0.0
    %7301 = vmatpush1.msra.mxu0 0.0
    %7302 = vmatprep.subr.mxu0 0.0
    %7303 = vmatpush1.msra.mxu0 0.0
    %7304 = vmatprep.subr.mxu0 0.0
    %7305 = vmatpush1.msra.mxu0 0.0
    %7306 = vmatprep.subr.mxu0 0.0
    %7307 = vmatpush1.msra.mxu0 0.0
    %7308 = vmatprep.subr.mxu0 0.0
    %7309 = vmatpush1.msra.mxu0 0.0
    %7310 = vmatprep.subr.mxu0 0.0
    %7311 = vmatpush1.msra.mxu0 0.0
    %7312 = vmatprep.subr.mxu0 0.0
    %7313 = vmatpush1.msra.mxu0 0.0
    %7314 = vmatprep.subr.mxu0 0.0
    %7315 = vmatpush1.msra.mxu0 0.0
    %7316 = vmatprep.subr.mxu0 0.0
    %7317 = vmatpush1.msra.mxu0 0.0
    %7318 = vmatprep.subr.mxu0 0.0
    %7319 = vmatpush1.msra.mxu0 0.0
    %7320 = vmatprep.subr.mxu0 0.0
    %7321 = vmatpush1.msra.mxu0 0.0
    %7322 = vmatprep.subr.mxu0 0.0
    %7323 = vmatpush1.msra.mxu0 0.0
    %7324 = vmatprep.subr.mxu0 0.0
    %7325 = vmatpush1.msra.mxu0 0.0
    %7326 = vmatprep.subr.mxu0 0.0
    %7327 = vmatpush1.msra.mxu0 0.0
    %7328 = vmatprep.subr.mxu0 0.0
    %7329 = vmatpush1.msra.mxu0 0.0
    %7330 = vmatprep.subr.mxu0 0.0
    %7331 = vmatpush1.msra.mxu0 0.0
    %7332 = vmatprep.mubr.f32.mxu0 0.0
    %7333 = vmatmul.mubr.f32.gmra.mrb[0].mxu0 %v7195
    %v7334 = vpop.f32.mrb[0].mxu0
    %v7335 = vadd.f32 0.0, %v7334
    %v7336 = vpop.f32.mrb[0].mxu0
    %v7337 = vadd.f32 0.0, %v7336
    %7338 = vdwg.mxu0
    %v7343 = vrot.slane %v7264, 1
    %v7344 = vrot.slane %v7266, 1
    %v7345 = vrot.slane %v7335, 1
    %v7346 = vrot.slane %v7337, 1
    %v7351 = vadd.f32 %v5817, %v7343
    %v7352 = vadd.f32 %v5819, %v7344
    %v7353 = vadd.f32 %v5888, %v7345
    %v7354 = vadd.f32 %v5890, %v7346
    %v7355 = vxor.u32 %v7351, 2147483648
    %v7356 = vmul.f32 %v7355, 1.442695
    %v7357 = vpow.pop %v7356
    %v7358 = vadd.f32 %v7357, 1.0
    %v7359 = vrcp.pop %v7358
    %v7360 = vmul.f32 1.0, %v7359
    %v7361 = vxor.u32 %v7352, 2147483648
    %v7362 = vmul.f32 %v7361, 1.442695
    %v7363 = vpow.pop %v7362
    %v7364 = vadd.f32 %v7363, 1.0
    %v7365 = vrcp.pop %v7364
    %v7366 = vmul.f32 1.0, %v7365
    %v7367 = vtanh.pop %v7353
    %v7368 = vxor.u32 %v7354, 2147483648
    %v7369 = vmul.f32 %v7368, 1.442695
    %v7370 = vpow.pop %v7369
    %v7371 = vadd.f32 %v7370, 1.0
    %v7372 = vrcp.pop %v7371
    %v7373 = vmul.f32 1.0, %v7372
    %v7375 = vrot.slane %v7190, 7
    %v7377 = vmul.f32 %v7366, %v7375
    %v7378 = vmul.f32 %v7360, %v7367
    %v7379 = vadd.f32 %v7377, %v7378
    %v7380 = vtanh.pop %v7379
    %v7381 = vmul.f32 %v7373, %v7380
    %7382 = vst [vmem:[#allocation2] sm:$0x80] %v7381
    %v7383 = vld [vmem:[#allocation2] sm:$0xff]
    %7384 = vmatprep.subr.mxu0 %v89
    %7385 = vmatpush1.msra.mxu0 %v88
    %7386 = vmatprep.subr.mxu0 %v91
    %7387 = vmatpush1.msra.mxu0 %v90
    %7388 = vmatprep.subr.mxu0 %v93
    %7389 = vmatpush1.msra.mxu0 %v92
    %7390 = vmatprep.subr.mxu0 %v95
    %7391 = vmatpush1.msra.mxu0 %v94
    %7392 = vmatprep.subr.mxu0 %v97
    %7393 = vmatpush1.msra.mxu0 %v96
    %7394 = vmatprep.subr.mxu0 %v99
    %7395 = vmatpush1.msra.mxu0 %v98
    %7396 = vmatprep.subr.mxu0 %v101
    %7397 = vmatpush1.msra.mxu0 %v100
    %7398 = vmatprep.subr.mxu0 %v103
    %7399 = vmatpush1.msra.mxu0 %v102
    %7400 = vmatprep.subr.mxu0 %v105
    %7401 = vmatpush1.msra.mxu0 %v104
    %7402 = vmatprep.subr.mxu0 %v107
    %7403 = vmatpush1.msra.mxu0 %v106
    %7404 = vmatprep.subr.mxu0 %v109
    %7405 = vmatpush1.msra.mxu0 %v108
    %7406 = vmatprep.subr.mxu0 %v111
    %7407 = vmatpush1.msra.mxu0 %v110
    %7408 = vmatprep.subr.mxu0 %v113
    %7409 = vmatpush1.msra.mxu0 %v112
    %7410 = vmatprep.subr.mxu0 %v115
    %7411 = vmatpush1.msra.mxu0 %v114
    %7412 = vmatprep.subr.mxu0 %v117
    %7413 = vmatpush1.msra.mxu0 %v116
    %7414 = vmatprep.subr.mxu0 %v119
    %7415 = vmatpush1.msra.mxu0 %v118
    %7416 = vmatprep.subr.mxu0 0.0
    %7417 = vmatpush1.msra.mxu0 0.0
    %7418 = vmatprep.subr.mxu0 0.0
    %7419 = vmatpush1.msra.mxu0 0.0
    %7420 = vmatprep.subr.mxu0 0.0
    %7421 = vmatpush1.msra.mxu0 0.0
    %7422 = vmatprep.subr.mxu0 0.0
    %7423 = vmatpush1.msra.mxu0 0.0
    %7424 = vmatprep.subr.mxu0 0.0
    %7425 = vmatpush1.msra.mxu0 0.0
    %7426 = vmatprep.subr.mxu0 0.0
    %7427 = vmatpush1.msra.mxu0 0.0
    %7428 = vmatprep.subr.mxu0 0.0
    %7429 = vmatpush1.msra.mxu0 0.0
    %7430 = vmatprep.subr.mxu0 0.0
    %7431 = vmatpush1.msra.mxu0 0.0
    %7432 = vmatprep.subr.mxu0 0.0
    %7433 = vmatpush1.msra.mxu0 0.0
    %7434 = vmatprep.subr.mxu0 0.0
    %7435 = vmatpush1.msra.mxu0 0.0
    %7436 = vmatprep.subr.mxu0 0.0
    %7437 = vmatpush1.msra.mxu0 0.0
    %7438 = vmatprep.subr.mxu0 0.0
    %7439 = vmatpush1.msra.mxu0 0.0
    %7440 = vmatprep.subr.mxu0 0.0
    %7441 = vmatpush1.msra.mxu0 0.0
    %7442 = vmatprep.subr.mxu0 0.0
    %7443 = vmatpush1.msra.mxu0 0.0
    %7444 = vmatprep.subr.mxu0 0.0
    %7445 = vmatpush1.msra.mxu0 0.0
    %7446 = vmatprep.subr.mxu0 0.0
    %7447 = vmatpush1.msra.mxu0 0.0
    %7448 = vmatprep.mubr.f32.mxu0 0.0
    %7449 = vmatmul.mubr.f32.gmra.mrb[0].mxu0 %v7383
    %v7450 = vpop.f32.mrb[0].mxu0
    %v7451 = vadd.f32 %v3716, %v7450
    %v7452 = vpop.f32.mrb[0].mxu0
    %v7453 = vadd.f32 %v3720, %v7452
    %7454 = vdwg.mxu0
    %v7455 = vmax.f32 %v3790, %v7451
    %v7456 = vmax.f32 %v3792, %v7453
    %v7457 = vsub.f32 %v3790, %v7455
    %v7458 = vsub.f32 %v3792, %v7456
    %v7459 = vmul.f32 %v7457, 1.442695
    %v7460 = vpow.pop %v7459
    %v7461 = vmul.f32 %v7458, 1.442695
    %v7462 = vpow.pop %v7461
    %v7463 = vsub.f32 %v7451, %v7455
    %v7464 = vsub.f32 %v7453, %v7456
    %v7465 = vmul.f32 %v7463, 1.442695
    %v7466 = vpow.pop %v7465
    %v7467 = vmul.f32 %v7464, 1.442695
    %v7468 = vpow.pop %v7467
    %v7469 = vadd.f32 %v7460, %v7466
    %v7470 = vadd.f32 %v7462, %v7468
    %v7471 = vrcp.pop %v7469
    %v7472 = vmul.f32 1.0, %v7471
    %v7473 = vrcp.pop %v7470
    %v7474 = vmul.f32 1.0, %v7473
    %v7475 = vmul.f32 %v7460, %v7472
    %v7476 = vmul.f32 %v7462, %v7474
    %7477 = vst [vmem:[#allocation11] sm:$0xff] %v7475
    %7478 = vst.msk [vmem:[#allocation11 + $0x8] sm:$0xff] %vm277, %v7476
    %v7479 = vmul.f32 %v7466, %v7472
    %v7480 = vmul.f32 %v7468, %v7474
    %s7481 = scalar_lea.vmem [#allocation11], 16
    %7482 = vst [vmem:[%s7481] sm:$0xff] %v7479
    %7483 = vst.msk [vmem:[%s7481 + $0x8] sm:$0xff] %vm277, %v7480
    // Predicated region
    $region54: #{model_forward.1} parent=1 // pred_check
      _
    $region55: #{model_forward.1} parent=1 // pred_check_branch
      %7485 = sbr.rel (0) target = $region57
    $region56: #{model_forward.1} parent=1 // pred_region
      %s7487 = ssub.s32 512, 512
      %7488 = vsyncadd [#allocation5], %s7487
      %s7489 = sshll.u32 [#allocation11], 4
      %s7490 = int_to_ptr.vmem [resolvable:$true] %s7489
      %7495 = dma.vmem_to_hbm [thread:$0]  %s7490, 512, %s9, [#allocation5], 256, 256, 16
    $region57: #{model_forward.1} parent=1 // pred_fallthru
      _
    // Predicated region
    $region58: #{model_forward.1} parent=1 // pred_check
      _
    $region59: #{model_forward.1} parent=1 // pred_check_branch
      %7497 = sbr.rel (0) target = $region61
    $region60: #{model_forward.1} parent=1 // pred_region
      %7498 = dma.done [#allocation5], 512
    $region61: #{model_forward.1} parent=1 // pred_fallthru
      _
    %7499 = vsyncpa [#allocation4], 1
    %7500 = vsyncpa [#allocation7], 1
    %7501 = vsyncpa [#allocation10], 1
    %7502 = vsyncpa [#allocation5], 1

</llo_original>
